<compile_context>
chip_gen: v7x
topology: tpu7x:2x2x1
jax: 0.10.0
libtpu: 0.0.40
codegen_flags: <defaults>
</compile_context>

<pallas_src>
import jax
import jax.numpy as jnp
from jax import lax
from jax.experimental import pallas as pl
from jax.experimental.pallas import tpu as pltpu

_BN_EPS = 1e-5


# ---------------------------------------------------------------------------
# Fused kernel: conv1+bn1+relu -> conv2+bn2 (+ identity residual) -> relu
# for one NHWC image block.
# ---------------------------------------------------------------------------
def _res_block_kernel(xp_ref, w1_ref, b1_ref, w2_ref, b2_ref, eye_ref,
                      o_ref, y1_ref):
    # xp_ref : (H+2, W+2, Cin)  bf16   zero-padded input image (halo)
    # w1_ref : (9, Cin, Cp)     bf16   conv1 taps, BN1 scale pre-folded
    # b1_ref : (1, Cp)          f32    BN1 bias
    # w2_ref : (9, Cp, Cp)      bf16   conv2 taps, BN2 scale pre-folded
    # b2_ref : (1, Cp)          f32    BN2 bias
    # eye_ref: (Cin, Cp)        bf16   identity -> residual add as a GEMM
    # o_ref  : (H, W, Cp)       f32    output block (lane-dense: Cp % 128 == 0)
    # y1_ref : (H+2, W+2, Cp)   f32    VMEM scratch, halo'ed intermediate
    h, w, cp = o_ref.shape
    c_in = xp_ref.shape[-1]
    hw = h * w

    # ---- conv1 (3x3, pad=1) + bn1 + relu : nine tap-GEMMs on the MXU -------
    acc = jnp.zeros((hw, cp), jnp.float32)
    res_tap = None
    for t in range(9):
        kh, kw = divmod(t, 3)
        tap = xp_ref[kh:kh + h, kw:kw + w, :].reshape(hw, c_in)
        if t == 4:                      # centre tap == the identity residual
            res_tap = tap
        acc = acc + jnp.dot(tap, w1_ref[t], preferred_element_type=jnp.float32)
    y1 = jnp.maximum(acc + b1_ref[...], 0.0)

    # Stage y1 with a zero halo in VMEM (the activation never touches HBM).
    y1_ref[...] = jnp.zeros_like(y1_ref)
    y1_ref[1:h + 1, 1:w + 1, :] = y1.reshape(h, w, cp)

    # ---- conv2 + bn2 + residual + relu --------------------------------------
    acc = jnp.zeros((hw, cp), jnp.float32)
    for t in range(9):
        kh, kw = divmod(t, 3)
        tap = y1_ref[kh:kh + h, kw:kw + w, :].reshape(hw, cp)
        acc = acc + jnp.dot(tap.astype(jnp.bfloat16), w2_ref[t],
                            preferred_element_type=jnp.float32)
    acc = acc + jnp.dot(res_tap, eye_ref[...],
                        preferred_element_type=jnp.float32)
    out = jnp.maximum(acc + b2_ref[...], 0.0)
    o_ref[...] = out.reshape(h, w, cp).astype(o_ref.dtype)


# ---------------------------------------------------------------------------
# Wrapper-side parameter prep: fold BN into taps, pad Cout to 128 lanes.
# ---------------------------------------------------------------------------
def _fold_conv_bn_taps(w_oihw, gamma, beta, mean, var, c_in_pad, c_out_pad,
                       eps=_BN_EPS):
    """-> taps (9, c_in_pad, c_out_pad) bf16, bias (1, c_out_pad) f32.

    BN (eval mode, running stats) is folded: scale into the conv weights,
    remaining bias applied in the kernel epilogue.  Padded channels are
    exactly zero so lane padding cannot leak through the ReLU.
    """
    c_out, c_in = w_oihw.shape[0], w_oihw.shape[1]
    scale = gamma / jnp.sqrt(var + eps)                       # (c_out,)
    bias = beta - mean * scale                                # (c_out,)
    taps = jnp.transpose(w_oihw, (2, 3, 1, 0)) * scale[None, None, None, :]
    taps = taps.reshape(9, c_in, c_out)                       # t = kh*3 + kw
    taps = jnp.pad(taps, ((0, 0), (0, c_in_pad - c_in), (0, c_out_pad - c_out)))
    bias = jnp.pad(bias, (0, c_out_pad - c_out))
    return taps.astype(jnp.bfloat16), bias[None, :].astype(jnp.float32)


# ---------------------------------------------------------------------------
# Full module forward (NCHW in / NCHW out, like the PyTorch module).
# ---------------------------------------------------------------------------
@jax.jit
def basic_res_block_forward(x_nchw, params):
    # TODO(synk): stride != 1 and a non-None `downsample` module are not
    # implemented; the default config (stride=1, downsample=None -> residual=x)
    # is what is covered here.  BN uses eval-mode running statistics.
    n, c_in, h, w = x_nchw.shape
    c_out = params["w1"].shape[0]
    assert c_in == c_out, "identity residual (downsample=None) needs nIn == nOut"
    cp = -(-c_out // 128) * 128                    # lane-dense output channels

    # Cheap layout plumbing (O(input)): NCHW -> NHWC, +1 halo, cast to bf16.
    x_nhwc = jnp.transpose(x_nchw, (0, 2, 3, 1))
    xp = jnp.pad(x_nhwc, ((0, 0), (1, 1), (1, 1), (0, 0))).astype(jnp.bfloat16)

    w1, b1 = _fold_conv_bn_taps(params["w1"], params["g1"], params["beta1"],
                                params["m1"], params["v1"], c_in, cp)
    w2, b2 = _fold_conv_bn_taps(params["w2"], params["g2"], params["beta2"],
                                params["m2"], params["v2"], cp, cp)
    eye = jnp.eye(c_in, cp, dtype=jnp.bfloat16)    # residual add on the MXU

    # TODO(synk): for large H*W, tile halo'ed row blocks within an image
    # instead of one image per grid step, to bound per-step VMEM on v7x.
    out = pl.pallas_call(
        _res_block_kernel,
        out_shape=jax.ShapeDtypeStruct((n, h, w, cp), jnp.float32),
        grid_spec=pltpu.PrefetchScalarGridSpec(
            num_scalar_prefetch=0,
            grid=(n,),
            in_specs=[
                pl.BlockSpec((None, h + 2, w + 2, c_in),
                             lambda b: (b, 0, 0, 0)),
                pl.BlockSpec((9, c_in, cp), lambda b: (0, 0, 0)),   # w1 (const)
                pl.BlockSpec((1, cp), lambda b: (0, 0)),            # b1 (const)
                pl.BlockSpec((9, cp, cp), lambda b: (0, 0, 0)),     # w2 (const)
                pl.BlockSpec((1, cp), lambda b: (0, 0)),            # b2 (const)
                pl.BlockSpec((c_in, cp), lambda b: (0, 0)),         # eye (const)
            ],
            out_specs=pl.BlockSpec((None, h, w, cp), lambda b: (b, 0, 0, 0)),
            scratch_shapes=[pltpu.VMEM((h + 2, w + 2, cp), jnp.float32)],
        ),
        compiler_params=pltpu.CompilerParams(
            dimension_semantics=("parallel",),      # shard the batch across TCs
            vmem_limit_bytes=32 * 1024 * 1024,
        ),
    )(xp, w1, b1, w2, b2, eye)

    out = out[..., :c_out]                          # drop lane padding
    return jnp.transpose(out, (0, 3, 1, 2))         # back to NCHW


# ---------------------------------------------------------------------------
# Pure-JAX reference (lax.conv) for verification.
# ---------------------------------------------------------------------------
def reference_forward(x, params):
    def conv(inp, wgt):
        return lax.conv_general_dilated(
            inp, wgt, window_strides=(1, 1), padding=((1, 1), (1, 1)),
            dimension_numbers=("NCHW", "OIHW", "NCHW"))

    def bn(y, g, b, m, v):
        g, b, m, v = (a[None, :, None, None] for a in (g, b, m, v))
        return (y - m) / jnp.sqrt(v + _BN_EPS) * g + b

    h = jax.nn.relu(bn(conv(x, params["w1"]), params["g1"], params["beta1"],
                       params["m1"], params["v1"]))
    h = bn(conv(h, params["w2"]), params["g2"], params["beta2"],
           params["m2"], params["v2"])
    return jax.nn.relu(h + x)


# ---------------------------------------------------------------------------
# Deterministic parameter init (shapes follow nn.Conv2d / nn.BatchNorm2d).
# ---------------------------------------------------------------------------
def init_params(key, n_in, n_out):
    ks = jax.random.split(key, 10)
    k1 = 1.0 / jnp.sqrt(n_in * 9.0)
    k2 = 1.0 / jnp.sqrt(n_out * 9.0)
    u = lambda k, shp, lo, hi: jax.random.uniform(k, shp, jnp.float32, lo, hi)
    nrm = lambda k, shp: 0.1 * jax.random.normal(k, shp, jnp.float32)
    return dict(
        w1=u(ks[0], (n_out, n_in, 3, 3), -k1, k1),
        g1=u(ks[1], (n_out,), 0.5, 1.5),
        beta1=nrm(ks[2], (n_out,)),
        m1=nrm(ks[3], (n_out,)),
        v1=u(ks[4], (n_out,), 0.5, 1.5),
        w2=u(ks[5], (n_out, n_out, 3, 3), -k2, k2),
        g2=u(ks[6], (n_out,), 0.5, 1.5),
        beta2=nrm(ks[7], (n_out,)),
        m2=nrm(ks[8], (n_out,)),
        v2=u(ks[9], (n_out,), 0.5, 1.5),
    )


if __name__ == "__main__":
    N, nIn, nOut, H, W = 2, 4, 4, 16, 16   # downsample=None requires nIn == nOut

    key = jax.random.PRNGKey(0)
    kx, kp = jax.random.split(key)
    x = jax.random.normal(kx, (N, nIn, H, W), jnp.float32)
    params = init_params(kp, nIn, nOut)

    out = jax.block_until_ready(basic_res_block_forward(x, params))
    assert out.shape == (N, nOut, H, W), out.shape

    ref = jax.block_until_ready(reference_forward(x, params))
    max_err = float(jnp.max(jnp.abs(out - ref)))
    # bf16 operands with f32 accumulation -> ~1e-2 level absolute error.
    assert jnp.allclose(out, ref, atol=7e-2, rtol=7e-2), max_err

    print("KERNEL_OK")
</pallas_src>

<mosaic_0001>
module attributes {stable_mosaic.version = 11 : i64} {
  func.func @_res_block_kernel(%arg0: i32, %arg1: memref<1x18x18x4xbf16, #tpu.memory_space<vmem>>, %arg2: memref<9x4x128xbf16, #tpu.memory_space<vmem>>, %arg3: memref<1x128xf32, #tpu.memory_space<vmem>>, %arg4: memref<9x128x128xbf16, #tpu.memory_space<vmem>>, %arg5: memref<1x128xf32, #tpu.memory_space<vmem>>, %arg6: memref<4x128xbf16, #tpu.memory_space<vmem>>, %arg7: memref<1x16x16x128xf32, #tpu.memory_space<vmem>>, %arg8: memref<18x18x128xf32, #tpu.memory_space<vmem>>) attributes {dimension_semantics = [#tpu.dimension_semantics<parallel>], iteration_bounds = array<i64: 2>, scalar_prefetch = 0 : i64, scratch_operands = 1 : i64, tpu.core_type = #tpu.core_type<tc>, window_params = [{transform_indices = @transform_0, window_bounds = array<i64: 1, 18, 18, 4>}, {pipeline_mode = #tpu.pipeline_mode<synchronous>, transform_indices = @transform_1, window_bounds = array<i64: 9, 4, 128>}, {pipeline_mode = #tpu.pipeline_mode<synchronous>, transform_indices = @transform_2, window_bounds = array<i64: 1, 128>}, {pipeline_mode = #tpu.pipeline_mode<synchronous>, transform_indices = @transform_3, window_bounds = array<i64: 9, 128, 128>}, {pipeline_mode = #tpu.pipeline_mode<synchronous>, transform_indices = @transform_4, window_bounds = array<i64: 1, 128>}, {pipeline_mode = #tpu.pipeline_mode<synchronous>, transform_indices = @transform_5, window_bounds = array<i64: 4, 128>}, {transform_indices = @transform_6, window_bounds = array<i64: 1, 16, 16, 128>}]} {
    %cst = arith.constant 0.000000e+00 : f32
    %0 = vector.broadcast %cst : f32 to vector<256x128xf32>
    %c0 = arith.constant 0 : index
    %c0_0 = arith.constant 0 : index
    %c0_1 = arith.constant 0 : index
    %c0_2 = arith.constant 0 : index
    %1 = vector.load %arg1[%c0, %c0_0, %c0_1, %c0_2] : memref<1x18x18x4xbf16, #tpu.memory_space<vmem>>, vector<1x16x16x4xbf16>
    %2 = vector.shape_cast %1 : vector<1x16x16x4xbf16> to vector<16x16x4xbf16>
    %3 = vector.shape_cast %2 : vector<16x16x4xbf16> to vector<256x4xbf16>
    %c0_3 = arith.constant 0 : index
    %c0_4 = arith.constant 0 : index
    %c0_5 = arith.constant 0 : index
    %4 = vector.load %arg2[%c0_3, %c0_4, %c0_5] : memref<9x4x128xbf16, #tpu.memory_space<vmem>>, vector<1x4x128xbf16>
    %5 = vector.shape_cast %4 : vector<1x4x128xbf16> to vector<4x128xbf16>
    %cst_6 = arith.constant dense<0.000000e+00> : vector<256x128xf32>
    %6 = tpu.matmul %3, %5, %cst_6 {dimension_numbers = #tpu.dot_dimension_numbers<[1], [0], [0], [1], [0, 0, 1, 1], [], []>} : vector<256x4xbf16>, vector<4x128xbf16>, vector<256x128xf32> -> vector<256x128xf32>
    %7 = arith.addf %0, %6 : vector<256x128xf32>
    %c0_7 = arith.constant 0 : index
    %c0_8 = arith.constant 0 : index
    %c1 = arith.constant 1 : index
    %c0_9 = arith.constant 0 : index
    %8 = vector.load %arg1[%c0_7, %c0_8, %c1, %c0_9] : memref<1x18x18x4xbf16, #tpu.memory_space<vmem>>, vector<1x16x16x4xbf16>
    %9 = vector.shape_cast %8 : vector<1x16x16x4xbf16> to vector<16x16x4xbf16>
    %10 = vector.shape_cast %9 : vector<16x16x4xbf16> to vector<256x4xbf16>
    %c1_10 = arith.constant 1 : index
    %c0_11 = arith.constant 0 : index
    %c0_12 = arith.constant 0 : index
    %11 = vector.load %arg2[%c1_10, %c0_11, %c0_12] : memref<9x4x128xbf16, #tpu.memory_space<vmem>>, vector<1x4x128xbf16>
    %12 = vector.shape_cast %11 : vector<1x4x128xbf16> to vector<4x128xbf16>
    %cst_13 = arith.constant dense<0.000000e+00> : vector<256x128xf32>
    %13 = tpu.matmul %10, %12, %cst_13 {dimension_numbers = #tpu.dot_dimension_numbers<[1], [0], [0], [1], [0, 0, 1, 1], [], []>} : vector<256x4xbf16>, vector<4x128xbf16>, vector<256x128xf32> -> vector<256x128xf32>
    %14 = arith.addf %7, %13 : vector<256x128xf32>
    %c0_14 = arith.constant 0 : index
    %c0_15 = arith.constant 0 : index
    %c2 = arith.constant 2 : index
    %c0_16 = arith.constant 0 : index
    %15 = vector.load %arg1[%c0_14, %c0_15, %c2, %c0_16] : memref<1x18x18x4xbf16, #tpu.memory_space<vmem>>, vector<1x16x16x4xbf16>
    %16 = vector.shape_cast %15 : vector<1x16x16x4xbf16> to vector<16x16x4xbf16>
    %17 = vector.shape_cast %16 : vector<16x16x4xbf16> to vector<256x4xbf16>
    %c2_17 = arith.constant 2 : index
    %c0_18 = arith.constant 0 : index
    %c0_19 = arith.constant 0 : index
    %18 = vector.load %arg2[%c2_17, %c0_18, %c0_19] : memref<9x4x128xbf16, #tpu.memory_space<vmem>>, vector<1x4x128xbf16>
    %19 = vector.shape_cast %18 : vector<1x4x128xbf16> to vector<4x128xbf16>
    %cst_20 = arith.constant dense<0.000000e+00> : vector<256x128xf32>
    %20 = tpu.matmul %17, %19, %cst_20 {dimension_numbers = #tpu.dot_dimension_numbers<[1], [0], [0], [1], [0, 0, 1, 1], [], []>} : vector<256x4xbf16>, vector<4x128xbf16>, vector<256x128xf32> -> vector<256x128xf32>
    %21 = arith.addf %14, %20 : vector<256x128xf32>
    %c0_21 = arith.constant 0 : index
    %c1_22 = arith.constant 1 : index
    %c0_23 = arith.constant 0 : index
    %c0_24 = arith.constant 0 : index
    %22 = vector.load %arg1[%c0_21, %c1_22, %c0_23, %c0_24] : memref<1x18x18x4xbf16, #tpu.memory_space<vmem>>, vector<1x16x16x4xbf16>
    %23 = vector.shape_cast %22 : vector<1x16x16x4xbf16> to vector<16x16x4xbf16>
    %24 = vector.shape_cast %23 : vector<16x16x4xbf16> to vector<256x4xbf16>
    %c3 = arith.constant 3 : index
    %c0_25 = arith.constant 0 : index
    %c0_26 = arith.constant 0 : index
    %25 = vector.load %arg2[%c3, %c0_25, %c0_26] : memref<9x4x128xbf16, #tpu.memory_space<vmem>>, vector<1x4x128xbf16>
    %26 = vector.shape_cast %25 : vector<1x4x128xbf16> to vector<4x128xbf16>
    %cst_27 = arith.constant dense<0.000000e+00> : vector<256x128xf32>
    %27 = tpu.matmul %24, %26, %cst_27 {dimension_numbers = #tpu.dot_dimension_numbers<[1], [0], [0], [1], [0, 0, 1, 1], [], []>} : vector<256x4xbf16>, vector<4x128xbf16>, vector<256x128xf32> -> vector<256x128xf32>
    %28 = arith.addf %21, %27 : vector<256x128xf32>
    %c0_28 = arith.constant 0 : index
    %c1_29 = arith.constant 1 : index
    %c1_30 = arith.constant 1 : index
    %c0_31 = arith.constant 0 : index
    %29 = vector.load %arg1[%c0_28, %c1_29, %c1_30, %c0_31] : memref<1x18x18x4xbf16, #tpu.memory_space<vmem>>, vector<1x16x16x4xbf16>
    %30 = vector.shape_cast %29 : vector<1x16x16x4xbf16> to vector<16x16x4xbf16>
    %31 = vector.shape_cast %30 : vector<16x16x4xbf16> to vector<256x4xbf16>
    %c4 = arith.constant 4 : index
    %c0_32 = arith.constant 0 : index
    %c0_33 = arith.constant 0 : index
    %32 = vector.load %arg2[%c4, %c0_32, %c0_33] : memref<9x4x128xbf16, #tpu.memory_space<vmem>>, vector<1x4x128xbf16>
    %33 = vector.shape_cast %32 : vector<1x4x128xbf16> to vector<4x128xbf16>
    %cst_34 = arith.constant dense<0.000000e+00> : vector<256x128xf32>
    %34 = tpu.matmul %31, %33, %cst_34 {dimension_numbers = #tpu.dot_dimension_numbers<[1], [0], [0], [1], [0, 0, 1, 1], [], []>} : vector<256x4xbf16>, vector<4x128xbf16>, vector<256x128xf32> -> vector<256x128xf32>
    %35 = arith.addf %28, %34 : vector<256x128xf32>
    %c0_35 = arith.constant 0 : index
    %c1_36 = arith.constant 1 : index
    %c2_37 = arith.constant 2 : index
    %c0_38 = arith.constant 0 : index
    %36 = vector.load %arg1[%c0_35, %c1_36, %c2_37, %c0_38] : memref<1x18x18x4xbf16, #tpu.memory_space<vmem>>, vector<1x16x16x4xbf16>
    %37 = vector.shape_cast %36 : vector<1x16x16x4xbf16> to vector<16x16x4xbf16>
    %38 = vector.shape_cast %37 : vector<16x16x4xbf16> to vector<256x4xbf16>
    %c5 = arith.constant 5 : index
    %c0_39 = arith.constant 0 : index
    %c0_40 = arith.constant 0 : index
    %39 = vector.load %arg2[%c5, %c0_39, %c0_40] : memref<9x4x128xbf16, #tpu.memory_space<vmem>>, vector<1x4x128xbf16>
    %40 = vector.shape_cast %39 : vector<1x4x128xbf16> to vector<4x128xbf16>
    %cst_41 = arith.constant dense<0.000000e+00> : vector<256x128xf32>
    %41 = tpu.matmul %38, %40, %cst_41 {dimension_numbers = #tpu.dot_dimension_numbers<[1], [0], [0], [1], [0, 0, 1, 1], [], []>} : vector<256x4xbf16>, vector<4x128xbf16>, vector<256x128xf32> -> vector<256x128xf32>
    %42 = arith.addf %35, %41 : vector<256x128xf32>
    %c0_42 = arith.constant 0 : index
    %c2_43 = arith.constant 2 : index
    %c0_44 = arith.constant 0 : index
    %c0_45 = arith.constant 0 : index
    %43 = vector.load %arg1[%c0_42, %c2_43, %c0_44, %c0_45] : memref<1x18x18x4xbf16, #tpu.memory_space<vmem>>, vector<1x16x16x4xbf16>
    %44 = vector.shape_cast %43 : vector<1x16x16x4xbf16> to vector<16x16x4xbf16>
    %45 = vector.shape_cast %44 : vector<16x16x4xbf16> to vector<256x4xbf16>
    %c6 = arith.constant 6 : index
    %c0_46 = arith.constant 0 : index
    %c0_47 = arith.constant 0 : index
    %46 = vector.load %arg2[%c6, %c0_46, %c0_47] : memref<9x4x128xbf16, #tpu.memory_space<vmem>>, vector<1x4x128xbf16>
    %47 = vector.shape_cast %46 : vector<1x4x128xbf16> to vector<4x128xbf16>
    %cst_48 = arith.constant dense<0.000000e+00> : vector<256x128xf32>
    %48 = tpu.matmul %45, %47, %cst_48 {dimension_numbers = #tpu.dot_dimension_numbers<[1], [0], [0], [1], [0, 0, 1, 1], [], []>} : vector<256x4xbf16>, vector<4x128xbf16>, vector<256x128xf32> -> vector<256x128xf32>
    %49 = arith.addf %42, %48 : vector<256x128xf32>
    %c0_49 = arith.constant 0 : index
    %c2_50 = arith.constant 2 : index
    %c1_51 = arith.constant 1 : index
    %c0_52 = arith.constant 0 : index
    %50 = vector.load %arg1[%c0_49, %c2_50, %c1_51, %c0_52] : memref<1x18x18x4xbf16, #tpu.memory_space<vmem>>, vector<1x16x16x4xbf16>
    %51 = vector.shape_cast %50 : vector<1x16x16x4xbf16> to vector<16x16x4xbf16>
    %52 = vector.shape_cast %51 : vector<16x16x4xbf16> to vector<256x4xbf16>
    %c7 = arith.constant 7 : index
    %c0_53 = arith.constant 0 : index
    %c0_54 = arith.constant 0 : index
    %53 = vector.load %arg2[%c7, %c0_53, %c0_54] : memref<9x4x128xbf16, #tpu.memory_space<vmem>>, vector<1x4x128xbf16>
    %54 = vector.shape_cast %53 : vector<1x4x128xbf16> to vector<4x128xbf16>
    %cst_55 = arith.constant dense<0.000000e+00> : vector<256x128xf32>
    %55 = tpu.matmul %52, %54, %cst_55 {dimension_numbers = #tpu.dot_dimension_numbers<[1], [0], [0], [1], [0, 0, 1, 1], [], []>} : vector<256x4xbf16>, vector<4x128xbf16>, vector<256x128xf32> -> vector<256x128xf32>
    %56 = arith.addf %49, %55 : vector<256x128xf32>
    %c0_56 = arith.constant 0 : index
    %c2_57 = arith.constant 2 : index
    %c2_58 = arith.constant 2 : index
    %c0_59 = arith.constant 0 : index
    %57 = vector.load %arg1[%c0_56, %c2_57, %c2_58, %c0_59] : memref<1x18x18x4xbf16, #tpu.memory_space<vmem>>, vector<1x16x16x4xbf16>
    %58 = vector.shape_cast %57 : vector<1x16x16x4xbf16> to vector<16x16x4xbf16>
    %59 = vector.shape_cast %58 : vector<16x16x4xbf16> to vector<256x4xbf16>
    %c8 = arith.constant 8 : index
    %c0_60 = arith.constant 0 : index
    %c0_61 = arith.constant 0 : index
    %60 = vector.load %arg2[%c8, %c0_60, %c0_61] : memref<9x4x128xbf16, #tpu.memory_space<vmem>>, vector<1x4x128xbf16>
    %61 = vector.shape_cast %60 : vector<1x4x128xbf16> to vector<4x128xbf16>
    %cst_62 = arith.constant dense<0.000000e+00> : vector<256x128xf32>
    %62 = tpu.matmul %59, %61, %cst_62 {dimension_numbers = #tpu.dot_dimension_numbers<[1], [0], [0], [1], [0, 0, 1, 1], [], []>} : vector<256x4xbf16>, vector<4x128xbf16>, vector<256x128xf32> -> vector<256x128xf32>
    %63 = arith.addf %56, %62 : vector<256x128xf32>
    %c0_63 = arith.constant 0 : index
    %c0_64 = arith.constant 0 : index
    %64 = vector.load %arg3[%c0_63, %c0_64] : memref<1x128xf32, #tpu.memory_space<vmem>>, vector<1x128xf32>
    %65 = vector.broadcast %64 : vector<1x128xf32> to vector<256x128xf32>
    %66 = arith.addf %63, %65 : vector<256x128xf32>
    %cst_65 = arith.constant 0.000000e+00 : f32
    %67 = vector.broadcast %cst_65 : f32 to vector<256x128xf32>
    %68 = arith.maximumf %66, %67 : vector<256x128xf32>
    %cst_66 = arith.constant 0.000000e+00 : f32
    %69 = vector.broadcast %cst_66 : f32 to vector<18x18x128xf32>
    %c0_67 = arith.constant 0 : index
    %c0_68 = arith.constant 0 : index
    %c0_69 = arith.constant 0 : index
    %70 = vector.load %arg8[%c0_67, %c0_68, %c0_69] : memref<18x18x128xf32, #tpu.memory_space<vmem>>, vector<18x18x128xf32>
    tpu.vector_store %arg8[%c0_67, %c0_68, %c0_69], %69 {strides = array<i32>} : memref<18x18x128xf32, #tpu.memory_space<vmem>>, vector<18x18x128xf32>,
    %71 = vector.shape_cast %68 : vector<256x128xf32> to vector<16x16x128xf32>
    %c1_70 = arith.constant 1 : index
    %c1_71 = arith.constant 1 : index
    %c0_72 = arith.constant 0 : index
    %72 = vector.load %arg8[%c1_70, %c1_71, %c0_72] : memref<18x18x128xf32, #tpu.memory_space<vmem>>, vector<16x16x128xf32>
    tpu.vector_store %arg8[%c1_70, %c1_71, %c0_72], %71 {strides = array<i32>} : memref<18x18x128xf32, #tpu.memory_space<vmem>>, vector<16x16x128xf32>,
    %cst_73 = arith.constant 0.000000e+00 : f32
    %73 = vector.broadcast %cst_73 : f32 to vector<256x128xf32>
    %c0_74 = arith.constant 0 : index
    %c0_75 = arith.constant 0 : index
    %c0_76 = arith.constant 0 : index
    %74 = vector.load %arg8[%c0_74, %c0_75, %c0_76] : memref<18x18x128xf32, #tpu.memory_space<vmem>>, vector<16x16x128xf32>
    %75 = vector.shape_cast %74 : vector<16x16x128xf32> to vector<256x128xf32>
    %76 = arith.truncf %75 : vector<256x128xf32> to vector<256x128xbf16>
    %c0_77 = arith.constant 0 : index
    %c0_78 = arith.constant 0 : index
    %c0_79 = arith.constant 0 : index
    %77 = vector.load %arg4[%c0_77, %c0_78, %c0_79] : memref<9x128x128xbf16, #tpu.memory_space<vmem>>, vector<1x128x128xbf16>
    %78 = vector.shape_cast %77 : vector<1x128x128xbf16> to vector<128x128xbf16>
    %cst_80 = arith.constant dense<0.000000e+00> : vector<256x128xf32>
    %79 = tpu.matmul %76, %78, %cst_80 {dimension_numbers = #tpu.dot_dimension_numbers<[1], [0], [0], [1], [0, 0, 1, 1], [], []>} : vector<256x128xbf16>, vector<128x128xbf16>, vector<256x128xf32> -> vector<256x128xf32>
    %80 = arith.addf %73, %79 : vector<256x128xf32>
    %c0_81 = arith.constant 0 : index
    %c1_82 = arith.constant 1 : index
    %c0_83 = arith.constant 0 : index
    %81 = vector.load %arg8[%c0_81, %c1_82, %c0_83] : memref<18x18x128xf32, #tpu.memory_space<vmem>>, vector<16x16x128xf32>
    %82 = vector.shape_cast %81 : vector<16x16x128xf32> to vector<256x128xf32>
    %83 = arith.truncf %82 : vector<256x128xf32> to vector<256x128xbf16>
    %c1_84 = arith.constant 1 : index
    %c0_85 = arith.constant 0 : index
    %c0_86 = arith.constant 0 : index
    %84 = vector.load %arg4[%c1_84, %c0_85, %c0_86] : memref<9x128x128xbf16, #tpu.memory_space<vmem>>, vector<1x128x128xbf16>
    %85 = vector.shape_cast %84 : vector<1x128x128xbf16> to vector<128x128xbf16>
    %cst_87 = arith.constant dense<0.000000e+00> : vector<256x128xf32>
    %86 = tpu.matmul %83, %85, %cst_87 {dimension_numbers = #tpu.dot_dimension_numbers<[1], [0], [0], [1], [0, 0, 1, 1], [], []>} : vector<256x128xbf16>, vector<128x128xbf16>, vector<256x128xf32> -> vector<256x128xf32>
    %87 = arith.addf %80, %86 : vector<256x128xf32>
    %c0_88 = arith.constant 0 : index
    %c2_89 = arith.constant 2 : index
    %c0_90 = arith.constant 0 : index
    %88 = vector.load %arg8[%c0_88, %c2_89, %c0_90] : memref<18x18x128xf32, #tpu.memory_space<vmem>>, vector<16x16x128xf32>
    %89 = vector.shape_cast %88 : vector<16x16x128xf32> to vector<256x128xf32>
    %90 = arith.truncf %89 : vector<256x128xf32> to vector<256x128xbf16>
    %c2_91 = arith.constant 2 : index
    %c0_92 = arith.constant 0 : index
    %c0_93 = arith.constant 0 : index
    %91 = vector.load %arg4[%c2_91, %c0_92, %c0_93] : memref<9x128x128xbf16, #tpu.memory_space<vmem>>, vector<1x128x128xbf16>
    %92 = vector.shape_cast %91 : vector<1x128x128xbf16> to vector<128x128xbf16>
    %cst_94 = arith.constant dense<0.000000e+00> : vector<256x128xf32>
    %93 = tpu.matmul %90, %92, %cst_94 {dimension_numbers = #tpu.dot_dimension_numbers<[1], [0], [0], [1], [0, 0, 1, 1], [], []>} : vector<256x128xbf16>, vector<128x128xbf16>, vector<256x128xf32> -> vector<256x128xf32>
    %94 = arith.addf %87, %93 : vector<256x128xf32>
    %c1_95 = arith.constant 1 : index
    %c0_96 = arith.constant 0 : index
    %c0_97 = arith.constant 0 : index
    %95 = vector.load %arg8[%c1_95, %c0_96, %c0_97] : memref<18x18x128xf32, #tpu.memory_space<vmem>>, vector<16x16x128xf32>
    %96 = vector.shape_cast %95 : vector<16x16x128xf32> to vector<256x128xf32>
    %97 = arith.truncf %96 : vector<256x128xf32> to vector<256x128xbf16>
    %c3_98 = arith.constant 3 : index
    %c0_99 = arith.constant 0 : index
    %c0_100 = arith.constant 0 : index
    %98 = vector.load %arg4[%c3_98, %c0_99, %c0_100] : memref<9x128x128xbf16, #tpu.memory_space<vmem>>, vector<1x128x128xbf16>
    %99 = vector.shape_cast %98 : vector<1x128x128xbf16> to vector<128x128xbf16>
    %cst_101 = arith.constant dense<0.000000e+00> : vector<256x128xf32>
    %100 = tpu.matmul %97, %99, %cst_101 {dimension_numbers = #tpu.dot_dimension_numbers<[1], [0], [0], [1], [0, 0, 1, 1], [], []>} : vector<256x128xbf16>, vector<128x128xbf16>, vector<256x128xf32> -> vector<256x128xf32>
    %101 = arith.addf %94, %100 : vector<256x128xf32>
    %c1_102 = arith.constant 1 : index
    %c1_103 = arith.constant 1 : index
    %c0_104 = arith.constant 0 : index
    %102 = vector.load %arg8[%c1_102, %c1_103, %c0_104] : memref<18x18x128xf32, #tpu.memory_space<vmem>>, vector<16x16x128xf32>
    %103 = vector.shape_cast %102 : vector<16x16x128xf32> to vector<256x128xf32>
    %104 = arith.truncf %103 : vector<256x128xf32> to vector<256x128xbf16>
    %c4_105 = arith.constant 4 : index
    %c0_106 = arith.constant 0 : index
    %c0_107 = arith.constant 0 : index
    %105 = vector.load %arg4[%c4_105, %c0_106, %c0_107] : memref<9x128x128xbf16, #tpu.memory_space<vmem>>, vector<1x128x128xbf16>
    %106 = vector.shape_cast %105 : vector<1x128x128xbf16> to vector<128x128xbf16>
    %cst_108 = arith.constant dense<0.000000e+00> : vector<256x128xf32>
    %107 = tpu.matmul %104, %106, %cst_108 {dimension_numbers = #tpu.dot_dimension_numbers<[1], [0], [0], [1], [0, 0, 1, 1], [], []>} : vector<256x128xbf16>, vector<128x128xbf16>, vector<256x128xf32> -> vector<256x128xf32>
    %108 = arith.addf %101, %107 : vector<256x128xf32>
    %c1_109 = arith.constant 1 : index
    %c2_110 = arith.constant 2 : index
    %c0_111 = arith.constant 0 : index
    %109 = vector.load %arg8[%c1_109, %c2_110, %c0_111] : memref<18x18x128xf32, #tpu.memory_space<vmem>>, vector<16x16x128xf32>
    %110 = vector.shape_cast %109 : vector<16x16x128xf32> to vector<256x128xf32>
    %111 = arith.truncf %110 : vector<256x128xf32> to vector<256x128xbf16>
    %c5_112 = arith.constant 5 : index
    %c0_113 = arith.constant 0 : index
    %c0_114 = arith.constant 0 : index
    %112 = vector.load %arg4[%c5_112, %c0_113, %c0_114] : memref<9x128x128xbf16, #tpu.memory_space<vmem>>, vector<1x128x128xbf16>
    %113 = vector.shape_cast %112 : vector<1x128x128xbf16> to vector<128x128xbf16>
    %cst_115 = arith.constant dense<0.000000e+00> : vector<256x128xf32>
    %114 = tpu.matmul %111, %113, %cst_115 {dimension_numbers = #tpu.dot_dimension_numbers<[1], [0], [0], [1], [0, 0, 1, 1], [], []>} : vector<256x128xbf16>, vector<128x128xbf16>, vector<256x128xf32> -> vector<256x128xf32>
    %115 = arith.addf %108, %114 : vector<256x128xf32>
    %c2_116 = arith.constant 2 : index
    %c0_117 = arith.constant 0 : index
    %c0_118 = arith.constant 0 : index
    %116 = vector.load %arg8[%c2_116, %c0_117, %c0_118] : memref<18x18x128xf32, #tpu.memory_space<vmem>>, vector<16x16x128xf32>
    %117 = vector.shape_cast %116 : vector<16x16x128xf32> to vector<256x128xf32>
    %118 = arith.truncf %117 : vector<256x128xf32> to vector<256x128xbf16>
    %c6_119 = arith.constant 6 : index
    %c0_120 = arith.constant 0 : index
    %c0_121 = arith.constant 0 : index
    %119 = vector.load %arg4[%c6_119, %c0_120, %c0_121] : memref<9x128x128xbf16, #tpu.memory_space<vmem>>, vector<1x128x128xbf16>
    %120 = vector.shape_cast %119 : vector<1x128x128xbf16> to vector<128x128xbf16>
    %cst_122 = arith.constant dense<0.000000e+00> : vector<256x128xf32>
    %121 = tpu.matmul %118, %120, %cst_122 {dimension_numbers = #tpu.dot_dimension_numbers<[1], [0], [0], [1], [0, 0, 1, 1], [], []>} : vector<256x128xbf16>, vector<128x128xbf16>, vector<256x128xf32> -> vector<256x128xf32>
    %122 = arith.addf %115, %121 : vector<256x128xf32>
    %c2_123 = arith.constant 2 : index
    %c1_124 = arith.constant 1 : index
    %c0_125 = arith.constant 0 : index
    %123 = vector.load %arg8[%c2_123, %c1_124, %c0_125] : memref<18x18x128xf32, #tpu.memory_space<vmem>>, vector<16x16x128xf32>
    %124 = vector.shape_cast %123 : vector<16x16x128xf32> to vector<256x128xf32>
    %125 = arith.truncf %124 : vector<256x128xf32> to vector<256x128xbf16>
    %c7_126 = arith.constant 7 : index
    %c0_127 = arith.constant 0 : index
    %c0_128 = arith.constant 0 : index
    %126 = vector.load %arg4[%c7_126, %c0_127, %c0_128] : memref<9x128x128xbf16, #tpu.memory_space<vmem>>, vector<1x128x128xbf16>
    %127 = vector.shape_cast %126 : vector<1x128x128xbf16> to vector<128x128xbf16>
    %cst_129 = arith.constant dense<0.000000e+00> : vector<256x128xf32>
    %128 = tpu.matmul %125, %127, %cst_129 {dimension_numbers = #tpu.dot_dimension_numbers<[1], [0], [0], [1], [0, 0, 1, 1], [], []>} : vector<256x128xbf16>, vector<128x128xbf16>, vector<256x128xf32> -> vector<256x128xf32>
    %129 = arith.addf %122, %128 : vector<256x128xf32>
    %c2_130 = arith.constant 2 : index
    %c2_131 = arith.constant 2 : index
    %c0_132 = arith.constant 0 : index
    %130 = vector.load %arg8[%c2_130, %c2_131, %c0_132] : memref<18x18x128xf32, #tpu.memory_space<vmem>>, vector<16x16x128xf32>
    %131 = vector.shape_cast %130 : vector<16x16x128xf32> to vector<256x128xf32>
    %132 = arith.truncf %131 : vector<256x128xf32> to vector<256x128xbf16>
    %c8_133 = arith.constant 8 : index
    %c0_134 = arith.constant 0 : index
    %c0_135 = arith.constant 0 : index
    %133 = vector.load %arg4[%c8_133, %c0_134, %c0_135] : memref<9x128x128xbf16, #tpu.memory_space<vmem>>, vector<1x128x128xbf16>
    %134 = vector.shape_cast %133 : vector<1x128x128xbf16> to vector<128x128xbf16>
    %cst_136 = arith.constant dense<0.000000e+00> : vector<256x128xf32>
    %135 = tpu.matmul %132, %134, %cst_136 {dimension_numbers = #tpu.dot_dimension_numbers<[1], [0], [0], [1], [0, 0, 1, 1], [], []>} : vector<256x128xbf16>, vector<128x128xbf16>, vector<256x128xf32> -> vector<256x128xf32>
    %136 = arith.addf %129, %135 : vector<256x128xf32>
    %c0_137 = arith.constant 0 : index
    %c0_138 = arith.constant 0 : index
    %137 = vector.load %arg6[%c0_137, %c0_138] : memref<4x128xbf16, #tpu.memory_space<vmem>>, vector<4x128xbf16>
    %cst_139 = arith.constant dense<0.000000e+00> : vector<256x128xf32>
    %138 = tpu.matmul %31, %137, %cst_139 {dimension_numbers = #tpu.dot_dimension_numbers<[1], [0], [0], [1], [0, 0, 1, 1], [], []>} : vector<256x4xbf16>, vector<4x128xbf16>, vector<256x128xf32> -> vector<256x128xf32>
    %139 = arith.addf %136, %138 : vector<256x128xf32>
    %c0_140 = arith.constant 0 : index
    %c0_141 = arith.constant 0 : index
    %140 = vector.load %arg5[%c0_140, %c0_141] : memref<1x128xf32, #tpu.memory_space<vmem>>, vector<1x128xf32>
    %141 = vector.broadcast %140 : vector<1x128xf32> to vector<256x128xf32>
    %142 = arith.addf %139, %141 : vector<256x128xf32>
    %cst_142 = arith.constant 0.000000e+00 : f32
    %143 = vector.broadcast %cst_142 : f32 to vector<256x128xf32>
    %144 = arith.maximumf %142, %143 : vector<256x128xf32>
    %145 = vector.shape_cast %144 : vector<256x128xf32> to vector<16x16x128xf32>
    %c0_143 = arith.constant 0 : index
    %c0_144 = arith.constant 0 : index
    %c0_145 = arith.constant 0 : index
    %c0_146 = arith.constant 0 : index
    %146 = vector.load %arg7[%c0_143, %c0_144, %c0_145, %c0_146] : memref<1x16x16x128xf32, #tpu.memory_space<vmem>>, vector<1x16x16x128xf32>
    %147 = vector.shape_cast %146 : vector<1x16x16x128xf32> to vector<16x16x128xf32>
    %148 = vector.shape_cast %145 : vector<16x16x128xf32> to vector<1x16x16x128xf32>
    tpu.vector_store %arg7[%c0_143, %c0_144, %c0_145, %c0_146], %148 {strides = array<i32>} : memref<1x16x16x128xf32, #tpu.memory_space<vmem>>, vector<1x16x16x128xf32>,
    return
  }
  func.func @transform_0(%arg0: i32) -> (i32, i32, i32, i32) {
    %c0_i32 = arith.constant 0 : i32
    %c0_i32_0 = arith.constant 0 : i32
    %c0_i32_1 = arith.constant 0 : i32
    %c0_i32_2 = arith.constant 0 : i32
    return %arg0, %c0_i32, %c0_i32_0, %c0_i32_1 : i32, i32, i32, i32
  }
  func.func @transform_1(%arg0: i32) -> (i32, i32, i32) {
    %c0_i32 = arith.constant 0 : i32
    %c0_i32_0 = arith.constant 0 : i32
    %c0_i32_1 = arith.constant 0 : i32
    %c0_i32_2 = arith.constant 0 : i32
    return %c0_i32, %c0_i32_0, %c0_i32_1 : i32, i32, i32
  }
  func.func @transform_2(%arg0: i32) -> (i32, i32) {
    %c0_i32 = arith.constant 0 : i32
    %c0_i32_0 = arith.constant 0 : i32
    %c0_i32_1 = arith.constant 0 : i32
    return %c0_i32, %c0_i32_0 : i32, i32
  }
  func.func @transform_3(%arg0: i32) -> (i32, i32, i32) {
    %c0_i32 = arith.constant 0 : i32
    %c0_i32_0 = arith.constant 0 : i32
    %c0_i32_1 = arith.constant 0 : i32
    %c0_i32_2 = arith.constant 0 : i32
    return %c0_i32, %c0_i32_0, %c0_i32_1 : i32, i32, i32
  }
  func.func @transform_4(%arg0: i32) -> (i32, i32) {
    %c0_i32 = arith.constant 0 : i32
    %c0_i32_0 = arith.constant 0 : i32
    %c0_i32_1 = arith.constant 0 : i32
    return %c0_i32, %c0_i32_0 : i32, i32
  }
  func.func @transform_5(%arg0: i32) -> (i32, i32) {
    %c0_i32 = arith.constant 0 : i32
    %c0_i32_0 = arith.constant 0 : i32
    %c0_i32_1 = arith.constant 0 : i32
    return %c0_i32, %c0_i32_0 : i32, i32
  }
  func.func @transform_6(%arg0: i32) -> (i32, i32, i32, i32) {
    %c0_i32 = arith.constant 0 : i32
    %c0_i32_0 = arith.constant 0 : i32
    %c0_i32_1 = arith.constant 0 : i32
    %c0_i32_2 = arith.constant 0 : i32
    return %arg0, %c0_i32, %c0_i32_0, %c0_i32_1 : i32, i32, i32, i32
  }
}

</mosaic_0001>

<llo_original>
// kernel: basic_res_block_forward.1
$region0: #{basic_res_block_forward.1}
  #allocation0 [shape = 'u32[]', space=smem, size = 0x4, offset = 0x4, fixed_abs, tag = 'smem constant byte address 0x4 - core index']
  #allocation1 [shape = 'u32[144,128]{1,0:T(1,128)}', space=vmem, size = 0x12000, scoped, tag = 'internal scratch']
  #allocation2 [shape = 'f32[18,18,128]{2,1,0:T(8,128)}', space=vmem, size = 0x36000, scoped, tag = 'scratch operand']
  %s0 = inlined_call_operand.vmem [shape: bf16[2,18,18,4], index: 0, kind: input, shape index: {}]
  %s1 = inlined_call_operand.vmem [shape: bf16[9,4,128], index: 1, kind: input, shape index: {}]
  %s2 = inlined_call_operand.vmem [shape: f32[1,128], index: 2, kind: input, shape index: {}]
  %s3 = inlined_call_operand.vmem [shape: bf16[9,128,128], index: 3, kind: input, shape index: {}]
  %s4 = inlined_call_operand.vmem [shape: f32[1,128], index: 4, kind: input, shape index: {}]
  %s5 = inlined_call_operand.vmem [shape: bf16[4,128], index: 5, kind: input, shape index: {}]
  %s6 = inlined_call_operand.vmem [shape: f32[2,16,16,128], index: 6, kind: output, shape index: {}]
  %s7 = sld [smem:[#allocation0]]
  $region57: #{basic_res_block_forward.1} parent=0
    _
  %s9 = ssub.s32 1, %s7
  %s10 = scalar_select 0, %s9, %s7
  loop: start=0, step=1, limit=4
  $region2: #{basic_res_block_forward.1} parent=0 // loop_pre_header
    _
  $region3: #{basic_res_block_forward.1} parent=0 // loop_header
    %s12 = sphi 0, %s16
    %p13 = scmp.ge.s32.totalorder %s12, 4
    %s22 = sphi 0, %s24
    %s25 = sphi 0, %s22
    %s26 = sphi 0, %s25
    %s42 = sphi 0, %s26
    %s46 = sphi 0, %s46
    %s48 = sphi 0, %s46
    %s49 = sphi 0, %s48
    %s63 = sphi 0, %s49
    %s67 = sphi 0, %s67
    %s69 = sphi 0, %s67
    %s70 = sphi 0, %s69
    %s84 = sphi 0, %s70
    %s88 = sphi 0, %s88
    %s90 = sphi 0, %s88
    %s91 = sphi 0, %s90
    %s105 = sphi 0, %s91
    %s109 = sphi 0, %s109
    %s111 = sphi 0, %s109
    %s112 = sphi 0, %s111
    %s126 = sphi 0, %s112
    %s130 = sphi 0, %s130
    %s132 = sphi 0, %s130
    %s133 = sphi 0, %s132
    %s147 = sphi 0, %s133
    %s153 = sphi 0, %s155
    %s156 = sphi 0, %s153
    %s157 = sphi 0, %s156
    %s173 = sphi 0, %s157
  $region4: #{basic_res_block_forward.1} parent=0 // loop_header_branch
    %15 = sbr.rel (%p13) target = $region8
  $region5: #{basic_res_block_forward.1} parent=0 // loop_body
    %s17 = ssub.s32 %s12, 1
    %s18 = ssub.s32 %s12, 2
    %s19 = sadd.s32 %s12, 1
    %s20 = ssub.s32 %s12, %s19
    %p21 = scmp.eq.s32.totalorder %s20, 0
    %s23 = sadd.s32 %s22, 1
    %s24 = scalar_select %p21, %s22, %s23
    %p27 = pneg %p21
    %p28 = scmp.eq.s32.totalorder %s12, 1
    %p29 = por %p27, %p28
    %p30 = scmp.ne.s32.totalorder %s22, %s25
    %p31 = scmp.eq.s32.totalorder %s12, 0
    %p32 = por %p30, %p31
    %p33 = scmp.ne.s32.totalorder %s22, %s25
    %p34 = scmp.eq.s32.totalorder %s17, 1
    %p35 = por %p33, %p34
    %p36 = scmp.ne.s32.totalorder %s25, %s26
    %p37 = scmp.eq.s32.totalorder %s17, 0
    %p38 = por %p36, %p37
    %p39 = scmp.ne.s32.totalorder %s25, %s26
    %p40 = scmp.eq.s32.totalorder %s18, 1
    %p41 = por %p39, %p40
    %p43 = scmp.ne.s32.totalorder %s26, %s42
    %p44 = scmp.eq.s32.totalorder %s18, 0
    %p45 = por %p43, %p44
    %s47 = sadd.s32 %s46, 1
    %p50 = scmp.eq.s32.totalorder %s12, 1
    %p51 = scmp.ne.s32.totalorder %s46, %s48
    %p52 = scmp.eq.s32.totalorder %s12, 0
    %p53 = por %p51, %p52
    %p54 = scmp.ne.s32.totalorder %s46, %s48
    %p55 = scmp.eq.s32.totalorder %s17, 1
    %p56 = por %p54, %p55
    %p57 = scmp.ne.s32.totalorder %s48, %s49
    %p58 = scmp.eq.s32.totalorder %s17, 0
    %p59 = por %p57, %p58
    %p60 = scmp.ne.s32.totalorder %s48, %s49
    %p61 = scmp.eq.s32.totalorder %s18, 1
    %p62 = por %p60, %p61
    %p64 = scmp.ne.s32.totalorder %s49, %s63
    %p65 = scmp.eq.s32.totalorder %s18, 0
    %p66 = por %p64, %p65
    %s68 = sadd.s32 %s67, 1
    %p71 = scmp.eq.s32.totalorder %s12, 1
    %p72 = scmp.ne.s32.totalorder %s67, %s69
    %p73 = scmp.eq.s32.totalorder %s12, 0
    %p74 = por %p72, %p73
    %p75 = scmp.ne.s32.totalorder %s67, %s69
    %p76 = scmp.eq.s32.totalorder %s17, 1
    %p77 = por %p75, %p76
    %p78 = scmp.ne.s32.totalorder %s69, %s70
    %p79 = scmp.eq.s32.totalorder %s17, 0
    %p80 = por %p78, %p79
    %p81 = scmp.ne.s32.totalorder %s69, %s70
    %p82 = scmp.eq.s32.totalorder %s18, 1
    %p83 = por %p81, %p82
    %p85 = scmp.ne.s32.totalorder %s70, %s84
    %p86 = scmp.eq.s32.totalorder %s18, 0
    %p87 = por %p85, %p86
    %s89 = sadd.s32 %s88, 1
    %p92 = scmp.eq.s32.totalorder %s12, 1
    %p93 = scmp.ne.s32.totalorder %s88, %s90
    %p94 = scmp.eq.s32.totalorder %s12, 0
    %p95 = por %p93, %p94
    %p96 = scmp.ne.s32.totalorder %s88, %s90
    %p97 = scmp.eq.s32.totalorder %s17, 1
    %p98 = por %p96, %p97
    %p99 = scmp.ne.s32.totalorder %s90, %s91
    %p100 = scmp.eq.s32.totalorder %s17, 0
    %p101 = por %p99, %p100
    %p102 = scmp.ne.s32.totalorder %s90, %s91
    %p103 = scmp.eq.s32.totalorder %s18, 1
    %p104 = por %p102, %p103
    %p106 = scmp.ne.s32.totalorder %s91, %s105
    %p107 = scmp.eq.s32.totalorder %s18, 0
    %p108 = por %p106, %p107
    %s110 = sadd.s32 %s109, 1
    %p113 = scmp.eq.s32.totalorder %s12, 1
    %p114 = scmp.ne.s32.totalorder %s109, %s111
    %p115 = scmp.eq.s32.totalorder %s12, 0
    %p116 = por %p114, %p115
    %p117 = scmp.ne.s32.totalorder %s109, %s111
    %p118 = scmp.eq.s32.totalorder %s17, 1
    %p119 = por %p117, %p118
    %p120 = scmp.ne.s32.totalorder %s111, %s112
    %p121 = scmp.eq.s32.totalorder %s17, 0
    %p122 = por %p120, %p121
    %p123 = scmp.ne.s32.totalorder %s111, %s112
    %p124 = scmp.eq.s32.totalorder %s18, 1
    %p125 = por %p123, %p124
    %p127 = scmp.ne.s32.totalorder %s112, %s126
    %p128 = scmp.eq.s32.totalorder %s18, 0
    %p129 = por %p127, %p128
    %s131 = sadd.s32 %s130, 1
    %p134 = scmp.eq.s32.totalorder %s12, 1
    %p135 = scmp.ne.s32.totalorder %s130, %s132
    %p136 = scmp.eq.s32.totalorder %s12, 0
    %p137 = por %p135, %p136
    %p138 = scmp.ne.s32.totalorder %s130, %s132
    %p139 = scmp.eq.s32.totalorder %s17, 1
    %p140 = por %p138, %p139
    %p141 = scmp.ne.s32.totalorder %s132, %s133
    %p142 = scmp.eq.s32.totalorder %s17, 0
    %p143 = por %p141, %p142
    %p144 = scmp.ne.s32.totalorder %s132, %s133
    %p145 = scmp.eq.s32.totalorder %s18, 1
    %p146 = por %p144, %p145
    %p148 = scmp.ne.s32.totalorder %s133, %s147
    %p149 = scmp.eq.s32.totalorder %s18, 0
    %p150 = por %p148, %p149
    %s151 = ssub.s32 %s12, %s19
    %p152 = scmp.eq.s32.totalorder %s151, 0
    %s154 = sadd.s32 %s153, 1
    %s155 = scalar_select %p152, %s153, %s154
    %p158 = pneg %p152
    %p159 = scmp.eq.s32.totalorder %s12, 1
    %p160 = por %p158, %p159
    %p161 = scmp.ne.s32.totalorder %s153, %s156
    %p162 = scmp.eq.s32.totalorder %s12, 0
    %p163 = por %p161, %p162
    %p164 = scmp.ne.s32.totalorder %s153, %s156
    %p165 = scmp.eq.s32.totalorder %s17, 1
    %p166 = por %p164, %p165
    %p167 = scmp.ne.s32.totalorder %s156, %s157
    %p168 = scmp.eq.s32.totalorder %s17, 0
    %p169 = por %p167, %p168
    %p170 = scmp.ne.s32.totalorder %s156, %s157
    %p171 = scmp.eq.s32.totalorder %s18, 1
    %p172 = por %p170, %p171
    %p174 = scmp.ne.s32.totalorder %s157, %s173
    %p175 = scmp.eq.s32.totalorder %s18, 0
    %p176 = por %p174, %p175
    %p177 = scmp.le.s32.totalorder 1, %s12
    %p178 = scmp.lt.s32.totalorder %s12, 3
    %p179 = pnand %p177, %p178
    %p180 = pneg %p179
    // Predicated region
    $region9: #{basic_res_block_forward.1} parent=5 // pred_check
      _
    $region10: #{basic_res_block_forward.1} parent=5 // pred_check_branch
      %182 = sbr.rel (%p179) target = $region12
    $region11: #{basic_res_block_forward.1} parent=5 // pred_region
      %s183 = ssub.s32 %s12, 1
      // Predicated region
      $region13: #{basic_res_block_forward.1} parent=11 // pred_check
        %p184 = pneg %p59
      $region14: #{basic_res_block_forward.1} parent=11 // pred_check_branch
        %186 = sbr.rel (%p184) target = $region16
      $region15: #{basic_res_block_forward.1} parent=11 // pred_region
        _
      $region16: #{basic_res_block_forward.1} parent=11 // pred_fallthru
        _
      // Predicated region
      $region17: #{basic_res_block_forward.1} parent=11 // pred_check
        %p187 = pneg %p80
      $region18: #{basic_res_block_forward.1} parent=11 // pred_check_branch
        %189 = sbr.rel (%p187) target = $region20
      $region19: #{basic_res_block_forward.1} parent=11 // pred_region
        _
      $region20: #{basic_res_block_forward.1} parent=11 // pred_fallthru
        _
      // Predicated region
      $region21: #{basic_res_block_forward.1} parent=11 // pred_check
        %p190 = pneg %p101
      $region22: #{basic_res_block_forward.1} parent=11 // pred_check_branch
        %192 = sbr.rel (%p190) target = $region24
      $region23: #{basic_res_block_forward.1} parent=11 // pred_region
        _
      $region24: #{basic_res_block_forward.1} parent=11 // pred_fallthru
        _
      // Predicated region
      $region25: #{basic_res_block_forward.1} parent=11 // pred_check
        %p193 = pneg %p122
      $region26: #{basic_res_block_forward.1} parent=11 // pred_check_branch
        %195 = sbr.rel (%p193) target = $region28
      $region27: #{basic_res_block_forward.1} parent=11 // pred_region
        _
      $region28: #{basic_res_block_forward.1} parent=11 // pred_fallthru
        _
      // Predicated region
      $region29: #{basic_res_block_forward.1} parent=11 // pred_check
        %p196 = pneg %p143
      $region30: #{basic_res_block_forward.1} parent=11 // pred_check_branch
        %198 = sbr.rel (%p196) target = $region32
      $region31: #{basic_res_block_forward.1} parent=11 // pred_region
        _
      $region32: #{basic_res_block_forward.1} parent=11 // pred_fallthru
        _
    $region12: #{basic_res_block_forward.1} parent=5 // pred_fallthru
      _
    %p199 = scmp.lt.s32.totalorder %s12, 2
    // Predicated region
    $region33: #{basic_res_block_forward.1} parent=5 // pred_check
      %p200 = pneg %p199
    $region34: #{basic_res_block_forward.1} parent=5 // pred_check_branch
      %202 = sbr.rel (%p200) target = $region36
    $region35: #{basic_res_block_forward.1} parent=5 // pred_region
      // Predicated region
      $region37: #{basic_res_block_forward.1} parent=35 // pred_check
        %p203 = pneg %p32
      $region38: #{basic_res_block_forward.1} parent=35 // pred_check_branch
        %205 = sbr.rel (%p203) target = $region40
      $region39: #{basic_res_block_forward.1} parent=35 // pred_region
        %p206 = scmp.lt.s32.totalorder %s12, 1
        %s207 = scalar_select %p206, %s12, 1
        %s208 = smul.addr %s207, 54
        %s209 = smul.addr %s208, 4
        %s210 = scalar_lea.vmem %s0, %s209
      $region40: #{basic_res_block_forward.1} parent=35 // pred_fallthru
        _
    $region36: #{basic_res_block_forward.1} parent=5 // pred_fallthru
      _
    %p211 = scmp.le.s32.totalorder 1, %s12
    %p212 = scmp.lt.s32.totalorder %s12, 3
    %p213 = pnand %p211, %p212
    %p214 = pneg %p213
    // Predicated region
    $region41: #{basic_res_block_forward.1} parent=5 // pred_check
      _
    $region42: #{basic_res_block_forward.1} parent=5 // pred_check_branch
      %216 = sbr.rel (%p213) target = $region44
    $region43: #{basic_res_block_forward.1} parent=5 // pred_region
      %s217 = ssub.s32 %s12, 1
      %p218 = scmp.lt.s32.totalorder %s17, 1
      %s219 = scalar_select %p218, %s17, 1
      %s220 = smul.addr %s219, 54
      %s221 = smul.addr %s220, 4
      %s222 = scalar_lea.vmem %s0, %s221
      %p223 = pneg %p38
      %p224 = pneg %p35
      %p225 = pneg %p59
      %p226 = pneg %p56
      %p227 = pneg %p80
      %p228 = pneg %p77
      %p229 = pneg %p101
      %p230 = pneg %p98
      %p231 = pneg %p122
      %p232 = pneg %p119
      %p233 = pneg %p143
      %p234 = pneg %p140
      %p235 = pneg %p169
      %p236 = pneg %p166
      %p237 = scmp.lt.s32.totalorder %s17, 1
      %s238 = scalar_select %p237, %s17, 1
      %s239 = smul.addr %s238, 32
      %s240 = smul.addr %s239, 8
      %s241 = scalar_lea.vmem %s6, %s240
      %p242 = scmp.lt.s32.totalorder %s17, 1
      %s243 = scalar_select %p242, %s17, 1
      %s244 = smul.addr %s243, 54
      %s245 = smul.addr %s244, 4
      %s246 = scalar_lea.vmem %s0, %s245
      %p247 = scmp.lt.s32.totalorder %s17, 1
      %s248 = scalar_select %p247, %s17, 1
      %s249 = smul.addr %s248, 32
      %s250 = smul.addr %s249, 8
      %s251 = scalar_lea.vmem %s6, %s250
      %v253 = vld [vmem:[%s246] sm:$0xf]
      %v254 = vld [vmem:[%s246 + $0x4] sm:$0xf]
      %v255 = vld [vmem:[%s246 + $0xc] sm:$0xf]
      %v256 = vld [vmem:[%s246 + $0x10] sm:$0xf]
      %v257 = vld [vmem:[%s246 + $0x18] sm:$0xf]
      %v258 = vld [vmem:[%s246 + $0x1c] sm:$0xf]
      %v259 = vld [vmem:[%s246 + $0x24] sm:$0xf]
      %v260 = vld [vmem:[%s246 + $0x28] sm:$0xf]
      %v261 = vld [vmem:[%s246 + $0x30] sm:$0xf]
      %v262 = vld [vmem:[%s246 + $0x34] sm:$0xf]
      %v263 = vld [vmem:[%s246 + $0x3c] sm:$0xf]
      %v264 = vld [vmem:[%s246 + $0x40] sm:$0xf]
      %v265 = vld [vmem:[%s246 + $0x48] sm:$0xf]
      %v266 = vld [vmem:[%s246 + $0x4c] sm:$0xf]
      %v267 = vld [vmem:[%s246 + $0x54] sm:$0xf]
      %v268 = vld [vmem:[%s246 + $0x58] sm:$0xf]
      %v269 = vld [vmem:[%s246 + $0x60] sm:$0xf]
      %v270 = vld [vmem:[%s246 + $0x64] sm:$0xf]
      %v271 = vld [vmem:[%s246 + $0x6c] sm:$0xf]
      %v272 = vld [vmem:[%s246 + $0x70] sm:$0xf]
      %v273 = vld [vmem:[%s246 + $0x78] sm:$0xf]
      %v274 = vld [vmem:[%s246 + $0x7c] sm:$0xf]
      %v275 = vld [vmem:[%s246 + $0x84] sm:$0xf]
      %v276 = vld [vmem:[%s246 + $0x88] sm:$0xf]
      %v277 = vld [vmem:[%s246 + $0x90] sm:$0xf]
      %v278 = vld [vmem:[%s246 + $0x94] sm:$0xf]
      %v279 = vld [vmem:[%s246 + $0x9c] sm:$0xf]
      %v280 = vld [vmem:[%s246 + $0xa0] sm:$0xf]
      %v281 = vld [vmem:[%s246 + $0xa8] sm:$0xf]
      %v282 = vld [vmem:[%s246 + $0xac] sm:$0xf]
      %v283 = vld [vmem:[%s246 + $0xb4] sm:$0xf]
      %v284 = vld [vmem:[%s246 + $0xb8] sm:$0xf]
      %v285 = vld [vmem:[%s1] sm:$0x3]
      %v286 = vld [vmem:[%s246 + $0x8] sm:$0x1]
      %v287 = vld [vmem:[%s246 + $0x14] sm:$0x1]
      %v288 = vld [vmem:[%s246 + $0x20] sm:$0x1]
      %v289 = vld [vmem:[%s246 + $0x2c] sm:$0x1]
      %v290 = vld [vmem:[%s246 + $0x38] sm:$0x1]
      %v291 = vld [vmem:[%s246 + $0x44] sm:$0x1]
      %v292 = vld [vmem:[%s246 + $0x50] sm:$0x1]
      %v293 = vld [vmem:[%s246 + $0x5c] sm:$0x1]
      %v294 = vld [vmem:[%s246 + $0x68] sm:$0x1]
      %v295 = vld [vmem:[%s246 + $0x74] sm:$0x1]
      %v296 = vld [vmem:[%s246 + $0x80] sm:$0x1]
      %v297 = vld [vmem:[%s246 + $0x8c] sm:$0x1]
      %v298 = vld [vmem:[%s246 + $0x98] sm:$0x1]
      %v299 = vld [vmem:[%s246 + $0xa4] sm:$0x1]
      %v300 = vld [vmem:[%s246 + $0xb0] sm:$0x1]
      %v301 = vld [vmem:[%s246 + $0xbc] sm:$0x1]
      %vm302 = vsmask.f32 3328
      %vm303 = vsmask.f32 7440
      %vm304 = vmor %vm302, %vm303
      %v306 = vshrl.u32 %v253, 16
      %v308 = vrot.slane %v306, 4
      %v309 = vshll.u32 %v253, 16
      %v311 = vrot.slane %v309, 5
      %v312 = vor.u32 %v308, %v311
      %v313 = vrot.slane %v312, 4
      %v315 = vshll.u32 %v254, 16
      %v317 = vrot.slane %v315, 5
      %v318 = vsel %vm304, %v313, %v317
      %v319 = vshrl.u32 %v254, 16
      %v321 = vrot.slane %v319, 4
      %v322 = vor.u32 %v321, %v317
      %v323 = vrot.slane %v322, 4
      %v325 = vshll.u32 %v286, 16
      %v327 = vrot.slane %v325, 5
      %v328 = vsel %vm304, %v323, %v327
      %v330 = vshrl.u32 %v255, 16
      %v332 = vrot.slane %v330, 4
      %v333 = vshll.u32 %v255, 16
      %v335 = vrot.slane %v333, 5
      %v336 = vor.u32 %v332, %v335
      %v337 = vrot.slane %v336, 4
      %v339 = vshll.u32 %v256, 16
      %v341 = vrot.slane %v339, 5
      %v342 = vsel %vm304, %v337, %v341
      %v343 = vshrl.u32 %v256, 16
      %v345 = vrot.slane %v343, 4
      %v346 = vor.u32 %v345, %v341
      %v347 = vrot.slane %v346, 4
      %v349 = vshll.u32 %v287, 16
      %v351 = vrot.slane %v349, 5
      %v352 = vsel %vm304, %v347, %v351
      %v354 = vshrl.u32 %v257, 16
      %v356 = vrot.slane %v354, 4
      %v357 = vshll.u32 %v257, 16
      %v359 = vrot.slane %v357, 5
      %v360 = vor.u32 %v356, %v359
      %v361 = vrot.slane %v360, 4
      %v363 = vshll.u32 %v258, 16
      %v365 = vrot.slane %v363, 5
      %v366 = vsel %vm304, %v361, %v365
      %v367 = vshrl.u32 %v258, 16
      %v369 = vrot.slane %v367, 4
      %v370 = vor.u32 %v369, %v365
      %v371 = vrot.slane %v370, 4
      %v373 = vshll.u32 %v288, 16
      %v375 = vrot.slane %v373, 5
      %v376 = vsel %vm304, %v371, %v375
      %v378 = vshrl.u32 %v259, 16
      %v380 = vrot.slane %v378, 4
      %v381 = vshll.u32 %v259, 16
      %v383 = vrot.slane %v381, 5
      %v384 = vor.u32 %v380, %v383
      %v385 = vrot.slane %v384, 4
      %v387 = vshll.u32 %v260, 16
      %v389 = vrot.slane %v387, 5
      %v390 = vsel %vm304, %v385, %v389
      %v391 = vshrl.u32 %v260, 16
      %v393 = vrot.slane %v391, 4
      %v394 = vor.u32 %v393, %v389
      %v395 = vrot.slane %v394, 4
      %v397 = vshll.u32 %v289, 16
      %v399 = vrot.slane %v397, 5
      %v400 = vsel %vm304, %v395, %v399
      %v402 = vshrl.u32 %v261, 16
      %v404 = vrot.slane %v402, 4
      %v405 = vshll.u32 %v261, 16
      %v407 = vrot.slane %v405, 5
      %v408 = vor.u32 %v404, %v407
      %v409 = vrot.slane %v408, 4
      %v411 = vshll.u32 %v262, 16
      %v413 = vrot.slane %v411, 5
      %v414 = vsel %vm304, %v409, %v413
      %v415 = vshrl.u32 %v262, 16
      %v417 = vrot.slane %v415, 4
      %v418 = vor.u32 %v417, %v413
      %v419 = vrot.slane %v418, 4
      %v421 = vshll.u32 %v290, 16
      %v423 = vrot.slane %v421, 5
      %v424 = vsel %vm304, %v419, %v423
      %v426 = vshrl.u32 %v263, 16
      %v428 = vrot.slane %v426, 4
      %v429 = vshll.u32 %v263, 16
      %v431 = vrot.slane %v429, 5
      %v432 = vor.u32 %v428, %v431
      %v433 = vrot.slane %v432, 4
      %v435 = vshll.u32 %v264, 16
      %v437 = vrot.slane %v435, 5
      %v438 = vsel %vm304, %v433, %v437
      %v439 = vshrl.u32 %v264, 16
      %v441 = vrot.slane %v439, 4
      %v442 = vor.u32 %v441, %v437
      %v443 = vrot.slane %v442, 4
      %v445 = vshll.u32 %v291, 16
      %v447 = vrot.slane %v445, 5
      %v448 = vsel %vm304, %v443, %v447
      %v450 = vshrl.u32 %v265, 16
      %v452 = vrot.slane %v450, 4
      %v453 = vshll.u32 %v265, 16
      %v455 = vrot.slane %v453, 5
      %v456 = vor.u32 %v452, %v455
      %v457 = vrot.slane %v456, 4
      %v459 = vshll.u32 %v266, 16
      %v461 = vrot.slane %v459, 5
      %v462 = vsel %vm304, %v457, %v461
      %v463 = vshrl.u32 %v266, 16
      %v465 = vrot.slane %v463, 4
      %v466 = vor.u32 %v465, %v461
      %v467 = vrot.slane %v466, 4
      %v469 = vshll.u32 %v292, 16
      %v471 = vrot.slane %v469, 5
      %v472 = vsel %vm304, %v467, %v471
      %v474 = vshrl.u32 %v267, 16
      %v476 = vrot.slane %v474, 4
      %v477 = vshll.u32 %v267, 16
      %v479 = vrot.slane %v477, 5
      %v480 = vor.u32 %v476, %v479
      %v481 = vrot.slane %v480, 4
      %v483 = vshll.u32 %v268, 16
      %v485 = vrot.slane %v483, 5
      %v486 = vsel %vm304, %v481, %v485
      %v487 = vshrl.u32 %v268, 16
      %v489 = vrot.slane %v487, 4
      %v490 = vor.u32 %v489, %v485
      %v491 = vrot.slane %v490, 4
      %v493 = vshll.u32 %v293, 16
      %v495 = vrot.slane %v493, 5
      %v496 = vsel %vm304, %v491, %v495
      %v498 = vshrl.u32 %v269, 16
      %v500 = vrot.slane %v498, 4
      %v501 = vshll.u32 %v269, 16
      %v503 = vrot.slane %v501, 5
      %v504 = vor.u32 %v500, %v503
      %v505 = vrot.slane %v504, 4
      %v507 = vshll.u32 %v270, 16
      %v509 = vrot.slane %v507, 5
      %v510 = vsel %vm304, %v505, %v509
      %v511 = vshrl.u32 %v270, 16
      %v513 = vrot.slane %v511, 4
      %v514 = vor.u32 %v513, %v509
      %v515 = vrot.slane %v514, 4
      %v517 = vshll.u32 %v294, 16
      %v519 = vrot.slane %v517, 5
      %v520 = vsel %vm304, %v515, %v519
      %v522 = vshrl.u32 %v271, 16
      %v524 = vrot.slane %v522, 4
      %v525 = vshll.u32 %v271, 16
      %v527 = vrot.slane %v525, 5
      %v528 = vor.u32 %v524, %v527
      %v529 = vrot.slane %v528, 4
      %v531 = vshll.u32 %v272, 16
      %v533 = vrot.slane %v531, 5
      %v534 = vsel %vm304, %v529, %v533
      %v535 = vshrl.u32 %v272, 16
      %v537 = vrot.slane %v535, 4
      %v538 = vor.u32 %v537, %v533
      %v539 = vrot.slane %v538, 4
      %v541 = vshll.u32 %v295, 16
      %v543 = vrot.slane %v541, 5
      %v544 = vsel %vm304, %v539, %v543
      %v546 = vshrl.u32 %v273, 16
      %v548 = vrot.slane %v546, 4
      %v549 = vshll.u32 %v273, 16
      %v551 = vrot.slane %v549, 5
      %v552 = vor.u32 %v548, %v551
      %v553 = vrot.slane %v552, 4
      %v555 = vshll.u32 %v274, 16
      %v557 = vrot.slane %v555, 5
      %v558 = vsel %vm304, %v553, %v557
      %v559 = vshrl.u32 %v274, 16
      %v561 = vrot.slane %v559, 4
      %v562 = vor.u32 %v561, %v557
      %v563 = vrot.slane %v562, 4
      %v565 = vshll.u32 %v296, 16
      %v567 = vrot.slane %v565, 5
      %v568 = vsel %vm304, %v563, %v567
      %v570 = vshrl.u32 %v275, 16
      %v572 = vrot.slane %v570, 4
      %v573 = vshll.u32 %v275, 16
      %v575 = vrot.slane %v573, 5
      %v576 = vor.u32 %v572, %v575
      %v577 = vrot.slane %v576, 4
      %v579 = vshll.u32 %v276, 16
      %v581 = vrot.slane %v579, 5
      %v582 = vsel %vm304, %v577, %v581
      %v583 = vshrl.u32 %v276, 16
      %v585 = vrot.slane %v583, 4
      %v586 = vor.u32 %v585, %v581
      %v587 = vrot.slane %v586, 4
      %v589 = vshll.u32 %v297, 16
      %v591 = vrot.slane %v589, 5
      %v592 = vsel %vm304, %v587, %v591
      %v594 = vshrl.u32 %v277, 16
      %v596 = vrot.slane %v594, 4
      %v597 = vshll.u32 %v277, 16
      %v599 = vrot.slane %v597, 5
      %v600 = vor.u32 %v596, %v599
      %v601 = vrot.slane %v600, 4
      %v603 = vshll.u32 %v278, 16
      %v605 = vrot.slane %v603, 5
      %v606 = vsel %vm304, %v601, %v605
      %v607 = vshrl.u32 %v278, 16
      %v609 = vrot.slane %v607, 4
      %v610 = vor.u32 %v609, %v605
      %v611 = vrot.slane %v610, 4
      %v613 = vshll.u32 %v298, 16
      %v615 = vrot.slane %v613, 5
      %v616 = vsel %vm304, %v611, %v615
      %v618 = vshrl.u32 %v279, 16
      %v620 = vrot.slane %v618, 4
      %v621 = vshll.u32 %v279, 16
      %v623 = vrot.slane %v621, 5
      %v624 = vor.u32 %v620, %v623
      %v625 = vrot.slane %v624, 4
      %v627 = vshll.u32 %v280, 16
      %v629 = vrot.slane %v627, 5
      %v630 = vsel %vm304, %v625, %v629
      %v631 = vshrl.u32 %v280, 16
      %v633 = vrot.slane %v631, 4
      %v634 = vor.u32 %v633, %v629
      %v635 = vrot.slane %v634, 4
      %v637 = vshll.u32 %v299, 16
      %v639 = vrot.slane %v637, 5
      %v640 = vsel %vm304, %v635, %v639
      %v642 = vshrl.u32 %v281, 16
      %v644 = vrot.slane %v642, 4
      %v645 = vshll.u32 %v281, 16
      %v647 = vrot.slane %v645, 5
      %v648 = vor.u32 %v644, %v647
      %v649 = vrot.slane %v648, 4
      %v651 = vshll.u32 %v282, 16
      %v653 = vrot.slane %v651, 5
      %v654 = vsel %vm304, %v649, %v653
      %v655 = vshrl.u32 %v282, 16
      %v657 = vrot.slane %v655, 4
      %v658 = vor.u32 %v657, %v653
      %v659 = vrot.slane %v658, 4
      %v661 = vshll.u32 %v300, 16
      %v663 = vrot.slane %v661, 5
      %v664 = vsel %vm304, %v659, %v663
      %v666 = vshrl.u32 %v283, 16
      %v668 = vrot.slane %v666, 4
      %v669 = vshll.u32 %v283, 16
      %v671 = vrot.slane %v669, 5
      %v672 = vor.u32 %v668, %v671
      %v673 = vrot.slane %v672, 4
      %v675 = vshll.u32 %v284, 16
      %v677 = vrot.slane %v675, 5
      %v678 = vsel %vm304, %v673, %v677
      %v679 = vshrl.u32 %v284, 16
      %v681 = vrot.slane %v679, 4
      %v682 = vor.u32 %v681, %v677
      %v683 = vrot.slane %v682, 4
      %v685 = vshll.u32 %v301, 16
      %v687 = vrot.slane %v685, 5
      %v688 = vsel %vm304, %v683, %v687
      %s689 = scalar_lea.vmem %s1, 2
      %v690 = vld [vmem:[%s689] sm:$0x3]
      %v691 = vunpack.c.l.b16 %v318
      %v692 = vunpack.c.l.b16 %v328
      %v693 = vunpack.c.l.b16 %v342
      %v694 = vunpack.c.l.b16 %v352
      %v695 = vunpack.c.l.b16 %v366
      %v696 = vunpack.c.l.b16 %v376
      %v697 = vunpack.c.l.b16 %v390
      %v698 = vunpack.c.l.b16 %v400
      %v699 = vunpack.c.l.b16 %v414
      %v700 = vunpack.c.l.b16 %v424
      %v701 = vunpack.c.l.b16 %v438
      %v702 = vunpack.c.l.b16 %v448
      %v703 = vunpack.c.l.b16 %v462
      %v704 = vunpack.c.l.b16 %v472
      %v705 = vunpack.c.l.b16 %v486
      %v706 = vunpack.c.l.b16 %v496
      %v707 = vunpack.c.l.b16 %v510
      %v708 = vunpack.c.l.b16 %v520
      %v709 = vunpack.c.l.b16 %v534
      %v710 = vunpack.c.l.b16 %v544
      %v711 = vunpack.c.l.b16 %v558
      %v712 = vunpack.c.l.b16 %v568
      %v713 = vunpack.c.l.b16 %v582
      %v714 = vunpack.c.l.b16 %v592
      %v715 = vunpack.c.l.b16 %v606
      %v716 = vunpack.c.l.b16 %v616
      %v717 = vunpack.c.l.b16 %v630
      %v718 = vunpack.c.l.b16 %v640
      %v719 = vunpack.c.l.b16 %v654
      %v720 = vunpack.c.l.b16 %v664
      %v721 = vunpack.c.l.b16 %v678
      %v722 = vunpack.c.l.b16 %v688
      %v723 = vpack.c.b16 %v692, %v691
      %v724 = vpack.c.b16 %v694, %v693
      %v725 = vpack.c.b16 %v696, %v695
      %v726 = vpack.c.b16 %v698, %v697
      %v727 = vpack.c.b16 %v700, %v699
      %v728 = vpack.c.b16 %v702, %v701
      %v729 = vpack.c.b16 %v704, %v703
      %v730 = vpack.c.b16 %v706, %v705
      %v731 = vpack.c.b16 %v708, %v707
      %v732 = vpack.c.b16 %v710, %v709
      %v733 = vpack.c.b16 %v712, %v711
      %v734 = vpack.c.b16 %v714, %v713
      %v735 = vpack.c.b16 %v716, %v715
      %v736 = vpack.c.b16 %v718, %v717
      %v737 = vpack.c.b16 %v720, %v719
      %v738 = vpack.c.b16 %v722, %v721
      %vm739 = vcmask 31744
      %v741 = vsel %vm739, %v723, 0
      %v744 = vsel %vm739, %v724, 0
      %v747 = vsel %vm739, %v725, 0
      %v750 = vsel %vm739, %v726, 0
      %v753 = vsel %vm739, %v727, 0
      %v756 = vsel %vm739, %v728, 0
      %v759 = vsel %vm739, %v729, 0
      %v762 = vsel %vm739, %v730, 0
      %v765 = vsel %vm739, %v731, 0
      %v768 = vsel %vm739, %v732, 0
      %v771 = vsel %vm739, %v733, 0
      %v774 = vsel %vm739, %v734, 0
      %v777 = vsel %vm739, %v735, 0
      %v780 = vsel %vm739, %v736, 0
      %v783 = vsel %vm739, %v737, 0
      %v786 = vsel %vm739, %v738, 0
      %vm788 = vcmask 1041408
      %v790 = vsel %vm788, %v690, 0
      %792 = vmatprep.subr.bf16.mxu0 0
      %793 = vmatpush1.bf16.msra.mxu0 %v790
      %794 = vmatprep.subr.bf16.mxu0 0
      %795 = vmatpush1.bf16.msra.mxu0 0
      %796 = vmatprep.subr.bf16.mxu0 0
      %797 = vmatpush1.bf16.msra.mxu0 0
      %798 = vmatprep.subr.bf16.mxu0 0
      %799 = vmatpush1.bf16.msra.mxu0 0
      %800 = vmatprep.subr.bf16.mxu0 0
      %801 = vmatpush1.bf16.msra.mxu0 0
      %802 = vmatprep.subr.bf16.mxu0 0
      %803 = vmatpush1.bf16.msra.mxu0 0
      %804 = vmatprep.subr.bf16.mxu0 0
      %805 = vmatpush1.bf16.msra.mxu0 0
      %806 = vmatprep.subr.bf16.mxu0 0
      %807 = vmatpush1.bf16.msra.mxu0 0
      %808 = vmatprep.subr.bf16.mxu0 0
      %809 = vmatpush1.bf16.msra.mxu0 0
      %810 = vmatprep.subr.bf16.mxu0 0
      %811 = vmatpush1.bf16.msra.mxu0 0
      %812 = vmatprep.subr.bf16.mxu0 0
      %813 = vmatpush1.bf16.msra.mxu0 0
      %814 = vmatprep.subr.bf16.mxu0 0
      %815 = vmatpush1.bf16.msra.mxu0 0
      %816 = vmatprep.subr.bf16.mxu0 0
      %817 = vmatpush1.bf16.msra.mxu0 0
      %818 = vmatprep.subr.bf16.mxu0 0
      %819 = vmatpush1.bf16.msra.mxu0 0
      %820 = vmatprep.subr.bf16.mxu0 0
      %821 = vmatpush1.bf16.msra.mxu0 0
      %822 = vmatprep.subr.bf16.mxu0 0
      %823 = vmatpush1.bf16.msra.mxu0 0
      %824 = vmatprep.mubr.bf16.mxu0 0
      %825 = vmatmul.mubr.bf16.gmra.mrb[0].mxu0 %v741
      %v826 = vpop.f32.mrb[0].mxu0
      %v827 = vadd.f32 0.0, %v826
      %v828 = vpop.f32.mrb[0].mxu0
      %v829 = vpop.f32.mrb[0].mxu0
      %v830 = vadd.f32 0.0, %v829
      %v831 = vpop.f32.mrb[0].mxu0
      %832 = vmatprep.mubr.bf16.mxu0 0
      %833 = vmatmul.mubr.bf16.gmra.mrb[0].mxu0 %v744
      %v834 = vpop.f32.mrb[0].mxu0
      %v835 = vadd.f32 0.0, %v834
      %v836 = vpop.f32.mrb[0].mxu0
      %v837 = vpop.f32.mrb[0].mxu0
      %v838 = vadd.f32 0.0, %v837
      %v839 = vpop.f32.mrb[0].mxu0
      %840 = vmatprep.mubr.bf16.mxu0 0
      %841 = vmatmul.mubr.bf16.gmra.mrb[0].mxu0 %v747
      %v842 = vpop.f32.mrb[0].mxu0
      %v843 = vadd.f32 0.0, %v842
      %v844 = vpop.f32.mrb[0].mxu0
      %v845 = vpop.f32.mrb[0].mxu0
      %v846 = vadd.f32 0.0, %v845
      %v847 = vpop.f32.mrb[0].mxu0
      %848 = vmatprep.mubr.bf16.mxu0 0
      %849 = vmatmul.mubr.bf16.gmra.mrb[0].mxu0 %v750
      %v850 = vpop.f32.mrb[0].mxu0
      %v851 = vadd.f32 0.0, %v850
      %v852 = vpop.f32.mrb[0].mxu0
      %v853 = vpop.f32.mrb[0].mxu0
      %v854 = vadd.f32 0.0, %v853
      %v855 = vpop.f32.mrb[0].mxu0
      %856 = vmatprep.mubr.bf16.mxu0 0
      %857 = vmatmul.mubr.bf16.gmra.mrb[0].mxu0 %v753
      %v858 = vpop.f32.mrb[0].mxu0
      %v859 = vadd.f32 0.0, %v858
      %v860 = vpop.f32.mrb[0].mxu0
      %v861 = vpop.f32.mrb[0].mxu0
      %v862 = vadd.f32 0.0, %v861
      %v863 = vpop.f32.mrb[0].mxu0
      %864 = vmatprep.mubr.bf16.mxu0 0
      %865 = vmatmul.mubr.bf16.gmra.mrb[0].mxu0 %v756
      %v866 = vpop.f32.mrb[0].mxu0
      %v867 = vadd.f32 0.0, %v866
      %v868 = vpop.f32.mrb[0].mxu0
      %v869 = vpop.f32.mrb[0].mxu0
      %v870 = vadd.f32 0.0, %v869
      %v871 = vpop.f32.mrb[0].mxu0
      %872 = vmatprep.mubr.bf16.mxu0 0
      %873 = vmatmul.mubr.bf16.gmra.mrb[0].mxu0 %v759
      %v874 = vpop.f32.mrb[0].mxu0
      %v875 = vadd.f32 0.0, %v874
      %v876 = vpop.f32.mrb[0].mxu0
      %v877 = vpop.f32.mrb[0].mxu0
      %v878 = vadd.f32 0.0, %v877
      %v879 = vpop.f32.mrb[0].mxu0
      %880 = vmatprep.mubr.bf16.mxu0 0
      %881 = vmatmul.mubr.bf16.gmra.mrb[0].mxu0 %v762
      %v882 = vpop.f32.mrb[0].mxu0
      %v883 = vadd.f32 0.0, %v882
      %v884 = vpop.f32.mrb[0].mxu0
      %v885 = vpop.f32.mrb[0].mxu0
      %v886 = vadd.f32 0.0, %v885
      %v887 = vpop.f32.mrb[0].mxu0
      %888 = vmatprep.mubr.bf16.mxu0 0
      %889 = vmatmul.mubr.bf16.gmra.mrb[0].mxu0 %v765
      %v890 = vpop.f32.mrb[0].mxu0
      %v891 = vadd.f32 0.0, %v890
      %v892 = vpop.f32.mrb[0].mxu0
      %v893 = vpop.f32.mrb[0].mxu0
      %v894 = vadd.f32 0.0, %v893
      %v895 = vpop.f32.mrb[0].mxu0
      %896 = vmatprep.mubr.bf16.mxu0 0
      %897 = vmatmul.mubr.bf16.gmra.mrb[0].mxu0 %v768
      %v898 = vpop.f32.mrb[0].mxu0
      %v899 = vadd.f32 0.0, %v898
      %v900 = vpop.f32.mrb[0].mxu0
      %v901 = vpop.f32.mrb[0].mxu0
      %v902 = vadd.f32 0.0, %v901
      %v903 = vpop.f32.mrb[0].mxu0
      %904 = vmatprep.mubr.bf16.mxu0 0
      %905 = vmatmul.mubr.bf16.gmra.mrb[0].mxu0 %v771
      %v906 = vpop.f32.mrb[0].mxu0
      %v907 = vadd.f32 0.0, %v906
      %v908 = vpop.f32.mrb[0].mxu0
      %v909 = vpop.f32.mrb[0].mxu0
      %v910 = vadd.f32 0.0, %v909
      %v911 = vpop.f32.mrb[0].mxu0
      %912 = vmatprep.mubr.bf16.mxu0 0
      %913 = vmatmul.mubr.bf16.gmra.mrb[0].mxu0 %v774
      %v914 = vpop.f32.mrb[0].mxu0
      %v915 = vadd.f32 0.0, %v914
      %v916 = vpop.f32.mrb[0].mxu0
      %v917 = vpop.f32.mrb[0].mxu0
      %v918 = vadd.f32 0.0, %v917
      %v919 = vpop.f32.mrb[0].mxu0
      %920 = vmatprep.mubr.bf16.mxu0 0
      %921 = vmatmul.mubr.bf16.gmra.mrb[0].mxu0 %v777
      %v922 = vpop.f32.mrb[0].mxu0
      %v923 = vadd.f32 0.0, %v922
      %v924 = vpop.f32.mrb[0].mxu0
      %v925 = vpop.f32.mrb[0].mxu0
      %v926 = vadd.f32 0.0, %v925
      %v927 = vpop.f32.mrb[0].mxu0
      %928 = vmatprep.mubr.bf16.mxu0 0
      %929 = vmatmul.mubr.bf16.gmra.mrb[0].mxu0 %v780
      %v930 = vpop.f32.mrb[0].mxu0
      %v931 = vadd.f32 0.0, %v930
      %v932 = vpop.f32.mrb[0].mxu0
      %v933 = vpop.f32.mrb[0].mxu0
      %v934 = vadd.f32 0.0, %v933
      %v935 = vpop.f32.mrb[0].mxu0
      %936 = vmatprep.mubr.bf16.mxu0 0
      %937 = vmatmul.mubr.bf16.gmra.mrb[0].mxu0 %v783
      %v938 = vpop.f32.mrb[0].mxu0
      %v939 = vadd.f32 0.0, %v938
      %v940 = vpop.f32.mrb[0].mxu0
      %v941 = vpop.f32.mrb[0].mxu0
      %v942 = vadd.f32 0.0, %v941
      %v943 = vpop.f32.mrb[0].mxu0
      %944 = vmatprep.mubr.bf16.mxu0 0
      %945 = vmatmul.mubr.bf16.gmra.mrb[0].mxu0 %v786
      %v946 = vpop.f32.mrb[0].mxu0
      %v947 = vadd.f32 0.0, %v946
      %v948 = vpop.f32.mrb[0].mxu0
      %v949 = vpop.f32.mrb[0].mxu0
      %v950 = vadd.f32 0.0, %v949
      %v951 = vpop.f32.mrb[0].mxu0
      %952 = vdwg.mxu0
      %v985 = vunpack.c.l.b16 %v253
      %v986 = vunpack.c.l.b16 %v254
      %v987 = vunpack.c.l.b16 %v255
      %v988 = vunpack.c.l.b16 %v256
      %v989 = vunpack.c.l.b16 %v257
      %v990 = vunpack.c.l.b16 %v258
      %v991 = vunpack.c.l.b16 %v259
      %v992 = vunpack.c.l.b16 %v260
      %v993 = vunpack.c.l.b16 %v261
      %v994 = vunpack.c.l.b16 %v262
      %v995 = vunpack.c.l.b16 %v263
      %v996 = vunpack.c.l.b16 %v264
      %v997 = vunpack.c.l.b16 %v265
      %v998 = vunpack.c.l.b16 %v266
      %v999 = vunpack.c.l.b16 %v267
      %v1000 = vunpack.c.l.b16 %v268
      %v1001 = vunpack.c.l.b16 %v269
      %v1002 = vunpack.c.l.b16 %v270
      %v1003 = vunpack.c.l.b16 %v271
      %v1004 = vunpack.c.l.b16 %v272
      %v1005 = vunpack.c.l.b16 %v273
      %v1006 = vunpack.c.l.b16 %v274
      %v1007 = vunpack.c.l.b16 %v275
      %v1008 = vunpack.c.l.b16 %v276
      %v1009 = vunpack.c.l.b16 %v277
      %v1010 = vunpack.c.l.b16 %v278
      %v1011 = vunpack.c.l.b16 %v279
      %v1012 = vunpack.c.l.b16 %v280
      %v1013 = vunpack.c.l.b16 %v281
      %v1014 = vunpack.c.l.b16 %v282
      %v1015 = vunpack.c.l.b16 %v283
      %v1016 = vunpack.c.l.b16 %v284
      %v1017 = vpack.c.b16 %v986, %v985
      %v1018 = vpack.c.b16 %v988, %v987
      %v1019 = vpack.c.b16 %v990, %v989
      %v1020 = vpack.c.b16 %v992, %v991
      %v1021 = vpack.c.b16 %v994, %v993
      %v1022 = vpack.c.b16 %v996, %v995
      %v1023 = vpack.c.b16 %v998, %v997
      %v1024 = vpack.c.b16 %v1000, %v999
      %v1025 = vpack.c.b16 %v1002, %v1001
      %v1026 = vpack.c.b16 %v1004, %v1003
      %v1027 = vpack.c.b16 %v1006, %v1005
      %v1028 = vpack.c.b16 %v1008, %v1007
      %v1029 = vpack.c.b16 %v1010, %v1009
      %v1030 = vpack.c.b16 %v1012, %v1011
      %v1031 = vpack.c.b16 %v1014, %v1013
      %v1032 = vpack.c.b16 %v1016, %v1015
      %v1034 = vsel %vm739, %v1017, 0
      %v1037 = vsel %vm739, %v1018, 0
      %v1040 = vsel %vm739, %v1019, 0
      %v1043 = vsel %vm739, %v1020, 0
      %v1046 = vsel %vm739, %v1021, 0
      %v1049 = vsel %vm739, %v1022, 0
      %v1052 = vsel %vm739, %v1023, 0
      %v1055 = vsel %vm739, %v1024, 0
      %v1058 = vsel %vm739, %v1025, 0
      %v1061 = vsel %vm739, %v1026, 0
      %v1064 = vsel %vm739, %v1027, 0
      %v1067 = vsel %vm739, %v1028, 0
      %v1070 = vsel %vm739, %v1029, 0
      %v1073 = vsel %vm739, %v1030, 0
      %v1076 = vsel %vm739, %v1031, 0
      %v1079 = vsel %vm739, %v1032, 0
      %v1082 = vsel %vm788, %v285, 0
      %1084 = vmatprep.subr.bf16.mxu0 0
      %1085 = vmatpush1.bf16.msra.mxu0 %v1082
      %1086 = vmatprep.subr.bf16.mxu0 0
      %1087 = vmatpush1.bf16.msra.mxu0 0
      %1088 = vmatprep.subr.bf16.mxu0 0
      %1089 = vmatpush1.bf16.msra.mxu0 0
      %1090 = vmatprep.subr.bf16.mxu0 0
      %1091 = vmatpush1.bf16.msra.mxu0 0
      %1092 = vmatprep.subr.bf16.mxu0 0
      %1093 = vmatpush1.bf16.msra.mxu0 0
      %1094 = vmatprep.subr.bf16.mxu0 0
      %1095 = vmatpush1.bf16.msra.mxu0 0
      %1096 = vmatprep.subr.bf16.mxu0 0
      %1097 = vmatpush1.bf16.msra.mxu0 0
      %1098 = vmatprep.subr.bf16.mxu0 0
      %1099 = vmatpush1.bf16.msra.mxu0 0
      %1100 = vmatprep.subr.bf16.mxu0 0
      %1101 = vmatpush1.bf16.msra.mxu0 0
      %1102 = vmatprep.subr.bf16.mxu0 0
      %1103 = vmatpush1.bf16.msra.mxu0 0
      %1104 = vmatprep.subr.bf16.mxu0 0
      %1105 = vmatpush1.bf16.msra.mxu0 0
      %1106 = vmatprep.subr.bf16.mxu0 0
      %1107 = vmatpush1.bf16.msra.mxu0 0
      %1108 = vmatprep.subr.bf16.mxu0 0
      %1109 = vmatpush1.bf16.msra.mxu0 0
      %1110 = vmatprep.subr.bf16.mxu0 0
      %1111 = vmatpush1.bf16.msra.mxu0 0
      %1112 = vmatprep.subr.bf16.mxu0 0
      %1113 = vmatpush1.bf16.msra.mxu0 0
      %1114 = vmatprep.subr.bf16.mxu0 0
      %1115 = vmatpush1.bf16.msra.mxu0 0
      %1116 = vmatprep.mubr.bf16.mxu0 0
      %1117 = vmatmul.mubr.bf16.gmra.mrb[0].mxu0 %v1034
      %v1118 = vpop.f32.mrb[0].mxu0
      %v1119 = vadd.f32 %v827, %v1118
      %v1120 = vpop.f32.mrb[0].mxu0
      %v1121 = vpop.f32.mrb[0].mxu0
      %v1122 = vadd.f32 %v830, %v1121
      %v1123 = vpop.f32.mrb[0].mxu0
      %1124 = vmatprep.mubr.bf16.mxu0 0
      %1125 = vmatmul.mubr.bf16.gmra.mrb[0].mxu0 %v1037
      %v1126 = vpop.f32.mrb[0].mxu0
      %v1127 = vadd.f32 %v835, %v1126
      %v1128 = vpop.f32.mrb[0].mxu0
      %v1129 = vpop.f32.mrb[0].mxu0
      %v1130 = vadd.f32 %v838, %v1129
      %v1131 = vpop.f32.mrb[0].mxu0
      %1132 = vmatprep.mubr.bf16.mxu0 0
      %1133 = vmatmul.mubr.bf16.gmra.mrb[0].mxu0 %v1040
      %v1134 = vpop.f32.mrb[0].mxu0
      %v1135 = vadd.f32 %v843, %v1134
      %v1136 = vpop.f32.mrb[0].mxu0
      %v1137 = vpop.f32.mrb[0].mxu0
      %v1138 = vadd.f32 %v846, %v1137
      %v1139 = vpop.f32.mrb[0].mxu0
      %1140 = vmatprep.mubr.bf16.mxu0 0
      %1141 = vmatmul.mubr.bf16.gmra.mrb[0].mxu0 %v1043
      %v1142 = vpop.f32.mrb[0].mxu0
      %v1143 = vadd.f32 %v851, %v1142
      %v1144 = vpop.f32.mrb[0].mxu0
      %v1145 = vpop.f32.mrb[0].mxu0
      %v1146 = vadd.f32 %v854, %v1145
      %v1147 = vpop.f32.mrb[0].mxu0
      %1148 = vmatprep.mubr.bf16.mxu0 0
      %1149 = vmatmul.mubr.bf16.gmra.mrb[0].mxu0 %v1046
      %v1150 = vpop.f32.mrb[0].mxu0
      %v1151 = vadd.f32 %v859, %v1150
      %v1152 = vpop.f32.mrb[0].mxu0
      %v1153 = vpop.f32.mrb[0].mxu0
      %v1154 = vadd.f32 %v862, %v1153
      %v1155 = vpop.f32.mrb[0].mxu0
      %1156 = vmatprep.mubr.bf16.mxu0 0
      %1157 = vmatmul.mubr.bf16.gmra.mrb[0].mxu0 %v1049
      %v1158 = vpop.f32.mrb[0].mxu0
      %v1159 = vadd.f32 %v867, %v1158
      %v1160 = vpop.f32.mrb[0].mxu0
      %v1161 = vpop.f32.mrb[0].mxu0
      %v1162 = vadd.f32 %v870, %v1161
      %v1163 = vpop.f32.mrb[0].mxu0
      %1164 = vmatprep.mubr.bf16.mxu0 0
      %1165 = vmatmul.mubr.bf16.gmra.mrb[0].mxu0 %v1052
      %v1166 = vpop.f32.mrb[0].mxu0
      %v1167 = vadd.f32 %v875, %v1166
      %v1168 = vpop.f32.mrb[0].mxu0
      %v1169 = vpop.f32.mrb[0].mxu0
      %v1170 = vadd.f32 %v878, %v1169
      %v1171 = vpop.f32.mrb[0].mxu0
      %1172 = vmatprep.mubr.bf16.mxu0 0
      %1173 = vmatmul.mubr.bf16.gmra.mrb[0].mxu0 %v1055
      %v1174 = vpop.f32.mrb[0].mxu0
      %v1175 = vadd.f32 %v883, %v1174
      %v1176 = vpop.f32.mrb[0].mxu0
      %v1177 = vpop.f32.mrb[0].mxu0
      %v1178 = vadd.f32 %v886, %v1177
      %v1179 = vpop.f32.mrb[0].mxu0
      %1180 = vmatprep.mubr.bf16.mxu0 0
      %1181 = vmatmul.mubr.bf16.gmra.mrb[0].mxu0 %v1058
      %v1182 = vpop.f32.mrb[0].mxu0
      %v1183 = vadd.f32 %v891, %v1182
      %v1184 = vpop.f32.mrb[0].mxu0
      %v1185 = vpop.f32.mrb[0].mxu0
      %v1186 = vadd.f32 %v894, %v1185
      %v1187 = vpop.f32.mrb[0].mxu0
      %1188 = vmatprep.mubr.bf16.mxu0 0
      %1189 = vmatmul.mubr.bf16.gmra.mrb[0].mxu0 %v1061
      %v1190 = vpop.f32.mrb[0].mxu0
      %v1191 = vadd.f32 %v899, %v1190
      %v1192 = vpop.f32.mrb[0].mxu0
      %v1193 = vpop.f32.mrb[0].mxu0
      %v1194 = vadd.f32 %v902, %v1193
      %v1195 = vpop.f32.mrb[0].mxu0
      %1196 = vmatprep.mubr.bf16.mxu0 0
      %1197 = vmatmul.mubr.bf16.gmra.mrb[0].mxu0 %v1064
      %v1198 = vpop.f32.mrb[0].mxu0
      %v1199 = vadd.f32 %v907, %v1198
      %v1200 = vpop.f32.mrb[0].mxu0
      %v1201 = vpop.f32.mrb[0].mxu0
      %v1202 = vadd.f32 %v910, %v1201
      %v1203 = vpop.f32.mrb[0].mxu0
      %1204 = vmatprep.mubr.bf16.mxu0 0
      %1205 = vmatmul.mubr.bf16.gmra.mrb[0].mxu0 %v1067
      %v1206 = vpop.f32.mrb[0].mxu0
      %v1207 = vadd.f32 %v915, %v1206
      %v1208 = vpop.f32.mrb[0].mxu0
      %v1209 = vpop.f32.mrb[0].mxu0
      %v1210 = vadd.f32 %v918, %v1209
      %v1211 = vpop.f32.mrb[0].mxu0
      %1212 = vmatprep.mubr.bf16.mxu0 0
      %1213 = vmatmul.mubr.bf16.gmra.mrb[0].mxu0 %v1070
      %v1214 = vpop.f32.mrb[0].mxu0
      %v1215 = vadd.f32 %v923, %v1214
      %v1216 = vpop.f32.mrb[0].mxu0
      %v1217 = vpop.f32.mrb[0].mxu0
      %v1218 = vadd.f32 %v926, %v1217
      %v1219 = vpop.f32.mrb[0].mxu0
      %1220 = vmatprep.mubr.bf16.mxu0 0
      %1221 = vmatmul.mubr.bf16.gmra.mrb[0].mxu0 %v1073
      %v1222 = vpop.f32.mrb[0].mxu0
      %v1223 = vadd.f32 %v931, %v1222
      %v1224 = vpop.f32.mrb[0].mxu0
      %v1225 = vpop.f32.mrb[0].mxu0
      %v1226 = vadd.f32 %v934, %v1225
      %v1227 = vpop.f32.mrb[0].mxu0
      %1228 = vmatprep.mubr.bf16.mxu0 0
      %1229 = vmatmul.mubr.bf16.gmra.mrb[0].mxu0 %v1076
      %v1230 = vpop.f32.mrb[0].mxu0
      %v1231 = vadd.f32 %v939, %v1230
      %v1232 = vpop.f32.mrb[0].mxu0
      %v1233 = vpop.f32.mrb[0].mxu0
      %v1234 = vadd.f32 %v942, %v1233
      %v1235 = vpop.f32.mrb[0].mxu0
      %1236 = vmatprep.mubr.bf16.mxu0 0
      %1237 = vmatmul.mubr.bf16.gmra.mrb[0].mxu0 %v1079
      %v1238 = vpop.f32.mrb[0].mxu0
      %v1239 = vadd.f32 %v947, %v1238
      %v1240 = vpop.f32.mrb[0].mxu0
      %v1241 = vpop.f32.mrb[0].mxu0
      %v1242 = vadd.f32 %v950, %v1241
      %v1243 = vpop.f32.mrb[0].mxu0
      %1244 = vdwg.mxu0
      %v1245 = vld [vmem:[%s246] sm:$0xe]
      %v1246 = vld [vmem:[%s246 + $0xc] sm:$0xe]
      %v1247 = vld [vmem:[%s246 + $0x18] sm:$0xe]
      %v1248 = vld [vmem:[%s246 + $0x24] sm:$0xe]
      %v1249 = vld [vmem:[%s246 + $0x30] sm:$0xe]
      %v1250 = vld [vmem:[%s246 + $0x3c] sm:$0xe]
      %v1251 = vld [vmem:[%s246 + $0x48] sm:$0xe]
      %v1252 = vld [vmem:[%s246 + $0x54] sm:$0xe]
      %v1253 = vld [vmem:[%s246 + $0x60] sm:$0xe]
      %v1254 = vld [vmem:[%s246 + $0x6c] sm:$0xe]
      %v1255 = vld [vmem:[%s246 + $0x78] sm:$0xe]
      %v1256 = vld [vmem:[%s246 + $0x84] sm:$0xe]
      %v1257 = vld [vmem:[%s246 + $0x90] sm:$0xe]
      %v1258 = vld [vmem:[%s246 + $0x9c] sm:$0xe]
      %v1259 = vld [vmem:[%s246 + $0xa8] sm:$0xe]
      %v1260 = vld [vmem:[%s246 + $0xb4] sm:$0xe]
      %vm1293 = vcmask 1042432
      %vm1294 = vcmask 1046532
      %vm1295 = vmor %vm1293, %vm1294
      %v1296 = vrot.slane %v1245, 5
      %v1297 = vrot.slane %v1296, 4
      %v1298 = vrot.slane %v254, 5
      %v1299 = vsel %vm1295, %v1297, %v1298
      %v1300 = vrot.slane %v1298, 4
      %v1301 = vrot.slane %v286, 5
      %v1302 = vsel %vm1295, %v1300, %v1301
      %v1303 = vrot.slane %v1246, 5
      %v1304 = vrot.slane %v1303, 4
      %v1305 = vrot.slane %v256, 5
      %v1306 = vsel %vm1295, %v1304, %v1305
      %v1307 = vrot.slane %v1305, 4
      %v1308 = vrot.slane %v287, 5
      %v1309 = vsel %vm1295, %v1307, %v1308
      %v1310 = vrot.slane %v1247, 5
      %v1311 = vrot.slane %v1310, 4
      %v1312 = vrot.slane %v258, 5
      %v1313 = vsel %vm1295, %v1311, %v1312
      %v1314 = vrot.slane %v1312, 4
      %v1315 = vrot.slane %v288, 5
      %v1316 = vsel %vm1295, %v1314, %v1315
      %v1317 = vrot.slane %v1248, 5
      %v1318 = vrot.slane %v1317, 4
      %v1319 = vrot.slane %v260, 5
      %v1320 = vsel %vm1295, %v1318, %v1319
      %v1321 = vrot.slane %v1319, 4
      %v1322 = vrot.slane %v289, 5
      %v1323 = vsel %vm1295, %v1321, %v1322
      %v1324 = vrot.slane %v1249, 5
      %v1325 = vrot.slane %v1324, 4
      %v1326 = vrot.slane %v262, 5
      %v1327 = vsel %vm1295, %v1325, %v1326
      %v1328 = vrot.slane %v1326, 4
      %v1329 = vrot.slane %v290, 5
      %v1330 = vsel %vm1295, %v1328, %v1329
      %v1331 = vrot.slane %v1250, 5
      %v1332 = vrot.slane %v1331, 4
      %v1333 = vrot.slane %v264, 5
      %v1334 = vsel %vm1295, %v1332, %v1333
      %v1335 = vrot.slane %v1333, 4
      %v1336 = vrot.slane %v291, 5
      %v1337 = vsel %vm1295, %v1335, %v1336
      %v1338 = vrot.slane %v1251, 5
      %v1339 = vrot.slane %v1338, 4
      %v1340 = vrot.slane %v266, 5
      %v1341 = vsel %vm1295, %v1339, %v1340
      %v1342 = vrot.slane %v1340, 4
      %v1343 = vrot.slane %v292, 5
      %v1344 = vsel %vm1295, %v1342, %v1343
      %v1345 = vrot.slane %v1252, 5
      %v1346 = vrot.slane %v1345, 4
      %v1347 = vrot.slane %v268, 5
      %v1348 = vsel %vm1295, %v1346, %v1347
      %v1349 = vrot.slane %v1347, 4
      %v1350 = vrot.slane %v293, 5
      %v1351 = vsel %vm1295, %v1349, %v1350
      %v1352 = vrot.slane %v1253, 5
      %v1353 = vrot.slane %v1352, 4
      %v1354 = vrot.slane %v270, 5
      %v1355 = vsel %vm1295, %v1353, %v1354
      %v1356 = vrot.slane %v1354, 4
      %v1357 = vrot.slane %v294, 5
      %v1358 = vsel %vm1295, %v1356, %v1357
      %v1359 = vrot.slane %v1254, 5
      %v1360 = vrot.slane %v1359, 4
      %v1361 = vrot.slane %v272, 5
      %v1362 = vsel %vm1295, %v1360, %v1361
      %v1363 = vrot.slane %v1361, 4
      %v1364 = vrot.slane %v295, 5
      %v1365 = vsel %vm1295, %v1363, %v1364
      %v1366 = vrot.slane %v1255, 5
      %v1367 = vrot.slane %v1366, 4
      %v1368 = vrot.slane %v274, 5
      %v1369 = vsel %vm1295, %v1367, %v1368
      %v1370 = vrot.slane %v1368, 4
      %v1371 = vrot.slane %v296, 5
      %v1372 = vsel %vm1295, %v1370, %v1371
      %v1373 = vrot.slane %v1256, 5
      %v1374 = vrot.slane %v1373, 4
      %v1375 = vrot.slane %v276, 5
      %v1376 = vsel %vm1295, %v1374, %v1375
      %v1377 = vrot.slane %v1375, 4
      %v1378 = vrot.slane %v297, 5
      %v1379 = vsel %vm1295, %v1377, %v1378
      %v1380 = vrot.slane %v1257, 5
      %v1381 = vrot.slane %v1380, 4
      %v1382 = vrot.slane %v278, 5
      %v1383 = vsel %vm1295, %v1381, %v1382
      %v1384 = vrot.slane %v1382, 4
      %v1385 = vrot.slane %v298, 5
      %v1386 = vsel %vm1295, %v1384, %v1385
      %v1387 = vrot.slane %v1258, 5
      %v1388 = vrot.slane %v1387, 4
      %v1389 = vrot.slane %v280, 5
      %v1390 = vsel %vm1295, %v1388, %v1389
      %v1391 = vrot.slane %v1389, 4
      %v1392 = vrot.slane %v299, 5
      %v1393 = vsel %vm1295, %v1391, %v1392
      %v1394 = vrot.slane %v1259, 5
      %v1395 = vrot.slane %v1394, 4
      %v1396 = vrot.slane %v282, 5
      %v1397 = vsel %vm1295, %v1395, %v1396
      %v1398 = vrot.slane %v1396, 4
      %v1399 = vrot.slane %v300, 5
      %v1400 = vsel %vm1295, %v1398, %v1399
      %v1401 = vrot.slane %v1260, 5
      %v1402 = vrot.slane %v1401, 4
      %v1403 = vrot.slane %v284, 5
      %v1404 = vsel %vm1295, %v1402, %v1403
      %v1405 = vrot.slane %v1403, 4
      %v1406 = vrot.slane %v301, 5
      %v1407 = vsel %vm1295, %v1405, %v1406
      %s1408 = scalar_lea.vmem %s1, 4
      %v1409 = vld [vmem:[%s1408] sm:$0x3]
      %v1410 = vunpack.c.l.b16 %v1299
      %v1411 = vunpack.c.l.b16 %v1302
      %v1412 = vunpack.c.l.b16 %v1306
      %v1413 = vunpack.c.l.b16 %v1309
      %v1414 = vunpack.c.l.b16 %v1313
      %v1415 = vunpack.c.l.b16 %v1316
      %v1416 = vunpack.c.l.b16 %v1320
      %v1417 = vunpack.c.l.b16 %v1323
      %v1418 = vunpack.c.l.b16 %v1327
      %v1419 = vunpack.c.l.b16 %v1330
      %v1420 = vunpack.c.l.b16 %v1334
      %v1421 = vunpack.c.l.b16 %v1337
      %v1422 = vunpack.c.l.b16 %v1341
      %v1423 = vunpack.c.l.b16 %v1344
      %v1424 = vunpack.c.l.b16 %v1348
      %v1425 = vunpack.c.l.b16 %v1351
      %v1426 = vunpack.c.l.b16 %v1355
      %v1427 = vunpack.c.l.b16 %v1358
      %v1428 = vunpack.c.l.b16 %v1362
      %v1429 = vunpack.c.l.b16 %v1365
      %v1430 = vunpack.c.l.b16 %v1369
      %v1431 = vunpack.c.l.b16 %v1372
      %v1432 = vunpack.c.l.b16 %v1376
      %v1433 = vunpack.c.l.b16 %v1379
      %v1434 = vunpack.c.l.b16 %v1383
      %v1435 = vunpack.c.l.b16 %v1386
      %v1436 = vunpack.c.l.b16 %v1390
      %v1437 = vunpack.c.l.b16 %v1393
      %v1438 = vunpack.c.l.b16 %v1397
      %v1439 = vunpack.c.l.b16 %v1400
      %v1440 = vunpack.c.l.b16 %v1404
      %v1441 = vunpack.c.l.b16 %v1407
      %v1442 = vpack.c.b16 %v1411, %v1410
      %v1443 = vpack.c.b16 %v1413, %v1412
      %v1444 = vpack.c.b16 %v1415, %v1414
      %v1445 = vpack.c.b16 %v1417, %v1416
      %v1446 = vpack.c.b16 %v1419, %v1418
      %v1447 = vpack.c.b16 %v1421, %v1420
      %v1448 = vpack.c.b16 %v1423, %v1422
      %v1449 = vpack.c.b16 %v1425, %v1424
      %v1450 = vpack.c.b16 %v1427, %v1426
      %v1451 = vpack.c.b16 %v1429, %v1428
      %v1452 = vpack.c.b16 %v1431, %v1430
      %v1453 = vpack.c.b16 %v1433, %v1432
      %v1454 = vpack.c.b16 %v1435, %v1434
      %v1455 = vpack.c.b16 %v1437, %v1436
      %v1456 = vpack.c.b16 %v1439, %v1438
      %v1457 = vpack.c.b16 %v1441, %v1440
      %v1459 = vsel %vm739, %v1442, 0
      %v1462 = vsel %vm739, %v1443, 0
      %v1465 = vsel %vm739, %v1444, 0
      %v1468 = vsel %vm739, %v1445, 0
      %v1471 = vsel %vm739, %v1446, 0
      %v1474 = vsel %vm739, %v1447, 0
      %v1477 = vsel %vm739, %v1448, 0
      %v1480 = vsel %vm739, %v1449, 0
      %v1483 = vsel %vm739, %v1450, 0
      %v1486 = vsel %vm739, %v1451, 0
      %v1489 = vsel %vm739, %v1452, 0
      %v1492 = vsel %vm739, %v1453, 0
      %v1495 = vsel %vm739, %v1454, 0
      %v1498 = vsel %vm739, %v1455, 0
      %v1501 = vsel %vm739, %v1456, 0
      %v1504 = vsel %vm739, %v1457, 0
      %v1507 = vsel %vm788, %v1409, 0
      %1509 = vmatprep.subr.bf16.mxu0 0
      %1510 = vmatpush1.bf16.msra.mxu0 %v1507
      %1511 = vmatprep.subr.bf16.mxu0 0
      %1512 = vmatpush1.bf16.msra.mxu0 0
      %1513 = vmatprep.subr.bf16.mxu0 0
      %1514 = vmatpush1.bf16.msra.mxu0 0
      %1515 = vmatprep.subr.bf16.mxu0 0
      %1516 = vmatpush1.bf16.msra.mxu0 0
      %1517 = vmatprep.subr.bf16.mxu0 0
      %1518 = vmatpush1.bf16.msra.mxu0 0
      %1519 = vmatprep.subr.bf16.mxu0 0
      %1520 = vmatpush1.bf16.msra.mxu0 0
      %1521 = vmatprep.subr.bf16.mxu0 0
      %1522 = vmatpush1.bf16.msra.mxu0 0
      %1523 = vmatprep.subr.bf16.mxu0 0
      %1524 = vmatpush1.bf16.msra.mxu0 0
      %1525 = vmatprep.subr.bf16.mxu0 0
      %1526 = vmatpush1.bf16.msra.mxu0 0
      %1527 = vmatprep.subr.bf16.mxu0 0
      %1528 = vmatpush1.bf16.msra.mxu0 0
      %1529 = vmatprep.subr.bf16.mxu0 0
      %1530 = vmatpush1.bf16.msra.mxu0 0
      %1531 = vmatprep.subr.bf16.mxu0 0
      %1532 = vmatpush1.bf16.msra.mxu0 0
      %1533 = vmatprep.subr.bf16.mxu0 0
      %1534 = vmatpush1.bf16.msra.mxu0 0
      %1535 = vmatprep.subr.bf16.mxu0 0
      %1536 = vmatpush1.bf16.msra.mxu0 0
      %1537 = vmatprep.subr.bf16.mxu0 0
      %1538 = vmatpush1.bf16.msra.mxu0 0
      %1539 = vmatprep.subr.bf16.mxu0 0
      %1540 = vmatpush1.bf16.msra.mxu0 0
      %1541 = vmatprep.mubr.bf16.mxu0 0
      %1542 = vmatmul.mubr.bf16.gmra.mrb[0].mxu0 %v1459
      %v1543 = vpop.f32.mrb[0].mxu0
      %v1544 = vadd.f32 0.0, %v1543
      %v1545 = vpop.f32.mrb[0].mxu0
      %v1546 = vpop.f32.mrb[0].mxu0
      %v1547 = vadd.f32 0.0, %v1546
      %v1548 = vpop.f32.mrb[0].mxu0
      %1549 = vmatprep.mubr.bf16.mxu0 0
      %1550 = vmatmul.mubr.bf16.gmra.mrb[0].mxu0 %v1462
      %v1551 = vpop.f32.mrb[0].mxu0
      %v1552 = vadd.f32 0.0, %v1551
      %v1553 = vpop.f32.mrb[0].mxu0
      %v1554 = vpop.f32.mrb[0].mxu0
      %v1555 = vadd.f32 0.0, %v1554
      %v1556 = vpop.f32.mrb[0].mxu0
      %1557 = vmatprep.mubr.bf16.mxu0 0
      %1558 = vmatmul.mubr.bf16.gmra.mrb[0].mxu0 %v1465
      %v1559 = vpop.f32.mrb[0].mxu0
      %v1560 = vadd.f32 0.0, %v1559
      %v1561 = vpop.f32.mrb[0].mxu0
      %v1562 = vpop.f32.mrb[0].mxu0
      %v1563 = vadd.f32 0.0, %v1562
      %v1564 = vpop.f32.mrb[0].mxu0
      %1565 = vmatprep.mubr.bf16.mxu0 0
      %1566 = vmatmul.mubr.bf16.gmra.mrb[0].mxu0 %v1468
      %v1567 = vpop.f32.mrb[0].mxu0
      %v1568 = vadd.f32 0.0, %v1567
      %v1569 = vpop.f32.mrb[0].mxu0
      %v1570 = vpop.f32.mrb[0].mxu0
      %v1571 = vadd.f32 0.0, %v1570
      %v1572 = vpop.f32.mrb[0].mxu0
      %1573 = vmatprep.mubr.bf16.mxu0 0
      %1574 = vmatmul.mubr.bf16.gmra.mrb[0].mxu0 %v1471
      %v1575 = vpop.f32.mrb[0].mxu0
      %v1576 = vadd.f32 0.0, %v1575
      %v1577 = vpop.f32.mrb[0].mxu0
      %v1578 = vpop.f32.mrb[0].mxu0
      %v1579 = vadd.f32 0.0, %v1578
      %v1580 = vpop.f32.mrb[0].mxu0
      %1581 = vmatprep.mubr.bf16.mxu0 0
      %1582 = vmatmul.mubr.bf16.gmra.mrb[0].mxu0 %v1474
      %v1583 = vpop.f32.mrb[0].mxu0
      %v1584 = vadd.f32 0.0, %v1583
      %v1585 = vpop.f32.mrb[0].mxu0
      %v1586 = vpop.f32.mrb[0].mxu0
      %v1587 = vadd.f32 0.0, %v1586
      %v1588 = vpop.f32.mrb[0].mxu0
      %1589 = vmatprep.mubr.bf16.mxu0 0
      %1590 = vmatmul.mubr.bf16.gmra.mrb[0].mxu0 %v1477
      %v1591 = vpop.f32.mrb[0].mxu0
      %v1592 = vadd.f32 0.0, %v1591
      %v1593 = vpop.f32.mrb[0].mxu0
      %v1594 = vpop.f32.mrb[0].mxu0
      %v1595 = vadd.f32 0.0, %v1594
      %v1596 = vpop.f32.mrb[0].mxu0
      %1597 = vmatprep.mubr.bf16.mxu0 0
      %1598 = vmatmul.mubr.bf16.gmra.mrb[0].mxu0 %v1480
      %v1599 = vpop.f32.mrb[0].mxu0
      %v1600 = vadd.f32 0.0, %v1599
      %v1601 = vpop.f32.mrb[0].mxu0
      %v1602 = vpop.f32.mrb[0].mxu0
      %v1603 = vadd.f32 0.0, %v1602
      %v1604 = vpop.f32.mrb[0].mxu0
      %1605 = vmatprep.mubr.bf16.mxu0 0
      %1606 = vmatmul.mubr.bf16.gmra.mrb[0].mxu0 %v1483
      %v1607 = vpop.f32.mrb[0].mxu0
      %v1608 = vadd.f32 0.0, %v1607
      %v1609 = vpop.f32.mrb[0].mxu0
      %v1610 = vpop.f32.mrb[0].mxu0
      %v1611 = vadd.f32 0.0, %v1610
      %v1612 = vpop.f32.mrb[0].mxu0
      %1613 = vmatprep.mubr.bf16.mxu0 0
      %1614 = vmatmul.mubr.bf16.gmra.mrb[0].mxu0 %v1486
      %v1615 = vpop.f32.mrb[0].mxu0
      %v1616 = vadd.f32 0.0, %v1615
      %v1617 = vpop.f32.mrb[0].mxu0
      %v1618 = vpop.f32.mrb[0].mxu0
      %v1619 = vadd.f32 0.0, %v1618
      %v1620 = vpop.f32.mrb[0].mxu0
      %1621 = vmatprep.mubr.bf16.mxu0 0
      %1622 = vmatmul.mubr.bf16.gmra.mrb[0].mxu0 %v1489
      %v1623 = vpop.f32.mrb[0].mxu0
      %v1624 = vadd.f32 0.0, %v1623
      %v1625 = vpop.f32.mrb[0].mxu0
      %v1626 = vpop.f32.mrb[0].mxu0
      %v1627 = vadd.f32 0.0, %v1626
      %v1628 = vpop.f32.mrb[0].mxu0
      %1629 = vmatprep.mubr.bf16.mxu0 0
      %1630 = vmatmul.mubr.bf16.gmra.mrb[0].mxu0 %v1492
      %v1631 = vpop.f32.mrb[0].mxu0
      %v1632 = vadd.f32 0.0, %v1631
      %v1633 = vpop.f32.mrb[0].mxu0
      %v1634 = vpop.f32.mrb[0].mxu0
      %v1635 = vadd.f32 0.0, %v1634
      %v1636 = vpop.f32.mrb[0].mxu0
      %1637 = vmatprep.mubr.bf16.mxu0 0
      %1638 = vmatmul.mubr.bf16.gmra.mrb[0].mxu0 %v1495
      %v1639 = vpop.f32.mrb[0].mxu0
      %v1640 = vadd.f32 0.0, %v1639
      %v1641 = vpop.f32.mrb[0].mxu0
      %v1642 = vpop.f32.mrb[0].mxu0
      %v1643 = vadd.f32 0.0, %v1642
      %v1644 = vpop.f32.mrb[0].mxu0
      %1645 = vmatprep.mubr.bf16.mxu0 0
      %1646 = vmatmul.mubr.bf16.gmra.mrb[0].mxu0 %v1498
      %v1647 = vpop.f32.mrb[0].mxu0
      %v1648 = vadd.f32 0.0, %v1647
      %v1649 = vpop.f32.mrb[0].mxu0
      %v1650 = vpop.f32.mrb[0].mxu0
      %v1651 = vadd.f32 0.0, %v1650
      %v1652 = vpop.f32.mrb[0].mxu0
      %1653 = vmatprep.mubr.bf16.mxu0 0
      %1654 = vmatmul.mubr.bf16.gmra.mrb[0].mxu0 %v1501
      %v1655 = vpop.f32.mrb[0].mxu0
      %v1656 = vadd.f32 0.0, %v1655
      %v1657 = vpop.f32.mrb[0].mxu0
      %v1658 = vpop.f32.mrb[0].mxu0
      %v1659 = vadd.f32 0.0, %v1658
      %v1660 = vpop.f32.mrb[0].mxu0
      %1661 = vmatprep.mubr.bf16.mxu0 0
      %1662 = vmatmul.mubr.bf16.gmra.mrb[0].mxu0 %v1504
      %v1663 = vpop.f32.mrb[0].mxu0
      %v1664 = vadd.f32 0.0, %v1663
      %v1665 = vpop.f32.mrb[0].mxu0
      %v1666 = vpop.f32.mrb[0].mxu0
      %v1667 = vadd.f32 0.0, %v1666
      %v1668 = vpop.f32.mrb[0].mxu0
      %1669 = vdwg.mxu0
      %v1670 = vadd.f32 %v1119, %v1544
      %v1671 = vadd.f32 %v1122, %v1547
      %v1672 = vadd.f32 %v1127, %v1552
      %v1673 = vadd.f32 %v1130, %v1555
      %v1674 = vadd.f32 %v1135, %v1560
      %v1675 = vadd.f32 %v1138, %v1563
      %v1676 = vadd.f32 %v1143, %v1568
      %v1677 = vadd.f32 %v1146, %v1571
      %v1678 = vadd.f32 %v1151, %v1576
      %v1679 = vadd.f32 %v1154, %v1579
      %v1680 = vadd.f32 %v1159, %v1584
      %v1681 = vadd.f32 %v1162, %v1587
      %v1682 = vadd.f32 %v1167, %v1592
      %v1683 = vadd.f32 %v1170, %v1595
      %v1684 = vadd.f32 %v1175, %v1600
      %v1685 = vadd.f32 %v1178, %v1603
      %v1686 = vadd.f32 %v1183, %v1608
      %v1687 = vadd.f32 %v1186, %v1611
      %v1688 = vadd.f32 %v1191, %v1616
      %v1689 = vadd.f32 %v1194, %v1619
      %v1690 = vadd.f32 %v1199, %v1624
      %v1691 = vadd.f32 %v1202, %v1627
      %v1692 = vadd.f32 %v1207, %v1632
      %v1693 = vadd.f32 %v1210, %v1635
      %v1694 = vadd.f32 %v1215, %v1640
      %v1695 = vadd.f32 %v1218, %v1643
      %v1696 = vadd.f32 %v1223, %v1648
      %v1697 = vadd.f32 %v1226, %v1651
      %v1698 = vadd.f32 %v1231, %v1656
      %v1699 = vadd.f32 %v1234, %v1659
      %v1700 = vadd.f32 %v1239, %v1664
      %v1701 = vadd.f32 %v1242, %v1667
      %s1702 = scalar_lea.vmem %s246, 12
      %v1703 = vld [vmem:[%s1702] sm:$0xf]
      %v1704 = vld [vmem:[%s1702 + $0x4] sm:$0xf]
      %v1705 = vld [vmem:[%s1702 + $0xc] sm:$0xf]
      %v1706 = vld [vmem:[%s1702 + $0x10] sm:$0xf]
      %v1707 = vld [vmem:[%s1702 + $0x18] sm:$0xf]
      %v1708 = vld [vmem:[%s1702 + $0x1c] sm:$0xf]
      %v1709 = vld [vmem:[%s1702 + $0x24] sm:$0xf]
      %v1710 = vld [vmem:[%s1702 + $0x28] sm:$0xf]
      %v1711 = vld [vmem:[%s1702 + $0x30] sm:$0xf]
      %v1712 = vld [vmem:[%s1702 + $0x34] sm:$0xf]
      %v1713 = vld [vmem:[%s1702 + $0x3c] sm:$0xf]
      %v1714 = vld [vmem:[%s1702 + $0x40] sm:$0xf]
      %v1715 = vld [vmem:[%s1702 + $0x48] sm:$0xf]
      %v1716 = vld [vmem:[%s1702 + $0x4c] sm:$0xf]
      %v1717 = vld [vmem:[%s1702 + $0x54] sm:$0xf]
      %v1718 = vld [vmem:[%s1702 + $0x58] sm:$0xf]
      %v1719 = vld [vmem:[%s1702 + $0x60] sm:$0xf]
      %v1720 = vld [vmem:[%s1702 + $0x64] sm:$0xf]
      %v1721 = vld [vmem:[%s1702 + $0x6c] sm:$0xf]
      %v1722 = vld [vmem:[%s1702 + $0x70] sm:$0xf]
      %v1723 = vld [vmem:[%s1702 + $0x78] sm:$0xf]
      %v1724 = vld [vmem:[%s1702 + $0x7c] sm:$0xf]
      %v1725 = vld [vmem:[%s1702 + $0x84] sm:$0xf]
      %v1726 = vld [vmem:[%s1702 + $0x88] sm:$0xf]
      %v1727 = vld [vmem:[%s1702 + $0x90] sm:$0xf]
      %v1728 = vld [vmem:[%s1702 + $0x94] sm:$0xf]
      %v1729 = vld [vmem:[%s1702 + $0x9c] sm:$0xf]
      %v1730 = vld [vmem:[%s1702 + $0xa0] sm:$0xf]
      %v1731 = vld [vmem:[%s1702 + $0xa8] sm:$0xf]
      %v1732 = vld [vmem:[%s1702 + $0xac] sm:$0xf]
      %v1733 = vld [vmem:[%s1702 + $0xb4] sm:$0xf]
      %v1734 = vld [vmem:[%s1702 + $0xb8] sm:$0xf]
      %s1735 = scalar_lea.vmem %s1, 6
      %v1736 = vld [vmem:[%s1735] sm:$0x3]
      %v1769 = vunpack.c.l.b16 %v1703
      %v1770 = vunpack.c.l.b16 %v1704
      %v1771 = vunpack.c.l.b16 %v1705
      %v1772 = vunpack.c.l.b16 %v1706
      %v1773 = vunpack.c.l.b16 %v1707
      %v1774 = vunpack.c.l.b16 %v1708
      %v1775 = vunpack.c.l.b16 %v1709
      %v1776 = vunpack.c.l.b16 %v1710
      %v1777 = vunpack.c.l.b16 %v1711
      %v1778 = vunpack.c.l.b16 %v1712
      %v1779 = vunpack.c.l.b16 %v1713
      %v1780 = vunpack.c.l.b16 %v1714
      %v1781 = vunpack.c.l.b16 %v1715
      %v1782 = vunpack.c.l.b16 %v1716
      %v1783 = vunpack.c.l.b16 %v1717
      %v1784 = vunpack.c.l.b16 %v1718
      %v1785 = vunpack.c.l.b16 %v1719
      %v1786 = vunpack.c.l.b16 %v1720
      %v1787 = vunpack.c.l.b16 %v1721
      %v1788 = vunpack.c.l.b16 %v1722
      %v1789 = vunpack.c.l.b16 %v1723
      %v1790 = vunpack.c.l.b16 %v1724
      %v1791 = vunpack.c.l.b16 %v1725
      %v1792 = vunpack.c.l.b16 %v1726
      %v1793 = vunpack.c.l.b16 %v1727
      %v1794 = vunpack.c.l.b16 %v1728
      %v1795 = vunpack.c.l.b16 %v1729
      %v1796 = vunpack.c.l.b16 %v1730
      %v1797 = vunpack.c.l.b16 %v1731
      %v1798 = vunpack.c.l.b16 %v1732
      %v1799 = vunpack.c.l.b16 %v1733
      %v1800 = vunpack.c.l.b16 %v1734
      %v1801 = vpack.c.b16 %v1770, %v1769
      %v1802 = vpack.c.b16 %v1772, %v1771
      %v1803 = vpack.c.b16 %v1774, %v1773
      %v1804 = vpack.c.b16 %v1776, %v1775
      %v1805 = vpack.c.b16 %v1778, %v1777
      %v1806 = vpack.c.b16 %v1780, %v1779
      %v1807 = vpack.c.b16 %v1782, %v1781
      %v1808 = vpack.c.b16 %v1784, %v1783
      %v1809 = vpack.c.b16 %v1786, %v1785
      %v1810 = vpack.c.b16 %v1788, %v1787
      %v1811 = vpack.c.b16 %v1790, %v1789
      %v1812 = vpack.c.b16 %v1792, %v1791
      %v1813 = vpack.c.b16 %v1794, %v1793
      %v1814 = vpack.c.b16 %v1796, %v1795
      %v1815 = vpack.c.b16 %v1798, %v1797
      %v1816 = vpack.c.b16 %v1800, %v1799
      %v1818 = vsel %vm739, %v1801, 0
      %v1821 = vsel %vm739, %v1802, 0
      %v1824 = vsel %vm739, %v1803, 0
      %v1827 = vsel %vm739, %v1804, 0
      %v1830 = vsel %vm739, %v1805, 0
      %v1833 = vsel %vm739, %v1806, 0
      %v1836 = vsel %vm739, %v1807, 0
      %v1839 = vsel %vm739, %v1808, 0
      %v1842 = vsel %vm739, %v1809, 0
      %v1845 = vsel %vm739, %v1810, 0
      %v1848 = vsel %vm739, %v1811, 0
      %v1851 = vsel %vm739, %v1812, 0
      %v1854 = vsel %vm739, %v1813, 0
      %v1857 = vsel %vm739, %v1814, 0
      %v1860 = vsel %vm739, %v1815, 0
      %v1863 = vsel %vm739, %v1816, 0
      %v1866 = vsel %vm788, %v1736, 0
      %1868 = vmatprep.subr.bf16.mxu0 0
      %1869 = vmatpush1.bf16.msra.mxu0 %v1866
      %1870 = vmatprep.subr.bf16.mxu0 0
      %1871 = vmatpush1.bf16.msra.mxu0 0
      %1872 = vmatprep.subr.bf16.mxu0 0
      %1873 = vmatpush1.bf16.msra.mxu0 0
      %1874 = vmatprep.subr.bf16.mxu0 0
      %1875 = vmatpush1.bf16.msra.mxu0 0
      %1876 = vmatprep.subr.bf16.mxu0 0
      %1877 = vmatpush1.bf16.msra.mxu0 0
      %1878 = vmatprep.subr.bf16.mxu0 0
      %1879 = vmatpush1.bf16.msra.mxu0 0
      %1880 = vmatprep.subr.bf16.mxu0 0
      %1881 = vmatpush1.bf16.msra.mxu0 0
      %1882 = vmatprep.subr.bf16.mxu0 0
      %1883 = vmatpush1.bf16.msra.mxu0 0
      %1884 = vmatprep.subr.bf16.mxu0 0
      %1885 = vmatpush1.bf16.msra.mxu0 0
      %1886 = vmatprep.subr.bf16.mxu0 0
      %1887 = vmatpush1.bf16.msra.mxu0 0
      %1888 = vmatprep.subr.bf16.mxu0 0
      %1889 = vmatpush1.bf16.msra.mxu0 0
      %1890 = vmatprep.subr.bf16.mxu0 0
      %1891 = vmatpush1.bf16.msra.mxu0 0
      %1892 = vmatprep.subr.bf16.mxu0 0
      %1893 = vmatpush1.bf16.msra.mxu0 0
      %1894 = vmatprep.subr.bf16.mxu0 0
      %1895 = vmatpush1.bf16.msra.mxu0 0
      %1896 = vmatprep.subr.bf16.mxu0 0
      %1897 = vmatpush1.bf16.msra.mxu0 0
      %1898 = vmatprep.subr.bf16.mxu0 0
      %1899 = vmatpush1.bf16.msra.mxu0 0
      %1900 = vmatprep.mubr.bf16.mxu0 0
      %1901 = vmatmul.mubr.bf16.gmra.mrb[0].mxu0 %v1818
      %v1902 = vpop.f32.mrb[0].mxu0
      %v1903 = vadd.f32 0.0, %v1902
      %v1904 = vpop.f32.mrb[0].mxu0
      %v1905 = vpop.f32.mrb[0].mxu0
      %v1906 = vadd.f32 0.0, %v1905
      %v1907 = vpop.f32.mrb[0].mxu0
      %1908 = vmatprep.mubr.bf16.mxu0 0
      %1909 = vmatmul.mubr.bf16.gmra.mrb[0].mxu0 %v1821
      %v1910 = vpop.f32.mrb[0].mxu0
      %v1911 = vadd.f32 0.0, %v1910
      %v1912 = vpop.f32.mrb[0].mxu0
      %v1913 = vpop.f32.mrb[0].mxu0
      %v1914 = vadd.f32 0.0, %v1913
      %v1915 = vpop.f32.mrb[0].mxu0
      %1916 = vmatprep.mubr.bf16.mxu0 0
      %1917 = vmatmul.mubr.bf16.gmra.mrb[0].mxu0 %v1824
      %v1918 = vpop.f32.mrb[0].mxu0
      %v1919 = vadd.f32 0.0, %v1918
      %v1920 = vpop.f32.mrb[0].mxu0
      %v1921 = vpop.f32.mrb[0].mxu0
      %v1922 = vadd.f32 0.0, %v1921
      %v1923 = vpop.f32.mrb[0].mxu0
      %1924 = vmatprep.mubr.bf16.mxu0 0
      %1925 = vmatmul.mubr.bf16.gmra.mrb[0].mxu0 %v1827
      %v1926 = vpop.f32.mrb[0].mxu0
      %v1927 = vadd.f32 0.0, %v1926
      %v1928 = vpop.f32.mrb[0].mxu0
      %v1929 = vpop.f32.mrb[0].mxu0
      %v1930 = vadd.f32 0.0, %v1929
      %v1931 = vpop.f32.mrb[0].mxu0
      %1932 = vmatprep.mubr.bf16.mxu0 0
      %1933 = vmatmul.mubr.bf16.gmra.mrb[0].mxu0 %v1830
      %v1934 = vpop.f32.mrb[0].mxu0
      %v1935 = vadd.f32 0.0, %v1934
      %v1936 = vpop.f32.mrb[0].mxu0
      %v1937 = vpop.f32.mrb[0].mxu0
      %v1938 = vadd.f32 0.0, %v1937
      %v1939 = vpop.f32.mrb[0].mxu0
      %1940 = vmatprep.mubr.bf16.mxu0 0
      %1941 = vmatmul.mubr.bf16.gmra.mrb[0].mxu0 %v1833
      %v1942 = vpop.f32.mrb[0].mxu0
      %v1943 = vadd.f32 0.0, %v1942
      %v1944 = vpop.f32.mrb[0].mxu0
      %v1945 = vpop.f32.mrb[0].mxu0
      %v1946 = vadd.f32 0.0, %v1945
      %v1947 = vpop.f32.mrb[0].mxu0
      %1948 = vmatprep.mubr.bf16.mxu0 0
      %1949 = vmatmul.mubr.bf16.gmra.mrb[0].mxu0 %v1836
      %v1950 = vpop.f32.mrb[0].mxu0
      %v1951 = vadd.f32 0.0, %v1950
      %v1952 = vpop.f32.mrb[0].mxu0
      %v1953 = vpop.f32.mrb[0].mxu0
      %v1954 = vadd.f32 0.0, %v1953
      %v1955 = vpop.f32.mrb[0].mxu0
      %1956 = vmatprep.mubr.bf16.mxu0 0
      %1957 = vmatmul.mubr.bf16.gmra.mrb[0].mxu0 %v1839
      %v1958 = vpop.f32.mrb[0].mxu0
      %v1959 = vadd.f32 0.0, %v1958
      %v1960 = vpop.f32.mrb[0].mxu0
      %v1961 = vpop.f32.mrb[0].mxu0
      %v1962 = vadd.f32 0.0, %v1961
      %v1963 = vpop.f32.mrb[0].mxu0
      %1964 = vmatprep.mubr.bf16.mxu0 0
      %1965 = vmatmul.mubr.bf16.gmra.mrb[0].mxu0 %v1842
      %v1966 = vpop.f32.mrb[0].mxu0
      %v1967 = vadd.f32 0.0, %v1966
      %v1968 = vpop.f32.mrb[0].mxu0
      %v1969 = vpop.f32.mrb[0].mxu0
      %v1970 = vadd.f32 0.0, %v1969
      %v1971 = vpop.f32.mrb[0].mxu0
      %1972 = vmatprep.mubr.bf16.mxu0 0
      %1973 = vmatmul.mubr.bf16.gmra.mrb[0].mxu0 %v1845
      %v1974 = vpop.f32.mrb[0].mxu0
      %v1975 = vadd.f32 0.0, %v1974
      %v1976 = vpop.f32.mrb[0].mxu0
      %v1977 = vpop.f32.mrb[0].mxu0
      %v1978 = vadd.f32 0.0, %v1977
      %v1979 = vpop.f32.mrb[0].mxu0
      %1980 = vmatprep.mubr.bf16.mxu0 0
      %1981 = vmatmul.mubr.bf16.gmra.mrb[0].mxu0 %v1848
      %v1982 = vpop.f32.mrb[0].mxu0
      %v1983 = vadd.f32 0.0, %v1982
      %v1984 = vpop.f32.mrb[0].mxu0
      %v1985 = vpop.f32.mrb[0].mxu0
      %v1986 = vadd.f32 0.0, %v1985
      %v1987 = vpop.f32.mrb[0].mxu0
      %1988 = vmatprep.mubr.bf16.mxu0 0
      %1989 = vmatmul.mubr.bf16.gmra.mrb[0].mxu0 %v1851
      %v1990 = vpop.f32.mrb[0].mxu0
      %v1991 = vadd.f32 0.0, %v1990
      %v1992 = vpop.f32.mrb[0].mxu0
      %v1993 = vpop.f32.mrb[0].mxu0
      %v1994 = vadd.f32 0.0, %v1993
      %v1995 = vpop.f32.mrb[0].mxu0
      %1996 = vmatprep.mubr.bf16.mxu0 0
      %1997 = vmatmul.mubr.bf16.gmra.mrb[0].mxu0 %v1854
      %v1998 = vpop.f32.mrb[0].mxu0
      %v1999 = vadd.f32 0.0, %v1998
      %v2000 = vpop.f32.mrb[0].mxu0
      %v2001 = vpop.f32.mrb[0].mxu0
      %v2002 = vadd.f32 0.0, %v2001
      %v2003 = vpop.f32.mrb[0].mxu0
      %2004 = vmatprep.mubr.bf16.mxu0 0
      %2005 = vmatmul.mubr.bf16.gmra.mrb[0].mxu0 %v1857
      %v2006 = vpop.f32.mrb[0].mxu0
      %v2007 = vadd.f32 0.0, %v2006
      %v2008 = vpop.f32.mrb[0].mxu0
      %v2009 = vpop.f32.mrb[0].mxu0
      %v2010 = vadd.f32 0.0, %v2009
      %v2011 = vpop.f32.mrb[0].mxu0
      %2012 = vmatprep.mubr.bf16.mxu0 0
      %2013 = vmatmul.mubr.bf16.gmra.mrb[0].mxu0 %v1860
      %v2014 = vpop.f32.mrb[0].mxu0
      %v2015 = vadd.f32 0.0, %v2014
      %v2016 = vpop.f32.mrb[0].mxu0
      %v2017 = vpop.f32.mrb[0].mxu0
      %v2018 = vadd.f32 0.0, %v2017
      %v2019 = vpop.f32.mrb[0].mxu0
      %2020 = vmatprep.mubr.bf16.mxu0 0
      %2021 = vmatmul.mubr.bf16.gmra.mrb[0].mxu0 %v1863
      %v2022 = vpop.f32.mrb[0].mxu0
      %v2023 = vadd.f32 0.0, %v2022
      %v2024 = vpop.f32.mrb[0].mxu0
      %v2025 = vpop.f32.mrb[0].mxu0
      %v2026 = vadd.f32 0.0, %v2025
      %v2027 = vpop.f32.mrb[0].mxu0
      %2028 = vdwg.mxu0
      %v2029 = vadd.f32 %v1670, %v1903
      %v2030 = vadd.f32 %v1671, %v1906
      %v2031 = vadd.f32 %v1672, %v1911
      %v2032 = vadd.f32 %v1673, %v1914
      %v2033 = vadd.f32 %v1674, %v1919
      %v2034 = vadd.f32 %v1675, %v1922
      %v2035 = vadd.f32 %v1676, %v1927
      %v2036 = vadd.f32 %v1677, %v1930
      %v2037 = vadd.f32 %v1678, %v1935
      %v2038 = vadd.f32 %v1679, %v1938
      %v2039 = vadd.f32 %v1680, %v1943
      %v2040 = vadd.f32 %v1681, %v1946
      %v2041 = vadd.f32 %v1682, %v1951
      %v2042 = vadd.f32 %v1683, %v1954
      %v2043 = vadd.f32 %v1684, %v1959
      %v2044 = vadd.f32 %v1685, %v1962
      %v2045 = vadd.f32 %v1686, %v1967
      %v2046 = vadd.f32 %v1687, %v1970
      %v2047 = vadd.f32 %v1688, %v1975
      %v2048 = vadd.f32 %v1689, %v1978
      %v2049 = vadd.f32 %v1690, %v1983
      %v2050 = vadd.f32 %v1691, %v1986
      %v2051 = vadd.f32 %v1692, %v1991
      %v2052 = vadd.f32 %v1693, %v1994
      %v2053 = vadd.f32 %v1694, %v1999
      %v2054 = vadd.f32 %v1695, %v2002
      %v2055 = vadd.f32 %v1696, %v2007
      %v2056 = vadd.f32 %v1697, %v2010
      %v2057 = vadd.f32 %v1698, %v2015
      %v2058 = vadd.f32 %v1699, %v2018
      %v2059 = vadd.f32 %v1700, %v2023
      %v2060 = vadd.f32 %v1701, %v2026
      %v2061 = vld [vmem:[%s1702] sm:$0xf]
      %v2062 = vld [vmem:[%s1702 + $0x4] sm:$0xf]
      %v2063 = vld [vmem:[%s1702 + $0x8] sm:$0x1]
      %v2064 = vld [vmem:[%s1702 + $0xc] sm:$0xf]
      %v2065 = vld [vmem:[%s1702 + $0x10] sm:$0xf]
      %v2066 = vld [vmem:[%s1702 + $0x14] sm:$0x1]
      %v2067 = vld [vmem:[%s1702 + $0x18] sm:$0xf]
      %v2068 = vld [vmem:[%s1702 + $0x1c] sm:$0xf]
      %v2069 = vld [vmem:[%s1702 + $0x20] sm:$0x1]
      %v2070 = vld [vmem:[%s1702 + $0x24] sm:$0xf]
      %v2071 = vld [vmem:[%s1702 + $0x28] sm:$0xf]
      %v2072 = vld [vmem:[%s1702 + $0x2c] sm:$0x1]
      %v2073 = vld [vmem:[%s1702 + $0x30] sm:$0xf]
      %v2074 = vld [vmem:[%s1702 + $0x34] sm:$0xf]
      %v2075 = vld [vmem:[%s1702 + $0x38] sm:$0x1]
      %v2076 = vld [vmem:[%s1702 + $0x3c] sm:$0xf]
      %v2077 = vld [vmem:[%s1702 + $0x40] sm:$0xf]
      %v2078 = vld [vmem:[%s1702 + $0x44] sm:$0x1]
      %v2079 = vld [vmem:[%s1702 + $0x48] sm:$0xf]
      %v2080 = vld [vmem:[%s1702 + $0x4c] sm:$0xf]
      %v2081 = vld [vmem:[%s1702 + $0x50] sm:$0x1]
      %v2082 = vld [vmem:[%s1702 + $0x54] sm:$0xf]
      %v2083 = vld [vmem:[%s1702 + $0x58] sm:$0xf]
      %v2084 = vld [vmem:[%s1702 + $0x5c] sm:$0x1]
      %v2085 = vld [vmem:[%s1702 + $0x60] sm:$0xf]
      %v2086 = vld [vmem:[%s1702 + $0x64] sm:$0xf]
      %v2087 = vld [vmem:[%s1702 + $0x68] sm:$0x1]
      %v2088 = vld [vmem:[%s1702 + $0x6c] sm:$0xf]
      %v2089 = vld [vmem:[%s1702 + $0x70] sm:$0xf]
      %v2090 = vld [vmem:[%s1702 + $0x74] sm:$0x1]
      %v2091 = vld [vmem:[%s1702 + $0x78] sm:$0xf]
      %v2092 = vld [vmem:[%s1702 + $0x7c] sm:$0xf]
      %v2093 = vld [vmem:[%s1702 + $0x80] sm:$0x1]
      %v2094 = vld [vmem:[%s1702 + $0x84] sm:$0xf]
      %v2095 = vld [vmem:[%s1702 + $0x88] sm:$0xf]
      %v2096 = vld [vmem:[%s1702 + $0x8c] sm:$0x1]
      %v2097 = vld [vmem:[%s1702 + $0x90] sm:$0xf]
      %v2098 = vld [vmem:[%s1702 + $0x94] sm:$0xf]
      %v2099 = vld [vmem:[%s1702 + $0x98] sm:$0x1]
      %v2100 = vld [vmem:[%s1702 + $0x9c] sm:$0xf]
      %v2101 = vld [vmem:[%s1702 + $0xa0] sm:$0xf]
      %v2102 = vld [vmem:[%s1702 + $0xa4] sm:$0x1]
      %v2103 = vld [vmem:[%s1702 + $0xa8] sm:$0xf]
      %v2104 = vld [vmem:[%s1702 + $0xac] sm:$0xf]
      %v2105 = vld [vmem:[%s1702 + $0xb0] sm:$0x1]
      %v2106 = vld [vmem:[%s1702 + $0xb4] sm:$0xf]
      %v2107 = vld [vmem:[%s1702 + $0xb8] sm:$0xf]
      %v2108 = vld [vmem:[%s1702 + $0xbc] sm:$0x1]
      %v2110 = vshrl.u32 %v2061, 16
      %v2112 = vrot.slane %v2110, 4
      %v2113 = vshll.u32 %v2061, 16
      %v2115 = vrot.slane %v2113, 5
      %v2116 = vor.u32 %v2112, %v2115
      %v2117 = vrot.slane %v2116, 4
      %v2119 = vshll.u32 %v2062, 16
      %v2121 = vrot.slane %v2119, 5
      %v2122 = vsel %vm304, %v2117, %v2121
      %v2123 = vshrl.u32 %v2062, 16
      %v2125 = vrot.slane %v2123, 4
      %v2126 = vor.u32 %v2125, %v2121
      %v2127 = vrot.slane %v2126, 4
      %v2129 = vshll.u32 %v2063, 16
      %v2131 = vrot.slane %v2129, 5
      %v2132 = vsel %vm304, %v2127, %v2131
      %v2134 = vshrl.u32 %v2064, 16
      %v2136 = vrot.slane %v2134, 4
      %v2137 = vshll.u32 %v2064, 16
      %v2139 = vrot.slane %v2137, 5
      %v2140 = vor.u32 %v2136, %v2139
      %v2141 = vrot.slane %v2140, 4
      %v2143 = vshll.u32 %v2065, 16
      %v2145 = vrot.slane %v2143, 5
      %v2146 = vsel %vm304, %v2141, %v2145
      %v2147 = vshrl.u32 %v2065, 16
      %v2149 = vrot.slane %v2147, 4
      %v2150 = vor.u32 %v2149, %v2145
      %v2151 = vrot.slane %v2150, 4
      %v2153 = vshll.u32 %v2066, 16
      %v2155 = vrot.slane %v2153, 5
      %v2156 = vsel %vm304, %v2151, %v2155
      %v2158 = vshrl.u32 %v2067, 16
      %v2160 = vrot.slane %v2158, 4
      %v2161 = vshll.u32 %v2067, 16
      %v2163 = vrot.slane %v2161, 5
      %v2164 = vor.u32 %v2160, %v2163
      %v2165 = vrot.slane %v2164, 4
      %v2167 = vshll.u32 %v2068, 16
      %v2169 = vrot.slane %v2167, 5
      %v2170 = vsel %vm304, %v2165, %v2169
      %v2171 = vshrl.u32 %v2068, 16
      %v2173 = vrot.slane %v2171, 4
      %v2174 = vor.u32 %v2173, %v2169
      %v2175 = vrot.slane %v2174, 4
      %v2177 = vshll.u32 %v2069, 16
      %v2179 = vrot.slane %v2177, 5
      %v2180 = vsel %vm304, %v2175, %v2179
      %v2182 = vshrl.u32 %v2070, 16
      %v2184 = vrot.slane %v2182, 4
      %v2185 = vshll.u32 %v2070, 16
      %v2187 = vrot.slane %v2185, 5
      %v2188 = vor.u32 %v2184, %v2187
      %v2189 = vrot.slane %v2188, 4
      %v2191 = vshll.u32 %v2071, 16
      %v2193 = vrot.slane %v2191, 5
      %v2194 = vsel %vm304, %v2189, %v2193
      %v2195 = vshrl.u32 %v2071, 16
      %v2197 = vrot.slane %v2195, 4
      %v2198 = vor.u32 %v2197, %v2193
      %v2199 = vrot.slane %v2198, 4
      %v2201 = vshll.u32 %v2072, 16
      %v2203 = vrot.slane %v2201, 5
      %v2204 = vsel %vm304, %v2199, %v2203
      %v2206 = vshrl.u32 %v2073, 16
      %v2208 = vrot.slane %v2206, 4
      %v2209 = vshll.u32 %v2073, 16
      %v2211 = vrot.slane %v2209, 5
      %v2212 = vor.u32 %v2208, %v2211
      %v2213 = vrot.slane %v2212, 4
      %v2215 = vshll.u32 %v2074, 16
      %v2217 = vrot.slane %v2215, 5
      %v2218 = vsel %vm304, %v2213, %v2217
      %v2219 = vshrl.u32 %v2074, 16
      %v2221 = vrot.slane %v2219, 4
      %v2222 = vor.u32 %v2221, %v2217
      %v2223 = vrot.slane %v2222, 4
      %v2225 = vshll.u32 %v2075, 16
      %v2227 = vrot.slane %v2225, 5
      %v2228 = vsel %vm304, %v2223, %v2227
      %v2230 = vshrl.u32 %v2076, 16
      %v2232 = vrot.slane %v2230, 4
      %v2233 = vshll.u32 %v2076, 16
      %v2235 = vrot.slane %v2233, 5
      %v2236 = vor.u32 %v2232, %v2235
      %v2237 = vrot.slane %v2236, 4
      %v2239 = vshll.u32 %v2077, 16
      %v2241 = vrot.slane %v2239, 5
      %v2242 = vsel %vm304, %v2237, %v2241
      %v2243 = vshrl.u32 %v2077, 16
      %v2245 = vrot.slane %v2243, 4
      %v2246 = vor.u32 %v2245, %v2241
      %v2247 = vrot.slane %v2246, 4
      %v2249 = vshll.u32 %v2078, 16
      %v2251 = vrot.slane %v2249, 5
      %v2252 = vsel %vm304, %v2247, %v2251
      %v2254 = vshrl.u32 %v2079, 16
      %v2256 = vrot.slane %v2254, 4
      %v2257 = vshll.u32 %v2079, 16
      %v2259 = vrot.slane %v2257, 5
      %v2260 = vor.u32 %v2256, %v2259
      %v2261 = vrot.slane %v2260, 4
      %v2263 = vshll.u32 %v2080, 16
      %v2265 = vrot.slane %v2263, 5
      %v2266 = vsel %vm304, %v2261, %v2265
      %v2267 = vshrl.u32 %v2080, 16
      %v2269 = vrot.slane %v2267, 4
      %v2270 = vor.u32 %v2269, %v2265
      %v2271 = vrot.slane %v2270, 4
      %v2273 = vshll.u32 %v2081, 16
      %v2275 = vrot.slane %v2273, 5
      %v2276 = vsel %vm304, %v2271, %v2275
      %v2278 = vshrl.u32 %v2082, 16
      %v2280 = vrot.slane %v2278, 4
      %v2281 = vshll.u32 %v2082, 16
      %v2283 = vrot.slane %v2281, 5
      %v2284 = vor.u32 %v2280, %v2283
      %v2285 = vrot.slane %v2284, 4
      %v2287 = vshll.u32 %v2083, 16
      %v2289 = vrot.slane %v2287, 5
      %v2290 = vsel %vm304, %v2285, %v2289
      %v2291 = vshrl.u32 %v2083, 16
      %v2293 = vrot.slane %v2291, 4
      %v2294 = vor.u32 %v2293, %v2289
      %v2295 = vrot.slane %v2294, 4
      %v2297 = vshll.u32 %v2084, 16
      %v2299 = vrot.slane %v2297, 5
      %v2300 = vsel %vm304, %v2295, %v2299
      %v2302 = vshrl.u32 %v2085, 16
      %v2304 = vrot.slane %v2302, 4
      %v2305 = vshll.u32 %v2085, 16
      %v2307 = vrot.slane %v2305, 5
      %v2308 = vor.u32 %v2304, %v2307
      %v2309 = vrot.slane %v2308, 4
      %v2311 = vshll.u32 %v2086, 16
      %v2313 = vrot.slane %v2311, 5
      %v2314 = vsel %vm304, %v2309, %v2313
      %v2315 = vshrl.u32 %v2086, 16
      %v2317 = vrot.slane %v2315, 4
      %v2318 = vor.u32 %v2317, %v2313
      %v2319 = vrot.slane %v2318, 4
      %v2321 = vshll.u32 %v2087, 16
      %v2323 = vrot.slane %v2321, 5
      %v2324 = vsel %vm304, %v2319, %v2323
      %v2326 = vshrl.u32 %v2088, 16
      %v2328 = vrot.slane %v2326, 4
      %v2329 = vshll.u32 %v2088, 16
      %v2331 = vrot.slane %v2329, 5
      %v2332 = vor.u32 %v2328, %v2331
      %v2333 = vrot.slane %v2332, 4
      %v2335 = vshll.u32 %v2089, 16
      %v2337 = vrot.slane %v2335, 5
      %v2338 = vsel %vm304, %v2333, %v2337
      %v2339 = vshrl.u32 %v2089, 16
      %v2341 = vrot.slane %v2339, 4
      %v2342 = vor.u32 %v2341, %v2337
      %v2343 = vrot.slane %v2342, 4
      %v2345 = vshll.u32 %v2090, 16
      %v2347 = vrot.slane %v2345, 5
      %v2348 = vsel %vm304, %v2343, %v2347
      %v2350 = vshrl.u32 %v2091, 16
      %v2352 = vrot.slane %v2350, 4
      %v2353 = vshll.u32 %v2091, 16
      %v2355 = vrot.slane %v2353, 5
      %v2356 = vor.u32 %v2352, %v2355
      %v2357 = vrot.slane %v2356, 4
      %v2359 = vshll.u32 %v2092, 16
      %v2361 = vrot.slane %v2359, 5
      %v2362 = vsel %vm304, %v2357, %v2361
      %v2363 = vshrl.u32 %v2092, 16
      %v2365 = vrot.slane %v2363, 4
      %v2366 = vor.u32 %v2365, %v2361
      %v2367 = vrot.slane %v2366, 4
      %v2369 = vshll.u32 %v2093, 16
      %v2371 = vrot.slane %v2369, 5
      %v2372 = vsel %vm304, %v2367, %v2371
      %v2374 = vshrl.u32 %v2094, 16
      %v2376 = vrot.slane %v2374, 4
      %v2377 = vshll.u32 %v2094, 16
      %v2379 = vrot.slane %v2377, 5
      %v2380 = vor.u32 %v2376, %v2379
      %v2381 = vrot.slane %v2380, 4
      %v2383 = vshll.u32 %v2095, 16
      %v2385 = vrot.slane %v2383, 5
      %v2386 = vsel %vm304, %v2381, %v2385
      %v2387 = vshrl.u32 %v2095, 16
      %v2389 = vrot.slane %v2387, 4
      %v2390 = vor.u32 %v2389, %v2385
      %v2391 = vrot.slane %v2390, 4
      %v2393 = vshll.u32 %v2096, 16
      %v2395 = vrot.slane %v2393, 5
      %v2396 = vsel %vm304, %v2391, %v2395
      %v2398 = vshrl.u32 %v2097, 16
      %v2400 = vrot.slane %v2398, 4
      %v2401 = vshll.u32 %v2097, 16
      %v2403 = vrot.slane %v2401, 5
      %v2404 = vor.u32 %v2400, %v2403
      %v2405 = vrot.slane %v2404, 4
      %v2407 = vshll.u32 %v2098, 16
      %v2409 = vrot.slane %v2407, 5
      %v2410 = vsel %vm304, %v2405, %v2409
      %v2411 = vshrl.u32 %v2098, 16
      %v2413 = vrot.slane %v2411, 4
      %v2414 = vor.u32 %v2413, %v2409
      %v2415 = vrot.slane %v2414, 4
      %v2417 = vshll.u32 %v2099, 16
      %v2419 = vrot.slane %v2417, 5
      %v2420 = vsel %vm304, %v2415, %v2419
      %v2422 = vshrl.u32 %v2100, 16
      %v2424 = vrot.slane %v2422, 4
      %v2425 = vshll.u32 %v2100, 16
      %v2427 = vrot.slane %v2425, 5
      %v2428 = vor.u32 %v2424, %v2427
      %v2429 = vrot.slane %v2428, 4
      %v2431 = vshll.u32 %v2101, 16
      %v2433 = vrot.slane %v2431, 5
      %v2434 = vsel %vm304, %v2429, %v2433
      %v2435 = vshrl.u32 %v2101, 16
      %v2437 = vrot.slane %v2435, 4
      %v2438 = vor.u32 %v2437, %v2433
      %v2439 = vrot.slane %v2438, 4
      %v2441 = vshll.u32 %v2102, 16
      %v2443 = vrot.slane %v2441, 5
      %v2444 = vsel %vm304, %v2439, %v2443
      %v2446 = vshrl.u32 %v2103, 16
      %v2448 = vrot.slane %v2446, 4
      %v2449 = vshll.u32 %v2103, 16
      %v2451 = vrot.slane %v2449, 5
      %v2452 = vor.u32 %v2448, %v2451
      %v2453 = vrot.slane %v2452, 4
      %v2455 = vshll.u32 %v2104, 16
      %v2457 = vrot.slane %v2455, 5
      %v2458 = vsel %vm304, %v2453, %v2457
      %v2459 = vshrl.u32 %v2104, 16
      %v2461 = vrot.slane %v2459, 4
      %v2462 = vor.u32 %v2461, %v2457
      %v2463 = vrot.slane %v2462, 4
      %v2465 = vshll.u32 %v2105, 16
      %v2467 = vrot.slane %v2465, 5
      %v2468 = vsel %vm304, %v2463, %v2467
      %v2470 = vshrl.u32 %v2106, 16
      %v2472 = vrot.slane %v2470, 4
      %v2473 = vshll.u32 %v2106, 16
      %v2475 = vrot.slane %v2473, 5
      %v2476 = vor.u32 %v2472, %v2475
      %v2477 = vrot.slane %v2476, 4
      %v2479 = vshll.u32 %v2107, 16
      %v2481 = vrot.slane %v2479, 5
      %v2482 = vsel %vm304, %v2477, %v2481
      %v2483 = vshrl.u32 %v2107, 16
      %v2485 = vrot.slane %v2483, 4
      %v2486 = vor.u32 %v2485, %v2481
      %v2487 = vrot.slane %v2486, 4
      %v2489 = vshll.u32 %v2108, 16
      %v2491 = vrot.slane %v2489, 5
      %v2492 = vsel %vm304, %v2487, %v2491
      %s2493 = scalar_lea.vmem %s1, 8
      %v2494 = vld [vmem:[%s2493] sm:$0x3]
      %v2495 = vunpack.c.l.b16 %v2122
      %v2496 = vunpack.c.l.b16 %v2132
      %v2497 = vunpack.c.l.b16 %v2146
      %v2498 = vunpack.c.l.b16 %v2156
      %v2499 = vunpack.c.l.b16 %v2170
      %v2500 = vunpack.c.l.b16 %v2180
      %v2501 = vunpack.c.l.b16 %v2194
      %v2502 = vunpack.c.l.b16 %v2204
      %v2503 = vunpack.c.l.b16 %v2218
      %v2504 = vunpack.c.l.b16 %v2228
      %v2505 = vunpack.c.l.b16 %v2242
      %v2506 = vunpack.c.l.b16 %v2252
      %v2507 = vunpack.c.l.b16 %v2266
      %v2508 = vunpack.c.l.b16 %v2276
      %v2509 = vunpack.c.l.b16 %v2290
      %v2510 = vunpack.c.l.b16 %v2300
      %v2511 = vunpack.c.l.b16 %v2314
      %v2512 = vunpack.c.l.b16 %v2324
      %v2513 = vunpack.c.l.b16 %v2338
      %v2514 = vunpack.c.l.b16 %v2348
      %v2515 = vunpack.c.l.b16 %v2362
      %v2516 = vunpack.c.l.b16 %v2372
      %v2517 = vunpack.c.l.b16 %v2386
      %v2518 = vunpack.c.l.b16 %v2396
      %v2519 = vunpack.c.l.b16 %v2410
      %v2520 = vunpack.c.l.b16 %v2420
      %v2521 = vunpack.c.l.b16 %v2434
      %v2522 = vunpack.c.l.b16 %v2444
      %v2523 = vunpack.c.l.b16 %v2458
      %v2524 = vunpack.c.l.b16 %v2468
      %v2525 = vunpack.c.l.b16 %v2482
      %v2526 = vunpack.c.l.b16 %v2492
      %v2527 = vpack.c.b16 %v2496, %v2495
      %v2528 = vpack.c.b16 %v2498, %v2497
      %v2529 = vpack.c.b16 %v2500, %v2499
      %v2530 = vpack.c.b16 %v2502, %v2501
      %v2531 = vpack.c.b16 %v2504, %v2503
      %v2532 = vpack.c.b16 %v2506, %v2505
      %v2533 = vpack.c.b16 %v2508, %v2507
      %v2534 = vpack.c.b16 %v2510, %v2509
      %v2535 = vpack.c.b16 %v2512, %v2511
      %v2536 = vpack.c.b16 %v2514, %v2513
      %v2537 = vpack.c.b16 %v2516, %v2515
      %v2538 = vpack.c.b16 %v2518, %v2517
      %v2539 = vpack.c.b16 %v2520, %v2519
      %v2540 = vpack.c.b16 %v2522, %v2521
      %v2541 = vpack.c.b16 %v2524, %v2523
      %v2542 = vpack.c.b16 %v2526, %v2525
      %v2544 = vsel %vm739, %v2527, 0
      %v2547 = vsel %vm739, %v2528, 0
      %v2550 = vsel %vm739, %v2529, 0
      %v2553 = vsel %vm739, %v2530, 0
      %v2556 = vsel %vm739, %v2531, 0
      %v2559 = vsel %vm739, %v2532, 0
      %v2562 = vsel %vm739, %v2533, 0
      %v2565 = vsel %vm739, %v2534, 0
      %v2568 = vsel %vm739, %v2535, 0
      %v2571 = vsel %vm739, %v2536, 0
      %v2574 = vsel %vm739, %v2537, 0
      %v2577 = vsel %vm739, %v2538, 0
      %v2580 = vsel %vm739, %v2539, 0
      %v2583 = vsel %vm739, %v2540, 0
      %v2586 = vsel %vm739, %v2541, 0
      %v2589 = vsel %vm739, %v2542, 0
      %v2592 = vsel %vm788, %v2494, 0
      %2594 = vmatprep.subr.bf16.mxu0 0
      %2595 = vmatpush1.bf16.msra.mxu0 %v2592
      %2596 = vmatprep.subr.bf16.mxu0 0
      %2597 = vmatpush1.bf16.msra.mxu0 0
      %2598 = vmatprep.subr.bf16.mxu0 0
      %2599 = vmatpush1.bf16.msra.mxu0 0
      %2600 = vmatprep.subr.bf16.mxu0 0
      %2601 = vmatpush1.bf16.msra.mxu0 0
      %2602 = vmatprep.subr.bf16.mxu0 0
      %2603 = vmatpush1.bf16.msra.mxu0 0
      %2604 = vmatprep.subr.bf16.mxu0 0
      %2605 = vmatpush1.bf16.msra.mxu0 0
      %2606 = vmatprep.subr.bf16.mxu0 0
      %2607 = vmatpush1.bf16.msra.mxu0 0
      %2608 = vmatprep.subr.bf16.mxu0 0
      %2609 = vmatpush1.bf16.msra.mxu0 0
      %2610 = vmatprep.subr.bf16.mxu0 0
      %2611 = vmatpush1.bf16.msra.mxu0 0
      %2612 = vmatprep.subr.bf16.mxu0 0
      %2613 = vmatpush1.bf16.msra.mxu0 0
      %2614 = vmatprep.subr.bf16.mxu0 0
      %2615 = vmatpush1.bf16.msra.mxu0 0
      %2616 = vmatprep.subr.bf16.mxu0 0
      %2617 = vmatpush1.bf16.msra.mxu0 0
      %2618 = vmatprep.subr.bf16.mxu0 0
      %2619 = vmatpush1.bf16.msra.mxu0 0
      %2620 = vmatprep.subr.bf16.mxu0 0
      %2621 = vmatpush1.bf16.msra.mxu0 0
      %2622 = vmatprep.subr.bf16.mxu0 0
      %2623 = vmatpush1.bf16.msra.mxu0 0
      %2624 = vmatprep.subr.bf16.mxu0 0
      %2625 = vmatpush1.bf16.msra.mxu0 0
      %2626 = vmatprep.mubr.bf16.mxu0 0
      %2627 = vmatmul.mubr.bf16.gmra.mrb[0].mxu0 %v2544
      %v2628 = vpop.f32.mrb[0].mxu0
      %v2629 = vadd.f32 0.0, %v2628
      %v2630 = vpop.f32.mrb[0].mxu0
      %v2631 = vpop.f32.mrb[0].mxu0
      %v2632 = vadd.f32 0.0, %v2631
      %v2633 = vpop.f32.mrb[0].mxu0
      %2634 = vmatprep.mubr.bf16.mxu0 0
      %2635 = vmatmul.mubr.bf16.gmra.mrb[0].mxu0 %v2547
      %v2636 = vpop.f32.mrb[0].mxu0
      %v2637 = vadd.f32 0.0, %v2636
      %v2638 = vpop.f32.mrb[0].mxu0
      %v2639 = vpop.f32.mrb[0].mxu0
      %v2640 = vadd.f32 0.0, %v2639
      %v2641 = vpop.f32.mrb[0].mxu0
      %2642 = vmatprep.mubr.bf16.mxu0 0
      %2643 = vmatmul.mubr.bf16.gmra.mrb[0].mxu0 %v2550
      %v2644 = vpop.f32.mrb[0].mxu0
      %v2645 = vadd.f32 0.0, %v2644
      %v2646 = vpop.f32.mrb[0].mxu0
      %v2647 = vpop.f32.mrb[0].mxu0
      %v2648 = vadd.f32 0.0, %v2647
      %v2649 = vpop.f32.mrb[0].mxu0
      %2650 = vmatprep.mubr.bf16.mxu0 0
      %2651 = vmatmul.mubr.bf16.gmra.mrb[0].mxu0 %v2553
      %v2652 = vpop.f32.mrb[0].mxu0
      %v2653 = vadd.f32 0.0, %v2652
      %v2654 = vpop.f32.mrb[0].mxu0
      %v2655 = vpop.f32.mrb[0].mxu0
      %v2656 = vadd.f32 0.0, %v2655
      %v2657 = vpop.f32.mrb[0].mxu0
      %2658 = vmatprep.mubr.bf16.mxu0 0
      %2659 = vmatmul.mubr.bf16.gmra.mrb[0].mxu0 %v2556
      %v2660 = vpop.f32.mrb[0].mxu0
      %v2661 = vadd.f32 0.0, %v2660
      %v2662 = vpop.f32.mrb[0].mxu0
      %v2663 = vpop.f32.mrb[0].mxu0
      %v2664 = vadd.f32 0.0, %v2663
      %v2665 = vpop.f32.mrb[0].mxu0
      %2666 = vmatprep.mubr.bf16.mxu0 0
      %2667 = vmatmul.mubr.bf16.gmra.mrb[0].mxu0 %v2559
      %v2668 = vpop.f32.mrb[0].mxu0
      %v2669 = vadd.f32 0.0, %v2668
      %v2670 = vpop.f32.mrb[0].mxu0
      %v2671 = vpop.f32.mrb[0].mxu0
      %v2672 = vadd.f32 0.0, %v2671
      %v2673 = vpop.f32.mrb[0].mxu0
      %2674 = vmatprep.mubr.bf16.mxu0 0
      %2675 = vmatmul.mubr.bf16.gmra.mrb[0].mxu0 %v2562
      %v2676 = vpop.f32.mrb[0].mxu0
      %v2677 = vadd.f32 0.0, %v2676
      %v2678 = vpop.f32.mrb[0].mxu0
      %v2679 = vpop.f32.mrb[0].mxu0
      %v2680 = vadd.f32 0.0, %v2679
      %v2681 = vpop.f32.mrb[0].mxu0
      %2682 = vmatprep.mubr.bf16.mxu0 0
      %2683 = vmatmul.mubr.bf16.gmra.mrb[0].mxu0 %v2565
      %v2684 = vpop.f32.mrb[0].mxu0
      %v2685 = vadd.f32 0.0, %v2684
      %v2686 = vpop.f32.mrb[0].mxu0
      %v2687 = vpop.f32.mrb[0].mxu0
      %v2688 = vadd.f32 0.0, %v2687
      %v2689 = vpop.f32.mrb[0].mxu0
      %2690 = vmatprep.mubr.bf16.mxu0 0
      %2691 = vmatmul.mubr.bf16.gmra.mrb[0].mxu0 %v2568
      %v2692 = vpop.f32.mrb[0].mxu0
      %v2693 = vadd.f32 0.0, %v2692
      %v2694 = vpop.f32.mrb[0].mxu0
      %v2695 = vpop.f32.mrb[0].mxu0
      %v2696 = vadd.f32 0.0, %v2695
      %v2697 = vpop.f32.mrb[0].mxu0
      %2698 = vmatprep.mubr.bf16.mxu0 0
      %2699 = vmatmul.mubr.bf16.gmra.mrb[0].mxu0 %v2571
      %v2700 = vpop.f32.mrb[0].mxu0
      %v2701 = vadd.f32 0.0, %v2700
      %v2702 = vpop.f32.mrb[0].mxu0
      %v2703 = vpop.f32.mrb[0].mxu0
      %v2704 = vadd.f32 0.0, %v2703
      %v2705 = vpop.f32.mrb[0].mxu0
      %2706 = vmatprep.mubr.bf16.mxu0 0
      %2707 = vmatmul.mubr.bf16.gmra.mrb[0].mxu0 %v2574
      %v2708 = vpop.f32.mrb[0].mxu0
      %v2709 = vadd.f32 0.0, %v2708
      %v2710 = vpop.f32.mrb[0].mxu0
      %v2711 = vpop.f32.mrb[0].mxu0
      %v2712 = vadd.f32 0.0, %v2711
      %v2713 = vpop.f32.mrb[0].mxu0
      %2714 = vmatprep.mubr.bf16.mxu0 0
      %2715 = vmatmul.mubr.bf16.gmra.mrb[0].mxu0 %v2577
      %v2716 = vpop.f32.mrb[0].mxu0
      %v2717 = vadd.f32 0.0, %v2716
      %v2718 = vpop.f32.mrb[0].mxu0
      %v2719 = vpop.f32.mrb[0].mxu0
      %v2720 = vadd.f32 0.0, %v2719
      %v2721 = vpop.f32.mrb[0].mxu0
      %2722 = vmatprep.mubr.bf16.mxu0 0
      %2723 = vmatmul.mubr.bf16.gmra.mrb[0].mxu0 %v2580
      %v2724 = vpop.f32.mrb[0].mxu0
      %v2725 = vadd.f32 0.0, %v2724
      %v2726 = vpop.f32.mrb[0].mxu0
      %v2727 = vpop.f32.mrb[0].mxu0
      %v2728 = vadd.f32 0.0, %v2727
      %v2729 = vpop.f32.mrb[0].mxu0
      %2730 = vmatprep.mubr.bf16.mxu0 0
      %2731 = vmatmul.mubr.bf16.gmra.mrb[0].mxu0 %v2583
      %v2732 = vpop.f32.mrb[0].mxu0
      %v2733 = vadd.f32 0.0, %v2732
      %v2734 = vpop.f32.mrb[0].mxu0
      %v2735 = vpop.f32.mrb[0].mxu0
      %v2736 = vadd.f32 0.0, %v2735
      %v2737 = vpop.f32.mrb[0].mxu0
      %2738 = vmatprep.mubr.bf16.mxu0 0
      %2739 = vmatmul.mubr.bf16.gmra.mrb[0].mxu0 %v2586
      %v2740 = vpop.f32.mrb[0].mxu0
      %v2741 = vadd.f32 0.0, %v2740
      %v2742 = vpop.f32.mrb[0].mxu0
      %v2743 = vpop.f32.mrb[0].mxu0
      %v2744 = vadd.f32 0.0, %v2743
      %v2745 = vpop.f32.mrb[0].mxu0
      %2746 = vmatprep.mubr.bf16.mxu0 0
      %2747 = vmatmul.mubr.bf16.gmra.mrb[0].mxu0 %v2589
      %v2748 = vpop.f32.mrb[0].mxu0
      %v2749 = vadd.f32 0.0, %v2748
      %v2750 = vpop.f32.mrb[0].mxu0
      %v2751 = vpop.f32.mrb[0].mxu0
      %v2752 = vadd.f32 0.0, %v2751
      %v2753 = vpop.f32.mrb[0].mxu0
      %2754 = vdwg.mxu0
      %v2755 = vadd.f32 %v2029, %v2629
      %v2756 = vadd.f32 %v2030, %v2632
      %v2757 = vadd.f32 %v2031, %v2637
      %v2758 = vadd.f32 %v2032, %v2640
      %v2759 = vadd.f32 %v2033, %v2645
      %v2760 = vadd.f32 %v2034, %v2648
      %v2761 = vadd.f32 %v2035, %v2653
      %v2762 = vadd.f32 %v2036, %v2656
      %v2763 = vadd.f32 %v2037, %v2661
      %v2764 = vadd.f32 %v2038, %v2664
      %v2765 = vadd.f32 %v2039, %v2669
      %v2766 = vadd.f32 %v2040, %v2672
      %v2767 = vadd.f32 %v2041, %v2677
      %v2768 = vadd.f32 %v2042, %v2680
      %v2769 = vadd.f32 %v2043, %v2685
      %v2770 = vadd.f32 %v2044, %v2688
      %v2771 = vadd.f32 %v2045, %v2693
      %v2772 = vadd.f32 %v2046, %v2696
      %v2773 = vadd.f32 %v2047, %v2701
      %v2774 = vadd.f32 %v2048, %v2704
      %v2775 = vadd.f32 %v2049, %v2709
      %v2776 = vadd.f32 %v2050, %v2712
      %v2777 = vadd.f32 %v2051, %v2717
      %v2778 = vadd.f32 %v2052, %v2720
      %v2779 = vadd.f32 %v2053, %v2725
      %v2780 = vadd.f32 %v2054, %v2728
      %v2781 = vadd.f32 %v2055, %v2733
      %v2782 = vadd.f32 %v2056, %v2736
      %v2783 = vadd.f32 %v2057, %v2741
      %v2784 = vadd.f32 %v2058, %v2744
      %v2785 = vadd.f32 %v2059, %v2749
      %v2786 = vadd.f32 %v2060, %v2752
      %v2787 = vld [vmem:[%s1702] sm:$0xe]
      %v2788 = vld [vmem:[%s1702 + $0xc] sm:$0xe]
      %v2789 = vld [vmem:[%s1702 + $0x18] sm:$0xe]
      %v2790 = vld [vmem:[%s1702 + $0x24] sm:$0xe]
      %v2791 = vld [vmem:[%s1702 + $0x30] sm:$0xe]
      %v2792 = vld [vmem:[%s1702 + $0x3c] sm:$0xe]
      %v2793 = vld [vmem:[%s1702 + $0x48] sm:$0xe]
      %v2794 = vld [vmem:[%s1702 + $0x54] sm:$0xe]
      %v2795 = vld [vmem:[%s1702 + $0x60] sm:$0xe]
      %v2796 = vld [vmem:[%s1702 + $0x6c] sm:$0xe]
      %v2797 = vld [vmem:[%s1702 + $0x78] sm:$0xe]
      %v2798 = vld [vmem:[%s1702 + $0x84] sm:$0xe]
      %v2799 = vld [vmem:[%s1702 + $0x90] sm:$0xe]
      %v2800 = vld [vmem:[%s1702 + $0x9c] sm:$0xe]
      %v2801 = vld [vmem:[%s1702 + $0xa8] sm:$0xe]
      %v2802 = vld [vmem:[%s1702 + $0xb4] sm:$0xe]
      %v2851 = vrot.slane %v2787, 5
      %v2852 = vrot.slane %v2851, 4
      %v2853 = vrot.slane %v2062, 5
      %v2854 = vsel %vm1295, %v2852, %v2853
      %v2855 = vrot.slane %v2853, 4
      %v2856 = vrot.slane %v2063, 5
      %v2857 = vsel %vm1295, %v2855, %v2856
      %v2858 = vrot.slane %v2788, 5
      %v2859 = vrot.slane %v2858, 4
      %v2860 = vrot.slane %v2065, 5
      %v2861 = vsel %vm1295, %v2859, %v2860
      %v2862 = vrot.slane %v2860, 4
      %v2863 = vrot.slane %v2066, 5
      %v2864 = vsel %vm1295, %v2862, %v2863
      %v2865 = vrot.slane %v2789, 5
      %v2866 = vrot.slane %v2865, 4
      %v2867 = vrot.slane %v2068, 5
      %v2868 = vsel %vm1295, %v2866, %v2867
      %v2869 = vrot.slane %v2867, 4
      %v2870 = vrot.slane %v2069, 5
      %v2871 = vsel %vm1295, %v2869, %v2870
      %v2872 = vrot.slane %v2790, 5
      %v2873 = vrot.slane %v2872, 4
      %v2874 = vrot.slane %v2071, 5
      %v2875 = vsel %vm1295, %v2873, %v2874
      %v2876 = vrot.slane %v2874, 4
      %v2877 = vrot.slane %v2072, 5
      %v2878 = vsel %vm1295, %v2876, %v2877
      %v2879 = vrot.slane %v2791, 5
      %v2880 = vrot.slane %v2879, 4
      %v2881 = vrot.slane %v2074, 5
      %v2882 = vsel %vm1295, %v2880, %v2881
      %v2883 = vrot.slane %v2881, 4
      %v2884 = vrot.slane %v2075, 5
      %v2885 = vsel %vm1295, %v2883, %v2884
      %v2886 = vrot.slane %v2792, 5
      %v2887 = vrot.slane %v2886, 4
      %v2888 = vrot.slane %v2077, 5
      %v2889 = vsel %vm1295, %v2887, %v2888
      %v2890 = vrot.slane %v2888, 4
      %v2891 = vrot.slane %v2078, 5
      %v2892 = vsel %vm1295, %v2890, %v2891
      %v2893 = vrot.slane %v2793, 5
      %v2894 = vrot.slane %v2893, 4
      %v2895 = vrot.slane %v2080, 5
      %v2896 = vsel %vm1295, %v2894, %v2895
      %v2897 = vrot.slane %v2895, 4
      %v2898 = vrot.slane %v2081, 5
      %v2899 = vsel %vm1295, %v2897, %v2898
      %v2900 = vrot.slane %v2794, 5
      %v2901 = vrot.slane %v2900, 4
      %v2902 = vrot.slane %v2083, 5
      %v2903 = vsel %vm1295, %v2901, %v2902
      %v2904 = vrot.slane %v2902, 4
      %v2905 = vrot.slane %v2084, 5
      %v2906 = vsel %vm1295, %v2904, %v2905
      %v2907 = vrot.slane %v2795, 5
      %v2908 = vrot.slane %v2907, 4
      %v2909 = vrot.slane %v2086, 5
      %v2910 = vsel %vm1295, %v2908, %v2909
      %v2911 = vrot.slane %v2909, 4
      %v2912 = vrot.slane %v2087, 5
      %v2913 = vsel %vm1295, %v2911, %v2912
      %v2914 = vrot.slane %v2796, 5
      %v2915 = vrot.slane %v2914, 4
      %v2916 = vrot.slane %v2089, 5
      %v2917 = vsel %vm1295, %v2915, %v2916
      %v2918 = vrot.slane %v2916, 4
      %v2919 = vrot.slane %v2090, 5
      %v2920 = vsel %vm1295, %v2918, %v2919
      %v2921 = vrot.slane %v2797, 5
      %v2922 = vrot.slane %v2921, 4
      %v2923 = vrot.slane %v2092, 5
      %v2924 = vsel %vm1295, %v2922, %v2923
      %v2925 = vrot.slane %v2923, 4
      %v2926 = vrot.slane %v2093, 5
      %v2927 = vsel %vm1295, %v2925, %v2926
      %v2928 = vrot.slane %v2798, 5
      %v2929 = vrot.slane %v2928, 4
      %v2930 = vrot.slane %v2095, 5
      %v2931 = vsel %vm1295, %v2929, %v2930
      %v2932 = vrot.slane %v2930, 4
      %v2933 = vrot.slane %v2096, 5
      %v2934 = vsel %vm1295, %v2932, %v2933
      %v2935 = vrot.slane %v2799, 5
      %v2936 = vrot.slane %v2935, 4
      %v2937 = vrot.slane %v2098, 5
      %v2938 = vsel %vm1295, %v2936, %v2937
      %v2939 = vrot.slane %v2937, 4
      %v2940 = vrot.slane %v2099, 5
      %v2941 = vsel %vm1295, %v2939, %v2940
      %v2942 = vrot.slane %v2800, 5
      %v2943 = vrot.slane %v2942, 4
      %v2944 = vrot.slane %v2101, 5
      %v2945 = vsel %vm1295, %v2943, %v2944
      %v2946 = vrot.slane %v2944, 4
      %v2947 = vrot.slane %v2102, 5
      %v2948 = vsel %vm1295, %v2946, %v2947
      %v2949 = vrot.slane %v2801, 5
      %v2950 = vrot.slane %v2949, 4
      %v2951 = vrot.slane %v2104, 5
      %v2952 = vsel %vm1295, %v2950, %v2951
      %v2953 = vrot.slane %v2951, 4
      %v2954 = vrot.slane %v2105, 5
      %v2955 = vsel %vm1295, %v2953, %v2954
      %v2956 = vrot.slane %v2802, 5
      %v2957 = vrot.slane %v2956, 4
      %v2958 = vrot.slane %v2107, 5
      %v2959 = vsel %vm1295, %v2957, %v2958
      %v2960 = vrot.slane %v2958, 4
      %v2961 = vrot.slane %v2108, 5
      %v2962 = vsel %vm1295, %v2960, %v2961
      %s2963 = scalar_lea.vmem %s1, 10
      %v2964 = vld [vmem:[%s2963] sm:$0x3]
      %v2965 = vunpack.c.l.b16 %v2854
      %v2966 = vunpack.c.l.b16 %v2857
      %v2967 = vunpack.c.l.b16 %v2861
      %v2968 = vunpack.c.l.b16 %v2864
      %v2969 = vunpack.c.l.b16 %v2868
      %v2970 = vunpack.c.l.b16 %v2871
      %v2971 = vunpack.c.l.b16 %v2875
      %v2972 = vunpack.c.l.b16 %v2878
      %v2973 = vunpack.c.l.b16 %v2882
      %v2974 = vunpack.c.l.b16 %v2885
      %v2975 = vunpack.c.l.b16 %v2889
      %v2976 = vunpack.c.l.b16 %v2892
      %v2977 = vunpack.c.l.b16 %v2896
      %v2978 = vunpack.c.l.b16 %v2899
      %v2979 = vunpack.c.l.b16 %v2903
      %v2980 = vunpack.c.l.b16 %v2906
      %v2981 = vunpack.c.l.b16 %v2910
      %v2982 = vunpack.c.l.b16 %v2913
      %v2983 = vunpack.c.l.b16 %v2917
      %v2984 = vunpack.c.l.b16 %v2920
      %v2985 = vunpack.c.l.b16 %v2924
      %v2986 = vunpack.c.l.b16 %v2927
      %v2987 = vunpack.c.l.b16 %v2931
      %v2988 = vunpack.c.l.b16 %v2934
      %v2989 = vunpack.c.l.b16 %v2938
      %v2990 = vunpack.c.l.b16 %v2941
      %v2991 = vunpack.c.l.b16 %v2945
      %v2992 = vunpack.c.l.b16 %v2948
      %v2993 = vunpack.c.l.b16 %v2952
      %v2994 = vunpack.c.l.b16 %v2955
      %v2995 = vunpack.c.l.b16 %v2959
      %v2996 = vunpack.c.l.b16 %v2962
      %v2997 = vpack.c.b16 %v2966, %v2965
      %v2998 = vpack.c.b16 %v2968, %v2967
      %v2999 = vpack.c.b16 %v2970, %v2969
      %v3000 = vpack.c.b16 %v2972, %v2971
      %v3001 = vpack.c.b16 %v2974, %v2973
      %v3002 = vpack.c.b16 %v2976, %v2975
      %v3003 = vpack.c.b16 %v2978, %v2977
      %v3004 = vpack.c.b16 %v2980, %v2979
      %v3005 = vpack.c.b16 %v2982, %v2981
      %v3006 = vpack.c.b16 %v2984, %v2983
      %v3007 = vpack.c.b16 %v2986, %v2985
      %v3008 = vpack.c.b16 %v2988, %v2987
      %v3009 = vpack.c.b16 %v2990, %v2989
      %v3010 = vpack.c.b16 %v2992, %v2991
      %v3011 = vpack.c.b16 %v2994, %v2993
      %v3012 = vpack.c.b16 %v2996, %v2995
      %v3014 = vsel %vm739, %v2997, 0
      %v3017 = vsel %vm739, %v2998, 0
      %v3020 = vsel %vm739, %v2999, 0
      %v3023 = vsel %vm739, %v3000, 0
      %v3026 = vsel %vm739, %v3001, 0
      %v3029 = vsel %vm739, %v3002, 0
      %v3032 = vsel %vm739, %v3003, 0
      %v3035 = vsel %vm739, %v3004, 0
      %v3038 = vsel %vm739, %v3005, 0
      %v3041 = vsel %vm739, %v3006, 0
      %v3044 = vsel %vm739, %v3007, 0
      %v3047 = vsel %vm739, %v3008, 0
      %v3050 = vsel %vm739, %v3009, 0
      %v3053 = vsel %vm739, %v3010, 0
      %v3056 = vsel %vm739, %v3011, 0
      %v3059 = vsel %vm739, %v3012, 0
      %v3062 = vsel %vm788, %v2964, 0
      %3064 = vmatprep.subr.bf16.mxu0 0
      %3065 = vmatpush1.bf16.msra.mxu0 %v3062
      %3066 = vmatprep.subr.bf16.mxu0 0
      %3067 = vmatpush1.bf16.msra.mxu0 0
      %3068 = vmatprep.subr.bf16.mxu0 0
      %3069 = vmatpush1.bf16.msra.mxu0 0
      %3070 = vmatprep.subr.bf16.mxu0 0
      %3071 = vmatpush1.bf16.msra.mxu0 0
      %3072 = vmatprep.subr.bf16.mxu0 0
      %3073 = vmatpush1.bf16.msra.mxu0 0
      %3074 = vmatprep.subr.bf16.mxu0 0
      %3075 = vmatpush1.bf16.msra.mxu0 0
      %3076 = vmatprep.subr.bf16.mxu0 0
      %3077 = vmatpush1.bf16.msra.mxu0 0
      %3078 = vmatprep.subr.bf16.mxu0 0
      %3079 = vmatpush1.bf16.msra.mxu0 0
      %3080 = vmatprep.subr.bf16.mxu0 0
      %3081 = vmatpush1.bf16.msra.mxu0 0
      %3082 = vmatprep.subr.bf16.mxu0 0
      %3083 = vmatpush1.bf16.msra.mxu0 0
      %3084 = vmatprep.subr.bf16.mxu0 0
      %3085 = vmatpush1.bf16.msra.mxu0 0
      %3086 = vmatprep.subr.bf16.mxu0 0
      %3087 = vmatpush1.bf16.msra.mxu0 0
      %3088 = vmatprep.subr.bf16.mxu0 0
      %3089 = vmatpush1.bf16.msra.mxu0 0
      %3090 = vmatprep.subr.bf16.mxu0 0
      %3091 = vmatpush1.bf16.msra.mxu0 0
      %3092 = vmatprep.subr.bf16.mxu0 0
      %3093 = vmatpush1.bf16.msra.mxu0 0
      %3094 = vmatprep.subr.bf16.mxu0 0
      %3095 = vmatpush1.bf16.msra.mxu0 0
      %3096 = vmatprep.mubr.bf16.mxu0 0
      %3097 = vmatmul.mubr.bf16.gmra.mrb[0].mxu0 %v3014
      %v3098 = vpop.f32.mrb[0].mxu0
      %v3099 = vadd.f32 0.0, %v3098
      %v3100 = vpop.f32.mrb[0].mxu0
      %v3101 = vpop.f32.mrb[0].mxu0
      %v3102 = vadd.f32 0.0, %v3101
      %v3103 = vpop.f32.mrb[0].mxu0
      %3104 = vmatprep.mubr.bf16.mxu0 0
      %3105 = vmatmul.mubr.bf16.gmra.mrb[0].mxu0 %v3017
      %v3106 = vpop.f32.mrb[0].mxu0
      %v3107 = vadd.f32 0.0, %v3106
      %v3108 = vpop.f32.mrb[0].mxu0
      %v3109 = vpop.f32.mrb[0].mxu0
      %v3110 = vadd.f32 0.0, %v3109
      %v3111 = vpop.f32.mrb[0].mxu0
      %3112 = vmatprep.mubr.bf16.mxu0 0
      %3113 = vmatmul.mubr.bf16.gmra.mrb[0].mxu0 %v3020
      %v3114 = vpop.f32.mrb[0].mxu0
      %v3115 = vadd.f32 0.0, %v3114
      %v3116 = vpop.f32.mrb[0].mxu0
      %v3117 = vpop.f32.mrb[0].mxu0
      %v3118 = vadd.f32 0.0, %v3117
      %v3119 = vpop.f32.mrb[0].mxu0
      %3120 = vmatprep.mubr.bf16.mxu0 0
      %3121 = vmatmul.mubr.bf16.gmra.mrb[0].mxu0 %v3023
      %v3122 = vpop.f32.mrb[0].mxu0
      %v3123 = vadd.f32 0.0, %v3122
      %v3124 = vpop.f32.mrb[0].mxu0
      %v3125 = vpop.f32.mrb[0].mxu0
      %v3126 = vadd.f32 0.0, %v3125
      %v3127 = vpop.f32.mrb[0].mxu0
      %3128 = vmatprep.mubr.bf16.mxu0 0
      %3129 = vmatmul.mubr.bf16.gmra.mrb[0].mxu0 %v3026
      %v3130 = vpop.f32.mrb[0].mxu0
      %v3131 = vadd.f32 0.0, %v3130
      %v3132 = vpop.f32.mrb[0].mxu0
      %v3133 = vpop.f32.mrb[0].mxu0
      %v3134 = vadd.f32 0.0, %v3133
      %v3135 = vpop.f32.mrb[0].mxu0
      %3136 = vmatprep.mubr.bf16.mxu0 0
      %3137 = vmatmul.mubr.bf16.gmra.mrb[0].mxu0 %v3029
      %v3138 = vpop.f32.mrb[0].mxu0
      %v3139 = vadd.f32 0.0, %v3138
      %v3140 = vpop.f32.mrb[0].mxu0
      %v3141 = vpop.f32.mrb[0].mxu0
      %v3142 = vadd.f32 0.0, %v3141
      %v3143 = vpop.f32.mrb[0].mxu0
      %3144 = vmatprep.mubr.bf16.mxu0 0
      %3145 = vmatmul.mubr.bf16.gmra.mrb[0].mxu0 %v3032
      %v3146 = vpop.f32.mrb[0].mxu0
      %v3147 = vadd.f32 0.0, %v3146
      %v3148 = vpop.f32.mrb[0].mxu0
      %v3149 = vpop.f32.mrb[0].mxu0
      %v3150 = vadd.f32 0.0, %v3149
      %v3151 = vpop.f32.mrb[0].mxu0
      %3152 = vmatprep.mubr.bf16.mxu0 0
      %3153 = vmatmul.mubr.bf16.gmra.mrb[0].mxu0 %v3035
      %v3154 = vpop.f32.mrb[0].mxu0
      %v3155 = vadd.f32 0.0, %v3154
      %v3156 = vpop.f32.mrb[0].mxu0
      %v3157 = vpop.f32.mrb[0].mxu0
      %v3158 = vadd.f32 0.0, %v3157
      %v3159 = vpop.f32.mrb[0].mxu0
      %3160 = vmatprep.mubr.bf16.mxu0 0
      %3161 = vmatmul.mubr.bf16.gmra.mrb[0].mxu0 %v3038
      %v3162 = vpop.f32.mrb[0].mxu0
      %v3163 = vadd.f32 0.0, %v3162
      %v3164 = vpop.f32.mrb[0].mxu0
      %v3165 = vpop.f32.mrb[0].mxu0
      %v3166 = vadd.f32 0.0, %v3165
      %v3167 = vpop.f32.mrb[0].mxu0
      %3168 = vmatprep.mubr.bf16.mxu0 0
      %3169 = vmatmul.mubr.bf16.gmra.mrb[0].mxu0 %v3041
      %v3170 = vpop.f32.mrb[0].mxu0
      %v3171 = vadd.f32 0.0, %v3170
      %v3172 = vpop.f32.mrb[0].mxu0
      %v3173 = vpop.f32.mrb[0].mxu0
      %v3174 = vadd.f32 0.0, %v3173
      %v3175 = vpop.f32.mrb[0].mxu0
      %3176 = vmatprep.mubr.bf16.mxu0 0
      %3177 = vmatmul.mubr.bf16.gmra.mrb[0].mxu0 %v3044
      %v3178 = vpop.f32.mrb[0].mxu0
      %v3179 = vadd.f32 0.0, %v3178
      %v3180 = vpop.f32.mrb[0].mxu0
      %v3181 = vpop.f32.mrb[0].mxu0
      %v3182 = vadd.f32 0.0, %v3181
      %v3183 = vpop.f32.mrb[0].mxu0
      %3184 = vmatprep.mubr.bf16.mxu0 0
      %3185 = vmatmul.mubr.bf16.gmra.mrb[0].mxu0 %v3047
      %v3186 = vpop.f32.mrb[0].mxu0
      %v3187 = vadd.f32 0.0, %v3186
      %v3188 = vpop.f32.mrb[0].mxu0
      %v3189 = vpop.f32.mrb[0].mxu0
      %v3190 = vadd.f32 0.0, %v3189
      %v3191 = vpop.f32.mrb[0].mxu0
      %3192 = vmatprep.mubr.bf16.mxu0 0
      %3193 = vmatmul.mubr.bf16.gmra.mrb[0].mxu0 %v3050
      %v3194 = vpop.f32.mrb[0].mxu0
      %v3195 = vadd.f32 0.0, %v3194
      %v3196 = vpop.f32.mrb[0].mxu0
      %v3197 = vpop.f32.mrb[0].mxu0
      %v3198 = vadd.f32 0.0, %v3197
      %v3199 = vpop.f32.mrb[0].mxu0
      %3200 = vmatprep.mubr.bf16.mxu0 0
      %3201 = vmatmul.mubr.bf16.gmra.mrb[0].mxu0 %v3053
      %v3202 = vpop.f32.mrb[0].mxu0
      %v3203 = vadd.f32 0.0, %v3202
      %v3204 = vpop.f32.mrb[0].mxu0
      %v3205 = vpop.f32.mrb[0].mxu0
      %v3206 = vadd.f32 0.0, %v3205
      %v3207 = vpop.f32.mrb[0].mxu0
      %3208 = vmatprep.mubr.bf16.mxu0 0
      %3209 = vmatmul.mubr.bf16.gmra.mrb[0].mxu0 %v3056
      %v3210 = vpop.f32.mrb[0].mxu0
      %v3211 = vadd.f32 0.0, %v3210
      %v3212 = vpop.f32.mrb[0].mxu0
      %v3213 = vpop.f32.mrb[0].mxu0
      %v3214 = vadd.f32 0.0, %v3213
      %v3215 = vpop.f32.mrb[0].mxu0
      %3216 = vmatprep.mubr.bf16.mxu0 0
      %3217 = vmatmul.mubr.bf16.gmra.mrb[0].mxu0 %v3059
      %v3218 = vpop.f32.mrb[0].mxu0
      %v3219 = vadd.f32 0.0, %v3218
      %v3220 = vpop.f32.mrb[0].mxu0
      %v3221 = vpop.f32.mrb[0].mxu0
      %v3222 = vadd.f32 0.0, %v3221
      %v3223 = vpop.f32.mrb[0].mxu0
      %3224 = vdwg.mxu0
      %v3225 = vadd.f32 %v2755, %v3099
      %v3226 = vadd.f32 %v2756, %v3102
      %v3227 = vadd.f32 %v2757, %v3107
      %v3228 = vadd.f32 %v2758, %v3110
      %v3229 = vadd.f32 %v2759, %v3115
      %v3230 = vadd.f32 %v2760, %v3118
      %v3231 = vadd.f32 %v2761, %v3123
      %v3232 = vadd.f32 %v2762, %v3126
      %v3233 = vadd.f32 %v2763, %v3131
      %v3234 = vadd.f32 %v2764, %v3134
      %v3235 = vadd.f32 %v2765, %v3139
      %v3236 = vadd.f32 %v2766, %v3142
      %v3237 = vadd.f32 %v2767, %v3147
      %v3238 = vadd.f32 %v2768, %v3150
      %v3239 = vadd.f32 %v2769, %v3155
      %v3240 = vadd.f32 %v2770, %v3158
      %v3241 = vadd.f32 %v2771, %v3163
      %v3242 = vadd.f32 %v2772, %v3166
      %v3243 = vadd.f32 %v2773, %v3171
      %v3244 = vadd.f32 %v2774, %v3174
      %v3245 = vadd.f32 %v2775, %v3179
      %v3246 = vadd.f32 %v2776, %v3182
      %v3247 = vadd.f32 %v2777, %v3187
      %v3248 = vadd.f32 %v2778, %v3190
      %v3249 = vadd.f32 %v2779, %v3195
      %v3250 = vadd.f32 %v2780, %v3198
      %v3251 = vadd.f32 %v2781, %v3203
      %v3252 = vadd.f32 %v2782, %v3206
      %v3253 = vadd.f32 %v2783, %v3211
      %v3254 = vadd.f32 %v2784, %v3214
      %v3255 = vadd.f32 %v2785, %v3219
      %v3256 = vadd.f32 %v2786, %v3222
      %s3257 = scalar_lea.vmem %s246, 24
      %v3258 = vld [vmem:[%s3257] sm:$0xf]
      %v3259 = vld [vmem:[%s3257 + $0x4] sm:$0xf]
      %v3260 = vld [vmem:[%s3257 + $0xc] sm:$0xf]
      %v3261 = vld [vmem:[%s3257 + $0x10] sm:$0xf]
      %v3262 = vld [vmem:[%s3257 + $0x18] sm:$0xf]
      %v3263 = vld [vmem:[%s3257 + $0x1c] sm:$0xf]
      %v3264 = vld [vmem:[%s3257 + $0x24] sm:$0xf]
      %v3265 = vld [vmem:[%s3257 + $0x28] sm:$0xf]
      %v3266 = vld [vmem:[%s3257 + $0x30] sm:$0xf]
      %v3267 = vld [vmem:[%s3257 + $0x34] sm:$0xf]
      %v3268 = vld [vmem:[%s3257 + $0x3c] sm:$0xf]
      %v3269 = vld [vmem:[%s3257 + $0x40] sm:$0xf]
      %v3270 = vld [vmem:[%s3257 + $0x48] sm:$0xf]
      %v3271 = vld [vmem:[%s3257 + $0x4c] sm:$0xf]
      %v3272 = vld [vmem:[%s3257 + $0x54] sm:$0xf]
      %v3273 = vld [vmem:[%s3257 + $0x58] sm:$0xf]
      %v3274 = vld [vmem:[%s3257 + $0x60] sm:$0xf]
      %v3275 = vld [vmem:[%s3257 + $0x64] sm:$0xf]
      %v3276 = vld [vmem:[%s3257 + $0x6c] sm:$0xf]
      %v3277 = vld [vmem:[%s3257 + $0x70] sm:$0xf]
      %v3278 = vld [vmem:[%s3257 + $0x78] sm:$0xf]
      %v3279 = vld [vmem:[%s3257 + $0x7c] sm:$0xf]
      %v3280 = vld [vmem:[%s3257 + $0x84] sm:$0xf]
      %v3281 = vld [vmem:[%s3257 + $0x88] sm:$0xf]
      %v3282 = vld [vmem:[%s3257 + $0x90] sm:$0xf]
      %v3283 = vld [vmem:[%s3257 + $0x94] sm:$0xf]
      %v3284 = vld [vmem:[%s3257 + $0x9c] sm:$0xf]
      %v3285 = vld [vmem:[%s3257 + $0xa0] sm:$0xf]
      %v3286 = vld [vmem:[%s3257 + $0xa8] sm:$0xf]
      %v3287 = vld [vmem:[%s3257 + $0xac] sm:$0xf]
      %v3288 = vld [vmem:[%s3257 + $0xb4] sm:$0xf]
      %v3289 = vld [vmem:[%s3257 + $0xb8] sm:$0xf]
      %s3290 = scalar_lea.vmem %s1, 12
      %v3291 = vld [vmem:[%s3290] sm:$0x3]
      %v3324 = vunpack.c.l.b16 %v3258
      %v3325 = vunpack.c.l.b16 %v3259
      %v3326 = vunpack.c.l.b16 %v3260
      %v3327 = vunpack.c.l.b16 %v3261
      %v3328 = vunpack.c.l.b16 %v3262
      %v3329 = vunpack.c.l.b16 %v3263
      %v3330 = vunpack.c.l.b16 %v3264
      %v3331 = vunpack.c.l.b16 %v3265
      %v3332 = vunpack.c.l.b16 %v3266
      %v3333 = vunpack.c.l.b16 %v3267
      %v3334 = vunpack.c.l.b16 %v3268
      %v3335 = vunpack.c.l.b16 %v3269
      %v3336 = vunpack.c.l.b16 %v3270
      %v3337 = vunpack.c.l.b16 %v3271
      %v3338 = vunpack.c.l.b16 %v3272
      %v3339 = vunpack.c.l.b16 %v3273
      %v3340 = vunpack.c.l.b16 %v3274
      %v3341 = vunpack.c.l.b16 %v3275
      %v3342 = vunpack.c.l.b16 %v3276
      %v3343 = vunpack.c.l.b16 %v3277
      %v3344 = vunpack.c.l.b16 %v3278
      %v3345 = vunpack.c.l.b16 %v3279
      %v3346 = vunpack.c.l.b16 %v3280
      %v3347 = vunpack.c.l.b16 %v3281
      %v3348 = vunpack.c.l.b16 %v3282
      %v3349 = vunpack.c.l.b16 %v3283
      %v3350 = vunpack.c.l.b16 %v3284
      %v3351 = vunpack.c.l.b16 %v3285
      %v3352 = vunpack.c.l.b16 %v3286
      %v3353 = vunpack.c.l.b16 %v3287
      %v3354 = vunpack.c.l.b16 %v3288
      %v3355 = vunpack.c.l.b16 %v3289
      %v3356 = vpack.c.b16 %v3325, %v3324
      %v3357 = vpack.c.b16 %v3327, %v3326
      %v3358 = vpack.c.b16 %v3329, %v3328
      %v3359 = vpack.c.b16 %v3331, %v3330
      %v3360 = vpack.c.b16 %v3333, %v3332
      %v3361 = vpack.c.b16 %v3335, %v3334
      %v3362 = vpack.c.b16 %v3337, %v3336
      %v3363 = vpack.c.b16 %v3339, %v3338
      %v3364 = vpack.c.b16 %v3341, %v3340
      %v3365 = vpack.c.b16 %v3343, %v3342
      %v3366 = vpack.c.b16 %v3345, %v3344
      %v3367 = vpack.c.b16 %v3347, %v3346
      %v3368 = vpack.c.b16 %v3349, %v3348
      %v3369 = vpack.c.b16 %v3351, %v3350
      %v3370 = vpack.c.b16 %v3353, %v3352
      %v3371 = vpack.c.b16 %v3355, %v3354
      %v3373 = vsel %vm739, %v3356, 0
      %v3376 = vsel %vm739, %v3357, 0
      %v3379 = vsel %vm739, %v3358, 0
      %v3382 = vsel %vm739, %v3359, 0
      %v3385 = vsel %vm739, %v3360, 0
      %v3388 = vsel %vm739, %v3361, 0
      %v3391 = vsel %vm739, %v3362, 0
      %v3394 = vsel %vm739, %v3363, 0
      %v3397 = vsel %vm739, %v3364, 0
      %v3400 = vsel %vm739, %v3365, 0
      %v3403 = vsel %vm739, %v3366, 0
      %v3406 = vsel %vm739, %v3367, 0
      %v3409 = vsel %vm739, %v3368, 0
      %v3412 = vsel %vm739, %v3369, 0
      %v3415 = vsel %vm739, %v3370, 0
      %v3418 = vsel %vm739, %v3371, 0
      %v3421 = vsel %vm788, %v3291, 0
      %3423 = vmatprep.subr.bf16.mxu0 0
      %3424 = vmatpush1.bf16.msra.mxu0 %v3421
      %3425 = vmatprep.subr.bf16.mxu0 0
      %3426 = vmatpush1.bf16.msra.mxu0 0
      %3427 = vmatprep.subr.bf16.mxu0 0
      %3428 = vmatpush1.bf16.msra.mxu0 0
      %3429 = vmatprep.subr.bf16.mxu0 0
      %3430 = vmatpush1.bf16.msra.mxu0 0
      %3431 = vmatprep.subr.bf16.mxu0 0
      %3432 = vmatpush1.bf16.msra.mxu0 0
      %3433 = vmatprep.subr.bf16.mxu0 0
      %3434 = vmatpush1.bf16.msra.mxu0 0
      %3435 = vmatprep.subr.bf16.mxu0 0
      %3436 = vmatpush1.bf16.msra.mxu0 0
      %3437 = vmatprep.subr.bf16.mxu0 0
      %3438 = vmatpush1.bf16.msra.mxu0 0
      %3439 = vmatprep.subr.bf16.mxu0 0
      %3440 = vmatpush1.bf16.msra.mxu0 0
      %3441 = vmatprep.subr.bf16.mxu0 0
      %3442 = vmatpush1.bf16.msra.mxu0 0
      %3443 = vmatprep.subr.bf16.mxu0 0
      %3444 = vmatpush1.bf16.msra.mxu0 0
      %3445 = vmatprep.subr.bf16.mxu0 0
      %3446 = vmatpush1.bf16.msra.mxu0 0
      %3447 = vmatprep.subr.bf16.mxu0 0
      %3448 = vmatpush1.bf16.msra.mxu0 0
      %3449 = vmatprep.subr.bf16.mxu0 0
      %3450 = vmatpush1.bf16.msra.mxu0 0
      %3451 = vmatprep.subr.bf16.mxu0 0
      %3452 = vmatpush1.bf16.msra.mxu0 0
      %3453 = vmatprep.subr.bf16.mxu0 0
      %3454 = vmatpush1.bf16.msra.mxu0 0
      %3455 = vmatprep.mubr.bf16.mxu0 0
      %3456 = vmatmul.mubr.bf16.gmra.mrb[0].mxu0 %v3373
      %v3457 = vpop.f32.mrb[0].mxu0
      %v3458 = vadd.f32 0.0, %v3457
      %v3459 = vpop.f32.mrb[0].mxu0
      %v3460 = vpop.f32.mrb[0].mxu0
      %v3461 = vadd.f32 0.0, %v3460
      %v3462 = vpop.f32.mrb[0].mxu0
      %3463 = vmatprep.mubr.bf16.mxu0 0
      %3464 = vmatmul.mubr.bf16.gmra.mrb[0].mxu0 %v3376
      %v3465 = vpop.f32.mrb[0].mxu0
      %v3466 = vadd.f32 0.0, %v3465
      %v3467 = vpop.f32.mrb[0].mxu0
      %v3468 = vpop.f32.mrb[0].mxu0
      %v3469 = vadd.f32 0.0, %v3468
      %v3470 = vpop.f32.mrb[0].mxu0
      %3471 = vmatprep.mubr.bf16.mxu0 0
      %3472 = vmatmul.mubr.bf16.gmra.mrb[0].mxu0 %v3379
      %v3473 = vpop.f32.mrb[0].mxu0
      %v3474 = vadd.f32 0.0, %v3473
      %v3475 = vpop.f32.mrb[0].mxu0
      %v3476 = vpop.f32.mrb[0].mxu0
      %v3477 = vadd.f32 0.0, %v3476
      %v3478 = vpop.f32.mrb[0].mxu0
      %3479 = vmatprep.mubr.bf16.mxu0 0
      %3480 = vmatmul.mubr.bf16.gmra.mrb[0].mxu0 %v3382
      %v3481 = vpop.f32.mrb[0].mxu0
      %v3482 = vadd.f32 0.0, %v3481
      %v3483 = vpop.f32.mrb[0].mxu0
      %v3484 = vpop.f32.mrb[0].mxu0
      %v3485 = vadd.f32 0.0, %v3484
      %v3486 = vpop.f32.mrb[0].mxu0
      %3487 = vmatprep.mubr.bf16.mxu0 0
      %3488 = vmatmul.mubr.bf16.gmra.mrb[0].mxu0 %v3385
      %v3489 = vpop.f32.mrb[0].mxu0
      %v3490 = vadd.f32 0.0, %v3489
      %v3491 = vpop.f32.mrb[0].mxu0
      %v3492 = vpop.f32.mrb[0].mxu0
      %v3493 = vadd.f32 0.0, %v3492
      %v3494 = vpop.f32.mrb[0].mxu0
      %3495 = vmatprep.mubr.bf16.mxu0 0
      %3496 = vmatmul.mubr.bf16.gmra.mrb[0].mxu0 %v3388
      %v3497 = vpop.f32.mrb[0].mxu0
      %v3498 = vadd.f32 0.0, %v3497
      %v3499 = vpop.f32.mrb[0].mxu0
      %v3500 = vpop.f32.mrb[0].mxu0
      %v3501 = vadd.f32 0.0, %v3500
      %v3502 = vpop.f32.mrb[0].mxu0
      %3503 = vmatprep.mubr.bf16.mxu0 0
      %3504 = vmatmul.mubr.bf16.gmra.mrb[0].mxu0 %v3391
      %v3505 = vpop.f32.mrb[0].mxu0
      %v3506 = vadd.f32 0.0, %v3505
      %v3507 = vpop.f32.mrb[0].mxu0
      %v3508 = vpop.f32.mrb[0].mxu0
      %v3509 = vadd.f32 0.0, %v3508
      %v3510 = vpop.f32.mrb[0].mxu0
      %3511 = vmatprep.mubr.bf16.mxu0 0
      %3512 = vmatmul.mubr.bf16.gmra.mrb[0].mxu0 %v3394
      %v3513 = vpop.f32.mrb[0].mxu0
      %v3514 = vadd.f32 0.0, %v3513
      %v3515 = vpop.f32.mrb[0].mxu0
      %v3516 = vpop.f32.mrb[0].mxu0
      %v3517 = vadd.f32 0.0, %v3516
      %v3518 = vpop.f32.mrb[0].mxu0
      %3519 = vmatprep.mubr.bf16.mxu0 0
      %3520 = vmatmul.mubr.bf16.gmra.mrb[0].mxu0 %v3397
      %v3521 = vpop.f32.mrb[0].mxu0
      %v3522 = vadd.f32 0.0, %v3521
      %v3523 = vpop.f32.mrb[0].mxu0
      %v3524 = vpop.f32.mrb[0].mxu0
      %v3525 = vadd.f32 0.0, %v3524
      %v3526 = vpop.f32.mrb[0].mxu0
      %3527 = vmatprep.mubr.bf16.mxu0 0
      %3528 = vmatmul.mubr.bf16.gmra.mrb[0].mxu0 %v3400
      %v3529 = vpop.f32.mrb[0].mxu0
      %v3530 = vadd.f32 0.0, %v3529
      %v3531 = vpop.f32.mrb[0].mxu0
      %v3532 = vpop.f32.mrb[0].mxu0
      %v3533 = vadd.f32 0.0, %v3532
      %v3534 = vpop.f32.mrb[0].mxu0
      %3535 = vmatprep.mubr.bf16.mxu0 0
      %3536 = vmatmul.mubr.bf16.gmra.mrb[0].mxu0 %v3403
      %v3537 = vpop.f32.mrb[0].mxu0
      %v3538 = vadd.f32 0.0, %v3537
      %v3539 = vpop.f32.mrb[0].mxu0
      %v3540 = vpop.f32.mrb[0].mxu0
      %v3541 = vadd.f32 0.0, %v3540
      %v3542 = vpop.f32.mrb[0].mxu0
      %3543 = vmatprep.mubr.bf16.mxu0 0
      %3544 = vmatmul.mubr.bf16.gmra.mrb[0].mxu0 %v3406
      %v3545 = vpop.f32.mrb[0].mxu0
      %v3546 = vadd.f32 0.0, %v3545
      %v3547 = vpop.f32.mrb[0].mxu0
      %v3548 = vpop.f32.mrb[0].mxu0
      %v3549 = vadd.f32 0.0, %v3548
      %v3550 = vpop.f32.mrb[0].mxu0
      %3551 = vmatprep.mubr.bf16.mxu0 0
      %3552 = vmatmul.mubr.bf16.gmra.mrb[0].mxu0 %v3409
      %v3553 = vpop.f32.mrb[0].mxu0
      %v3554 = vadd.f32 0.0, %v3553
      %v3555 = vpop.f32.mrb[0].mxu0
      %v3556 = vpop.f32.mrb[0].mxu0
      %v3557 = vadd.f32 0.0, %v3556
      %v3558 = vpop.f32.mrb[0].mxu0
      %3559 = vmatprep.mubr.bf16.mxu0 0
      %3560 = vmatmul.mubr.bf16.gmra.mrb[0].mxu0 %v3412
      %v3561 = vpop.f32.mrb[0].mxu0
      %v3562 = vadd.f32 0.0, %v3561
      %v3563 = vpop.f32.mrb[0].mxu0
      %v3564 = vpop.f32.mrb[0].mxu0
      %v3565 = vadd.f32 0.0, %v3564
      %v3566 = vpop.f32.mrb[0].mxu0
      %3567 = vmatprep.mubr.bf16.mxu0 0
      %3568 = vmatmul.mubr.bf16.gmra.mrb[0].mxu0 %v3415
      %v3569 = vpop.f32.mrb[0].mxu0
      %v3570 = vadd.f32 0.0, %v3569
      %v3571 = vpop.f32.mrb[0].mxu0
      %v3572 = vpop.f32.mrb[0].mxu0
      %v3573 = vadd.f32 0.0, %v3572
      %v3574 = vpop.f32.mrb[0].mxu0
      %3575 = vmatprep.mubr.bf16.mxu0 0
      %3576 = vmatmul.mubr.bf16.gmra.mrb[0].mxu0 %v3418
      %v3577 = vpop.f32.mrb[0].mxu0
      %v3578 = vadd.f32 0.0, %v3577
      %v3579 = vpop.f32.mrb[0].mxu0
      %v3580 = vpop.f32.mrb[0].mxu0
      %v3581 = vadd.f32 0.0, %v3580
      %v3582 = vpop.f32.mrb[0].mxu0
      %3583 = vdwg.mxu0
      %v3584 = vadd.f32 %v3225, %v3458
      %v3585 = vadd.f32 %v3226, %v3461
      %v3586 = vadd.f32 %v3227, %v3466
      %v3587 = vadd.f32 %v3228, %v3469
      %v3588 = vadd.f32 %v3229, %v3474
      %v3589 = vadd.f32 %v3230, %v3477
      %v3590 = vadd.f32 %v3231, %v3482
      %v3591 = vadd.f32 %v3232, %v3485
      %v3592 = vadd.f32 %v3233, %v3490
      %v3593 = vadd.f32 %v3234, %v3493
      %v3594 = vadd.f32 %v3235, %v3498
      %v3595 = vadd.f32 %v3236, %v3501
      %v3596 = vadd.f32 %v3237, %v3506
      %v3597 = vadd.f32 %v3238, %v3509
      %v3598 = vadd.f32 %v3239, %v3514
      %v3599 = vadd.f32 %v3240, %v3517
      %v3600 = vadd.f32 %v3241, %v3522
      %v3601 = vadd.f32 %v3242, %v3525
      %v3602 = vadd.f32 %v3243, %v3530
      %v3603 = vadd.f32 %v3244, %v3533
      %v3604 = vadd.f32 %v3245, %v3538
      %v3605 = vadd.f32 %v3246, %v3541
      %v3606 = vadd.f32 %v3247, %v3546
      %v3607 = vadd.f32 %v3248, %v3549
      %v3608 = vadd.f32 %v3249, %v3554
      %v3609 = vadd.f32 %v3250, %v3557
      %v3610 = vadd.f32 %v3251, %v3562
      %v3611 = vadd.f32 %v3252, %v3565
      %v3612 = vadd.f32 %v3253, %v3570
      %v3613 = vadd.f32 %v3254, %v3573
      %v3614 = vadd.f32 %v3255, %v3578
      %v3615 = vadd.f32 %v3256, %v3581
      %v3616 = vld [vmem:[%s3257] sm:$0xf]
      %v3617 = vld [vmem:[%s3257 + $0x4] sm:$0xf]
      %v3618 = vld [vmem:[%s3257 + $0x8] sm:$0x1]
      %v3619 = vld [vmem:[%s3257 + $0xc] sm:$0xf]
      %v3620 = vld [vmem:[%s3257 + $0x10] sm:$0xf]
      %v3621 = vld [vmem:[%s3257 + $0x14] sm:$0x1]
      %v3622 = vld [vmem:[%s3257 + $0x18] sm:$0xf]
      %v3623 = vld [vmem:[%s3257 + $0x1c] sm:$0xf]
      %v3624 = vld [vmem:[%s3257 + $0x20] sm:$0x1]
      %v3625 = vld [vmem:[%s3257 + $0x24] sm:$0xf]
      %v3626 = vld [vmem:[%s3257 + $0x28] sm:$0xf]
      %v3627 = vld [vmem:[%s3257 + $0x2c] sm:$0x1]
      %v3628 = vld [vmem:[%s3257 + $0x30] sm:$0xf]
      %v3629 = vld [vmem:[%s3257 + $0x34] sm:$0xf]
      %v3630 = vld [vmem:[%s3257 + $0x38] sm:$0x1]
      %v3631 = vld [vmem:[%s3257 + $0x3c] sm:$0xf]
      %v3632 = vld [vmem:[%s3257 + $0x40] sm:$0xf]
      %v3633 = vld [vmem:[%s3257 + $0x44] sm:$0x1]
      %v3634 = vld [vmem:[%s3257 + $0x48] sm:$0xf]
      %v3635 = vld [vmem:[%s3257 + $0x4c] sm:$0xf]
      %v3636 = vld [vmem:[%s3257 + $0x50] sm:$0x1]
      %v3637 = vld [vmem:[%s3257 + $0x54] sm:$0xf]
      %v3638 = vld [vmem:[%s3257 + $0x58] sm:$0xf]
      %v3639 = vld [vmem:[%s3257 + $0x5c] sm:$0x1]
      %v3640 = vld [vmem:[%s3257 + $0x60] sm:$0xf]
      %v3641 = vld [vmem:[%s3257 + $0x64] sm:$0xf]
      %v3642 = vld [vmem:[%s3257 + $0x68] sm:$0x1]
      %v3643 = vld [vmem:[%s3257 + $0x6c] sm:$0xf]
      %v3644 = vld [vmem:[%s3257 + $0x70] sm:$0xf]
      %v3645 = vld [vmem:[%s3257 + $0x74] sm:$0x1]
      %v3646 = vld [vmem:[%s3257 + $0x78] sm:$0xf]
      %v3647 = vld [vmem:[%s3257 + $0x7c] sm:$0xf]
      %v3648 = vld [vmem:[%s3257 + $0x80] sm:$0x1]
      %v3649 = vld [vmem:[%s3257 + $0x84] sm:$0xf]
      %v3650 = vld [vmem:[%s3257 + $0x88] sm:$0xf]
      %v3651 = vld [vmem:[%s3257 + $0x8c] sm:$0x1]
      %v3652 = vld [vmem:[%s3257 + $0x90] sm:$0xf]
      %v3653 = vld [vmem:[%s3257 + $0x94] sm:$0xf]
      %v3654 = vld [vmem:[%s3257 + $0x98] sm:$0x1]
      %v3655 = vld [vmem:[%s3257 + $0x9c] sm:$0xf]
      %v3656 = vld [vmem:[%s3257 + $0xa0] sm:$0xf]
      %v3657 = vld [vmem:[%s3257 + $0xa4] sm:$0x1]
      %v3658 = vld [vmem:[%s3257 + $0xa8] sm:$0xf]
      %v3659 = vld [vmem:[%s3257 + $0xac] sm:$0xf]
      %v3660 = vld [vmem:[%s3257 + $0xb0] sm:$0x1]
      %v3661 = vld [vmem:[%s3257 + $0xb4] sm:$0xf]
      %v3662 = vld [vmem:[%s3257 + $0xb8] sm:$0xf]
      %v3663 = vld [vmem:[%s3257 + $0xbc] sm:$0x1]
      %v3665 = vshrl.u32 %v3616, 16
      %v3667 = vrot.slane %v3665, 4
      %v3668 = vshll.u32 %v3616, 16
      %v3670 = vrot.slane %v3668, 5
      %v3671 = vor.u32 %v3667, %v3670
      %v3672 = vrot.slane %v3671, 4
      %v3674 = vshll.u32 %v3617, 16
      %v3676 = vrot.slane %v3674, 5
      %v3677 = vsel %vm304, %v3672, %v3676
      %v3678 = vshrl.u32 %v3617, 16
      %v3680 = vrot.slane %v3678, 4
      %v3681 = vor.u32 %v3680, %v3676
      %v3682 = vrot.slane %v3681, 4
      %v3684 = vshll.u32 %v3618, 16
      %v3686 = vrot.slane %v3684, 5
      %v3687 = vsel %vm304, %v3682, %v3686
      %v3689 = vshrl.u32 %v3619, 16
      %v3691 = vrot.slane %v3689, 4
      %v3692 = vshll.u32 %v3619, 16
      %v3694 = vrot.slane %v3692, 5
      %v3695 = vor.u32 %v3691, %v3694
      %v3696 = vrot.slane %v3695, 4
      %v3698 = vshll.u32 %v3620, 16
      %v3700 = vrot.slane %v3698, 5
      %v3701 = vsel %vm304, %v3696, %v3700
      %v3702 = vshrl.u32 %v3620, 16
      %v3704 = vrot.slane %v3702, 4
      %v3705 = vor.u32 %v3704, %v3700
      %v3706 = vrot.slane %v3705, 4
      %v3708 = vshll.u32 %v3621, 16
      %v3710 = vrot.slane %v3708, 5
      %v3711 = vsel %vm304, %v3706, %v3710
      %v3713 = vshrl.u32 %v3622, 16
      %v3715 = vrot.slane %v3713, 4
      %v3716 = vshll.u32 %v3622, 16
      %v3718 = vrot.slane %v3716, 5
      %v3719 = vor.u32 %v3715, %v3718
      %v3720 = vrot.slane %v3719, 4
      %v3722 = vshll.u32 %v3623, 16
      %v3724 = vrot.slane %v3722, 5
      %v3725 = vsel %vm304, %v3720, %v3724
      %v3726 = vshrl.u32 %v3623, 16
      %v3728 = vrot.slane %v3726, 4
      %v3729 = vor.u32 %v3728, %v3724
      %v3730 = vrot.slane %v3729, 4
      %v3732 = vshll.u32 %v3624, 16
      %v3734 = vrot.slane %v3732, 5
      %v3735 = vsel %vm304, %v3730, %v3734
      %v3737 = vshrl.u32 %v3625, 16
      %v3739 = vrot.slane %v3737, 4
      %v3740 = vshll.u32 %v3625, 16
      %v3742 = vrot.slane %v3740, 5
      %v3743 = vor.u32 %v3739, %v3742
      %v3744 = vrot.slane %v3743, 4
      %v3746 = vshll.u32 %v3626, 16
      %v3748 = vrot.slane %v3746, 5
      %v3749 = vsel %vm304, %v3744, %v3748
      %v3750 = vshrl.u32 %v3626, 16
      %v3752 = vrot.slane %v3750, 4
      %v3753 = vor.u32 %v3752, %v3748
      %v3754 = vrot.slane %v3753, 4
      %v3756 = vshll.u32 %v3627, 16
      %v3758 = vrot.slane %v3756, 5
      %v3759 = vsel %vm304, %v3754, %v3758
      %v3761 = vshrl.u32 %v3628, 16
      %v3763 = vrot.slane %v3761, 4
      %v3764 = vshll.u32 %v3628, 16
      %v3766 = vrot.slane %v3764, 5
      %v3767 = vor.u32 %v3763, %v3766
      %v3768 = vrot.slane %v3767, 4
      %v3770 = vshll.u32 %v3629, 16
      %v3772 = vrot.slane %v3770, 5
      %v3773 = vsel %vm304, %v3768, %v3772
      %v3774 = vshrl.u32 %v3629, 16
      %v3776 = vrot.slane %v3774, 4
      %v3777 = vor.u32 %v3776, %v3772
      %v3778 = vrot.slane %v3777, 4
      %v3780 = vshll.u32 %v3630, 16
      %v3782 = vrot.slane %v3780, 5
      %v3783 = vsel %vm304, %v3778, %v3782
      %v3785 = vshrl.u32 %v3631, 16
      %v3787 = vrot.slane %v3785, 4
      %v3788 = vshll.u32 %v3631, 16
      %v3790 = vrot.slane %v3788, 5
      %v3791 = vor.u32 %v3787, %v3790
      %v3792 = vrot.slane %v3791, 4
      %v3794 = vshll.u32 %v3632, 16
      %v3796 = vrot.slane %v3794, 5
      %v3797 = vsel %vm304, %v3792, %v3796
      %v3798 = vshrl.u32 %v3632, 16
      %v3800 = vrot.slane %v3798, 4
      %v3801 = vor.u32 %v3800, %v3796
      %v3802 = vrot.slane %v3801, 4
      %v3804 = vshll.u32 %v3633, 16
      %v3806 = vrot.slane %v3804, 5
      %v3807 = vsel %vm304, %v3802, %v3806
      %v3809 = vshrl.u32 %v3634, 16
      %v3811 = vrot.slane %v3809, 4
      %v3812 = vshll.u32 %v3634, 16
      %v3814 = vrot.slane %v3812, 5
      %v3815 = vor.u32 %v3811, %v3814
      %v3816 = vrot.slane %v3815, 4
      %v3818 = vshll.u32 %v3635, 16
      %v3820 = vrot.slane %v3818, 5
      %v3821 = vsel %vm304, %v3816, %v3820
      %v3822 = vshrl.u32 %v3635, 16
      %v3824 = vrot.slane %v3822, 4
      %v3825 = vor.u32 %v3824, %v3820
      %v3826 = vrot.slane %v3825, 4
      %v3828 = vshll.u32 %v3636, 16
      %v3830 = vrot.slane %v3828, 5
      %v3831 = vsel %vm304, %v3826, %v3830
      %v3833 = vshrl.u32 %v3637, 16
      %v3835 = vrot.slane %v3833, 4
      %v3836 = vshll.u32 %v3637, 16
      %v3838 = vrot.slane %v3836, 5
      %v3839 = vor.u32 %v3835, %v3838
      %v3840 = vrot.slane %v3839, 4
      %v3842 = vshll.u32 %v3638, 16
      %v3844 = vrot.slane %v3842, 5
      %v3845 = vsel %vm304, %v3840, %v3844
      %v3846 = vshrl.u32 %v3638, 16
      %v3848 = vrot.slane %v3846, 4
      %v3849 = vor.u32 %v3848, %v3844
      %v3850 = vrot.slane %v3849, 4
      %v3852 = vshll.u32 %v3639, 16
      %v3854 = vrot.slane %v3852, 5
      %v3855 = vsel %vm304, %v3850, %v3854
      %v3857 = vshrl.u32 %v3640, 16
      %v3859 = vrot.slane %v3857, 4
      %v3860 = vshll.u32 %v3640, 16
      %v3862 = vrot.slane %v3860, 5
      %v3863 = vor.u32 %v3859, %v3862
      %v3864 = vrot.slane %v3863, 4
      %v3866 = vshll.u32 %v3641, 16
      %v3868 = vrot.slane %v3866, 5
      %v3869 = vsel %vm304, %v3864, %v3868
      %v3870 = vshrl.u32 %v3641, 16
      %v3872 = vrot.slane %v3870, 4
      %v3873 = vor.u32 %v3872, %v3868
      %v3874 = vrot.slane %v3873, 4
      %v3876 = vshll.u32 %v3642, 16
      %v3878 = vrot.slane %v3876, 5
      %v3879 = vsel %vm304, %v3874, %v3878
      %v3881 = vshrl.u32 %v3643, 16
      %v3883 = vrot.slane %v3881, 4
      %v3884 = vshll.u32 %v3643, 16
      %v3886 = vrot.slane %v3884, 5
      %v3887 = vor.u32 %v3883, %v3886
      %v3888 = vrot.slane %v3887, 4
      %v3890 = vshll.u32 %v3644, 16
      %v3892 = vrot.slane %v3890, 5
      %v3893 = vsel %vm304, %v3888, %v3892
      %v3894 = vshrl.u32 %v3644, 16
      %v3896 = vrot.slane %v3894, 4
      %v3897 = vor.u32 %v3896, %v3892
      %v3898 = vrot.slane %v3897, 4
      %v3900 = vshll.u32 %v3645, 16
      %v3902 = vrot.slane %v3900, 5
      %v3903 = vsel %vm304, %v3898, %v3902
      %v3905 = vshrl.u32 %v3646, 16
      %v3907 = vrot.slane %v3905, 4
      %v3908 = vshll.u32 %v3646, 16
      %v3910 = vrot.slane %v3908, 5
      %v3911 = vor.u32 %v3907, %v3910
      %v3912 = vrot.slane %v3911, 4
      %v3914 = vshll.u32 %v3647, 16
      %v3916 = vrot.slane %v3914, 5
      %v3917 = vsel %vm304, %v3912, %v3916
      %v3918 = vshrl.u32 %v3647, 16
      %v3920 = vrot.slane %v3918, 4
      %v3921 = vor.u32 %v3920, %v3916
      %v3922 = vrot.slane %v3921, 4
      %v3924 = vshll.u32 %v3648, 16
      %v3926 = vrot.slane %v3924, 5
      %v3927 = vsel %vm304, %v3922, %v3926
      %v3929 = vshrl.u32 %v3649, 16
      %v3931 = vrot.slane %v3929, 4
      %v3932 = vshll.u32 %v3649, 16
      %v3934 = vrot.slane %v3932, 5
      %v3935 = vor.u32 %v3931, %v3934
      %v3936 = vrot.slane %v3935, 4
      %v3938 = vshll.u32 %v3650, 16
      %v3940 = vrot.slane %v3938, 5
      %v3941 = vsel %vm304, %v3936, %v3940
      %v3942 = vshrl.u32 %v3650, 16
      %v3944 = vrot.slane %v3942, 4
      %v3945 = vor.u32 %v3944, %v3940
      %v3946 = vrot.slane %v3945, 4
      %v3948 = vshll.u32 %v3651, 16
      %v3950 = vrot.slane %v3948, 5
      %v3951 = vsel %vm304, %v3946, %v3950
      %v3953 = vshrl.u32 %v3652, 16
      %v3955 = vrot.slane %v3953, 4
      %v3956 = vshll.u32 %v3652, 16
      %v3958 = vrot.slane %v3956, 5
      %v3959 = vor.u32 %v3955, %v3958
      %v3960 = vrot.slane %v3959, 4
      %v3962 = vshll.u32 %v3653, 16
      %v3964 = vrot.slane %v3962, 5
      %v3965 = vsel %vm304, %v3960, %v3964
      %v3966 = vshrl.u32 %v3653, 16
      %v3968 = vrot.slane %v3966, 4
      %v3969 = vor.u32 %v3968, %v3964
      %v3970 = vrot.slane %v3969, 4
      %v3972 = vshll.u32 %v3654, 16
      %v3974 = vrot.slane %v3972, 5
      %v3975 = vsel %vm304, %v3970, %v3974
      %v3977 = vshrl.u32 %v3655, 16
      %v3979 = vrot.slane %v3977, 4
      %v3980 = vshll.u32 %v3655, 16
      %v3982 = vrot.slane %v3980, 5
      %v3983 = vor.u32 %v3979, %v3982
      %v3984 = vrot.slane %v3983, 4
      %v3986 = vshll.u32 %v3656, 16
      %v3988 = vrot.slane %v3986, 5
      %v3989 = vsel %vm304, %v3984, %v3988
      %v3990 = vshrl.u32 %v3656, 16
      %v3992 = vrot.slane %v3990, 4
      %v3993 = vor.u32 %v3992, %v3988
      %v3994 = vrot.slane %v3993, 4
      %v3996 = vshll.u32 %v3657, 16
      %v3998 = vrot.slane %v3996, 5
      %v3999 = vsel %vm304, %v3994, %v3998
      %v4001 = vshrl.u32 %v3658, 16
      %v4003 = vrot.slane %v4001, 4
      %v4004 = vshll.u32 %v3658, 16
      %v4006 = vrot.slane %v4004, 5
      %v4007 = vor.u32 %v4003, %v4006
      %v4008 = vrot.slane %v4007, 4
      %v4010 = vshll.u32 %v3659, 16
      %v4012 = vrot.slane %v4010, 5
      %v4013 = vsel %vm304, %v4008, %v4012
      %v4014 = vshrl.u32 %v3659, 16
      %v4016 = vrot.slane %v4014, 4
      %v4017 = vor.u32 %v4016, %v4012
      %v4018 = vrot.slane %v4017, 4
      %v4020 = vshll.u32 %v3660, 16
      %v4022 = vrot.slane %v4020, 5
      %v4023 = vsel %vm304, %v4018, %v4022
      %v4025 = vshrl.u32 %v3661, 16
      %v4027 = vrot.slane %v4025, 4
      %v4028 = vshll.u32 %v3661, 16
      %v4030 = vrot.slane %v4028, 5
      %v4031 = vor.u32 %v4027, %v4030
      %v4032 = vrot.slane %v4031, 4
      %v4034 = vshll.u32 %v3662, 16
      %v4036 = vrot.slane %v4034, 5
      %v4037 = vsel %vm304, %v4032, %v4036
      %v4038 = vshrl.u32 %v3662, 16
      %v4040 = vrot.slane %v4038, 4
      %v4041 = vor.u32 %v4040, %v4036
      %v4042 = vrot.slane %v4041, 4
      %v4044 = vshll.u32 %v3663, 16
      %v4046 = vrot.slane %v4044, 5
      %v4047 = vsel %vm304, %v4042, %v4046
      %s4048 = scalar_lea.vmem %s1, 14
      %v4049 = vld [vmem:[%s4048] sm:$0x3]
      %v4050 = vunpack.c.l.b16 %v3677
      %v4051 = vunpack.c.l.b16 %v3687
      %v4052 = vunpack.c.l.b16 %v3701
      %v4053 = vunpack.c.l.b16 %v3711
      %v4054 = vunpack.c.l.b16 %v3725
      %v4055 = vunpack.c.l.b16 %v3735
      %v4056 = vunpack.c.l.b16 %v3749
      %v4057 = vunpack.c.l.b16 %v3759
      %v4058 = vunpack.c.l.b16 %v3773
      %v4059 = vunpack.c.l.b16 %v3783
      %v4060 = vunpack.c.l.b16 %v3797
      %v4061 = vunpack.c.l.b16 %v3807
      %v4062 = vunpack.c.l.b16 %v3821
      %v4063 = vunpack.c.l.b16 %v3831
      %v4064 = vunpack.c.l.b16 %v3845
      %v4065 = vunpack.c.l.b16 %v3855
      %v4066 = vunpack.c.l.b16 %v3869
      %v4067 = vunpack.c.l.b16 %v3879
      %v4068 = vunpack.c.l.b16 %v3893
      %v4069 = vunpack.c.l.b16 %v3903
      %v4070 = vunpack.c.l.b16 %v3917
      %v4071 = vunpack.c.l.b16 %v3927
      %v4072 = vunpack.c.l.b16 %v3941
      %v4073 = vunpack.c.l.b16 %v3951
      %v4074 = vunpack.c.l.b16 %v3965
      %v4075 = vunpack.c.l.b16 %v3975
      %v4076 = vunpack.c.l.b16 %v3989
      %v4077 = vunpack.c.l.b16 %v3999
      %v4078 = vunpack.c.l.b16 %v4013
      %v4079 = vunpack.c.l.b16 %v4023
      %v4080 = vunpack.c.l.b16 %v4037
      %v4081 = vunpack.c.l.b16 %v4047
      %v4082 = vpack.c.b16 %v4051, %v4050
      %v4083 = vpack.c.b16 %v4053, %v4052
      %v4084 = vpack.c.b16 %v4055, %v4054
      %v4085 = vpack.c.b16 %v4057, %v4056
      %v4086 = vpack.c.b16 %v4059, %v4058
      %v4087 = vpack.c.b16 %v4061, %v4060
      %v4088 = vpack.c.b16 %v4063, %v4062
      %v4089 = vpack.c.b16 %v4065, %v4064
      %v4090 = vpack.c.b16 %v4067, %v4066
      %v4091 = vpack.c.b16 %v4069, %v4068
      %v4092 = vpack.c.b16 %v4071, %v4070
      %v4093 = vpack.c.b16 %v4073, %v4072
      %v4094 = vpack.c.b16 %v4075, %v4074
      %v4095 = vpack.c.b16 %v4077, %v4076
      %v4096 = vpack.c.b16 %v4079, %v4078
      %v4097 = vpack.c.b16 %v4081, %v4080
      %v4099 = vsel %vm739, %v4082, 0
      %v4102 = vsel %vm739, %v4083, 0
      %v4105 = vsel %vm739, %v4084, 0
      %v4108 = vsel %vm739, %v4085, 0
      %v4111 = vsel %vm739, %v4086, 0
      %v4114 = vsel %vm739, %v4087, 0
      %v4117 = vsel %vm739, %v4088, 0
      %v4120 = vsel %vm739, %v4089, 0
      %v4123 = vsel %vm739, %v4090, 0
      %v4126 = vsel %vm739, %v4091, 0
      %v4129 = vsel %vm739, %v4092, 0
      %v4132 = vsel %vm739, %v4093, 0
      %v4135 = vsel %vm739, %v4094, 0
      %v4138 = vsel %vm739, %v4095, 0
      %v4141 = vsel %vm739, %v4096, 0
      %v4144 = vsel %vm739, %v4097, 0
      %v4147 = vsel %vm788, %v4049, 0
      %4149 = vmatprep.subr.bf16.mxu0 0
      %4150 = vmatpush1.bf16.msra.mxu0 %v4147
      %4151 = vmatprep.subr.bf16.mxu0 0
      %4152 = vmatpush1.bf16.msra.mxu0 0
      %4153 = vmatprep.subr.bf16.mxu0 0
      %4154 = vmatpush1.bf16.msra.mxu0 0
      %4155 = vmatprep.subr.bf16.mxu0 0
      %4156 = vmatpush1.bf16.msra.mxu0 0
      %4157 = vmatprep.subr.bf16.mxu0 0
      %4158 = vmatpush1.bf16.msra.mxu0 0
      %4159 = vmatprep.subr.bf16.mxu0 0
      %4160 = vmatpush1.bf16.msra.mxu0 0
      %4161 = vmatprep.subr.bf16.mxu0 0
      %4162 = vmatpush1.bf16.msra.mxu0 0
      %4163 = vmatprep.subr.bf16.mxu0 0
      %4164 = vmatpush1.bf16.msra.mxu0 0
      %4165 = vmatprep.subr.bf16.mxu0 0
      %4166 = vmatpush1.bf16.msra.mxu0 0
      %4167 = vmatprep.subr.bf16.mxu0 0
      %4168 = vmatpush1.bf16.msra.mxu0 0
      %4169 = vmatprep.subr.bf16.mxu0 0
      %4170 = vmatpush1.bf16.msra.mxu0 0
      %4171 = vmatprep.subr.bf16.mxu0 0
      %4172 = vmatpush1.bf16.msra.mxu0 0
      %4173 = vmatprep.subr.bf16.mxu0 0
      %4174 = vmatpush1.bf16.msra.mxu0 0
      %4175 = vmatprep.subr.bf16.mxu0 0
      %4176 = vmatpush1.bf16.msra.mxu0 0
      %4177 = vmatprep.subr.bf16.mxu0 0
      %4178 = vmatpush1.bf16.msra.mxu0 0
      %4179 = vmatprep.subr.bf16.mxu0 0
      %4180 = vmatpush1.bf16.msra.mxu0 0
      %4181 = vmatprep.mubr.bf16.mxu0 0
      %4182 = vmatmul.mubr.bf16.gmra.mrb[0].mxu0 %v4099
      %v4183 = vpop.f32.mrb[0].mxu0
      %v4184 = vadd.f32 0.0, %v4183
      %v4185 = vpop.f32.mrb[0].mxu0
      %v4186 = vpop.f32.mrb[0].mxu0
      %v4187 = vadd.f32 0.0, %v4186
      %v4188 = vpop.f32.mrb[0].mxu0
      %4189 = vmatprep.mubr.bf16.mxu0 0
      %4190 = vmatmul.mubr.bf16.gmra.mrb[0].mxu0 %v4102
      %v4191 = vpop.f32.mrb[0].mxu0
      %v4192 = vadd.f32 0.0, %v4191
      %v4193 = vpop.f32.mrb[0].mxu0
      %v4194 = vpop.f32.mrb[0].mxu0
      %v4195 = vadd.f32 0.0, %v4194
      %v4196 = vpop.f32.mrb[0].mxu0
      %4197 = vmatprep.mubr.bf16.mxu0 0
      %4198 = vmatmul.mubr.bf16.gmra.mrb[0].mxu0 %v4105
      %v4199 = vpop.f32.mrb[0].mxu0
      %v4200 = vadd.f32 0.0, %v4199
      %v4201 = vpop.f32.mrb[0].mxu0
      %v4202 = vpop.f32.mrb[0].mxu0
      %v4203 = vadd.f32 0.0, %v4202
      %v4204 = vpop.f32.mrb[0].mxu0
      %4205 = vmatprep.mubr.bf16.mxu0 0
      %4206 = vmatmul.mubr.bf16.gmra.mrb[0].mxu0 %v4108
      %v4207 = vpop.f32.mrb[0].mxu0
      %v4208 = vadd.f32 0.0, %v4207
      %v4209 = vpop.f32.mrb[0].mxu0
      %v4210 = vpop.f32.mrb[0].mxu0
      %v4211 = vadd.f32 0.0, %v4210
      %v4212 = vpop.f32.mrb[0].mxu0
      %4213 = vmatprep.mubr.bf16.mxu0 0
      %4214 = vmatmul.mubr.bf16.gmra.mrb[0].mxu0 %v4111
      %v4215 = vpop.f32.mrb[0].mxu0
      %v4216 = vadd.f32 0.0, %v4215
      %v4217 = vpop.f32.mrb[0].mxu0
      %v4218 = vpop.f32.mrb[0].mxu0
      %v4219 = vadd.f32 0.0, %v4218
      %v4220 = vpop.f32.mrb[0].mxu0
      %4221 = vmatprep.mubr.bf16.mxu0 0
      %4222 = vmatmul.mubr.bf16.gmra.mrb[0].mxu0 %v4114
      %v4223 = vpop.f32.mrb[0].mxu0
      %v4224 = vadd.f32 0.0, %v4223
      %v4225 = vpop.f32.mrb[0].mxu0
      %v4226 = vpop.f32.mrb[0].mxu0
      %v4227 = vadd.f32 0.0, %v4226
      %v4228 = vpop.f32.mrb[0].mxu0
      %4229 = vmatprep.mubr.bf16.mxu0 0
      %4230 = vmatmul.mubr.bf16.gmra.mrb[0].mxu0 %v4117
      %v4231 = vpop.f32.mrb[0].mxu0
      %v4232 = vadd.f32 0.0, %v4231
      %v4233 = vpop.f32.mrb[0].mxu0
      %v4234 = vpop.f32.mrb[0].mxu0
      %v4235 = vadd.f32 0.0, %v4234
      %v4236 = vpop.f32.mrb[0].mxu0
      %4237 = vmatprep.mubr.bf16.mxu0 0
      %4238 = vmatmul.mubr.bf16.gmra.mrb[0].mxu0 %v4120
      %v4239 = vpop.f32.mrb[0].mxu0
      %v4240 = vadd.f32 0.0, %v4239
      %v4241 = vpop.f32.mrb[0].mxu0
      %v4242 = vpop.f32.mrb[0].mxu0
      %v4243 = vadd.f32 0.0, %v4242
      %v4244 = vpop.f32.mrb[0].mxu0
      %4245 = vmatprep.mubr.bf16.mxu0 0
      %4246 = vmatmul.mubr.bf16.gmra.mrb[0].mxu0 %v4123
      %v4247 = vpop.f32.mrb[0].mxu0
      %v4248 = vadd.f32 0.0, %v4247
      %v4249 = vpop.f32.mrb[0].mxu0
      %v4250 = vpop.f32.mrb[0].mxu0
      %v4251 = vadd.f32 0.0, %v4250
      %v4252 = vpop.f32.mrb[0].mxu0
      %4253 = vmatprep.mubr.bf16.mxu0 0
      %4254 = vmatmul.mubr.bf16.gmra.mrb[0].mxu0 %v4126
      %v4255 = vpop.f32.mrb[0].mxu0
      %v4256 = vadd.f32 0.0, %v4255
      %v4257 = vpop.f32.mrb[0].mxu0
      %v4258 = vpop.f32.mrb[0].mxu0
      %v4259 = vadd.f32 0.0, %v4258
      %v4260 = vpop.f32.mrb[0].mxu0
      %4261 = vmatprep.mubr.bf16.mxu0 0
      %4262 = vmatmul.mubr.bf16.gmra.mrb[0].mxu0 %v4129
      %v4263 = vpop.f32.mrb[0].mxu0
      %v4264 = vadd.f32 0.0, %v4263
      %v4265 = vpop.f32.mrb[0].mxu0
      %v4266 = vpop.f32.mrb[0].mxu0
      %v4267 = vadd.f32 0.0, %v4266
      %v4268 = vpop.f32.mrb[0].mxu0
      %4269 = vmatprep.mubr.bf16.mxu0 0
      %4270 = vmatmul.mubr.bf16.gmra.mrb[0].mxu0 %v4132
      %v4271 = vpop.f32.mrb[0].mxu0
      %v4272 = vadd.f32 0.0, %v4271
      %v4273 = vpop.f32.mrb[0].mxu0
      %v4274 = vpop.f32.mrb[0].mxu0
      %v4275 = vadd.f32 0.0, %v4274
      %v4276 = vpop.f32.mrb[0].mxu0
      %4277 = vmatprep.mubr.bf16.mxu0 0
      %4278 = vmatmul.mubr.bf16.gmra.mrb[0].mxu0 %v4135
      %v4279 = vpop.f32.mrb[0].mxu0
      %v4280 = vadd.f32 0.0, %v4279
      %v4281 = vpop.f32.mrb[0].mxu0
      %v4282 = vpop.f32.mrb[0].mxu0
      %v4283 = vadd.f32 0.0, %v4282
      %v4284 = vpop.f32.mrb[0].mxu0
      %4285 = vmatprep.mubr.bf16.mxu0 0
      %4286 = vmatmul.mubr.bf16.gmra.mrb[0].mxu0 %v4138
      %v4287 = vpop.f32.mrb[0].mxu0
      %v4288 = vadd.f32 0.0, %v4287
      %v4289 = vpop.f32.mrb[0].mxu0
      %v4290 = vpop.f32.mrb[0].mxu0
      %v4291 = vadd.f32 0.0, %v4290
      %v4292 = vpop.f32.mrb[0].mxu0
      %4293 = vmatprep.mubr.bf16.mxu0 0
      %4294 = vmatmul.mubr.bf16.gmra.mrb[0].mxu0 %v4141
      %v4295 = vpop.f32.mrb[0].mxu0
      %v4296 = vadd.f32 0.0, %v4295
      %v4297 = vpop.f32.mrb[0].mxu0
      %v4298 = vpop.f32.mrb[0].mxu0
      %v4299 = vadd.f32 0.0, %v4298
      %v4300 = vpop.f32.mrb[0].mxu0
      %4301 = vmatprep.mubr.bf16.mxu0 0
      %4302 = vmatmul.mubr.bf16.gmra.mrb[0].mxu0 %v4144
      %v4303 = vpop.f32.mrb[0].mxu0
      %v4304 = vadd.f32 0.0, %v4303
      %v4305 = vpop.f32.mrb[0].mxu0
      %v4306 = vpop.f32.mrb[0].mxu0
      %v4307 = vadd.f32 0.0, %v4306
      %v4308 = vpop.f32.mrb[0].mxu0
      %4309 = vdwg.mxu0
      %v4310 = vadd.f32 %v3584, %v4184
      %v4311 = vadd.f32 %v3585, %v4187
      %v4312 = vadd.f32 %v3586, %v4192
      %v4313 = vadd.f32 %v3587, %v4195
      %v4314 = vadd.f32 %v3588, %v4200
      %v4315 = vadd.f32 %v3589, %v4203
      %v4316 = vadd.f32 %v3590, %v4208
      %v4317 = vadd.f32 %v3591, %v4211
      %v4318 = vadd.f32 %v3592, %v4216
      %v4319 = vadd.f32 %v3593, %v4219
      %v4320 = vadd.f32 %v3594, %v4224
      %v4321 = vadd.f32 %v3595, %v4227
      %v4322 = vadd.f32 %v3596, %v4232
      %v4323 = vadd.f32 %v3597, %v4235
      %v4324 = vadd.f32 %v3598, %v4240
      %v4325 = vadd.f32 %v3599, %v4243
      %v4326 = vadd.f32 %v3600, %v4248
      %v4327 = vadd.f32 %v3601, %v4251
      %v4328 = vadd.f32 %v3602, %v4256
      %v4329 = vadd.f32 %v3603, %v4259
      %v4330 = vadd.f32 %v3604, %v4264
      %v4331 = vadd.f32 %v3605, %v4267
      %v4332 = vadd.f32 %v3606, %v4272
      %v4333 = vadd.f32 %v3607, %v4275
      %v4334 = vadd.f32 %v3608, %v4280
      %v4335 = vadd.f32 %v3609, %v4283
      %v4336 = vadd.f32 %v3610, %v4288
      %v4337 = vadd.f32 %v3611, %v4291
      %v4338 = vadd.f32 %v3612, %v4296
      %v4339 = vadd.f32 %v3613, %v4299
      %v4340 = vadd.f32 %v3614, %v4304
      %v4341 = vadd.f32 %v3615, %v4307
      %v4342 = vld [vmem:[%s3257] sm:$0xe]
      %v4343 = vld [vmem:[%s3257 + $0xc] sm:$0xe]
      %v4344 = vld [vmem:[%s3257 + $0x18] sm:$0xe]
      %v4345 = vld [vmem:[%s3257 + $0x24] sm:$0xe]
      %v4346 = vld [vmem:[%s3257 + $0x30] sm:$0xe]
      %v4347 = vld [vmem:[%s3257 + $0x3c] sm:$0xe]
      %v4348 = vld [vmem:[%s3257 + $0x48] sm:$0xe]
      %v4349 = vld [vmem:[%s3257 + $0x54] sm:$0xe]
      %v4350 = vld [vmem:[%s3257 + $0x60] sm:$0xe]
      %v4351 = vld [vmem:[%s3257 + $0x6c] sm:$0xe]
      %v4352 = vld [vmem:[%s3257 + $0x78] sm:$0xe]
      %v4353 = vld [vmem:[%s3257 + $0x84] sm:$0xe]
      %v4354 = vld [vmem:[%s3257 + $0x90] sm:$0xe]
      %v4355 = vld [vmem:[%s3257 + $0x9c] sm:$0xe]
      %v4356 = vld [vmem:[%s3257 + $0xa8] sm:$0xe]
      %v4357 = vld [vmem:[%s3257 + $0xb4] sm:$0xe]
      %v4406 = vrot.slane %v4342, 5
      %v4407 = vrot.slane %v4406, 4
      %v4408 = vrot.slane %v3617, 5
      %v4409 = vsel %vm1295, %v4407, %v4408
      %v4410 = vrot.slane %v4408, 4
      %v4411 = vrot.slane %v3618, 5
      %v4412 = vsel %vm1295, %v4410, %v4411
      %v4413 = vrot.slane %v4343, 5
      %v4414 = vrot.slane %v4413, 4
      %v4415 = vrot.slane %v3620, 5
      %v4416 = vsel %vm1295, %v4414, %v4415
      %v4417 = vrot.slane %v4415, 4
      %v4418 = vrot.slane %v3621, 5
      %v4419 = vsel %vm1295, %v4417, %v4418
      %v4420 = vrot.slane %v4344, 5
      %v4421 = vrot.slane %v4420, 4
      %v4422 = vrot.slane %v3623, 5
      %v4423 = vsel %vm1295, %v4421, %v4422
      %v4424 = vrot.slane %v4422, 4
      %v4425 = vrot.slane %v3624, 5
      %v4426 = vsel %vm1295, %v4424, %v4425
      %v4427 = vrot.slane %v4345, 5
      %v4428 = vrot.slane %v4427, 4
      %v4429 = vrot.slane %v3626, 5
      %v4430 = vsel %vm1295, %v4428, %v4429
      %v4431 = vrot.slane %v4429, 4
      %v4432 = vrot.slane %v3627, 5
      %v4433 = vsel %vm1295, %v4431, %v4432
      %v4434 = vrot.slane %v4346, 5
      %v4435 = vrot.slane %v4434, 4
      %v4436 = vrot.slane %v3629, 5
      %v4437 = vsel %vm1295, %v4435, %v4436
      %v4438 = vrot.slane %v4436, 4
      %v4439 = vrot.slane %v3630, 5
      %v4440 = vsel %vm1295, %v4438, %v4439
      %v4441 = vrot.slane %v4347, 5
      %v4442 = vrot.slane %v4441, 4
      %v4443 = vrot.slane %v3632, 5
      %v4444 = vsel %vm1295, %v4442, %v4443
      %v4445 = vrot.slane %v4443, 4
      %v4446 = vrot.slane %v3633, 5
      %v4447 = vsel %vm1295, %v4445, %v4446
      %v4448 = vrot.slane %v4348, 5
      %v4449 = vrot.slane %v4448, 4
      %v4450 = vrot.slane %v3635, 5
      %v4451 = vsel %vm1295, %v4449, %v4450
      %v4452 = vrot.slane %v4450, 4
      %v4453 = vrot.slane %v3636, 5
      %v4454 = vsel %vm1295, %v4452, %v4453
      %v4455 = vrot.slane %v4349, 5
      %v4456 = vrot.slane %v4455, 4
      %v4457 = vrot.slane %v3638, 5
      %v4458 = vsel %vm1295, %v4456, %v4457
      %v4459 = vrot.slane %v4457, 4
      %v4460 = vrot.slane %v3639, 5
      %v4461 = vsel %vm1295, %v4459, %v4460
      %v4462 = vrot.slane %v4350, 5
      %v4463 = vrot.slane %v4462, 4
      %v4464 = vrot.slane %v3641, 5
      %v4465 = vsel %vm1295, %v4463, %v4464
      %v4466 = vrot.slane %v4464, 4
      %v4467 = vrot.slane %v3642, 5
      %v4468 = vsel %vm1295, %v4466, %v4467
      %v4469 = vrot.slane %v4351, 5
      %v4470 = vrot.slane %v4469, 4
      %v4471 = vrot.slane %v3644, 5
      %v4472 = vsel %vm1295, %v4470, %v4471
      %v4473 = vrot.slane %v4471, 4
      %v4474 = vrot.slane %v3645, 5
      %v4475 = vsel %vm1295, %v4473, %v4474
      %v4476 = vrot.slane %v4352, 5
      %v4477 = vrot.slane %v4476, 4
      %v4478 = vrot.slane %v3647, 5
      %v4479 = vsel %vm1295, %v4477, %v4478
      %v4480 = vrot.slane %v4478, 4
      %v4481 = vrot.slane %v3648, 5
      %v4482 = vsel %vm1295, %v4480, %v4481
      %v4483 = vrot.slane %v4353, 5
      %v4484 = vrot.slane %v4483, 4
      %v4485 = vrot.slane %v3650, 5
      %v4486 = vsel %vm1295, %v4484, %v4485
      %v4487 = vrot.slane %v4485, 4
      %v4488 = vrot.slane %v3651, 5
      %v4489 = vsel %vm1295, %v4487, %v4488
      %v4490 = vrot.slane %v4354, 5
      %v4491 = vrot.slane %v4490, 4
      %v4492 = vrot.slane %v3653, 5
      %v4493 = vsel %vm1295, %v4491, %v4492
      %v4494 = vrot.slane %v4492, 4
      %v4495 = vrot.slane %v3654, 5
      %v4496 = vsel %vm1295, %v4494, %v4495
      %v4497 = vrot.slane %v4355, 5
      %v4498 = vrot.slane %v4497, 4
      %v4499 = vrot.slane %v3656, 5
      %v4500 = vsel %vm1295, %v4498, %v4499
      %v4501 = vrot.slane %v4499, 4
      %v4502 = vrot.slane %v3657, 5
      %v4503 = vsel %vm1295, %v4501, %v4502
      %v4504 = vrot.slane %v4356, 5
      %v4505 = vrot.slane %v4504, 4
      %v4506 = vrot.slane %v3659, 5
      %v4507 = vsel %vm1295, %v4505, %v4506
      %v4508 = vrot.slane %v4506, 4
      %v4509 = vrot.slane %v3660, 5
      %v4510 = vsel %vm1295, %v4508, %v4509
      %v4511 = vrot.slane %v4357, 5
      %v4512 = vrot.slane %v4511, 4
      %v4513 = vrot.slane %v3662, 5
      %v4514 = vsel %vm1295, %v4512, %v4513
      %v4515 = vrot.slane %v4513, 4
      %v4516 = vrot.slane %v3663, 5
      %v4517 = vsel %vm1295, %v4515, %v4516
      %s4518 = scalar_lea.vmem %s1, 16
      %v4519 = vld [vmem:[%s4518] sm:$0x3]
      %v4520 = vunpack.c.l.b16 %v4409
      %v4521 = vunpack.c.l.b16 %v4412
      %v4522 = vunpack.c.l.b16 %v4416
      %v4523 = vunpack.c.l.b16 %v4419
      %v4524 = vunpack.c.l.b16 %v4423
      %v4525 = vunpack.c.l.b16 %v4426
      %v4526 = vunpack.c.l.b16 %v4430
      %v4527 = vunpack.c.l.b16 %v4433
      %v4528 = vunpack.c.l.b16 %v4437
      %v4529 = vunpack.c.l.b16 %v4440
      %v4530 = vunpack.c.l.b16 %v4444
      %v4531 = vunpack.c.l.b16 %v4447
      %v4532 = vunpack.c.l.b16 %v4451
      %v4533 = vunpack.c.l.b16 %v4454
      %v4534 = vunpack.c.l.b16 %v4458
      %v4535 = vunpack.c.l.b16 %v4461
      %v4536 = vunpack.c.l.b16 %v4465
      %v4537 = vunpack.c.l.b16 %v4468
      %v4538 = vunpack.c.l.b16 %v4472
      %v4539 = vunpack.c.l.b16 %v4475
      %v4540 = vunpack.c.l.b16 %v4479
      %v4541 = vunpack.c.l.b16 %v4482
      %v4542 = vunpack.c.l.b16 %v4486
      %v4543 = vunpack.c.l.b16 %v4489
      %v4544 = vunpack.c.l.b16 %v4493
      %v4545 = vunpack.c.l.b16 %v4496
      %v4546 = vunpack.c.l.b16 %v4500
      %v4547 = vunpack.c.l.b16 %v4503
      %v4548 = vunpack.c.l.b16 %v4507
      %v4549 = vunpack.c.l.b16 %v4510
      %v4550 = vunpack.c.l.b16 %v4514
      %v4551 = vunpack.c.l.b16 %v4517
      %v4552 = vpack.c.b16 %v4521, %v4520
      %v4553 = vpack.c.b16 %v4523, %v4522
      %v4554 = vpack.c.b16 %v4525, %v4524
      %v4555 = vpack.c.b16 %v4527, %v4526
      %v4556 = vpack.c.b16 %v4529, %v4528
      %v4557 = vpack.c.b16 %v4531, %v4530
      %v4558 = vpack.c.b16 %v4533, %v4532
      %v4559 = vpack.c.b16 %v4535, %v4534
      %v4560 = vpack.c.b16 %v4537, %v4536
      %v4561 = vpack.c.b16 %v4539, %v4538
      %v4562 = vpack.c.b16 %v4541, %v4540
      %v4563 = vpack.c.b16 %v4543, %v4542
      %v4564 = vpack.c.b16 %v4545, %v4544
      %v4565 = vpack.c.b16 %v4547, %v4546
      %v4566 = vpack.c.b16 %v4549, %v4548
      %v4567 = vpack.c.b16 %v4551, %v4550
      %v4569 = vsel %vm739, %v4552, 0
      %v4572 = vsel %vm739, %v4553, 0
      %v4575 = vsel %vm739, %v4554, 0
      %v4578 = vsel %vm739, %v4555, 0
      %v4581 = vsel %vm739, %v4556, 0
      %v4584 = vsel %vm739, %v4557, 0
      %v4587 = vsel %vm739, %v4558, 0
      %v4590 = vsel %vm739, %v4559, 0
      %v4593 = vsel %vm739, %v4560, 0
      %v4596 = vsel %vm739, %v4561, 0
      %v4599 = vsel %vm739, %v4562, 0
      %v4602 = vsel %vm739, %v4563, 0
      %v4605 = vsel %vm739, %v4564, 0
      %v4608 = vsel %vm739, %v4565, 0
      %v4611 = vsel %vm739, %v4566, 0
      %v4614 = vsel %vm739, %v4567, 0
      %v4617 = vsel %vm788, %v4519, 0
      %4619 = vmatprep.subr.bf16.mxu0 0
      %4620 = vmatpush1.bf16.msra.mxu0 %v4617
      %4621 = vmatprep.subr.bf16.mxu0 0
      %4622 = vmatpush1.bf16.msra.mxu0 0
      %4623 = vmatprep.subr.bf16.mxu0 0
      %4624 = vmatpush1.bf16.msra.mxu0 0
      %4625 = vmatprep.subr.bf16.mxu0 0
      %4626 = vmatpush1.bf16.msra.mxu0 0
      %4627 = vmatprep.subr.bf16.mxu0 0
      %4628 = vmatpush1.bf16.msra.mxu0 0
      %4629 = vmatprep.subr.bf16.mxu0 0
      %4630 = vmatpush1.bf16.msra.mxu0 0
      %4631 = vmatprep.subr.bf16.mxu0 0
      %4632 = vmatpush1.bf16.msra.mxu0 0
      %4633 = vmatprep.subr.bf16.mxu0 0
      %4634 = vmatpush1.bf16.msra.mxu0 0
      %4635 = vmatprep.subr.bf16.mxu0 0
      %4636 = vmatpush1.bf16.msra.mxu0 0
      %4637 = vmatprep.subr.bf16.mxu0 0
      %4638 = vmatpush1.bf16.msra.mxu0 0
      %4639 = vmatprep.subr.bf16.mxu0 0
      %4640 = vmatpush1.bf16.msra.mxu0 0
      %4641 = vmatprep.subr.bf16.mxu0 0
      %4642 = vmatpush1.bf16.msra.mxu0 0
      %4643 = vmatprep.subr.bf16.mxu0 0
      %4644 = vmatpush1.bf16.msra.mxu0 0
      %4645 = vmatprep.subr.bf16.mxu0 0
      %4646 = vmatpush1.bf16.msra.mxu0 0
      %4647 = vmatprep.subr.bf16.mxu0 0
      %4648 = vmatpush1.bf16.msra.mxu0 0
      %4649 = vmatprep.subr.bf16.mxu0 0
      %4650 = vmatpush1.bf16.msra.mxu0 0
      %4651 = vmatprep.mubr.bf16.mxu0 0
      %4652 = vmatmul.mubr.bf16.gmra.mrb[0].mxu0 %v4569
      %v4653 = vpop.f32.mrb[0].mxu0
      %v4654 = vadd.f32 0.0, %v4653
      %v4655 = vpop.f32.mrb[0].mxu0
      %v4656 = vpop.f32.mrb[0].mxu0
      %v4657 = vadd.f32 0.0, %v4656
      %v4658 = vpop.f32.mrb[0].mxu0
      %4659 = vmatprep.mubr.bf16.mxu0 0
      %4660 = vmatmul.mubr.bf16.gmra.mrb[0].mxu0 %v4572
      %v4661 = vpop.f32.mrb[0].mxu0
      %v4662 = vadd.f32 0.0, %v4661
      %v4663 = vpop.f32.mrb[0].mxu0
      %v4664 = vpop.f32.mrb[0].mxu0
      %v4665 = vadd.f32 0.0, %v4664
      %v4666 = vpop.f32.mrb[0].mxu0
      %4667 = vmatprep.mubr.bf16.mxu0 0
      %4668 = vmatmul.mubr.bf16.gmra.mrb[0].mxu0 %v4575
      %v4669 = vpop.f32.mrb[0].mxu0
      %v4670 = vadd.f32 0.0, %v4669
      %v4671 = vpop.f32.mrb[0].mxu0
      %v4672 = vpop.f32.mrb[0].mxu0
      %v4673 = vadd.f32 0.0, %v4672
      %v4674 = vpop.f32.mrb[0].mxu0
      %4675 = vmatprep.mubr.bf16.mxu0 0
      %4676 = vmatmul.mubr.bf16.gmra.mrb[0].mxu0 %v4578
      %v4677 = vpop.f32.mrb[0].mxu0
      %v4678 = vadd.f32 0.0, %v4677
      %v4679 = vpop.f32.mrb[0].mxu0
      %v4680 = vpop.f32.mrb[0].mxu0
      %v4681 = vadd.f32 0.0, %v4680
      %v4682 = vpop.f32.mrb[0].mxu0
      %4683 = vmatprep.mubr.bf16.mxu0 0
      %4684 = vmatmul.mubr.bf16.gmra.mrb[0].mxu0 %v4581
      %v4685 = vpop.f32.mrb[0].mxu0
      %v4686 = vadd.f32 0.0, %v4685
      %v4687 = vpop.f32.mrb[0].mxu0
      %v4688 = vpop.f32.mrb[0].mxu0
      %v4689 = vadd.f32 0.0, %v4688
      %v4690 = vpop.f32.mrb[0].mxu0
      %4691 = vmatprep.mubr.bf16.mxu0 0
      %4692 = vmatmul.mubr.bf16.gmra.mrb[0].mxu0 %v4584
      %v4693 = vpop.f32.mrb[0].mxu0
      %v4694 = vadd.f32 0.0, %v4693
      %v4695 = vpop.f32.mrb[0].mxu0
      %v4696 = vpop.f32.mrb[0].mxu0
      %v4697 = vadd.f32 0.0, %v4696
      %v4698 = vpop.f32.mrb[0].mxu0
      %4699 = vmatprep.mubr.bf16.mxu0 0
      %4700 = vmatmul.mubr.bf16.gmra.mrb[0].mxu0 %v4587
      %v4701 = vpop.f32.mrb[0].mxu0
      %v4702 = vadd.f32 0.0, %v4701
      %v4703 = vpop.f32.mrb[0].mxu0
      %v4704 = vpop.f32.mrb[0].mxu0
      %v4705 = vadd.f32 0.0, %v4704
      %v4706 = vpop.f32.mrb[0].mxu0
      %4707 = vmatprep.mubr.bf16.mxu0 0
      %4708 = vmatmul.mubr.bf16.gmra.mrb[0].mxu0 %v4590
      %v4709 = vpop.f32.mrb[0].mxu0
      %v4710 = vadd.f32 0.0, %v4709
      %v4711 = vpop.f32.mrb[0].mxu0
      %v4712 = vpop.f32.mrb[0].mxu0
      %v4713 = vadd.f32 0.0, %v4712
      %v4714 = vpop.f32.mrb[0].mxu0
      %4715 = vmatprep.mubr.bf16.mxu0 0
      %4716 = vmatmul.mubr.bf16.gmra.mrb[0].mxu0 %v4593
      %v4717 = vpop.f32.mrb[0].mxu0
      %v4718 = vadd.f32 0.0, %v4717
      %v4719 = vpop.f32.mrb[0].mxu0
      %v4720 = vpop.f32.mrb[0].mxu0
      %v4721 = vadd.f32 0.0, %v4720
      %v4722 = vpop.f32.mrb[0].mxu0
      %4723 = vmatprep.mubr.bf16.mxu0 0
      %4724 = vmatmul.mubr.bf16.gmra.mrb[0].mxu0 %v4596
      %v4725 = vpop.f32.mrb[0].mxu0
      %v4726 = vadd.f32 0.0, %v4725
      %v4727 = vpop.f32.mrb[0].mxu0
      %v4728 = vpop.f32.mrb[0].mxu0
      %v4729 = vadd.f32 0.0, %v4728
      %v4730 = vpop.f32.mrb[0].mxu0
      %4731 = vmatprep.mubr.bf16.mxu0 0
      %4732 = vmatmul.mubr.bf16.gmra.mrb[0].mxu0 %v4599
      %v4733 = vpop.f32.mrb[0].mxu0
      %v4734 = vadd.f32 0.0, %v4733
      %v4735 = vpop.f32.mrb[0].mxu0
      %v4736 = vpop.f32.mrb[0].mxu0
      %v4737 = vadd.f32 0.0, %v4736
      %v4738 = vpop.f32.mrb[0].mxu0
      %4739 = vmatprep.mubr.bf16.mxu0 0
      %4740 = vmatmul.mubr.bf16.gmra.mrb[0].mxu0 %v4602
      %v4741 = vpop.f32.mrb[0].mxu0
      %v4742 = vadd.f32 0.0, %v4741
      %v4743 = vpop.f32.mrb[0].mxu0
      %v4744 = vpop.f32.mrb[0].mxu0
      %v4745 = vadd.f32 0.0, %v4744
      %v4746 = vpop.f32.mrb[0].mxu0
      %4747 = vmatprep.mubr.bf16.mxu0 0
      %4748 = vmatmul.mubr.bf16.gmra.mrb[0].mxu0 %v4605
      %v4749 = vpop.f32.mrb[0].mxu0
      %v4750 = vadd.f32 0.0, %v4749
      %v4751 = vpop.f32.mrb[0].mxu0
      %v4752 = vpop.f32.mrb[0].mxu0
      %v4753 = vadd.f32 0.0, %v4752
      %v4754 = vpop.f32.mrb[0].mxu0
      %4755 = vmatprep.mubr.bf16.mxu0 0
      %4756 = vmatmul.mubr.bf16.gmra.mrb[0].mxu0 %v4608
      %v4757 = vpop.f32.mrb[0].mxu0
      %v4758 = vadd.f32 0.0, %v4757
      %v4759 = vpop.f32.mrb[0].mxu0
      %v4760 = vpop.f32.mrb[0].mxu0
      %v4761 = vadd.f32 0.0, %v4760
      %v4762 = vpop.f32.mrb[0].mxu0
      %4763 = vmatprep.mubr.bf16.mxu0 0
      %4764 = vmatmul.mubr.bf16.gmra.mrb[0].mxu0 %v4611
      %v4765 = vpop.f32.mrb[0].mxu0
      %v4766 = vadd.f32 0.0, %v4765
      %v4767 = vpop.f32.mrb[0].mxu0
      %v4768 = vpop.f32.mrb[0].mxu0
      %v4769 = vadd.f32 0.0, %v4768
      %v4770 = vpop.f32.mrb[0].mxu0
      %4771 = vmatprep.mubr.bf16.mxu0 0
      %4772 = vmatmul.mubr.bf16.gmra.mrb[0].mxu0 %v4614
      %v4773 = vpop.f32.mrb[0].mxu0
      %v4774 = vadd.f32 0.0, %v4773
      %v4775 = vpop.f32.mrb[0].mxu0
      %v4776 = vpop.f32.mrb[0].mxu0
      %v4777 = vadd.f32 0.0, %v4776
      %v4778 = vpop.f32.mrb[0].mxu0
      %4779 = vdwg.mxu0
      %v4780 = vadd.f32 %v4310, %v4654
      %v4781 = vadd.f32 %v4311, %v4657
      %v4782 = vadd.f32 %v4312, %v4662
      %v4783 = vadd.f32 %v4313, %v4665
      %v4784 = vadd.f32 %v4314, %v4670
      %v4785 = vadd.f32 %v4315, %v4673
      %v4786 = vadd.f32 %v4316, %v4678
      %v4787 = vadd.f32 %v4317, %v4681
      %v4788 = vadd.f32 %v4318, %v4686
      %v4789 = vadd.f32 %v4319, %v4689
      %v4790 = vadd.f32 %v4320, %v4694
      %v4791 = vadd.f32 %v4321, %v4697
      %v4792 = vadd.f32 %v4322, %v4702
      %v4793 = vadd.f32 %v4323, %v4705
      %v4794 = vadd.f32 %v4324, %v4710
      %v4795 = vadd.f32 %v4325, %v4713
      %v4796 = vadd.f32 %v4326, %v4718
      %v4797 = vadd.f32 %v4327, %v4721
      %v4798 = vadd.f32 %v4328, %v4726
      %v4799 = vadd.f32 %v4329, %v4729
      %v4800 = vadd.f32 %v4330, %v4734
      %v4801 = vadd.f32 %v4331, %v4737
      %v4802 = vadd.f32 %v4332, %v4742
      %v4803 = vadd.f32 %v4333, %v4745
      %v4804 = vadd.f32 %v4334, %v4750
      %v4805 = vadd.f32 %v4335, %v4753
      %v4806 = vadd.f32 %v4336, %v4758
      %v4807 = vadd.f32 %v4337, %v4761
      %v4808 = vadd.f32 %v4338, %v4766
      %v4809 = vadd.f32 %v4339, %v4769
      %v4810 = vadd.f32 %v4340, %v4774
      %v4811 = vadd.f32 %v4341, %v4777
      %v4812 = vld [vmem:[%s2] sm:$0x1]
      %v4814 = vlaneseq
      %v4815 = vshrl.u32 %v4814, 7
      %v4816 = vsub.s32 0, %v4815
      %v4817 = vrot.slane %v4812, %v4816
      %v4819 = vadd.f32 %v4780, %v4817
      %v4820 = vadd.f32 %v4781, %v4817
      %v4821 = vadd.f32 %v4782, %v4817
      %v4822 = vadd.f32 %v4783, %v4817
      %v4823 = vadd.f32 %v4784, %v4817
      %v4824 = vadd.f32 %v4785, %v4817
      %v4825 = vadd.f32 %v4786, %v4817
      %v4826 = vadd.f32 %v4787, %v4817
      %v4827 = vadd.f32 %v4788, %v4817
      %v4828 = vadd.f32 %v4789, %v4817
      %v4829 = vadd.f32 %v4790, %v4817
      %v4830 = vadd.f32 %v4791, %v4817
      %v4831 = vadd.f32 %v4792, %v4817
      %v4832 = vadd.f32 %v4793, %v4817
      %v4833 = vadd.f32 %v4794, %v4817
      %v4834 = vadd.f32 %v4795, %v4817
      %v4835 = vadd.f32 %v4796, %v4817
      %v4836 = vadd.f32 %v4797, %v4817
      %v4837 = vadd.f32 %v4798, %v4817
      %v4838 = vadd.f32 %v4799, %v4817
      %v4839 = vadd.f32 %v4800, %v4817
      %v4840 = vadd.f32 %v4801, %v4817
      %v4841 = vadd.f32 %v4802, %v4817
      %v4842 = vadd.f32 %v4803, %v4817
      %v4843 = vadd.f32 %v4804, %v4817
      %v4844 = vadd.f32 %v4805, %v4817
      %v4845 = vadd.f32 %v4806, %v4817
      %v4846 = vadd.f32 %v4807, %v4817
      %v4847 = vadd.f32 %v4808, %v4817
      %v4848 = vadd.f32 %v4809, %v4817
      %v4849 = vadd.f32 %v4810, %v4817
      %v4850 = vadd.f32 %v4811, %v4817
      %v4851 = vmax.f32 %v4819, 0.0
      %v4852 = vmax.f32 %v4820, 0.0
      %v4853 = vmax.f32 %v4821, 0.0
      %v4854 = vmax.f32 %v4822, 0.0
      %v4855 = vmax.f32 %v4823, 0.0
      %v4856 = vmax.f32 %v4824, 0.0
      %v4857 = vmax.f32 %v4825, 0.0
      %v4858 = vmax.f32 %v4826, 0.0
      %v4859 = vmax.f32 %v4827, 0.0
      %v4860 = vmax.f32 %v4828, 0.0
      %v4861 = vmax.f32 %v4829, 0.0
      %v4862 = vmax.f32 %v4830, 0.0
      %v4863 = vmax.f32 %v4831, 0.0
      %v4864 = vmax.f32 %v4832, 0.0
      %v4865 = vmax.f32 %v4833, 0.0
      %v4866 = vmax.f32 %v4834, 0.0
      %v4867 = vmax.f32 %v4835, 0.0
      %v4868 = vmax.f32 %v4836, 0.0
      %v4869 = vmax.f32 %v4837, 0.0
      %v4870 = vmax.f32 %v4838, 0.0
      %v4871 = vmax.f32 %v4839, 0.0
      %v4872 = vmax.f32 %v4840, 0.0
      %v4873 = vmax.f32 %v4841, 0.0
      %v4874 = vmax.f32 %v4842, 0.0
      %v4875 = vmax.f32 %v4843, 0.0
      %v4876 = vmax.f32 %v4844, 0.0
      %v4877 = vmax.f32 %v4845, 0.0
      %v4878 = vmax.f32 %v4846, 0.0
      %v4879 = vmax.f32 %v4847, 0.0
      %v4880 = vmax.f32 %v4848, 0.0
      %v4881 = vmax.f32 %v4849, 0.0
      %v4882 = vmax.f32 %v4850, 0.0
      %4883 = vst [vmem:[#allocation2] sm:$0xff] 0.0
      %4884 = vst [vmem:[#allocation2 + $0x8] sm:$0xff] 0.0
      %4885 = vst [vmem:[#allocation2 + $0x10] sm:$0x3] 0.0
      %4886 = vst [vmem:[#allocation2 + $0x18] sm:$0xff] 0.0
      %4887 = vst [vmem:[#allocation2 + $0x20] sm:$0xff] 0.0
      %4888 = vst [vmem:[#allocation2 + $0x28] sm:$0x3] 0.0
      %4889 = vst [vmem:[#allocation2 + $0x30] sm:$0xff] 0.0
      %4890 = vst [vmem:[#allocation2 + $0x38] sm:$0xff] 0.0
      %4891 = vst [vmem:[#allocation2 + $0x40] sm:$0x3] 0.0
      %4892 = vst [vmem:[#allocation2 + $0x48] sm:$0xff] 0.0
      %4893 = vst [vmem:[#allocation2 + $0x50] sm:$0xff] 0.0
      %4894 = vst [vmem:[#allocation2 + $0x58] sm:$0x3] 0.0
      %4895 = vst [vmem:[#allocation2 + $0x60] sm:$0xff] 0.0
      %4896 = vst [vmem:[#allocation2 + $0x68] sm:$0xff] 0.0
      %4897 = vst [vmem:[#allocation2 + $0x70] sm:$0x3] 0.0
      %4898 = vst [vmem:[#allocation2 + $0x78] sm:$0xff] 0.0
      %4899 = vst [vmem:[#allocation2 + $0x80] sm:$0xff] 0.0
      %4900 = vst [vmem:[#allocation2 + $0x88] sm:$0x3] 0.0
      %4901 = vst [vmem:[#allocation2 + $0x90] sm:$0xff] 0.0
      %4902 = vst [vmem:[#allocation2 + $0x98] sm:$0xff] 0.0
      %4903 = vst [vmem:[#allocation2 + $0xa0] sm:$0x3] 0.0
      %4904 = vst [vmem:[#allocation2 + $0xa8] sm:$0xff] 0.0
      %4905 = vst [vmem:[#allocation2 + $0xb0] sm:$0xff] 0.0
      %4906 = vst [vmem:[#allocation2 + $0xb8] sm:$0x3] 0.0
      %4907 = vst [vmem:[#allocation2 + $0xc0] sm:$0xff] 0.0
      %4908 = vst [vmem:[#allocation2 + $0xc8] sm:$0xff] 0.0
      %4909 = vst [vmem:[#allocation2 + $0xd0] sm:$0x3] 0.0
      %4910 = vst [vmem:[#allocation2 + $0xd8] sm:$0xff] 0.0
      %4911 = vst [vmem:[#allocation2 + $0xe0] sm:$0xff] 0.0
      %4912 = vst [vmem:[#allocation2 + $0xe8] sm:$0x3] 0.0
      %4913 = vst [vmem:[#allocation2 + $0xf0] sm:$0xff] 0.0
      %4914 = vst [vmem:[#allocation2 + $0xf8] sm:$0xff] 0.0
      %4915 = vst [vmem:[#allocation2 + $0x100] sm:$0x3] 0.0
      %4916 = vst [vmem:[#allocation2 + $0x108] sm:$0xff] 0.0
      %4917 = vst [vmem:[#allocation2 + $0x110] sm:$0xff] 0.0
      %4918 = vst [vmem:[#allocation2 + $0x118] sm:$0x3] 0.0
      %4919 = vst [vmem:[#allocation2 + $0x120] sm:$0xff] 0.0
      %4920 = vst [vmem:[#allocation2 + $0x128] sm:$0xff] 0.0
      %4921 = vst [vmem:[#allocation2 + $0x130] sm:$0x3] 0.0
      %4922 = vst [vmem:[#allocation2 + $0x138] sm:$0xff] 0.0
      %4923 = vst [vmem:[#allocation2 + $0x140] sm:$0xff] 0.0
      %4924 = vst [vmem:[#allocation2 + $0x148] sm:$0x3] 0.0
      %4925 = vst [vmem:[#allocation2 + $0x150] sm:$0xff] 0.0
      %4926 = vst [vmem:[#allocation2 + $0x158] sm:$0xff] 0.0
      %4927 = vst [vmem:[#allocation2 + $0x160] sm:$0x3] 0.0
      %4928 = vst [vmem:[#allocation2 + $0x168] sm:$0xff] 0.0
      %4929 = vst [vmem:[#allocation2 + $0x170] sm:$0xff] 0.0
      %4930 = vst [vmem:[#allocation2 + $0x178] sm:$0x3] 0.0
      %4931 = vst [vmem:[#allocation2 + $0x180] sm:$0xff] 0.0
      %4932 = vst [vmem:[#allocation2 + $0x188] sm:$0xff] 0.0
      %4933 = vst [vmem:[#allocation2 + $0x190] sm:$0x3] 0.0
      %4934 = vst [vmem:[#allocation2 + $0x198] sm:$0xff] 0.0
      %4935 = vst [vmem:[#allocation2 + $0x1a0] sm:$0xff] 0.0
      %4936 = vst [vmem:[#allocation2 + $0x1a8] sm:$0x3] 0.0
      %s4937 = scalar_lea.vmem [#allocation2], 24
      %4938 = vst [vmem:[%s4937 + $0x1] sm:$0xff] %v4851
      %4939 = vst [vmem:[%s4937 + $0x9] sm:$0xff] %v4852
      %4940 = vst [vmem:[%s4937 + $0x19] sm:$0xff] %v4853
      %4941 = vst [vmem:[%s4937 + $0x21] sm:$0xff] %v4854
      %4942 = vst [vmem:[%s4937 + $0x31] sm:$0xff] %v4855
      %4943 = vst [vmem:[%s4937 + $0x39] sm:$0xff] %v4856
      %4944 = vst [vmem:[%s4937 + $0x49] sm:$0xff] %v4857
      %4945 = vst [vmem:[%s4937 + $0x51] sm:$0xff] %v4858
      %4946 = vst [vmem:[%s4937 + $0x61] sm:$0xff] %v4859
      %4947 = vst [vmem:[%s4937 + $0x69] sm:$0xff] %v4860
      %4948 = vst [vmem:[%s4937 + $0x79] sm:$0xff] %v4861
      %4949 = vst [vmem:[%s4937 + $0x81] sm:$0xff] %v4862
      %4950 = vst [vmem:[%s4937 + $0x91] sm:$0xff] %v4863
      %4951 = vst [vmem:[%s4937 + $0x99] sm:$0xff] %v4864
      %4952 = vst [vmem:[%s4937 + $0xa9] sm:$0xff] %v4865
      %4953 = vst [vmem:[%s4937 + $0xb1] sm:$0xff] %v4866
      %4954 = vst [vmem:[%s4937 + $0xc1] sm:$0xff] %v4867
      %4955 = vst [vmem:[%s4937 + $0xc9] sm:$0xff] %v4868
      %4956 = vst [vmem:[%s4937 + $0xd9] sm:$0xff] %v4869
      %4957 = vst [vmem:[%s4937 + $0xe1] sm:$0xff] %v4870
      %4958 = vst [vmem:[%s4937 + $0xf1] sm:$0xff] %v4871
      %4959 = vst [vmem:[%s4937 + $0xf9] sm:$0xff] %v4872
      %4960 = vst [vmem:[%s4937 + $0x109] sm:$0xff] %v4873
      %4961 = vst [vmem:[%s4937 + $0x111] sm:$0xff] %v4874
      %4962 = vst [vmem:[%s4937 + $0x121] sm:$0xff] %v4875
      %4963 = vst [vmem:[%s4937 + $0x129] sm:$0xff] %v4876
      %4964 = vst [vmem:[%s4937 + $0x139] sm:$0xff] %v4877
      %4965 = vst [vmem:[%s4937 + $0x141] sm:$0xff] %v4878
      %4966 = vst [vmem:[%s4937 + $0x151] sm:$0xff] %v4879
      %4967 = vst [vmem:[%s4937 + $0x159] sm:$0xff] %v4880
      %4968 = vst [vmem:[%s4937 + $0x169] sm:$0xff] %v4881
      %4969 = vst [vmem:[%s4937 + $0x171] sm:$0xff] %v4882
      %v4970 = vld [vmem:[#allocation2] sm:$0xff]
      %v4971 = vld [vmem:[#allocation2 + $0x8] sm:$0xff]
      %v4972 = vld [vmem:[#allocation2 + $0x18] sm:$0xff]
      %v4973 = vld [vmem:[#allocation2 + $0x20] sm:$0xff]
      %v4974 = vld [vmem:[#allocation2 + $0x30] sm:$0xff]
      %v4975 = vld [vmem:[#allocation2 + $0x38] sm:$0xff]
      %v4976 = vld [vmem:[#allocation2 + $0x48] sm:$0xff]
      %v4977 = vld [vmem:[#allocation2 + $0x50] sm:$0xff]
      %v4978 = vld [vmem:[#allocation2 + $0x60] sm:$0xff]
      %v4979 = vld [vmem:[#allocation2 + $0x68] sm:$0xff]
      %v4980 = vld [vmem:[#allocation2 + $0x78] sm:$0xff]
      %v4981 = vld [vmem:[#allocation2 + $0x80] sm:$0xff]
      %v4982 = vld [vmem:[#allocation2 + $0x90] sm:$0xff]
      %v4983 = vld [vmem:[#allocation2 + $0x98] sm:$0xff]
      %v4984 = vld [vmem:[#allocation2 + $0xa8] sm:$0xff]
      %v4985 = vld [vmem:[#allocation2 + $0xb0] sm:$0xff]
      %v4986 = vld [vmem:[#allocation2 + $0xc0] sm:$0xff]
      %v4987 = vld [vmem:[#allocation2 + $0xc8] sm:$0xff]
      %v4988 = vld [vmem:[#allocation2 + $0xd8] sm:$0xff]
      %v4989 = vld [vmem:[#allocation2 + $0xe0] sm:$0xff]
      %v4990 = vld [vmem:[#allocation2 + $0xf0] sm:$0xff]
      %v4991 = vld [vmem:[#allocation2 + $0xf8] sm:$0xff]
      %v4992 = vld [vmem:[#allocation2 + $0x108] sm:$0xff]
      %v4993 = vld [vmem:[#allocation2 + $0x110] sm:$0xff]
      %v4994 = vld [vmem:[#allocation2 + $0x120] sm:$0xff]
      %v4995 = vld [vmem:[#allocation2 + $0x128] sm:$0xff]
      %v4996 = vld [vmem:[#allocation2 + $0x138] sm:$0xff]
      %v4997 = vld [vmem:[#allocation2 + $0x140] sm:$0xff]
      %v4998 = vld [vmem:[#allocation2 + $0x150] sm:$0xff]
      %v4999 = vld [vmem:[#allocation2 + $0x158] sm:$0xff]
      %v5000 = vld [vmem:[#allocation2 + $0x168] sm:$0xff]
      %v5001 = vld [vmem:[#allocation2 + $0x170] sm:$0xff]
      %v5002 = vpack.c.bf16 %v4971, %v4970
      %v5003 = vpack.c.bf16 %v4973, %v4972
      %v5004 = vpack.c.bf16 %v4975, %v4974
      %v5005 = vpack.c.bf16 %v4977, %v4976
      %v5006 = vpack.c.bf16 %v4979, %v4978
      %v5007 = vpack.c.bf16 %v4981, %v4980
      %v5008 = vpack.c.bf16 %v4983, %v4982
      %v5009 = vpack.c.bf16 %v4985, %v4984
      %v5010 = vpack.c.bf16 %v4987, %v4986
      %v5011 = vpack.c.bf16 %v4989, %v4988
      %v5012 = vpack.c.bf16 %v4991, %v4990
      %v5013 = vpack.c.bf16 %v4993, %v4992
      %v5014 = vpack.c.bf16 %v4995, %v4994
      %v5015 = vpack.c.bf16 %v4997, %v4996
      %v5016 = vpack.c.bf16 %v4999, %v4998
      %v5017 = vpack.c.bf16 %v5001, %v5000
      %v5018 = vld [vmem:[%s3] sm:$0xf]
      %v5019 = vld [vmem:[%s3 + $0x4] sm:$0xf]
      %v5020 = vld [vmem:[%s3 + $0x8] sm:$0xf]
      %v5021 = vld [vmem:[%s3 + $0xc] sm:$0xf]
      %v5022 = vld [vmem:[%s3 + $0x10] sm:$0xf]
      %v5023 = vld [vmem:[%s3 + $0x14] sm:$0xf]
      %v5024 = vld [vmem:[%s3 + $0x18] sm:$0xf]
      %v5025 = vld [vmem:[%s3 + $0x1c] sm:$0xf]
      %v5026 = vld [vmem:[%s3 + $0x20] sm:$0xf]
      %v5027 = vld [vmem:[%s3 + $0x24] sm:$0xf]
      %v5028 = vld [vmem:[%s3 + $0x28] sm:$0xf]
      %v5029 = vld [vmem:[%s3 + $0x2c] sm:$0xf]
      %v5030 = vld [vmem:[%s3 + $0x30] sm:$0xf]
      %v5031 = vld [vmem:[%s3 + $0x34] sm:$0xf]
      %v5032 = vld [vmem:[%s3 + $0x38] sm:$0xf]
      %v5033 = vld [vmem:[%s3 + $0x3c] sm:$0xf]
      %v5034 = vld [vmem:[#allocation2 + $0x1] sm:$0xff]
      %v5035 = vld [vmem:[#allocation2 + $0x9] sm:$0xff]
      %v5036 = vld [vmem:[#allocation2 + $0x19] sm:$0xff]
      %v5037 = vld [vmem:[#allocation2 + $0x21] sm:$0xff]
      %v5038 = vld [vmem:[#allocation2 + $0x31] sm:$0xff]
      %v5039 = vld [vmem:[#allocation2 + $0x39] sm:$0xff]
      %v5040 = vld [vmem:[#allocation2 + $0x49] sm:$0xff]
      %v5041 = vld [vmem:[#allocation2 + $0x51] sm:$0xff]
      %v5042 = vld [vmem:[#allocation2 + $0x61] sm:$0xff]
      %v5043 = vld [vmem:[#allocation2 + $0x69] sm:$0xff]
      %v5044 = vld [vmem:[#allocation2 + $0x79] sm:$0xff]
      %v5045 = vld [vmem:[#allocation2 + $0x81] sm:$0xff]
      %v5046 = vld [vmem:[#allocation2 + $0x91] sm:$0xff]
      %v5047 = vld [vmem:[#allocation2 + $0x99] sm:$0xff]
      %v5048 = vld [vmem:[#allocation2 + $0xa9] sm:$0xff]
      %v5049 = vld [vmem:[#allocation2 + $0xb1] sm:$0xff]
      %v5050 = vld [vmem:[#allocation2 + $0xc1] sm:$0xff]
      %v5051 = vld [vmem:[#allocation2 + $0xc9] sm:$0xff]
      %v5052 = vld [vmem:[#allocation2 + $0xd9] sm:$0xff]
      %v5053 = vld [vmem:[#allocation2 + $0xe1] sm:$0xff]
      %v5054 = vld [vmem:[#allocation2 + $0xf1] sm:$0xff]
      %v5055 = vld [vmem:[#allocation2 + $0xf9] sm:$0xff]
      %v5056 = vld [vmem:[#allocation2 + $0x109] sm:$0xff]
      %v5057 = vld [vmem:[#allocation2 + $0x111] sm:$0xff]
      %v5058 = vld [vmem:[#allocation2 + $0x121] sm:$0xff]
      %v5059 = vld [vmem:[#allocation2 + $0x129] sm:$0xff]
      %v5060 = vld [vmem:[#allocation2 + $0x139] sm:$0xff]
      %v5061 = vld [vmem:[#allocation2 + $0x141] sm:$0xff]
      %v5062 = vld [vmem:[#allocation2 + $0x151] sm:$0xff]
      %v5063 = vld [vmem:[#allocation2 + $0x159] sm:$0xff]
      %v5064 = vld [vmem:[#allocation2 + $0x169] sm:$0xff]
      %v5065 = vld [vmem:[#allocation2 + $0x171] sm:$0xff]
      %v5066 = vpack.c.bf16 %v5035, %v5034
      %v5067 = vpack.c.bf16 %v5037, %v5036
      %v5068 = vpack.c.bf16 %v5039, %v5038
      %v5069 = vpack.c.bf16 %v5041, %v5040
      %v5070 = vpack.c.bf16 %v5043, %v5042
      %v5071 = vpack.c.bf16 %v5045, %v5044
      %v5072 = vpack.c.bf16 %v5047, %v5046
      %v5073 = vpack.c.bf16 %v5049, %v5048
      %v5074 = vpack.c.bf16 %v5051, %v5050
      %v5075 = vpack.c.bf16 %v5053, %v5052
      %v5076 = vpack.c.bf16 %v5055, %v5054
      %v5077 = vpack.c.bf16 %v5057, %v5056
      %v5078 = vpack.c.bf16 %v5059, %v5058
      %v5079 = vpack.c.bf16 %v5061, %v5060
      %v5080 = vpack.c.bf16 %v5063, %v5062
      %v5081 = vpack.c.bf16 %v5065, %v5064
      %s5082 = scalar_lea.vmem %s3, 64
      %v5083 = vld [vmem:[%s5082] sm:$0xf]
      %v5084 = vld [vmem:[%s5082 + $0x4] sm:$0xf]
      %v5085 = vld [vmem:[%s5082 + $0x8] sm:$0xf]
      %v5086 = vld [vmem:[%s5082 + $0xc] sm:$0xf]
      %v5087 = vld [vmem:[%s5082 + $0x10] sm:$0xf]
      %v5088 = vld [vmem:[%s5082 + $0x14] sm:$0xf]
      %v5089 = vld [vmem:[%s5082 + $0x18] sm:$0xf]
      %v5090 = vld [vmem:[%s5082 + $0x1c] sm:$0xf]
      %v5091 = vld [vmem:[%s5082 + $0x20] sm:$0xf]
      %v5092 = vld [vmem:[%s5082 + $0x24] sm:$0xf]
      %v5093 = vld [vmem:[%s5082 + $0x28] sm:$0xf]
      %v5094 = vld [vmem:[%s5082 + $0x2c] sm:$0xf]
      %v5095 = vld [vmem:[%s5082 + $0x30] sm:$0xf]
      %v5096 = vld [vmem:[%s5082 + $0x34] sm:$0xf]
      %v5097 = vld [vmem:[%s5082 + $0x38] sm:$0xf]
      %v5098 = vld [vmem:[%s5082 + $0x3c] sm:$0xf]
      %v5115 = vunpack.c.l.b16 %v5083
      %v5116 = vunpack.c.l.b16 %v5084
      %v5117 = vunpack.c.l.b16 %v5085
      %v5118 = vunpack.c.l.b16 %v5086
      %v5119 = vunpack.c.l.b16 %v5087
      %v5120 = vunpack.c.l.b16 %v5088
      %v5121 = vunpack.c.l.b16 %v5089
      %v5122 = vunpack.c.l.b16 %v5090
      %v5123 = vunpack.c.l.b16 %v5091
      %v5124 = vunpack.c.l.b16 %v5092
      %v5125 = vunpack.c.l.b16 %v5093
      %v5126 = vunpack.c.l.b16 %v5094
      %v5127 = vunpack.c.l.b16 %v5095
      %v5128 = vunpack.c.l.b16 %v5096
      %v5129 = vunpack.c.l.b16 %v5097
      %v5130 = vunpack.c.l.b16 %v5098
      %v5131 = vpack.c.b16 %v5116, %v5115
      %v5132 = vpack.c.b16 %v5118, %v5117
      %v5133 = vpack.c.b16 %v5120, %v5119
      %v5134 = vpack.c.b16 %v5122, %v5121
      %v5135 = vpack.c.b16 %v5124, %v5123
      %v5136 = vpack.c.b16 %v5126, %v5125
      %v5137 = vpack.c.b16 %v5128, %v5127
      %v5138 = vpack.c.b16 %v5130, %v5129
      %5147 = vmatprep.subr.bf16.mxu0 0
      %5148 = vmatpush1.bf16.msra.mxu0 %v5131
      %5149 = vmatprep.subr.bf16.mxu0 0
      %5150 = vmatpush1.bf16.msra.mxu0 %v5132
      %5151 = vmatprep.subr.bf16.mxu0 0
      %5152 = vmatpush1.bf16.msra.mxu0 %v5133
      %5153 = vmatprep.subr.bf16.mxu0 0
      %5154 = vmatpush1.bf16.msra.mxu0 %v5134
      %5155 = vmatprep.subr.bf16.mxu0 0
      %5156 = vmatpush1.bf16.msra.mxu0 %v5135
      %5157 = vmatprep.subr.bf16.mxu0 0
      %5158 = vmatpush1.bf16.msra.mxu0 %v5136
      %5159 = vmatprep.subr.bf16.mxu0 0
      %5160 = vmatpush1.bf16.msra.mxu0 %v5137
      %5161 = vmatprep.subr.bf16.mxu0 0
      %5162 = vmatpush1.bf16.msra.mxu0 %v5138
      %5163 = vmatprep.subr.bf16.mxu0 0
      %5164 = vmatpush1.bf16.msra.mxu0 0
      %5165 = vmatprep.subr.bf16.mxu0 0
      %5166 = vmatpush1.bf16.msra.mxu0 0
      %5167 = vmatprep.subr.bf16.mxu0 0
      %5168 = vmatpush1.bf16.msra.mxu0 0
      %5169 = vmatprep.subr.bf16.mxu0 0
      %5170 = vmatpush1.bf16.msra.mxu0 0
      %5171 = vmatprep.subr.bf16.mxu0 0
      %5172 = vmatpush1.bf16.msra.mxu0 0
      %5173 = vmatprep.subr.bf16.mxu0 0
      %5174 = vmatpush1.bf16.msra.mxu0 0
      %5175 = vmatprep.subr.bf16.mxu0 0
      %5176 = vmatpush1.bf16.msra.mxu0 0
      %5177 = vmatprep.subr.bf16.mxu0 0
      %5178 = vmatpush1.bf16.msra.mxu0 0
      %5179 = vmatprep.mubr.bf16.mxu0 0
      %5180 = vmatmul.mubr.bf16.gmra.mrb[0].mxu0 %v5066
      %v5181 = vpop.f32.mrb[0].mxu0
      %v5182 = vadd.f32 0.0, %v5181
      %v5183 = vpop.f32.mrb[0].mxu0
      %v5184 = vpop.f32.mrb[0].mxu0
      %v5185 = vadd.f32 0.0, %v5184
      %v5186 = vpop.f32.mrb[0].mxu0
      %5187 = vmatprep.mubr.bf16.mxu0 0
      %5188 = vmatmul.mubr.bf16.gmra.mrb[0].mxu0 %v5067
      %v5189 = vpop.f32.mrb[0].mxu0
      %v5190 = vadd.f32 0.0, %v5189
      %v5191 = vpop.f32.mrb[0].mxu0
      %v5192 = vpop.f32.mrb[0].mxu0
      %v5193 = vadd.f32 0.0, %v5192
      %v5194 = vpop.f32.mrb[0].mxu0
      %5195 = vmatprep.mubr.bf16.mxu0 0
      %5196 = vmatmul.mubr.bf16.gmra.mrb[0].mxu0 %v5068
      %v5197 = vpop.f32.mrb[0].mxu0
      %v5198 = vadd.f32 0.0, %v5197
      %v5199 = vpop.f32.mrb[0].mxu0
      %v5200 = vpop.f32.mrb[0].mxu0
      %v5201 = vadd.f32 0.0, %v5200
      %v5202 = vpop.f32.mrb[0].mxu0
      %5203 = vmatprep.mubr.bf16.mxu0 0
      %5204 = vmatmul.mubr.bf16.gmra.mrb[0].mxu0 %v5069
      %v5205 = vpop.f32.mrb[0].mxu0
      %v5206 = vadd.f32 0.0, %v5205
      %v5207 = vpop.f32.mrb[0].mxu0
      %v5208 = vpop.f32.mrb[0].mxu0
      %v5209 = vadd.f32 0.0, %v5208
      %v5210 = vpop.f32.mrb[0].mxu0
      %5211 = vmatprep.mubr.bf16.mxu0 0
      %5212 = vmatmul.mubr.bf16.gmra.mrb[0].mxu0 %v5070
      %v5213 = vpop.f32.mrb[0].mxu0
      %v5214 = vadd.f32 0.0, %v5213
      %v5215 = vpop.f32.mrb[0].mxu0
      %v5216 = vpop.f32.mrb[0].mxu0
      %v5217 = vadd.f32 0.0, %v5216
      %v5218 = vpop.f32.mrb[0].mxu0
      %5219 = vmatprep.mubr.bf16.mxu0 0
      %5220 = vmatmul.mubr.bf16.gmra.mrb[0].mxu0 %v5071
      %v5221 = vpop.f32.mrb[0].mxu0
      %v5222 = vadd.f32 0.0, %v5221
      %v5223 = vpop.f32.mrb[0].mxu0
      %v5224 = vpop.f32.mrb[0].mxu0
      %v5225 = vadd.f32 0.0, %v5224
      %v5226 = vpop.f32.mrb[0].mxu0
      %5227 = vmatprep.mubr.bf16.mxu0 0
      %5228 = vmatmul.mubr.bf16.gmra.mrb[0].mxu0 %v5072
      %v5229 = vpop.f32.mrb[0].mxu0
      %v5230 = vadd.f32 0.0, %v5229
      %v5231 = vpop.f32.mrb[0].mxu0
      %v5232 = vpop.f32.mrb[0].mxu0
      %v5233 = vadd.f32 0.0, %v5232
      %v5234 = vpop.f32.mrb[0].mxu0
      %5235 = vmatprep.mubr.bf16.mxu0 0
      %5236 = vmatmul.mubr.bf16.gmra.mrb[0].mxu0 %v5073
      %v5237 = vpop.f32.mrb[0].mxu0
      %v5238 = vadd.f32 0.0, %v5237
      %v5239 = vpop.f32.mrb[0].mxu0
      %v5240 = vpop.f32.mrb[0].mxu0
      %v5241 = vadd.f32 0.0, %v5240
      %v5242 = vpop.f32.mrb[0].mxu0
      %5243 = vmatprep.mubr.bf16.mxu0 0
      %5244 = vmatmul.mubr.bf16.gmra.mrb[0].mxu0 %v5074
      %v5245 = vpop.f32.mrb[0].mxu0
      %v5246 = vadd.f32 0.0, %v5245
      %v5247 = vpop.f32.mrb[0].mxu0
      %v5248 = vpop.f32.mrb[0].mxu0
      %v5249 = vadd.f32 0.0, %v5248
      %v5250 = vpop.f32.mrb[0].mxu0
      %5251 = vmatprep.mubr.bf16.mxu0 0
      %5252 = vmatmul.mubr.bf16.gmra.mrb[0].mxu0 %v5075
      %v5253 = vpop.f32.mrb[0].mxu0
      %v5254 = vadd.f32 0.0, %v5253
      %v5255 = vpop.f32.mrb[0].mxu0
      %v5256 = vpop.f32.mrb[0].mxu0
      %v5257 = vadd.f32 0.0, %v5256
      %v5258 = vpop.f32.mrb[0].mxu0
      %5259 = vmatprep.mubr.bf16.mxu0 0
      %5260 = vmatmul.mubr.bf16.gmra.mrb[0].mxu0 %v5076
      %v5261 = vpop.f32.mrb[0].mxu0
      %v5262 = vadd.f32 0.0, %v5261
      %v5263 = vpop.f32.mrb[0].mxu0
      %v5264 = vpop.f32.mrb[0].mxu0
      %v5265 = vadd.f32 0.0, %v5264
      %v5266 = vpop.f32.mrb[0].mxu0
      %5267 = vmatprep.mubr.bf16.mxu0 0
      %5268 = vmatmul.mubr.bf16.gmra.mrb[0].mxu0 %v5077
      %v5269 = vpop.f32.mrb[0].mxu0
      %v5270 = vadd.f32 0.0, %v5269
      %v5271 = vpop.f32.mrb[0].mxu0
      %v5272 = vpop.f32.mrb[0].mxu0
      %v5273 = vadd.f32 0.0, %v5272
      %v5274 = vpop.f32.mrb[0].mxu0
      %5275 = vmatprep.mubr.bf16.mxu0 0
      %5276 = vmatmul.mubr.bf16.gmra.mrb[0].mxu0 %v5078
      %v5277 = vpop.f32.mrb[0].mxu0
      %v5278 = vadd.f32 0.0, %v5277
      %v5279 = vpop.f32.mrb[0].mxu0
      %v5280 = vpop.f32.mrb[0].mxu0
      %v5281 = vadd.f32 0.0, %v5280
      %v5282 = vpop.f32.mrb[0].mxu0
      %5283 = vmatprep.mubr.bf16.mxu0 0
      %5284 = vmatmul.mubr.bf16.gmra.mrb[0].mxu0 %v5079
      %v5285 = vpop.f32.mrb[0].mxu0
      %v5286 = vadd.f32 0.0, %v5285
      %v5287 = vpop.f32.mrb[0].mxu0
      %v5288 = vpop.f32.mrb[0].mxu0
      %v5289 = vadd.f32 0.0, %v5288
      %v5290 = vpop.f32.mrb[0].mxu0
      %5291 = vmatprep.mubr.bf16.mxu0 0
      %5292 = vmatmul.mubr.bf16.gmra.mrb[0].mxu0 %v5080
      %v5293 = vpop.f32.mrb[0].mxu0
      %v5294 = vadd.f32 0.0, %v5293
      %v5295 = vpop.f32.mrb[0].mxu0
      %v5296 = vpop.f32.mrb[0].mxu0
      %v5297 = vadd.f32 0.0, %v5296
      %v5298 = vpop.f32.mrb[0].mxu0
      %5299 = vmatprep.mubr.bf16.mxu0 0
      %5300 = vmatmul.mubr.bf16.gmra.mrb[0].mxu0 %v5081
      %v5301 = vpop.f32.mrb[0].mxu0
      %v5302 = vadd.f32 0.0, %v5301
      %v5303 = vpop.f32.mrb[0].mxu0
      %v5304 = vpop.f32.mrb[0].mxu0
      %v5305 = vadd.f32 0.0, %v5304
      %v5306 = vpop.f32.mrb[0].mxu0
      %5307 = vdwg.mxu0
      %v5324 = vunpack.c.l.b16 %v5018
      %v5325 = vunpack.c.l.b16 %v5019
      %v5326 = vunpack.c.l.b16 %v5020
      %v5327 = vunpack.c.l.b16 %v5021
      %v5328 = vunpack.c.l.b16 %v5022
      %v5329 = vunpack.c.l.b16 %v5023
      %v5330 = vunpack.c.l.b16 %v5024
      %v5331 = vunpack.c.l.b16 %v5025
      %v5332 = vunpack.c.l.b16 %v5026
      %v5333 = vunpack.c.l.b16 %v5027
      %v5334 = vunpack.c.l.b16 %v5028
      %v5335 = vunpack.c.l.b16 %v5029
      %v5336 = vunpack.c.l.b16 %v5030
      %v5337 = vunpack.c.l.b16 %v5031
      %v5338 = vunpack.c.l.b16 %v5032
      %v5339 = vunpack.c.l.b16 %v5033
      %v5340 = vpack.c.b16 %v5325, %v5324
      %v5341 = vpack.c.b16 %v5327, %v5326
      %v5342 = vpack.c.b16 %v5329, %v5328
      %v5343 = vpack.c.b16 %v5331, %v5330
      %v5344 = vpack.c.b16 %v5333, %v5332
      %v5345 = vpack.c.b16 %v5335, %v5334
      %v5346 = vpack.c.b16 %v5337, %v5336
      %v5347 = vpack.c.b16 %v5339, %v5338
      %5356 = vmatprep.subr.bf16.mxu0 0
      %5357 = vmatpush1.bf16.msra.mxu0 %v5340
      %5358 = vmatprep.subr.bf16.mxu0 0
      %5359 = vmatpush1.bf16.msra.mxu0 %v5341
      %5360 = vmatprep.subr.bf16.mxu0 0
      %5361 = vmatpush1.bf16.msra.mxu0 %v5342
      %5362 = vmatprep.subr.bf16.mxu0 0
      %5363 = vmatpush1.bf16.msra.mxu0 %v5343
      %5364 = vmatprep.subr.bf16.mxu0 0
      %5365 = vmatpush1.bf16.msra.mxu0 %v5344
      %5366 = vmatprep.subr.bf16.mxu0 0
      %5367 = vmatpush1.bf16.msra.mxu0 %v5345
      %5368 = vmatprep.subr.bf16.mxu0 0
      %5369 = vmatpush1.bf16.msra.mxu0 %v5346
      %5370 = vmatprep.subr.bf16.mxu0 0
      %5371 = vmatpush1.bf16.msra.mxu0 %v5347
      %5372 = vmatprep.subr.bf16.mxu0 0
      %5373 = vmatpush1.bf16.msra.mxu0 0
      %5374 = vmatprep.subr.bf16.mxu0 0
      %5375 = vmatpush1.bf16.msra.mxu0 0
      %5376 = vmatprep.subr.bf16.mxu0 0
      %5377 = vmatpush1.bf16.msra.mxu0 0
      %5378 = vmatprep.subr.bf16.mxu0 0
      %5379 = vmatpush1.bf16.msra.mxu0 0
      %5380 = vmatprep.subr.bf16.mxu0 0
      %5381 = vmatpush1.bf16.msra.mxu0 0
      %5382 = vmatprep.subr.bf16.mxu0 0
      %5383 = vmatpush1.bf16.msra.mxu0 0
      %5384 = vmatprep.subr.bf16.mxu0 0
      %5385 = vmatpush1.bf16.msra.mxu0 0
      %5386 = vmatprep.subr.bf16.mxu0 0
      %5387 = vmatpush1.bf16.msra.mxu0 0
      %5388 = vmatprep.mubr.bf16.mxu0 0
      %5389 = vmatmul.mubr.bf16.gmra.mrb[0].mxu0 %v5002
      %v5390 = vpop.f32.mrb[0].mxu0
      %v5391 = vadd.f32 %v5182, %v5390
      %v5392 = vpop.f32.mrb[0].mxu0
      %v5393 = vpop.f32.mrb[0].mxu0
      %v5394 = vadd.f32 %v5185, %v5393
      %v5395 = vpop.f32.mrb[0].mxu0
      %5396 = vmatprep.mubr.bf16.mxu0 0
      %5397 = vmatmul.mubr.bf16.gmra.mrb[0].mxu0 %v5003
      %v5398 = vpop.f32.mrb[0].mxu0
      %v5399 = vadd.f32 %v5190, %v5398
      %v5400 = vpop.f32.mrb[0].mxu0
      %v5401 = vpop.f32.mrb[0].mxu0
      %v5402 = vadd.f32 %v5193, %v5401
      %v5403 = vpop.f32.mrb[0].mxu0
      %5404 = vmatprep.mubr.bf16.mxu0 0
      %5405 = vmatmul.mubr.bf16.gmra.mrb[0].mxu0 %v5004
      %v5406 = vpop.f32.mrb[0].mxu0
      %v5407 = vadd.f32 %v5198, %v5406
      %v5408 = vpop.f32.mrb[0].mxu0
      %v5409 = vpop.f32.mrb[0].mxu0
      %v5410 = vadd.f32 %v5201, %v5409
      %v5411 = vpop.f32.mrb[0].mxu0
      %5412 = vmatprep.mubr.bf16.mxu0 0
      %5413 = vmatmul.mubr.bf16.gmra.mrb[0].mxu0 %v5005
      %v5414 = vpop.f32.mrb[0].mxu0
      %v5415 = vadd.f32 %v5206, %v5414
      %v5416 = vpop.f32.mrb[0].mxu0
      %v5417 = vpop.f32.mrb[0].mxu0
      %v5418 = vadd.f32 %v5209, %v5417
      %v5419 = vpop.f32.mrb[0].mxu0
      %5420 = vmatprep.mubr.bf16.mxu0 0
      %5421 = vmatmul.mubr.bf16.gmra.mrb[0].mxu0 %v5006
      %v5422 = vpop.f32.mrb[0].mxu0
      %v5423 = vadd.f32 %v5214, %v5422
      %v5424 = vpop.f32.mrb[0].mxu0
      %v5425 = vpop.f32.mrb[0].mxu0
      %v5426 = vadd.f32 %v5217, %v5425
      %v5427 = vpop.f32.mrb[0].mxu0
      %5428 = vmatprep.mubr.bf16.mxu0 0
      %5429 = vmatmul.mubr.bf16.gmra.mrb[0].mxu0 %v5007
      %v5430 = vpop.f32.mrb[0].mxu0
      %v5431 = vadd.f32 %v5222, %v5430
      %v5432 = vpop.f32.mrb[0].mxu0
      %v5433 = vpop.f32.mrb[0].mxu0
      %v5434 = vadd.f32 %v5225, %v5433
      %v5435 = vpop.f32.mrb[0].mxu0
      %5436 = vmatprep.mubr.bf16.mxu0 0
      %5437 = vmatmul.mubr.bf16.gmra.mrb[0].mxu0 %v5008
      %v5438 = vpop.f32.mrb[0].mxu0
      %v5439 = vadd.f32 %v5230, %v5438
      %v5440 = vpop.f32.mrb[0].mxu0
      %v5441 = vpop.f32.mrb[0].mxu0
      %v5442 = vadd.f32 %v5233, %v5441
      %v5443 = vpop.f32.mrb[0].mxu0
      %5444 = vmatprep.mubr.bf16.mxu0 0
      %5445 = vmatmul.mubr.bf16.gmra.mrb[0].mxu0 %v5009
      %v5446 = vpop.f32.mrb[0].mxu0
      %v5447 = vadd.f32 %v5238, %v5446
      %v5448 = vpop.f32.mrb[0].mxu0
      %v5449 = vpop.f32.mrb[0].mxu0
      %v5450 = vadd.f32 %v5241, %v5449
      %v5451 = vpop.f32.mrb[0].mxu0
      %5452 = vmatprep.mubr.bf16.mxu0 0
      %5453 = vmatmul.mubr.bf16.gmra.mrb[0].mxu0 %v5010
      %v5454 = vpop.f32.mrb[0].mxu0
      %v5455 = vadd.f32 %v5246, %v5454
      %v5456 = vpop.f32.mrb[0].mxu0
      %v5457 = vpop.f32.mrb[0].mxu0
      %v5458 = vadd.f32 %v5249, %v5457
      %v5459 = vpop.f32.mrb[0].mxu0
      %5460 = vmatprep.mubr.bf16.mxu0 0
      %5461 = vmatmul.mubr.bf16.gmra.mrb[0].mxu0 %v5011
      %v5462 = vpop.f32.mrb[0].mxu0
      %v5463 = vadd.f32 %v5254, %v5462
      %v5464 = vpop.f32.mrb[0].mxu0
      %v5465 = vpop.f32.mrb[0].mxu0
      %v5466 = vadd.f32 %v5257, %v5465
      %v5467 = vpop.f32.mrb[0].mxu0
      %5468 = vmatprep.mubr.bf16.mxu0 0
      %5469 = vmatmul.mubr.bf16.gmra.mrb[0].mxu0 %v5012
      %v5470 = vpop.f32.mrb[0].mxu0
      %v5471 = vadd.f32 %v5262, %v5470
      %v5472 = vpop.f32.mrb[0].mxu0
      %v5473 = vpop.f32.mrb[0].mxu0
      %v5474 = vadd.f32 %v5265, %v5473
      %v5475 = vpop.f32.mrb[0].mxu0
      %5476 = vmatprep.mubr.bf16.mxu0 0
      %5477 = vmatmul.mubr.bf16.gmra.mrb[0].mxu0 %v5013
      %v5478 = vpop.f32.mrb[0].mxu0
      %v5479 = vadd.f32 %v5270, %v5478
      %v5480 = vpop.f32.mrb[0].mxu0
      %v5481 = vpop.f32.mrb[0].mxu0
      %v5482 = vadd.f32 %v5273, %v5481
      %v5483 = vpop.f32.mrb[0].mxu0
      %5484 = vmatprep.mubr.bf16.mxu0 0
      %5485 = vmatmul.mubr.bf16.gmra.mrb[0].mxu0 %v5014
      %v5486 = vpop.f32.mrb[0].mxu0
      %v5487 = vadd.f32 %v5278, %v5486
      %v5488 = vpop.f32.mrb[0].mxu0
      %v5489 = vpop.f32.mrb[0].mxu0
      %v5490 = vadd.f32 %v5281, %v5489
      %v5491 = vpop.f32.mrb[0].mxu0
      %5492 = vmatprep.mubr.bf16.mxu0 0
      %5493 = vmatmul.mubr.bf16.gmra.mrb[0].mxu0 %v5015
      %v5494 = vpop.f32.mrb[0].mxu0
      %v5495 = vadd.f32 %v5286, %v5494
      %v5496 = vpop.f32.mrb[0].mxu0
      %v5497 = vpop.f32.mrb[0].mxu0
      %v5498 = vadd.f32 %v5289, %v5497
      %v5499 = vpop.f32.mrb[0].mxu0
      %5500 = vmatprep.mubr.bf16.mxu0 0
      %5501 = vmatmul.mubr.bf16.gmra.mrb[0].mxu0 %v5016
      %v5502 = vpop.f32.mrb[0].mxu0
      %v5503 = vadd.f32 %v5294, %v5502
      %v5504 = vpop.f32.mrb[0].mxu0
      %v5505 = vpop.f32.mrb[0].mxu0
      %v5506 = vadd.f32 %v5297, %v5505
      %v5507 = vpop.f32.mrb[0].mxu0
      %5508 = vmatprep.mubr.bf16.mxu0 0
      %5509 = vmatmul.mubr.bf16.gmra.mrb[0].mxu0 %v5017
      %v5510 = vpop.f32.mrb[0].mxu0
      %v5511 = vadd.f32 %v5302, %v5510
      %v5512 = vpop.f32.mrb[0].mxu0
      %v5513 = vpop.f32.mrb[0].mxu0
      %v5514 = vadd.f32 %v5305, %v5513
      %v5515 = vpop.f32.mrb[0].mxu0
      %5516 = vdwg.mxu0
      %v5517 = vld [vmem:[#allocation2 + $0x2] sm:$0xff]
      %v5518 = vld [vmem:[#allocation2 + $0xa] sm:$0xff]
      %v5519 = vld [vmem:[#allocation2 + $0x1a] sm:$0xff]
      %v5520 = vld [vmem:[#allocation2 + $0x22] sm:$0xff]
      %v5521 = vld [vmem:[#allocation2 + $0x32] sm:$0xff]
      %v5522 = vld [vmem:[#allocation2 + $0x3a] sm:$0xff]
      %v5523 = vld [vmem:[#allocation2 + $0x4a] sm:$0xff]
      %v5524 = vld [vmem:[#allocation2 + $0x52] sm:$0xff]
      %v5525 = vld [vmem:[#allocation2 + $0x62] sm:$0xff]
      %v5526 = vld [vmem:[#allocation2 + $0x6a] sm:$0xff]
      %v5527 = vld [vmem:[#allocation2 + $0x7a] sm:$0xff]
      %v5528 = vld [vmem:[#allocation2 + $0x82] sm:$0xff]
      %v5529 = vld [vmem:[#allocation2 + $0x92] sm:$0xff]
      %v5530 = vld [vmem:[#allocation2 + $0x9a] sm:$0xff]
      %v5531 = vld [vmem:[#allocation2 + $0xaa] sm:$0xff]
      %v5532 = vld [vmem:[#allocation2 + $0xb2] sm:$0xff]
      %v5533 = vld [vmem:[#allocation2 + $0xc2] sm:$0xff]
      %v5534 = vld [vmem:[#allocation2 + $0xca] sm:$0xff]
      %v5535 = vld [vmem:[#allocation2 + $0xda] sm:$0xff]
      %v5536 = vld [vmem:[#allocation2 + $0xe2] sm:$0xff]
      %v5537 = vld [vmem:[#allocation2 + $0xf2] sm:$0xff]
      %v5538 = vld [vmem:[#allocation2 + $0xfa] sm:$0xff]
      %v5539 = vld [vmem:[#allocation2 + $0x10a] sm:$0xff]
      %v5540 = vld [vmem:[#allocation2 + $0x112] sm:$0xff]
      %v5541 = vld [vmem:[#allocation2 + $0x122] sm:$0xff]
      %v5542 = vld [vmem:[#allocation2 + $0x12a] sm:$0xff]
      %v5543 = vld [vmem:[#allocation2 + $0x13a] sm:$0xff]
      %v5544 = vld [vmem:[#allocation2 + $0x142] sm:$0xff]
      %v5545 = vld [vmem:[#allocation2 + $0x152] sm:$0xff]
      %v5546 = vld [vmem:[#allocation2 + $0x15a] sm:$0xff]
      %v5547 = vld [vmem:[#allocation2 + $0x16a] sm:$0xff]
      %v5548 = vld [vmem:[#allocation2 + $0x172] sm:$0xff]
      %v5549 = vpack.c.bf16 %v5518, %v5517
      %v5550 = vpack.c.bf16 %v5520, %v5519
      %v5551 = vpack.c.bf16 %v5522, %v5521
      %v5552 = vpack.c.bf16 %v5524, %v5523
      %v5553 = vpack.c.bf16 %v5526, %v5525
      %v5554 = vpack.c.bf16 %v5528, %v5527
      %v5555 = vpack.c.bf16 %v5530, %v5529
      %v5556 = vpack.c.bf16 %v5532, %v5531
      %v5557 = vpack.c.bf16 %v5534, %v5533
      %v5558 = vpack.c.bf16 %v5536, %v5535
      %v5559 = vpack.c.bf16 %v5538, %v5537
      %v5560 = vpack.c.bf16 %v5540, %v5539
      %v5561 = vpack.c.bf16 %v5542, %v5541
      %v5562 = vpack.c.bf16 %v5544, %v5543
      %v5563 = vpack.c.bf16 %v5546, %v5545
      %v5564 = vpack.c.bf16 %v5548, %v5547
      %s5565 = scalar_lea.vmem %s3, 128
      %v5566 = vld [vmem:[%s5565] sm:$0xf]
      %v5567 = vld [vmem:[%s5565 + $0x4] sm:$0xf]
      %v5568 = vld [vmem:[%s5565 + $0x8] sm:$0xf]
      %v5569 = vld [vmem:[%s5565 + $0xc] sm:$0xf]
      %v5570 = vld [vmem:[%s5565 + $0x10] sm:$0xf]
      %v5571 = vld [vmem:[%s5565 + $0x14] sm:$0xf]
      %v5572 = vld [vmem:[%s5565 + $0x18] sm:$0xf]
      %v5573 = vld [vmem:[%s5565 + $0x1c] sm:$0xf]
      %v5574 = vld [vmem:[%s5565 + $0x20] sm:$0xf]
      %v5575 = vld [vmem:[%s5565 + $0x24] sm:$0xf]
      %v5576 = vld [vmem:[%s5565 + $0x28] sm:$0xf]
      %v5577 = vld [vmem:[%s5565 + $0x2c] sm:$0xf]
      %v5578 = vld [vmem:[%s5565 + $0x30] sm:$0xf]
      %v5579 = vld [vmem:[%s5565 + $0x34] sm:$0xf]
      %v5580 = vld [vmem:[%s5565 + $0x38] sm:$0xf]
      %v5581 = vld [vmem:[%s5565 + $0x3c] sm:$0xf]
      %v5598 = vunpack.c.l.b16 %v5566
      %v5599 = vunpack.c.l.b16 %v5567
      %v5600 = vunpack.c.l.b16 %v5568
      %v5601 = vunpack.c.l.b16 %v5569
      %v5602 = vunpack.c.l.b16 %v5570
      %v5603 = vunpack.c.l.b16 %v5571
      %v5604 = vunpack.c.l.b16 %v5572
      %v5605 = vunpack.c.l.b16 %v5573
      %v5606 = vunpack.c.l.b16 %v5574
      %v5607 = vunpack.c.l.b16 %v5575
      %v5608 = vunpack.c.l.b16 %v5576
      %v5609 = vunpack.c.l.b16 %v5577
      %v5610 = vunpack.c.l.b16 %v5578
      %v5611 = vunpack.c.l.b16 %v5579
      %v5612 = vunpack.c.l.b16 %v5580
      %v5613 = vunpack.c.l.b16 %v5581
      %v5614 = vpack.c.b16 %v5599, %v5598
      %v5615 = vpack.c.b16 %v5601, %v5600
      %v5616 = vpack.c.b16 %v5603, %v5602
      %v5617 = vpack.c.b16 %v5605, %v5604
      %v5618 = vpack.c.b16 %v5607, %v5606
      %v5619 = vpack.c.b16 %v5609, %v5608
      %v5620 = vpack.c.b16 %v5611, %v5610
      %v5621 = vpack.c.b16 %v5613, %v5612
      %5630 = vmatprep.subr.bf16.mxu0 0
      %5631 = vmatpush1.bf16.msra.mxu0 %v5614
      %5632 = vmatprep.subr.bf16.mxu0 0
      %5633 = vmatpush1.bf16.msra.mxu0 %v5615
      %5634 = vmatprep.subr.bf16.mxu0 0
      %5635 = vmatpush1.bf16.msra.mxu0 %v5616
      %5636 = vmatprep.subr.bf16.mxu0 0
      %5637 = vmatpush1.bf16.msra.mxu0 %v5617
      %5638 = vmatprep.subr.bf16.mxu0 0
      %5639 = vmatpush1.bf16.msra.mxu0 %v5618
      %5640 = vmatprep.subr.bf16.mxu0 0
      %5641 = vmatpush1.bf16.msra.mxu0 %v5619
      %5642 = vmatprep.subr.bf16.mxu0 0
      %5643 = vmatpush1.bf16.msra.mxu0 %v5620
      %5644 = vmatprep.subr.bf16.mxu0 0
      %5645 = vmatpush1.bf16.msra.mxu0 %v5621
      %5646 = vmatprep.subr.bf16.mxu0 0
      %5647 = vmatpush1.bf16.msra.mxu0 0
      %5648 = vmatprep.subr.bf16.mxu0 0
      %5649 = vmatpush1.bf16.msra.mxu0 0
      %5650 = vmatprep.subr.bf16.mxu0 0
      %5651 = vmatpush1.bf16.msra.mxu0 0
      %5652 = vmatprep.subr.bf16.mxu0 0
      %5653 = vmatpush1.bf16.msra.mxu0 0
      %5654 = vmatprep.subr.bf16.mxu0 0
      %5655 = vmatpush1.bf16.msra.mxu0 0
      %5656 = vmatprep.subr.bf16.mxu0 0
      %5657 = vmatpush1.bf16.msra.mxu0 0
      %5658 = vmatprep.subr.bf16.mxu0 0
      %5659 = vmatpush1.bf16.msra.mxu0 0
      %5660 = vmatprep.subr.bf16.mxu0 0
      %5661 = vmatpush1.bf16.msra.mxu0 0
      %5662 = vmatprep.mubr.bf16.mxu0 0
      %5663 = vmatmul.mubr.bf16.gmra.mrb[0].mxu0 %v5549
      %v5664 = vpop.f32.mrb[0].mxu0
      %v5665 = vadd.f32 0.0, %v5664
      %v5666 = vpop.f32.mrb[0].mxu0
      %v5667 = vpop.f32.mrb[0].mxu0
      %v5668 = vadd.f32 0.0, %v5667
      %v5669 = vpop.f32.mrb[0].mxu0
      %5670 = vmatprep.mubr.bf16.mxu0 0
      %5671 = vmatmul.mubr.bf16.gmra.mrb[0].mxu0 %v5550
      %v5672 = vpop.f32.mrb[0].mxu0
      %v5673 = vadd.f32 0.0, %v5672
      %v5674 = vpop.f32.mrb[0].mxu0
      %v5675 = vpop.f32.mrb[0].mxu0
      %v5676 = vadd.f32 0.0, %v5675
      %v5677 = vpop.f32.mrb[0].mxu0
      %5678 = vmatprep.mubr.bf16.mxu0 0
      %5679 = vmatmul.mubr.bf16.gmra.mrb[0].mxu0 %v5551
      %v5680 = vpop.f32.mrb[0].mxu0
      %v5681 = vadd.f32 0.0, %v5680
      %v5682 = vpop.f32.mrb[0].mxu0
      %v5683 = vpop.f32.mrb[0].mxu0
      %v5684 = vadd.f32 0.0, %v5683
      %v5685 = vpop.f32.mrb[0].mxu0
      %5686 = vmatprep.mubr.bf16.mxu0 0
      %5687 = vmatmul.mubr.bf16.gmra.mrb[0].mxu0 %v5552
      %v5688 = vpop.f32.mrb[0].mxu0
      %v5689 = vadd.f32 0.0, %v5688
      %v5690 = vpop.f32.mrb[0].mxu0
      %v5691 = vpop.f32.mrb[0].mxu0
      %v5692 = vadd.f32 0.0, %v5691
      %v5693 = vpop.f32.mrb[0].mxu0
      %5694 = vmatprep.mubr.bf16.mxu0 0
      %5695 = vmatmul.mubr.bf16.gmra.mrb[0].mxu0 %v5553
      %v5696 = vpop.f32.mrb[0].mxu0
      %v5697 = vadd.f32 0.0, %v5696
      %v5698 = vpop.f32.mrb[0].mxu0
      %v5699 = vpop.f32.mrb[0].mxu0
      %v5700 = vadd.f32 0.0, %v5699
      %v5701 = vpop.f32.mrb[0].mxu0
      %5702 = vmatprep.mubr.bf16.mxu0 0
      %5703 = vmatmul.mubr.bf16.gmra.mrb[0].mxu0 %v5554
      %v5704 = vpop.f32.mrb[0].mxu0
      %v5705 = vadd.f32 0.0, %v5704
      %v5706 = vpop.f32.mrb[0].mxu0
      %v5707 = vpop.f32.mrb[0].mxu0
      %v5708 = vadd.f32 0.0, %v5707
      %v5709 = vpop.f32.mrb[0].mxu0
      %5710 = vmatprep.mubr.bf16.mxu0 0
      %5711 = vmatmul.mubr.bf16.gmra.mrb[0].mxu0 %v5555
      %v5712 = vpop.f32.mrb[0].mxu0
      %v5713 = vadd.f32 0.0, %v5712
      %v5714 = vpop.f32.mrb[0].mxu0
      %v5715 = vpop.f32.mrb[0].mxu0
      %v5716 = vadd.f32 0.0, %v5715
      %v5717 = vpop.f32.mrb[0].mxu0
      %5718 = vmatprep.mubr.bf16.mxu0 0
      %5719 = vmatmul.mubr.bf16.gmra.mrb[0].mxu0 %v5556
      %v5720 = vpop.f32.mrb[0].mxu0
      %v5721 = vadd.f32 0.0, %v5720
      %v5722 = vpop.f32.mrb[0].mxu0
      %v5723 = vpop.f32.mrb[0].mxu0
      %v5724 = vadd.f32 0.0, %v5723
      %v5725 = vpop.f32.mrb[0].mxu0
      %5726 = vmatprep.mubr.bf16.mxu0 0
      %5727 = vmatmul.mubr.bf16.gmra.mrb[0].mxu0 %v5557
      %v5728 = vpop.f32.mrb[0].mxu0
      %v5729 = vadd.f32 0.0, %v5728
      %v5730 = vpop.f32.mrb[0].mxu0
      %v5731 = vpop.f32.mrb[0].mxu0
      %v5732 = vadd.f32 0.0, %v5731
      %v5733 = vpop.f32.mrb[0].mxu0
      %5734 = vmatprep.mubr.bf16.mxu0 0
      %5735 = vmatmul.mubr.bf16.gmra.mrb[0].mxu0 %v5558
      %v5736 = vpop.f32.mrb[0].mxu0
      %v5737 = vadd.f32 0.0, %v5736
      %v5738 = vpop.f32.mrb[0].mxu0
      %v5739 = vpop.f32.mrb[0].mxu0
      %v5740 = vadd.f32 0.0, %v5739
      %v5741 = vpop.f32.mrb[0].mxu0
      %5742 = vmatprep.mubr.bf16.mxu0 0
      %5743 = vmatmul.mubr.bf16.gmra.mrb[0].mxu0 %v5559
      %v5744 = vpop.f32.mrb[0].mxu0
      %v5745 = vadd.f32 0.0, %v5744
      %v5746 = vpop.f32.mrb[0].mxu0
      %v5747 = vpop.f32.mrb[0].mxu0
      %v5748 = vadd.f32 0.0, %v5747
      %v5749 = vpop.f32.mrb[0].mxu0
      %5750 = vmatprep.mubr.bf16.mxu0 0
      %5751 = vmatmul.mubr.bf16.gmra.mrb[0].mxu0 %v5560
      %v5752 = vpop.f32.mrb[0].mxu0
      %v5753 = vadd.f32 0.0, %v5752
      %v5754 = vpop.f32.mrb[0].mxu0
      %v5755 = vpop.f32.mrb[0].mxu0
      %v5756 = vadd.f32 0.0, %v5755
      %v5757 = vpop.f32.mrb[0].mxu0
      %5758 = vmatprep.mubr.bf16.mxu0 0
      %5759 = vmatmul.mubr.bf16.gmra.mrb[0].mxu0 %v5561
      %v5760 = vpop.f32.mrb[0].mxu0
      %v5761 = vadd.f32 0.0, %v5760
      %v5762 = vpop.f32.mrb[0].mxu0
      %v5763 = vpop.f32.mrb[0].mxu0
      %v5764 = vadd.f32 0.0, %v5763
      %v5765 = vpop.f32.mrb[0].mxu0
      %5766 = vmatprep.mubr.bf16.mxu0 0
      %5767 = vmatmul.mubr.bf16.gmra.mrb[0].mxu0 %v5562
      %v5768 = vpop.f32.mrb[0].mxu0
      %v5769 = vadd.f32 0.0, %v5768
      %v5770 = vpop.f32.mrb[0].mxu0
      %v5771 = vpop.f32.mrb[0].mxu0
      %v5772 = vadd.f32 0.0, %v5771
      %v5773 = vpop.f32.mrb[0].mxu0
      %5774 = vmatprep.mubr.bf16.mxu0 0
      %5775 = vmatmul.mubr.bf16.gmra.mrb[0].mxu0 %v5563
      %v5776 = vpop.f32.mrb[0].mxu0
      %v5777 = vadd.f32 0.0, %v5776
      %v5778 = vpop.f32.mrb[0].mxu0
      %v5779 = vpop.f32.mrb[0].mxu0
      %v5780 = vadd.f32 0.0, %v5779
      %v5781 = vpop.f32.mrb[0].mxu0
      %5782 = vmatprep.mubr.bf16.mxu0 0
      %5783 = vmatmul.mubr.bf16.gmra.mrb[0].mxu0 %v5564
      %v5784 = vpop.f32.mrb[0].mxu0
      %v5785 = vadd.f32 0.0, %v5784
      %v5786 = vpop.f32.mrb[0].mxu0
      %v5787 = vpop.f32.mrb[0].mxu0
      %v5788 = vadd.f32 0.0, %v5787
      %v5789 = vpop.f32.mrb[0].mxu0
      %5790 = vdwg.mxu0
      %v5791 = vadd.f32 %v5391, %v5665
      %v5792 = vadd.f32 %v5394, %v5668
      %v5793 = vadd.f32 %v5399, %v5673
      %v5794 = vadd.f32 %v5402, %v5676
      %v5795 = vadd.f32 %v5407, %v5681
      %v5796 = vadd.f32 %v5410, %v5684
      %v5797 = vadd.f32 %v5415, %v5689
      %v5798 = vadd.f32 %v5418, %v5692
      %v5799 = vadd.f32 %v5423, %v5697
      %v5800 = vadd.f32 %v5426, %v5700
      %v5801 = vadd.f32 %v5431, %v5705
      %v5802 = vadd.f32 %v5434, %v5708
      %v5803 = vadd.f32 %v5439, %v5713
      %v5804 = vadd.f32 %v5442, %v5716
      %v5805 = vadd.f32 %v5447, %v5721
      %v5806 = vadd.f32 %v5450, %v5724
      %v5807 = vadd.f32 %v5455, %v5729
      %v5808 = vadd.f32 %v5458, %v5732
      %v5809 = vadd.f32 %v5463, %v5737
      %v5810 = vadd.f32 %v5466, %v5740
      %v5811 = vadd.f32 %v5471, %v5745
      %v5812 = vadd.f32 %v5474, %v5748
      %v5813 = vadd.f32 %v5479, %v5753
      %v5814 = vadd.f32 %v5482, %v5756
      %v5815 = vadd.f32 %v5487, %v5761
      %v5816 = vadd.f32 %v5490, %v5764
      %v5817 = vadd.f32 %v5495, %v5769
      %v5818 = vadd.f32 %v5498, %v5772
      %v5819 = vadd.f32 %v5503, %v5777
      %v5820 = vadd.f32 %v5506, %v5780
      %v5821 = vadd.f32 %v5511, %v5785
      %v5822 = vadd.f32 %v5514, %v5788
      %v5823 = vld [vmem:[%s4937] sm:$0xff]
      %v5824 = vld [vmem:[%s4937 + $0x8] sm:$0xff]
      %v5825 = vld [vmem:[%s4937 + $0x18] sm:$0xff]
      %v5826 = vld [vmem:[%s4937 + $0x20] sm:$0xff]
      %v5827 = vld [vmem:[%s4937 + $0x30] sm:$0xff]
      %v5828 = vld [vmem:[%s4937 + $0x38] sm:$0xff]
      %v5829 = vld [vmem:[%s4937 + $0x48] sm:$0xff]
      %v5830 = vld [vmem:[%s4937 + $0x50] sm:$0xff]
      %v5831 = vld [vmem:[%s4937 + $0x60] sm:$0xff]
      %v5832 = vld [vmem:[%s4937 + $0x68] sm:$0xff]
      %v5833 = vld [vmem:[%s4937 + $0x78] sm:$0xff]
      %v5834 = vld [vmem:[%s4937 + $0x80] sm:$0xff]
      %v5835 = vld [vmem:[%s4937 + $0x90] sm:$0xff]
      %v5836 = vld [vmem:[%s4937 + $0x98] sm:$0xff]
      %v5837 = vld [vmem:[%s4937 + $0xa8] sm:$0xff]
      %v5838 = vld [vmem:[%s4937 + $0xb0] sm:$0xff]
      %v5839 = vld [vmem:[%s4937 + $0xc0] sm:$0xff]
      %v5840 = vld [vmem:[%s4937 + $0xc8] sm:$0xff]
      %v5841 = vld [vmem:[%s4937 + $0xd8] sm:$0xff]
      %v5842 = vld [vmem:[%s4937 + $0xe0] sm:$0xff]
      %v5843 = vld [vmem:[%s4937 + $0xf0] sm:$0xff]
      %v5844 = vld [vmem:[%s4937 + $0xf8] sm:$0xff]
      %v5845 = vld [vmem:[%s4937 + $0x108] sm:$0xff]
      %v5846 = vld [vmem:[%s4937 + $0x110] sm:$0xff]
      %v5847 = vld [vmem:[%s4937 + $0x120] sm:$0xff]
      %v5848 = vld [vmem:[%s4937 + $0x128] sm:$0xff]
      %v5849 = vld [vmem:[%s4937 + $0x138] sm:$0xff]
      %v5850 = vld [vmem:[%s4937 + $0x140] sm:$0xff]
      %v5851 = vld [vmem:[%s4937 + $0x150] sm:$0xff]
      %v5852 = vld [vmem:[%s4937 + $0x158] sm:$0xff]
      %v5853 = vld [vmem:[%s4937 + $0x168] sm:$0xff]
      %v5854 = vld [vmem:[%s4937 + $0x170] sm:$0xff]
      %v5855 = vpack.c.bf16 %v5824, %v5823
      %v5856 = vpack.c.bf16 %v5826, %v5825
      %v5857 = vpack.c.bf16 %v5828, %v5827
      %v5858 = vpack.c.bf16 %v5830, %v5829
      %v5859 = vpack.c.bf16 %v5832, %v5831
      %v5860 = vpack.c.bf16 %v5834, %v5833
      %v5861 = vpack.c.bf16 %v5836, %v5835
      %v5862 = vpack.c.bf16 %v5838, %v5837
      %v5863 = vpack.c.bf16 %v5840, %v5839
      %v5864 = vpack.c.bf16 %v5842, %v5841
      %v5865 = vpack.c.bf16 %v5844, %v5843
      %v5866 = vpack.c.bf16 %v5846, %v5845
      %v5867 = vpack.c.bf16 %v5848, %v5847
      %v5868 = vpack.c.bf16 %v5850, %v5849
      %v5869 = vpack.c.bf16 %v5852, %v5851
      %v5870 = vpack.c.bf16 %v5854, %v5853
      %s5871 = scalar_lea.vmem %s3, 192
      %v5872 = vld [vmem:[%s5871] sm:$0xf]
      %v5873 = vld [vmem:[%s5871 + $0x4] sm:$0xf]
      %v5874 = vld [vmem:[%s5871 + $0x8] sm:$0xf]
      %v5875 = vld [vmem:[%s5871 + $0xc] sm:$0xf]
      %v5876 = vld [vmem:[%s5871 + $0x10] sm:$0xf]
      %v5877 = vld [vmem:[%s5871 + $0x14] sm:$0xf]
      %v5878 = vld [vmem:[%s5871 + $0x18] sm:$0xf]
      %v5879 = vld [vmem:[%s5871 + $0x1c] sm:$0xf]
      %v5880 = vld [vmem:[%s5871 + $0x20] sm:$0xf]
      %v5881 = vld [vmem:[%s5871 + $0x24] sm:$0xf]
      %v5882 = vld [vmem:[%s5871 + $0x28] sm:$0xf]
      %v5883 = vld [vmem:[%s5871 + $0x2c] sm:$0xf]
      %v5884 = vld [vmem:[%s5871 + $0x30] sm:$0xf]
      %v5885 = vld [vmem:[%s5871 + $0x34] sm:$0xf]
      %v5886 = vld [vmem:[%s5871 + $0x38] sm:$0xf]
      %v5887 = vld [vmem:[%s5871 + $0x3c] sm:$0xf]
      %v5904 = vunpack.c.l.b16 %v5872
      %v5905 = vunpack.c.l.b16 %v5873
      %v5906 = vunpack.c.l.b16 %v5874
      %v5907 = vunpack.c.l.b16 %v5875
      %v5908 = vunpack.c.l.b16 %v5876
      %v5909 = vunpack.c.l.b16 %v5877
      %v5910 = vunpack.c.l.b16 %v5878
      %v5911 = vunpack.c.l.b16 %v5879
      %v5912 = vunpack.c.l.b16 %v5880
      %v5913 = vunpack.c.l.b16 %v5881
      %v5914 = vunpack.c.l.b16 %v5882
      %v5915 = vunpack.c.l.b16 %v5883
      %v5916 = vunpack.c.l.b16 %v5884
      %v5917 = vunpack.c.l.b16 %v5885
      %v5918 = vunpack.c.l.b16 %v5886
      %v5919 = vunpack.c.l.b16 %v5887
      %v5920 = vpack.c.b16 %v5905, %v5904
      %v5921 = vpack.c.b16 %v5907, %v5906
      %v5922 = vpack.c.b16 %v5909, %v5908
      %v5923 = vpack.c.b16 %v5911, %v5910
      %v5924 = vpack.c.b16 %v5913, %v5912
      %v5925 = vpack.c.b16 %v5915, %v5914
      %v5926 = vpack.c.b16 %v5917, %v5916
      %v5927 = vpack.c.b16 %v5919, %v5918
      %5936 = vmatprep.subr.bf16.mxu0 0
      %5937 = vmatpush1.bf16.msra.mxu0 %v5920
      %5938 = vmatprep.subr.bf16.mxu0 0
      %5939 = vmatpush1.bf16.msra.mxu0 %v5921
      %5940 = vmatprep.subr.bf16.mxu0 0
      %5941 = vmatpush1.bf16.msra.mxu0 %v5922
      %5942 = vmatprep.subr.bf16.mxu0 0
      %5943 = vmatpush1.bf16.msra.mxu0 %v5923
      %5944 = vmatprep.subr.bf16.mxu0 0
      %5945 = vmatpush1.bf16.msra.mxu0 %v5924
      %5946 = vmatprep.subr.bf16.mxu0 0
      %5947 = vmatpush1.bf16.msra.mxu0 %v5925
      %5948 = vmatprep.subr.bf16.mxu0 0
      %5949 = vmatpush1.bf16.msra.mxu0 %v5926
      %5950 = vmatprep.subr.bf16.mxu0 0
      %5951 = vmatpush1.bf16.msra.mxu0 %v5927
      %5952 = vmatprep.subr.bf16.mxu0 0
      %5953 = vmatpush1.bf16.msra.mxu0 0
      %5954 = vmatprep.subr.bf16.mxu0 0
      %5955 = vmatpush1.bf16.msra.mxu0 0
      %5956 = vmatprep.subr.bf16.mxu0 0
      %5957 = vmatpush1.bf16.msra.mxu0 0
      %5958 = vmatprep.subr.bf16.mxu0 0
      %5959 = vmatpush1.bf16.msra.mxu0 0
      %5960 = vmatprep.subr.bf16.mxu0 0
      %5961 = vmatpush1.bf16.msra.mxu0 0
      %5962 = vmatprep.subr.bf16.mxu0 0
      %5963 = vmatpush1.bf16.msra.mxu0 0
      %5964 = vmatprep.subr.bf16.mxu0 0
      %5965 = vmatpush1.bf16.msra.mxu0 0
      %5966 = vmatprep.subr.bf16.mxu0 0
      %5967 = vmatpush1.bf16.msra.mxu0 0
      %5968 = vmatprep.mubr.bf16.mxu0 0
      %5969 = vmatmul.mubr.bf16.gmra.mrb[0].mxu0 %v5855
      %v5970 = vpop.f32.mrb[0].mxu0
      %v5971 = vadd.f32 0.0, %v5970
      %v5972 = vpop.f32.mrb[0].mxu0
      %v5973 = vpop.f32.mrb[0].mxu0
      %v5974 = vadd.f32 0.0, %v5973
      %v5975 = vpop.f32.mrb[0].mxu0
      %5976 = vmatprep.mubr.bf16.mxu0 0
      %5977 = vmatmul.mubr.bf16.gmra.mrb[0].mxu0 %v5856
      %v5978 = vpop.f32.mrb[0].mxu0
      %v5979 = vadd.f32 0.0, %v5978
      %v5980 = vpop.f32.mrb[0].mxu0
      %v5981 = vpop.f32.mrb[0].mxu0
      %v5982 = vadd.f32 0.0, %v5981
      %v5983 = vpop.f32.mrb[0].mxu0
      %5984 = vmatprep.mubr.bf16.mxu0 0
      %5985 = vmatmul.mubr.bf16.gmra.mrb[0].mxu0 %v5857
      %v5986 = vpop.f32.mrb[0].mxu0
      %v5987 = vadd.f32 0.0, %v5986
      %v5988 = vpop.f32.mrb[0].mxu0
      %v5989 = vpop.f32.mrb[0].mxu0
      %v5990 = vadd.f32 0.0, %v5989
      %v5991 = vpop.f32.mrb[0].mxu0
      %5992 = vmatprep.mubr.bf16.mxu0 0
      %5993 = vmatmul.mubr.bf16.gmra.mrb[0].mxu0 %v5858
      %v5994 = vpop.f32.mrb[0].mxu0
      %v5995 = vadd.f32 0.0, %v5994
      %v5996 = vpop.f32.mrb[0].mxu0
      %v5997 = vpop.f32.mrb[0].mxu0
      %v5998 = vadd.f32 0.0, %v5997
      %v5999 = vpop.f32.mrb[0].mxu0
      %6000 = vmatprep.mubr.bf16.mxu0 0
      %6001 = vmatmul.mubr.bf16.gmra.mrb[0].mxu0 %v5859
      %v6002 = vpop.f32.mrb[0].mxu0
      %v6003 = vadd.f32 0.0, %v6002
      %v6004 = vpop.f32.mrb[0].mxu0
      %v6005 = vpop.f32.mrb[0].mxu0
      %v6006 = vadd.f32 0.0, %v6005
      %v6007 = vpop.f32.mrb[0].mxu0
      %6008 = vmatprep.mubr.bf16.mxu0 0
      %6009 = vmatmul.mubr.bf16.gmra.mrb[0].mxu0 %v5860
      %v6010 = vpop.f32.mrb[0].mxu0
      %v6011 = vadd.f32 0.0, %v6010
      %v6012 = vpop.f32.mrb[0].mxu0
      %v6013 = vpop.f32.mrb[0].mxu0
      %v6014 = vadd.f32 0.0, %v6013
      %v6015 = vpop.f32.mrb[0].mxu0
      %6016 = vmatprep.mubr.bf16.mxu0 0
      %6017 = vmatmul.mubr.bf16.gmra.mrb[0].mxu0 %v5861
      %v6018 = vpop.f32.mrb[0].mxu0
      %v6019 = vadd.f32 0.0, %v6018
      %v6020 = vpop.f32.mrb[0].mxu0
      %v6021 = vpop.f32.mrb[0].mxu0
      %v6022 = vadd.f32 0.0, %v6021
      %v6023 = vpop.f32.mrb[0].mxu0
      %6024 = vmatprep.mubr.bf16.mxu0 0
      %6025 = vmatmul.mubr.bf16.gmra.mrb[0].mxu0 %v5862
      %v6026 = vpop.f32.mrb[0].mxu0
      %v6027 = vadd.f32 0.0, %v6026
      %v6028 = vpop.f32.mrb[0].mxu0
      %v6029 = vpop.f32.mrb[0].mxu0
      %v6030 = vadd.f32 0.0, %v6029
      %v6031 = vpop.f32.mrb[0].mxu0
      %6032 = vmatprep.mubr.bf16.mxu0 0
      %6033 = vmatmul.mubr.bf16.gmra.mrb[0].mxu0 %v5863
      %v6034 = vpop.f32.mrb[0].mxu0
      %v6035 = vadd.f32 0.0, %v6034
      %v6036 = vpop.f32.mrb[0].mxu0
      %v6037 = vpop.f32.mrb[0].mxu0
      %v6038 = vadd.f32 0.0, %v6037
      %v6039 = vpop.f32.mrb[0].mxu0
      %6040 = vmatprep.mubr.bf16.mxu0 0
      %6041 = vmatmul.mubr.bf16.gmra.mrb[0].mxu0 %v5864
      %v6042 = vpop.f32.mrb[0].mxu0
      %v6043 = vadd.f32 0.0, %v6042
      %v6044 = vpop.f32.mrb[0].mxu0
      %v6045 = vpop.f32.mrb[0].mxu0
      %v6046 = vadd.f32 0.0, %v6045
      %v6047 = vpop.f32.mrb[0].mxu0
      %6048 = vmatprep.mubr.bf16.mxu0 0
      %6049 = vmatmul.mubr.bf16.gmra.mrb[0].mxu0 %v5865
      %v6050 = vpop.f32.mrb[0].mxu0
      %v6051 = vadd.f32 0.0, %v6050
      %v6052 = vpop.f32.mrb[0].mxu0
      %v6053 = vpop.f32.mrb[0].mxu0
      %v6054 = vadd.f32 0.0, %v6053
      %v6055 = vpop.f32.mrb[0].mxu0
      %6056 = vmatprep.mubr.bf16.mxu0 0
      %6057 = vmatmul.mubr.bf16.gmra.mrb[0].mxu0 %v5866
      %v6058 = vpop.f32.mrb[0].mxu0
      %v6059 = vadd.f32 0.0, %v6058
      %v6060 = vpop.f32.mrb[0].mxu0
      %v6061 = vpop.f32.mrb[0].mxu0
      %v6062 = vadd.f32 0.0, %v6061
      %v6063 = vpop.f32.mrb[0].mxu0
      %6064 = vmatprep.mubr.bf16.mxu0 0
      %6065 = vmatmul.mubr.bf16.gmra.mrb[0].mxu0 %v5867
      %v6066 = vpop.f32.mrb[0].mxu0
      %v6067 = vadd.f32 0.0, %v6066
      %v6068 = vpop.f32.mrb[0].mxu0
      %v6069 = vpop.f32.mrb[0].mxu0
      %v6070 = vadd.f32 0.0, %v6069
      %v6071 = vpop.f32.mrb[0].mxu0
      %6072 = vmatprep.mubr.bf16.mxu0 0
      %6073 = vmatmul.mubr.bf16.gmra.mrb[0].mxu0 %v5868
      %v6074 = vpop.f32.mrb[0].mxu0
      %v6075 = vadd.f32 0.0, %v6074
      %v6076 = vpop.f32.mrb[0].mxu0
      %v6077 = vpop.f32.mrb[0].mxu0
      %v6078 = vadd.f32 0.0, %v6077
      %v6079 = vpop.f32.mrb[0].mxu0
      %6080 = vmatprep.mubr.bf16.mxu0 0
      %6081 = vmatmul.mubr.bf16.gmra.mrb[0].mxu0 %v5869
      %v6082 = vpop.f32.mrb[0].mxu0
      %v6083 = vadd.f32 0.0, %v6082
      %v6084 = vpop.f32.mrb[0].mxu0
      %v6085 = vpop.f32.mrb[0].mxu0
      %v6086 = vadd.f32 0.0, %v6085
      %v6087 = vpop.f32.mrb[0].mxu0
      %6088 = vmatprep.mubr.bf16.mxu0 0
      %6089 = vmatmul.mubr.bf16.gmra.mrb[0].mxu0 %v5870
      %v6090 = vpop.f32.mrb[0].mxu0
      %v6091 = vadd.f32 0.0, %v6090
      %v6092 = vpop.f32.mrb[0].mxu0
      %v6093 = vpop.f32.mrb[0].mxu0
      %v6094 = vadd.f32 0.0, %v6093
      %v6095 = vpop.f32.mrb[0].mxu0
      %6096 = vdwg.mxu0
      %v6097 = vadd.f32 %v5791, %v5971
      %v6098 = vadd.f32 %v5792, %v5974
      %v6099 = vadd.f32 %v5793, %v5979
      %v6100 = vadd.f32 %v5794, %v5982
      %v6101 = vadd.f32 %v5795, %v5987
      %v6102 = vadd.f32 %v5796, %v5990
      %v6103 = vadd.f32 %v5797, %v5995
      %v6104 = vadd.f32 %v5798, %v5998
      %v6105 = vadd.f32 %v5799, %v6003
      %v6106 = vadd.f32 %v5800, %v6006
      %v6107 = vadd.f32 %v5801, %v6011
      %v6108 = vadd.f32 %v5802, %v6014
      %v6109 = vadd.f32 %v5803, %v6019
      %v6110 = vadd.f32 %v5804, %v6022
      %v6111 = vadd.f32 %v5805, %v6027
      %v6112 = vadd.f32 %v5806, %v6030
      %v6113 = vadd.f32 %v5807, %v6035
      %v6114 = vadd.f32 %v5808, %v6038
      %v6115 = vadd.f32 %v5809, %v6043
      %v6116 = vadd.f32 %v5810, %v6046
      %v6117 = vadd.f32 %v5811, %v6051
      %v6118 = vadd.f32 %v5812, %v6054
      %v6119 = vadd.f32 %v5813, %v6059
      %v6120 = vadd.f32 %v5814, %v6062
      %v6121 = vadd.f32 %v5815, %v6067
      %v6122 = vadd.f32 %v5816, %v6070
      %v6123 = vadd.f32 %v5817, %v6075
      %v6124 = vadd.f32 %v5818, %v6078
      %v6125 = vadd.f32 %v5819, %v6083
      %v6126 = vadd.f32 %v5820, %v6086
      %v6127 = vadd.f32 %v5821, %v6091
      %v6128 = vadd.f32 %v5822, %v6094
      %v6129 = vld [vmem:[%s4937 + $0x1] sm:$0xff]
      %v6130 = vld [vmem:[%s4937 + $0x9] sm:$0xff]
      %v6131 = vld [vmem:[%s4937 + $0x19] sm:$0xff]
      %v6132 = vld [vmem:[%s4937 + $0x21] sm:$0xff]
      %v6133 = vld [vmem:[%s4937 + $0x31] sm:$0xff]
      %v6134 = vld [vmem:[%s4937 + $0x39] sm:$0xff]
      %v6135 = vld [vmem:[%s4937 + $0x49] sm:$0xff]
      %v6136 = vld [vmem:[%s4937 + $0x51] sm:$0xff]
      %v6137 = vld [vmem:[%s4937 + $0x61] sm:$0xff]
      %v6138 = vld [vmem:[%s4937 + $0x69] sm:$0xff]
      %v6139 = vld [vmem:[%s4937 + $0x79] sm:$0xff]
      %v6140 = vld [vmem:[%s4937 + $0x81] sm:$0xff]
      %v6141 = vld [vmem:[%s4937 + $0x91] sm:$0xff]
      %v6142 = vld [vmem:[%s4937 + $0x99] sm:$0xff]
      %v6143 = vld [vmem:[%s4937 + $0xa9] sm:$0xff]
      %v6144 = vld [vmem:[%s4937 + $0xb1] sm:$0xff]
      %v6145 = vld [vmem:[%s4937 + $0xc1] sm:$0xff]
      %v6146 = vld [vmem:[%s4937 + $0xc9] sm:$0xff]
      %v6147 = vld [vmem:[%s4937 + $0xd9] sm:$0xff]
      %v6148 = vld [vmem:[%s4937 + $0xe1] sm:$0xff]
      %v6149 = vld [vmem:[%s4937 + $0xf1] sm:$0xff]
      %v6150 = vld [vmem:[%s4937 + $0xf9] sm:$0xff]
      %v6151 = vld [vmem:[%s4937 + $0x109] sm:$0xff]
      %v6152 = vld [vmem:[%s4937 + $0x111] sm:$0xff]
      %v6153 = vld [vmem:[%s4937 + $0x121] sm:$0xff]
      %v6154 = vld [vmem:[%s4937 + $0x129] sm:$0xff]
      %v6155 = vld [vmem:[%s4937 + $0x139] sm:$0xff]
      %v6156 = vld [vmem:[%s4937 + $0x141] sm:$0xff]
      %v6157 = vld [vmem:[%s4937 + $0x151] sm:$0xff]
      %v6158 = vld [vmem:[%s4937 + $0x159] sm:$0xff]
      %v6159 = vld [vmem:[%s4937 + $0x169] sm:$0xff]
      %v6160 = vld [vmem:[%s4937 + $0x171] sm:$0xff]
      %v6161 = vpack.c.bf16 %v6130, %v6129
      %v6162 = vpack.c.bf16 %v6132, %v6131
      %v6163 = vpack.c.bf16 %v6134, %v6133
      %v6164 = vpack.c.bf16 %v6136, %v6135
      %v6165 = vpack.c.bf16 %v6138, %v6137
      %v6166 = vpack.c.bf16 %v6140, %v6139
      %v6167 = vpack.c.bf16 %v6142, %v6141
      %v6168 = vpack.c.bf16 %v6144, %v6143
      %v6169 = vpack.c.bf16 %v6146, %v6145
      %v6170 = vpack.c.bf16 %v6148, %v6147
      %v6171 = vpack.c.bf16 %v6150, %v6149
      %v6172 = vpack.c.bf16 %v6152, %v6151
      %v6173 = vpack.c.bf16 %v6154, %v6153
      %v6174 = vpack.c.bf16 %v6156, %v6155
      %v6175 = vpack.c.bf16 %v6158, %v6157
      %v6176 = vpack.c.bf16 %v6160, %v6159
      %s6177 = scalar_lea.vmem %s3, 256
      %v6178 = vld [vmem:[%s6177] sm:$0xf]
      %v6179 = vld [vmem:[%s6177 + $0x4] sm:$0xf]
      %v6180 = vld [vmem:[%s6177 + $0x8] sm:$0xf]
      %v6181 = vld [vmem:[%s6177 + $0xc] sm:$0xf]
      %v6182 = vld [vmem:[%s6177 + $0x10] sm:$0xf]
      %v6183 = vld [vmem:[%s6177 + $0x14] sm:$0xf]
      %v6184 = vld [vmem:[%s6177 + $0x18] sm:$0xf]
      %v6185 = vld [vmem:[%s6177 + $0x1c] sm:$0xf]
      %v6186 = vld [vmem:[%s6177 + $0x20] sm:$0xf]
      %v6187 = vld [vmem:[%s6177 + $0x24] sm:$0xf]
      %v6188 = vld [vmem:[%s6177 + $0x28] sm:$0xf]
      %v6189 = vld [vmem:[%s6177 + $0x2c] sm:$0xf]
      %v6190 = vld [vmem:[%s6177 + $0x30] sm:$0xf]
      %v6191 = vld [vmem:[%s6177 + $0x34] sm:$0xf]
      %v6192 = vld [vmem:[%s6177 + $0x38] sm:$0xf]
      %v6193 = vld [vmem:[%s6177 + $0x3c] sm:$0xf]
      %v6210 = vunpack.c.l.b16 %v6178
      %v6211 = vunpack.c.l.b16 %v6179
      %v6212 = vunpack.c.l.b16 %v6180
      %v6213 = vunpack.c.l.b16 %v6181
      %v6214 = vunpack.c.l.b16 %v6182
      %v6215 = vunpack.c.l.b16 %v6183
      %v6216 = vunpack.c.l.b16 %v6184
      %v6217 = vunpack.c.l.b16 %v6185
      %v6218 = vunpack.c.l.b16 %v6186
      %v6219 = vunpack.c.l.b16 %v6187
      %v6220 = vunpack.c.l.b16 %v6188
      %v6221 = vunpack.c.l.b16 %v6189
      %v6222 = vunpack.c.l.b16 %v6190
      %v6223 = vunpack.c.l.b16 %v6191
      %v6224 = vunpack.c.l.b16 %v6192
      %v6225 = vunpack.c.l.b16 %v6193
      %v6226 = vpack.c.b16 %v6211, %v6210
      %v6227 = vpack.c.b16 %v6213, %v6212
      %v6228 = vpack.c.b16 %v6215, %v6214
      %v6229 = vpack.c.b16 %v6217, %v6216
      %v6230 = vpack.c.b16 %v6219, %v6218
      %v6231 = vpack.c.b16 %v6221, %v6220
      %v6232 = vpack.c.b16 %v6223, %v6222
      %v6233 = vpack.c.b16 %v6225, %v6224
      %6242 = vmatprep.subr.bf16.mxu0 0
      %6243 = vmatpush1.bf16.msra.mxu0 %v6226
      %6244 = vmatprep.subr.bf16.mxu0 0
      %6245 = vmatpush1.bf16.msra.mxu0 %v6227
      %6246 = vmatprep.subr.bf16.mxu0 0
      %6247 = vmatpush1.bf16.msra.mxu0 %v6228
      %6248 = vmatprep.subr.bf16.mxu0 0
      %6249 = vmatpush1.bf16.msra.mxu0 %v6229
      %6250 = vmatprep.subr.bf16.mxu0 0
      %6251 = vmatpush1.bf16.msra.mxu0 %v6230
      %6252 = vmatprep.subr.bf16.mxu0 0
      %6253 = vmatpush1.bf16.msra.mxu0 %v6231
      %6254 = vmatprep.subr.bf16.mxu0 0
      %6255 = vmatpush1.bf16.msra.mxu0 %v6232
      %6256 = vmatprep.subr.bf16.mxu0 0
      %6257 = vmatpush1.bf16.msra.mxu0 %v6233
      %6258 = vmatprep.subr.bf16.mxu0 0
      %6259 = vmatpush1.bf16.msra.mxu0 0
      %6260 = vmatprep.subr.bf16.mxu0 0
      %6261 = vmatpush1.bf16.msra.mxu0 0
      %6262 = vmatprep.subr.bf16.mxu0 0
      %6263 = vmatpush1.bf16.msra.mxu0 0
      %6264 = vmatprep.subr.bf16.mxu0 0
      %6265 = vmatpush1.bf16.msra.mxu0 0
      %6266 = vmatprep.subr.bf16.mxu0 0
      %6267 = vmatpush1.bf16.msra.mxu0 0
      %6268 = vmatprep.subr.bf16.mxu0 0
      %6269 = vmatpush1.bf16.msra.mxu0 0
      %6270 = vmatprep.subr.bf16.mxu0 0
      %6271 = vmatpush1.bf16.msra.mxu0 0
      %6272 = vmatprep.subr.bf16.mxu0 0
      %6273 = vmatpush1.bf16.msra.mxu0 0
      %6274 = vmatprep.mubr.bf16.mxu0 0
      %6275 = vmatmul.mubr.bf16.gmra.mrb[0].mxu0 %v6161
      %v6276 = vpop.f32.mrb[0].mxu0
      %v6277 = vadd.f32 0.0, %v6276
      %v6278 = vpop.f32.mrb[0].mxu0
      %v6279 = vpop.f32.mrb[0].mxu0
      %v6280 = vadd.f32 0.0, %v6279
      %v6281 = vpop.f32.mrb[0].mxu0
      %6282 = vmatprep.mubr.bf16.mxu0 0
      %6283 = vmatmul.mubr.bf16.gmra.mrb[0].mxu0 %v6162
      %v6284 = vpop.f32.mrb[0].mxu0
      %v6285 = vadd.f32 0.0, %v6284
      %v6286 = vpop.f32.mrb[0].mxu0
      %v6287 = vpop.f32.mrb[0].mxu0
      %v6288 = vadd.f32 0.0, %v6287
      %v6289 = vpop.f32.mrb[0].mxu0
      %6290 = vmatprep.mubr.bf16.mxu0 0
      %6291 = vmatmul.mubr.bf16.gmra.mrb[0].mxu0 %v6163
      %v6292 = vpop.f32.mrb[0].mxu0
      %v6293 = vadd.f32 0.0, %v6292
      %v6294 = vpop.f32.mrb[0].mxu0
      %v6295 = vpop.f32.mrb[0].mxu0
      %v6296 = vadd.f32 0.0, %v6295
      %v6297 = vpop.f32.mrb[0].mxu0
      %6298 = vmatprep.mubr.bf16.mxu0 0
      %6299 = vmatmul.mubr.bf16.gmra.mrb[0].mxu0 %v6164
      %v6300 = vpop.f32.mrb[0].mxu0
      %v6301 = vadd.f32 0.0, %v6300
      %v6302 = vpop.f32.mrb[0].mxu0
      %v6303 = vpop.f32.mrb[0].mxu0
      %v6304 = vadd.f32 0.0, %v6303
      %v6305 = vpop.f32.mrb[0].mxu0
      %6306 = vmatprep.mubr.bf16.mxu0 0
      %6307 = vmatmul.mubr.bf16.gmra.mrb[0].mxu0 %v6165
      %v6308 = vpop.f32.mrb[0].mxu0
      %v6309 = vadd.f32 0.0, %v6308
      %v6310 = vpop.f32.mrb[0].mxu0
      %v6311 = vpop.f32.mrb[0].mxu0
      %v6312 = vadd.f32 0.0, %v6311
      %v6313 = vpop.f32.mrb[0].mxu0
      %6314 = vmatprep.mubr.bf16.mxu0 0
      %6315 = vmatmul.mubr.bf16.gmra.mrb[0].mxu0 %v6166
      %v6316 = vpop.f32.mrb[0].mxu0
      %v6317 = vadd.f32 0.0, %v6316
      %v6318 = vpop.f32.mrb[0].mxu0
      %v6319 = vpop.f32.mrb[0].mxu0
      %v6320 = vadd.f32 0.0, %v6319
      %v6321 = vpop.f32.mrb[0].mxu0
      %6322 = vmatprep.mubr.bf16.mxu0 0
      %6323 = vmatmul.mubr.bf16.gmra.mrb[0].mxu0 %v6167
      %v6324 = vpop.f32.mrb[0].mxu0
      %v6325 = vadd.f32 0.0, %v6324
      %v6326 = vpop.f32.mrb[0].mxu0
      %v6327 = vpop.f32.mrb[0].mxu0
      %v6328 = vadd.f32 0.0, %v6327
      %v6329 = vpop.f32.mrb[0].mxu0
      %6330 = vmatprep.mubr.bf16.mxu0 0
      %6331 = vmatmul.mubr.bf16.gmra.mrb[0].mxu0 %v6168
      %v6332 = vpop.f32.mrb[0].mxu0
      %v6333 = vadd.f32 0.0, %v6332
      %v6334 = vpop.f32.mrb[0].mxu0
      %v6335 = vpop.f32.mrb[0].mxu0
      %v6336 = vadd.f32 0.0, %v6335
      %v6337 = vpop.f32.mrb[0].mxu0
      %6338 = vmatprep.mubr.bf16.mxu0 0
      %6339 = vmatmul.mubr.bf16.gmra.mrb[0].mxu0 %v6169
      %v6340 = vpop.f32.mrb[0].mxu0
      %v6341 = vadd.f32 0.0, %v6340
      %v6342 = vpop.f32.mrb[0].mxu0
      %v6343 = vpop.f32.mrb[0].mxu0
      %v6344 = vadd.f32 0.0, %v6343
      %v6345 = vpop.f32.mrb[0].mxu0
      %6346 = vmatprep.mubr.bf16.mxu0 0
      %6347 = vmatmul.mubr.bf16.gmra.mrb[0].mxu0 %v6170
      %v6348 = vpop.f32.mrb[0].mxu0
      %v6349 = vadd.f32 0.0, %v6348
      %v6350 = vpop.f32.mrb[0].mxu0
      %v6351 = vpop.f32.mrb[0].mxu0
      %v6352 = vadd.f32 0.0, %v6351
      %v6353 = vpop.f32.mrb[0].mxu0
      %6354 = vmatprep.mubr.bf16.mxu0 0
      %6355 = vmatmul.mubr.bf16.gmra.mrb[0].mxu0 %v6171
      %v6356 = vpop.f32.mrb[0].mxu0
      %v6357 = vadd.f32 0.0, %v6356
      %v6358 = vpop.f32.mrb[0].mxu0
      %v6359 = vpop.f32.mrb[0].mxu0
      %v6360 = vadd.f32 0.0, %v6359
      %v6361 = vpop.f32.mrb[0].mxu0
      %6362 = vmatprep.mubr.bf16.mxu0 0
      %6363 = vmatmul.mubr.bf16.gmra.mrb[0].mxu0 %v6172
      %v6364 = vpop.f32.mrb[0].mxu0
      %v6365 = vadd.f32 0.0, %v6364
      %v6366 = vpop.f32.mrb[0].mxu0
      %v6367 = vpop.f32.mrb[0].mxu0
      %v6368 = vadd.f32 0.0, %v6367
      %v6369 = vpop.f32.mrb[0].mxu0
      %6370 = vmatprep.mubr.bf16.mxu0 0
      %6371 = vmatmul.mubr.bf16.gmra.mrb[0].mxu0 %v6173
      %v6372 = vpop.f32.mrb[0].mxu0
      %v6373 = vadd.f32 0.0, %v6372
      %v6374 = vpop.f32.mrb[0].mxu0
      %v6375 = vpop.f32.mrb[0].mxu0
      %v6376 = vadd.f32 0.0, %v6375
      %v6377 = vpop.f32.mrb[0].mxu0
      %6378 = vmatprep.mubr.bf16.mxu0 0
      %6379 = vmatmul.mubr.bf16.gmra.mrb[0].mxu0 %v6174
      %v6380 = vpop.f32.mrb[0].mxu0
      %v6381 = vadd.f32 0.0, %v6380
      %v6382 = vpop.f32.mrb[0].mxu0
      %v6383 = vpop.f32.mrb[0].mxu0
      %v6384 = vadd.f32 0.0, %v6383
      %v6385 = vpop.f32.mrb[0].mxu0
      %6386 = vmatprep.mubr.bf16.mxu0 0
      %6387 = vmatmul.mubr.bf16.gmra.mrb[0].mxu0 %v6175
      %v6388 = vpop.f32.mrb[0].mxu0
      %v6389 = vadd.f32 0.0, %v6388
      %v6390 = vpop.f32.mrb[0].mxu0
      %v6391 = vpop.f32.mrb[0].mxu0
      %v6392 = vadd.f32 0.0, %v6391
      %v6393 = vpop.f32.mrb[0].mxu0
      %6394 = vmatprep.mubr.bf16.mxu0 0
      %6395 = vmatmul.mubr.bf16.gmra.mrb[0].mxu0 %v6176
      %v6396 = vpop.f32.mrb[0].mxu0
      %v6397 = vadd.f32 0.0, %v6396
      %v6398 = vpop.f32.mrb[0].mxu0
      %v6399 = vpop.f32.mrb[0].mxu0
      %v6400 = vadd.f32 0.0, %v6399
      %v6401 = vpop.f32.mrb[0].mxu0
      %6402 = vdwg.mxu0
      %v6403 = vadd.f32 %v6097, %v6277
      %v6404 = vadd.f32 %v6098, %v6280
      %v6405 = vadd.f32 %v6099, %v6285
      %v6406 = vadd.f32 %v6100, %v6288
      %v6407 = vadd.f32 %v6101, %v6293
      %v6408 = vadd.f32 %v6102, %v6296
      %v6409 = vadd.f32 %v6103, %v6301
      %v6410 = vadd.f32 %v6104, %v6304
      %v6411 = vadd.f32 %v6105, %v6309
      %v6412 = vadd.f32 %v6106, %v6312
      %v6413 = vadd.f32 %v6107, %v6317
      %v6414 = vadd.f32 %v6108, %v6320
      %v6415 = vadd.f32 %v6109, %v6325
      %v6416 = vadd.f32 %v6110, %v6328
      %v6417 = vadd.f32 %v6111, %v6333
      %v6418 = vadd.f32 %v6112, %v6336
      %v6419 = vadd.f32 %v6113, %v6341
      %v6420 = vadd.f32 %v6114, %v6344
      %v6421 = vadd.f32 %v6115, %v6349
      %v6422 = vadd.f32 %v6116, %v6352
      %v6423 = vadd.f32 %v6117, %v6357
      %v6424 = vadd.f32 %v6118, %v6360
      %v6425 = vadd.f32 %v6119, %v6365
      %v6426 = vadd.f32 %v6120, %v6368
      %v6427 = vadd.f32 %v6121, %v6373
      %v6428 = vadd.f32 %v6122, %v6376
      %v6429 = vadd.f32 %v6123, %v6381
      %v6430 = vadd.f32 %v6124, %v6384
      %v6431 = vadd.f32 %v6125, %v6389
      %v6432 = vadd.f32 %v6126, %v6392
      %v6433 = vadd.f32 %v6127, %v6397
      %v6434 = vadd.f32 %v6128, %v6400
      %v6435 = vld [vmem:[%s4937 + $0x2] sm:$0xff]
      %v6436 = vld [vmem:[%s4937 + $0xa] sm:$0xff]
      %v6437 = vld [vmem:[%s4937 + $0x1a] sm:$0xff]
      %v6438 = vld [vmem:[%s4937 + $0x22] sm:$0xff]
      %v6439 = vld [vmem:[%s4937 + $0x32] sm:$0xff]
      %v6440 = vld [vmem:[%s4937 + $0x3a] sm:$0xff]
      %v6441 = vld [vmem:[%s4937 + $0x4a] sm:$0xff]
      %v6442 = vld [vmem:[%s4937 + $0x52] sm:$0xff]
      %v6443 = vld [vmem:[%s4937 + $0x62] sm:$0xff]
      %v6444 = vld [vmem:[%s4937 + $0x6a] sm:$0xff]
      %v6445 = vld [vmem:[%s4937 + $0x7a] sm:$0xff]
      %v6446 = vld [vmem:[%s4937 + $0x82] sm:$0xff]
      %v6447 = vld [vmem:[%s4937 + $0x92] sm:$0xff]
      %v6448 = vld [vmem:[%s4937 + $0x9a] sm:$0xff]
      %v6449 = vld [vmem:[%s4937 + $0xaa] sm:$0xff]
      %v6450 = vld [vmem:[%s4937 + $0xb2] sm:$0xff]
      %v6451 = vld [vmem:[%s4937 + $0xc2] sm:$0xff]
      %v6452 = vld [vmem:[%s4937 + $0xca] sm:$0xff]
      %v6453 = vld [vmem:[%s4937 + $0xda] sm:$0xff]
      %v6454 = vld [vmem:[%s4937 + $0xe2] sm:$0xff]
      %v6455 = vld [vmem:[%s4937 + $0xf2] sm:$0xff]
      %v6456 = vld [vmem:[%s4937 + $0xfa] sm:$0xff]
      %v6457 = vld [vmem:[%s4937 + $0x10a] sm:$0xff]
      %v6458 = vld [vmem:[%s4937 + $0x112] sm:$0xff]
      %v6459 = vld [vmem:[%s4937 + $0x122] sm:$0xff]
      %v6460 = vld [vmem:[%s4937 + $0x12a] sm:$0xff]
      %v6461 = vld [vmem:[%s4937 + $0x13a] sm:$0xff]
      %v6462 = vld [vmem:[%s4937 + $0x142] sm:$0xff]
      %v6463 = vld [vmem:[%s4937 + $0x152] sm:$0xff]
      %v6464 = vld [vmem:[%s4937 + $0x15a] sm:$0xff]
      %v6465 = vld [vmem:[%s4937 + $0x16a] sm:$0xff]
      %v6466 = vld [vmem:[%s4937 + $0x172] sm:$0xff]
      %v6467 = vpack.c.bf16 %v6436, %v6435
      %v6468 = vpack.c.bf16 %v6438, %v6437
      %v6469 = vpack.c.bf16 %v6440, %v6439
      %v6470 = vpack.c.bf16 %v6442, %v6441
      %v6471 = vpack.c.bf16 %v6444, %v6443
      %v6472 = vpack.c.bf16 %v6446, %v6445
      %v6473 = vpack.c.bf16 %v6448, %v6447
      %v6474 = vpack.c.bf16 %v6450, %v6449
      %v6475 = vpack.c.bf16 %v6452, %v6451
      %v6476 = vpack.c.bf16 %v6454, %v6453
      %v6477 = vpack.c.bf16 %v6456, %v6455
      %v6478 = vpack.c.bf16 %v6458, %v6457
      %v6479 = vpack.c.bf16 %v6460, %v6459
      %v6480 = vpack.c.bf16 %v6462, %v6461
      %v6481 = vpack.c.bf16 %v6464, %v6463
      %v6482 = vpack.c.bf16 %v6466, %v6465
      %s6483 = scalar_lea.vmem %s3, 320
      %v6484 = vld [vmem:[%s6483] sm:$0xf]
      %v6485 = vld [vmem:[%s6483 + $0x4] sm:$0xf]
      %v6486 = vld [vmem:[%s6483 + $0x8] sm:$0xf]
      %v6487 = vld [vmem:[%s6483 + $0xc] sm:$0xf]
      %v6488 = vld [vmem:[%s6483 + $0x10] sm:$0xf]
      %v6489 = vld [vmem:[%s6483 + $0x14] sm:$0xf]
      %v6490 = vld [vmem:[%s6483 + $0x18] sm:$0xf]
      %v6491 = vld [vmem:[%s6483 + $0x1c] sm:$0xf]
      %v6492 = vld [vmem:[%s6483 + $0x20] sm:$0xf]
      %v6493 = vld [vmem:[%s6483 + $0x24] sm:$0xf]
      %v6494 = vld [vmem:[%s6483 + $0x28] sm:$0xf]
      %v6495 = vld [vmem:[%s6483 + $0x2c] sm:$0xf]
      %v6496 = vld [vmem:[%s6483 + $0x30] sm:$0xf]
      %v6497 = vld [vmem:[%s6483 + $0x34] sm:$0xf]
      %v6498 = vld [vmem:[%s6483 + $0x38] sm:$0xf]
      %v6499 = vld [vmem:[%s6483 + $0x3c] sm:$0xf]
      %v6516 = vunpack.c.l.b16 %v6484
      %v6517 = vunpack.c.l.b16 %v6485
      %v6518 = vunpack.c.l.b16 %v6486
      %v6519 = vunpack.c.l.b16 %v6487
      %v6520 = vunpack.c.l.b16 %v6488
      %v6521 = vunpack.c.l.b16 %v6489
      %v6522 = vunpack.c.l.b16 %v6490
      %v6523 = vunpack.c.l.b16 %v6491
      %v6524 = vunpack.c.l.b16 %v6492
      %v6525 = vunpack.c.l.b16 %v6493
      %v6526 = vunpack.c.l.b16 %v6494
      %v6527 = vunpack.c.l.b16 %v6495
      %v6528 = vunpack.c.l.b16 %v6496
      %v6529 = vunpack.c.l.b16 %v6497
      %v6530 = vunpack.c.l.b16 %v6498
      %v6531 = vunpack.c.l.b16 %v6499
      %v6532 = vpack.c.b16 %v6517, %v6516
      %v6533 = vpack.c.b16 %v6519, %v6518
      %v6534 = vpack.c.b16 %v6521, %v6520
      %v6535 = vpack.c.b16 %v6523, %v6522
      %v6536 = vpack.c.b16 %v6525, %v6524
      %v6537 = vpack.c.b16 %v6527, %v6526
      %v6538 = vpack.c.b16 %v6529, %v6528
      %v6539 = vpack.c.b16 %v6531, %v6530
      %6548 = vmatprep.subr.bf16.mxu0 0
      %6549 = vmatpush1.bf16.msra.mxu0 %v6532
      %6550 = vmatprep.subr.bf16.mxu0 0
      %6551 = vmatpush1.bf16.msra.mxu0 %v6533
      %6552 = vmatprep.subr.bf16.mxu0 0
      %6553 = vmatpush1.bf16.msra.mxu0 %v6534
      %6554 = vmatprep.subr.bf16.mxu0 0
      %6555 = vmatpush1.bf16.msra.mxu0 %v6535
      %6556 = vmatprep.subr.bf16.mxu0 0
      %6557 = vmatpush1.bf16.msra.mxu0 %v6536
      %6558 = vmatprep.subr.bf16.mxu0 0
      %6559 = vmatpush1.bf16.msra.mxu0 %v6537
      %6560 = vmatprep.subr.bf16.mxu0 0
      %6561 = vmatpush1.bf16.msra.mxu0 %v6538
      %6562 = vmatprep.subr.bf16.mxu0 0
      %6563 = vmatpush1.bf16.msra.mxu0 %v6539
      %6564 = vmatprep.subr.bf16.mxu0 0
      %6565 = vmatpush1.bf16.msra.mxu0 0
      %6566 = vmatprep.subr.bf16.mxu0 0
      %6567 = vmatpush1.bf16.msra.mxu0 0
      %6568 = vmatprep.subr.bf16.mxu0 0
      %6569 = vmatpush1.bf16.msra.mxu0 0
      %6570 = vmatprep.subr.bf16.mxu0 0
      %6571 = vmatpush1.bf16.msra.mxu0 0
      %6572 = vmatprep.subr.bf16.mxu0 0
      %6573 = vmatpush1.bf16.msra.mxu0 0
      %6574 = vmatprep.subr.bf16.mxu0 0
      %6575 = vmatpush1.bf16.msra.mxu0 0
      %6576 = vmatprep.subr.bf16.mxu0 0
      %6577 = vmatpush1.bf16.msra.mxu0 0
      %6578 = vmatprep.subr.bf16.mxu0 0
      %6579 = vmatpush1.bf16.msra.mxu0 0
      %6580 = vmatprep.mubr.bf16.mxu0 0
      %6581 = vmatmul.mubr.bf16.gmra.mrb[0].mxu0 %v6467
      %v6582 = vpop.f32.mrb[0].mxu0
      %v6583 = vadd.f32 0.0, %v6582
      %v6584 = vpop.f32.mrb[0].mxu0
      %v6585 = vpop.f32.mrb[0].mxu0
      %v6586 = vadd.f32 0.0, %v6585
      %v6587 = vpop.f32.mrb[0].mxu0
      %6588 = vmatprep.mubr.bf16.mxu0 0
      %6589 = vmatmul.mubr.bf16.gmra.mrb[0].mxu0 %v6468
      %v6590 = vpop.f32.mrb[0].mxu0
      %v6591 = vadd.f32 0.0, %v6590
      %v6592 = vpop.f32.mrb[0].mxu0
      %v6593 = vpop.f32.mrb[0].mxu0
      %v6594 = vadd.f32 0.0, %v6593
      %v6595 = vpop.f32.mrb[0].mxu0
      %6596 = vmatprep.mubr.bf16.mxu0 0
      %6597 = vmatmul.mubr.bf16.gmra.mrb[0].mxu0 %v6469
      %v6598 = vpop.f32.mrb[0].mxu0
      %v6599 = vadd.f32 0.0, %v6598
      %v6600 = vpop.f32.mrb[0].mxu0
      %v6601 = vpop.f32.mrb[0].mxu0
      %v6602 = vadd.f32 0.0, %v6601
      %v6603 = vpop.f32.mrb[0].mxu0
      %6604 = vmatprep.mubr.bf16.mxu0 0
      %6605 = vmatmul.mubr.bf16.gmra.mrb[0].mxu0 %v6470
      %v6606 = vpop.f32.mrb[0].mxu0
      %v6607 = vadd.f32 0.0, %v6606
      %v6608 = vpop.f32.mrb[0].mxu0
      %v6609 = vpop.f32.mrb[0].mxu0
      %v6610 = vadd.f32 0.0, %v6609
      %v6611 = vpop.f32.mrb[0].mxu0
      %6612 = vmatprep.mubr.bf16.mxu0 0
      %6613 = vmatmul.mubr.bf16.gmra.mrb[0].mxu0 %v6471
      %v6614 = vpop.f32.mrb[0].mxu0
      %v6615 = vadd.f32 0.0, %v6614
      %v6616 = vpop.f32.mrb[0].mxu0
      %v6617 = vpop.f32.mrb[0].mxu0
      %v6618 = vadd.f32 0.0, %v6617
      %v6619 = vpop.f32.mrb[0].mxu0
      %6620 = vmatprep.mubr.bf16.mxu0 0
      %6621 = vmatmul.mubr.bf16.gmra.mrb[0].mxu0 %v6472
      %v6622 = vpop.f32.mrb[0].mxu0
      %v6623 = vadd.f32 0.0, %v6622
      %v6624 = vpop.f32.mrb[0].mxu0
      %v6625 = vpop.f32.mrb[0].mxu0
      %v6626 = vadd.f32 0.0, %v6625
      %v6627 = vpop.f32.mrb[0].mxu0
      %6628 = vmatprep.mubr.bf16.mxu0 0
      %6629 = vmatmul.mubr.bf16.gmra.mrb[0].mxu0 %v6473
      %v6630 = vpop.f32.mrb[0].mxu0
      %v6631 = vadd.f32 0.0, %v6630
      %v6632 = vpop.f32.mrb[0].mxu0
      %v6633 = vpop.f32.mrb[0].mxu0
      %v6634 = vadd.f32 0.0, %v6633
      %v6635 = vpop.f32.mrb[0].mxu0
      %6636 = vmatprep.mubr.bf16.mxu0 0
      %6637 = vmatmul.mubr.bf16.gmra.mrb[0].mxu0 %v6474
      %v6638 = vpop.f32.mrb[0].mxu0
      %v6639 = vadd.f32 0.0, %v6638
      %v6640 = vpop.f32.mrb[0].mxu0
      %v6641 = vpop.f32.mrb[0].mxu0
      %v6642 = vadd.f32 0.0, %v6641
      %v6643 = vpop.f32.mrb[0].mxu0
      %6644 = vmatprep.mubr.bf16.mxu0 0
      %6645 = vmatmul.mubr.bf16.gmra.mrb[0].mxu0 %v6475
      %v6646 = vpop.f32.mrb[0].mxu0
      %v6647 = vadd.f32 0.0, %v6646
      %v6648 = vpop.f32.mrb[0].mxu0
      %v6649 = vpop.f32.mrb[0].mxu0
      %v6650 = vadd.f32 0.0, %v6649
      %v6651 = vpop.f32.mrb[0].mxu0
      %6652 = vmatprep.mubr.bf16.mxu0 0
      %6653 = vmatmul.mubr.bf16.gmra.mrb[0].mxu0 %v6476
      %v6654 = vpop.f32.mrb[0].mxu0
      %v6655 = vadd.f32 0.0, %v6654
      %v6656 = vpop.f32.mrb[0].mxu0
      %v6657 = vpop.f32.mrb[0].mxu0
      %v6658 = vadd.f32 0.0, %v6657
      %v6659 = vpop.f32.mrb[0].mxu0
      %6660 = vmatprep.mubr.bf16.mxu0 0
      %6661 = vmatmul.mubr.bf16.gmra.mrb[0].mxu0 %v6477
      %v6662 = vpop.f32.mrb[0].mxu0
      %v6663 = vadd.f32 0.0, %v6662
      %v6664 = vpop.f32.mrb[0].mxu0
      %v6665 = vpop.f32.mrb[0].mxu0
      %v6666 = vadd.f32 0.0, %v6665
      %v6667 = vpop.f32.mrb[0].mxu0
      %6668 = vmatprep.mubr.bf16.mxu0 0
      %6669 = vmatmul.mubr.bf16.gmra.mrb[0].mxu0 %v6478
      %v6670 = vpop.f32.mrb[0].mxu0
      %v6671 = vadd.f32 0.0, %v6670
      %v6672 = vpop.f32.mrb[0].mxu0
      %v6673 = vpop.f32.mrb[0].mxu0
      %v6674 = vadd.f32 0.0, %v6673
      %v6675 = vpop.f32.mrb[0].mxu0
      %6676 = vmatprep.mubr.bf16.mxu0 0
      %6677 = vmatmul.mubr.bf16.gmra.mrb[0].mxu0 %v6479
      %v6678 = vpop.f32.mrb[0].mxu0
      %v6679 = vadd.f32 0.0, %v6678
      %v6680 = vpop.f32.mrb[0].mxu0
      %v6681 = vpop.f32.mrb[0].mxu0
      %v6682 = vadd.f32 0.0, %v6681
      %v6683 = vpop.f32.mrb[0].mxu0
      %6684 = vmatprep.mubr.bf16.mxu0 0
      %6685 = vmatmul.mubr.bf16.gmra.mrb[0].mxu0 %v6480
      %v6686 = vpop.f32.mrb[0].mxu0
      %v6687 = vadd.f32 0.0, %v6686
      %v6688 = vpop.f32.mrb[0].mxu0
      %v6689 = vpop.f32.mrb[0].mxu0
      %v6690 = vadd.f32 0.0, %v6689
      %v6691 = vpop.f32.mrb[0].mxu0
      %6692 = vmatprep.mubr.bf16.mxu0 0
      %6693 = vmatmul.mubr.bf16.gmra.mrb[0].mxu0 %v6481
      %v6694 = vpop.f32.mrb[0].mxu0
      %v6695 = vadd.f32 0.0, %v6694
      %v6696 = vpop.f32.mrb[0].mxu0
      %v6697 = vpop.f32.mrb[0].mxu0
      %v6698 = vadd.f32 0.0, %v6697
      %v6699 = vpop.f32.mrb[0].mxu0
      %6700 = vmatprep.mubr.bf16.mxu0 0
      %6701 = vmatmul.mubr.bf16.gmra.mrb[0].mxu0 %v6482
      %v6702 = vpop.f32.mrb[0].mxu0
      %v6703 = vadd.f32 0.0, %v6702
      %v6704 = vpop.f32.mrb[0].mxu0
      %v6705 = vpop.f32.mrb[0].mxu0
      %v6706 = vadd.f32 0.0, %v6705
      %v6707 = vpop.f32.mrb[0].mxu0
      %6708 = vdwg.mxu0
      %v6709 = vadd.f32 %v6403, %v6583
      %v6710 = vadd.f32 %v6404, %v6586
      %v6711 = vadd.f32 %v6405, %v6591
      %v6712 = vadd.f32 %v6406, %v6594
      %v6713 = vadd.f32 %v6407, %v6599
      %v6714 = vadd.f32 %v6408, %v6602
      %v6715 = vadd.f32 %v6409, %v6607
      %v6716 = vadd.f32 %v6410, %v6610
      %v6717 = vadd.f32 %v6411, %v6615
      %v6718 = vadd.f32 %v6412, %v6618
      %v6719 = vadd.f32 %v6413, %v6623
      %v6720 = vadd.f32 %v6414, %v6626
      %v6721 = vadd.f32 %v6415, %v6631
      %v6722 = vadd.f32 %v6416, %v6634
      %v6723 = vadd.f32 %v6417, %v6639
      %v6724 = vadd.f32 %v6418, %v6642
      %v6725 = vadd.f32 %v6419, %v6647
      %v6726 = vadd.f32 %v6420, %v6650
      %v6727 = vadd.f32 %v6421, %v6655
      %v6728 = vadd.f32 %v6422, %v6658
      %v6729 = vadd.f32 %v6423, %v6663
      %v6730 = vadd.f32 %v6424, %v6666
      %v6731 = vadd.f32 %v6425, %v6671
      %v6732 = vadd.f32 %v6426, %v6674
      %v6733 = vadd.f32 %v6427, %v6679
      %v6734 = vadd.f32 %v6428, %v6682
      %v6735 = vadd.f32 %v6429, %v6687
      %v6736 = vadd.f32 %v6430, %v6690
      %v6737 = vadd.f32 %v6431, %v6695
      %v6738 = vadd.f32 %v6432, %v6698
      %v6739 = vadd.f32 %v6433, %v6703
      %v6740 = vadd.f32 %v6434, %v6706
      %s6741 = scalar_lea.vmem [#allocation2], 48
      %v6742 = vld [vmem:[%s6741] sm:$0xff]
      %v6743 = vld [vmem:[%s6741 + $0x8] sm:$0xff]
      %v6744 = vld [vmem:[%s6741 + $0x18] sm:$0xff]
      %v6745 = vld [vmem:[%s6741 + $0x20] sm:$0xff]
      %v6746 = vld [vmem:[%s6741 + $0x30] sm:$0xff]
      %v6747 = vld [vmem:[%s6741 + $0x38] sm:$0xff]
      %v6748 = vld [vmem:[%s6741 + $0x48] sm:$0xff]
      %v6749 = vld [vmem:[%s6741 + $0x50] sm:$0xff]
      %v6750 = vld [vmem:[%s6741 + $0x60] sm:$0xff]
      %v6751 = vld [vmem:[%s6741 + $0x68] sm:$0xff]
      %v6752 = vld [vmem:[%s6741 + $0x78] sm:$0xff]
      %v6753 = vld [vmem:[%s6741 + $0x80] sm:$0xff]
      %v6754 = vld [vmem:[%s6741 + $0x90] sm:$0xff]
      %v6755 = vld [vmem:[%s6741 + $0x98] sm:$0xff]
      %v6756 = vld [vmem:[%s6741 + $0xa8] sm:$0xff]
      %v6757 = vld [vmem:[%s6741 + $0xb0] sm:$0xff]
      %v6758 = vld [vmem:[%s6741 + $0xc0] sm:$0xff]
      %v6759 = vld [vmem:[%s6741 + $0xc8] sm:$0xff]
      %v6760 = vld [vmem:[%s6741 + $0xd8] sm:$0xff]
      %v6761 = vld [vmem:[%s6741 + $0xe0] sm:$0xff]
      %v6762 = vld [vmem:[%s6741 + $0xf0] sm:$0xff]
      %v6763 = vld [vmem:[%s6741 + $0xf8] sm:$0xff]
      %v6764 = vld [vmem:[%s6741 + $0x108] sm:$0xff]
      %v6765 = vld [vmem:[%s6741 + $0x110] sm:$0xff]
      %v6766 = vld [vmem:[%s6741 + $0x120] sm:$0xff]
      %v6767 = vld [vmem:[%s6741 + $0x128] sm:$0xff]
      %v6768 = vld [vmem:[%s6741 + $0x138] sm:$0xff]
      %v6769 = vld [vmem:[%s6741 + $0x140] sm:$0xff]
      %v6770 = vld [vmem:[%s6741 + $0x150] sm:$0xff]
      %v6771 = vld [vmem:[%s6741 + $0x158] sm:$0xff]
      %v6772 = vld [vmem:[%s6741 + $0x168] sm:$0xff]
      %v6773 = vld [vmem:[%s6741 + $0x170] sm:$0xff]
      %v6774 = vpack.c.bf16 %v6743, %v6742
      %v6775 = vpack.c.bf16 %v6745, %v6744
      %v6776 = vpack.c.bf16 %v6747, %v6746
      %v6777 = vpack.c.bf16 %v6749, %v6748
      %v6778 = vpack.c.bf16 %v6751, %v6750
      %v6779 = vpack.c.bf16 %v6753, %v6752
      %v6780 = vpack.c.bf16 %v6755, %v6754
      %v6781 = vpack.c.bf16 %v6757, %v6756
      %v6782 = vpack.c.bf16 %v6759, %v6758
      %v6783 = vpack.c.bf16 %v6761, %v6760
      %v6784 = vpack.c.bf16 %v6763, %v6762
      %v6785 = vpack.c.bf16 %v6765, %v6764
      %v6786 = vpack.c.bf16 %v6767, %v6766
      %v6787 = vpack.c.bf16 %v6769, %v6768
      %v6788 = vpack.c.bf16 %v6771, %v6770
      %v6789 = vpack.c.bf16 %v6773, %v6772
      %s6790 = scalar_lea.vmem %s3, 384
      %v6791 = vld [vmem:[%s6790] sm:$0xf]
      %v6792 = vld [vmem:[%s6790 + $0x4] sm:$0xf]
      %v6793 = vld [vmem:[%s6790 + $0x8] sm:$0xf]
      %v6794 = vld [vmem:[%s6790 + $0xc] sm:$0xf]
      %v6795 = vld [vmem:[%s6790 + $0x10] sm:$0xf]
      %v6796 = vld [vmem:[%s6790 + $0x14] sm:$0xf]
      %v6797 = vld [vmem:[%s6790 + $0x18] sm:$0xf]
      %v6798 = vld [vmem:[%s6790 + $0x1c] sm:$0xf]
      %v6799 = vld [vmem:[%s6790 + $0x20] sm:$0xf]
      %v6800 = vld [vmem:[%s6790 + $0x24] sm:$0xf]
      %v6801 = vld [vmem:[%s6790 + $0x28] sm:$0xf]
      %v6802 = vld [vmem:[%s6790 + $0x2c] sm:$0xf]
      %v6803 = vld [vmem:[%s6790 + $0x30] sm:$0xf]
      %v6804 = vld [vmem:[%s6790 + $0x34] sm:$0xf]
      %v6805 = vld [vmem:[%s6790 + $0x38] sm:$0xf]
      %v6806 = vld [vmem:[%s6790 + $0x3c] sm:$0xf]
      %v6823 = vunpack.c.l.b16 %v6791
      %v6824 = vunpack.c.l.b16 %v6792
      %v6825 = vunpack.c.l.b16 %v6793
      %v6826 = vunpack.c.l.b16 %v6794
      %v6827 = vunpack.c.l.b16 %v6795
      %v6828 = vunpack.c.l.b16 %v6796
      %v6829 = vunpack.c.l.b16 %v6797
      %v6830 = vunpack.c.l.b16 %v6798
      %v6831 = vunpack.c.l.b16 %v6799
      %v6832 = vunpack.c.l.b16 %v6800
      %v6833 = vunpack.c.l.b16 %v6801
      %v6834 = vunpack.c.l.b16 %v6802
      %v6835 = vunpack.c.l.b16 %v6803
      %v6836 = vunpack.c.l.b16 %v6804
      %v6837 = vunpack.c.l.b16 %v6805
      %v6838 = vunpack.c.l.b16 %v6806
      %v6839 = vpack.c.b16 %v6824, %v6823
      %v6840 = vpack.c.b16 %v6826, %v6825
      %v6841 = vpack.c.b16 %v6828, %v6827
      %v6842 = vpack.c.b16 %v6830, %v6829
      %v6843 = vpack.c.b16 %v6832, %v6831
      %v6844 = vpack.c.b16 %v6834, %v6833
      %v6845 = vpack.c.b16 %v6836, %v6835
      %v6846 = vpack.c.b16 %v6838, %v6837
      %6855 = vmatprep.subr.bf16.mxu0 0
      %6856 = vmatpush1.bf16.msra.mxu0 %v6839
      %6857 = vmatprep.subr.bf16.mxu0 0
      %6858 = vmatpush1.bf16.msra.mxu0 %v6840
      %6859 = vmatprep.subr.bf16.mxu0 0
      %6860 = vmatpush1.bf16.msra.mxu0 %v6841
      %6861 = vmatprep.subr.bf16.mxu0 0
      %6862 = vmatpush1.bf16.msra.mxu0 %v6842
      %6863 = vmatprep.subr.bf16.mxu0 0
      %6864 = vmatpush1.bf16.msra.mxu0 %v6843
      %6865 = vmatprep.subr.bf16.mxu0 0
      %6866 = vmatpush1.bf16.msra.mxu0 %v6844
      %6867 = vmatprep.subr.bf16.mxu0 0
      %6868 = vmatpush1.bf16.msra.mxu0 %v6845
      %6869 = vmatprep.subr.bf16.mxu0 0
      %6870 = vmatpush1.bf16.msra.mxu0 %v6846
      %6871 = vmatprep.subr.bf16.mxu0 0
      %6872 = vmatpush1.bf16.msra.mxu0 0
      %6873 = vmatprep.subr.bf16.mxu0 0
      %6874 = vmatpush1.bf16.msra.mxu0 0
      %6875 = vmatprep.subr.bf16.mxu0 0
      %6876 = vmatpush1.bf16.msra.mxu0 0
      %6877 = vmatprep.subr.bf16.mxu0 0
      %6878 = vmatpush1.bf16.msra.mxu0 0
      %6879 = vmatprep.subr.bf16.mxu0 0
      %6880 = vmatpush1.bf16.msra.mxu0 0
      %6881 = vmatprep.subr.bf16.mxu0 0
      %6882 = vmatpush1.bf16.msra.mxu0 0
      %6883 = vmatprep.subr.bf16.mxu0 0
      %6884 = vmatpush1.bf16.msra.mxu0 0
      %6885 = vmatprep.subr.bf16.mxu0 0
      %6886 = vmatpush1.bf16.msra.mxu0 0
      %6887 = vmatprep.mubr.bf16.mxu0 0
      %6888 = vmatmul.mubr.bf16.gmra.mrb[0].mxu0 %v6774
      %v6889 = vpop.f32.mrb[0].mxu0
      %v6890 = vadd.f32 0.0, %v6889
      %v6891 = vpop.f32.mrb[0].mxu0
      %v6892 = vpop.f32.mrb[0].mxu0
      %v6893 = vadd.f32 0.0, %v6892
      %v6894 = vpop.f32.mrb[0].mxu0
      %6895 = vmatprep.mubr.bf16.mxu0 0
      %6896 = vmatmul.mubr.bf16.gmra.mrb[0].mxu0 %v6775
      %v6897 = vpop.f32.mrb[0].mxu0
      %v6898 = vadd.f32 0.0, %v6897
      %v6899 = vpop.f32.mrb[0].mxu0
      %v6900 = vpop.f32.mrb[0].mxu0
      %v6901 = vadd.f32 0.0, %v6900
      %v6902 = vpop.f32.mrb[0].mxu0
      %6903 = vmatprep.mubr.bf16.mxu0 0
      %6904 = vmatmul.mubr.bf16.gmra.mrb[0].mxu0 %v6776
      %v6905 = vpop.f32.mrb[0].mxu0
      %v6906 = vadd.f32 0.0, %v6905
      %v6907 = vpop.f32.mrb[0].mxu0
      %v6908 = vpop.f32.mrb[0].mxu0
      %v6909 = vadd.f32 0.0, %v6908
      %v6910 = vpop.f32.mrb[0].mxu0
      %6911 = vmatprep.mubr.bf16.mxu0 0
      %6912 = vmatmul.mubr.bf16.gmra.mrb[0].mxu0 %v6777
      %v6913 = vpop.f32.mrb[0].mxu0
      %v6914 = vadd.f32 0.0, %v6913
      %v6915 = vpop.f32.mrb[0].mxu0
      %v6916 = vpop.f32.mrb[0].mxu0
      %v6917 = vadd.f32 0.0, %v6916
      %v6918 = vpop.f32.mrb[0].mxu0
      %6919 = vmatprep.mubr.bf16.mxu0 0
      %6920 = vmatmul.mubr.bf16.gmra.mrb[0].mxu0 %v6778
      %v6921 = vpop.f32.mrb[0].mxu0
      %v6922 = vadd.f32 0.0, %v6921
      %v6923 = vpop.f32.mrb[0].mxu0
      %v6924 = vpop.f32.mrb[0].mxu0
      %v6925 = vadd.f32 0.0, %v6924
      %v6926 = vpop.f32.mrb[0].mxu0
      %6927 = vmatprep.mubr.bf16.mxu0 0
      %6928 = vmatmul.mubr.bf16.gmra.mrb[0].mxu0 %v6779
      %v6929 = vpop.f32.mrb[0].mxu0
      %v6930 = vadd.f32 0.0, %v6929
      %v6931 = vpop.f32.mrb[0].mxu0
      %v6932 = vpop.f32.mrb[0].mxu0
      %v6933 = vadd.f32 0.0, %v6932
      %v6934 = vpop.f32.mrb[0].mxu0
      %6935 = vmatprep.mubr.bf16.mxu0 0
      %6936 = vmatmul.mubr.bf16.gmra.mrb[0].mxu0 %v6780
      %v6937 = vpop.f32.mrb[0].mxu0
      %v6938 = vadd.f32 0.0, %v6937
      %v6939 = vpop.f32.mrb[0].mxu0
      %v6940 = vpop.f32.mrb[0].mxu0
      %v6941 = vadd.f32 0.0, %v6940
      %v6942 = vpop.f32.mrb[0].mxu0
      %6943 = vmatprep.mubr.bf16.mxu0 0
      %6944 = vmatmul.mubr.bf16.gmra.mrb[0].mxu0 %v6781
      %v6945 = vpop.f32.mrb[0].mxu0
      %v6946 = vadd.f32 0.0, %v6945
      %v6947 = vpop.f32.mrb[0].mxu0
      %v6948 = vpop.f32.mrb[0].mxu0
      %v6949 = vadd.f32 0.0, %v6948
      %v6950 = vpop.f32.mrb[0].mxu0
      %6951 = vmatprep.mubr.bf16.mxu0 0
      %6952 = vmatmul.mubr.bf16.gmra.mrb[0].mxu0 %v6782
      %v6953 = vpop.f32.mrb[0].mxu0
      %v6954 = vadd.f32 0.0, %v6953
      %v6955 = vpop.f32.mrb[0].mxu0
      %v6956 = vpop.f32.mrb[0].mxu0
      %v6957 = vadd.f32 0.0, %v6956
      %v6958 = vpop.f32.mrb[0].mxu0
      %6959 = vmatprep.mubr.bf16.mxu0 0
      %6960 = vmatmul.mubr.bf16.gmra.mrb[0].mxu0 %v6783
      %v6961 = vpop.f32.mrb[0].mxu0
      %v6962 = vadd.f32 0.0, %v6961
      %v6963 = vpop.f32.mrb[0].mxu0
      %v6964 = vpop.f32.mrb[0].mxu0
      %v6965 = vadd.f32 0.0, %v6964
      %v6966 = vpop.f32.mrb[0].mxu0
      %6967 = vmatprep.mubr.bf16.mxu0 0
      %6968 = vmatmul.mubr.bf16.gmra.mrb[0].mxu0 %v6784
      %v6969 = vpop.f32.mrb[0].mxu0
      %v6970 = vadd.f32 0.0, %v6969
      %v6971 = vpop.f32.mrb[0].mxu0
      %v6972 = vpop.f32.mrb[0].mxu0
      %v6973 = vadd.f32 0.0, %v6972
      %v6974 = vpop.f32.mrb[0].mxu0
      %6975 = vmatprep.mubr.bf16.mxu0 0
      %6976 = vmatmul.mubr.bf16.gmra.mrb[0].mxu0 %v6785
      %v6977 = vpop.f32.mrb[0].mxu0
      %v6978 = vadd.f32 0.0, %v6977
      %v6979 = vpop.f32.mrb[0].mxu0
      %v6980 = vpop.f32.mrb[0].mxu0
      %v6981 = vadd.f32 0.0, %v6980
      %v6982 = vpop.f32.mrb[0].mxu0
      %6983 = vmatprep.mubr.bf16.mxu0 0
      %6984 = vmatmul.mubr.bf16.gmra.mrb[0].mxu0 %v6786
      %v6985 = vpop.f32.mrb[0].mxu0
      %v6986 = vadd.f32 0.0, %v6985
      %v6987 = vpop.f32.mrb[0].mxu0
      %v6988 = vpop.f32.mrb[0].mxu0
      %v6989 = vadd.f32 0.0, %v6988
      %v6990 = vpop.f32.mrb[0].mxu0
      %6991 = vmatprep.mubr.bf16.mxu0 0
      %6992 = vmatmul.mubr.bf16.gmra.mrb[0].mxu0 %v6787
      %v6993 = vpop.f32.mrb[0].mxu0
      %v6994 = vadd.f32 0.0, %v6993
      %v6995 = vpop.f32.mrb[0].mxu0
      %v6996 = vpop.f32.mrb[0].mxu0
      %v6997 = vadd.f32 0.0, %v6996
      %v6998 = vpop.f32.mrb[0].mxu0
      %6999 = vmatprep.mubr.bf16.mxu0 0
      %7000 = vmatmul.mubr.bf16.gmra.mrb[0].mxu0 %v6788
      %v7001 = vpop.f32.mrb[0].mxu0
      %v7002 = vadd.f32 0.0, %v7001
      %v7003 = vpop.f32.mrb[0].mxu0
      %v7004 = vpop.f32.mrb[0].mxu0
      %v7005 = vadd.f32 0.0, %v7004
      %v7006 = vpop.f32.mrb[0].mxu0
      %7007 = vmatprep.mubr.bf16.mxu0 0
      %7008 = vmatmul.mubr.bf16.gmra.mrb[0].mxu0 %v6789
      %v7009 = vpop.f32.mrb[0].mxu0
      %v7010 = vadd.f32 0.0, %v7009
      %v7011 = vpop.f32.mrb[0].mxu0
      %v7012 = vpop.f32.mrb[0].mxu0
      %v7013 = vadd.f32 0.0, %v7012
      %v7014 = vpop.f32.mrb[0].mxu0
      %7015 = vdwg.mxu0
      %v7016 = vadd.f32 %v6709, %v6890
      %v7017 = vadd.f32 %v6710, %v6893
      %v7018 = vadd.f32 %v6711, %v6898
      %v7019 = vadd.f32 %v6712, %v6901
      %v7020 = vadd.f32 %v6713, %v6906
      %v7021 = vadd.f32 %v6714, %v6909
      %v7022 = vadd.f32 %v6715, %v6914
      %v7023 = vadd.f32 %v6716, %v6917
      %v7024 = vadd.f32 %v6717, %v6922
      %v7025 = vadd.f32 %v6718, %v6925
      %v7026 = vadd.f32 %v6719, %v6930
      %v7027 = vadd.f32 %v6720, %v6933
      %v7028 = vadd.f32 %v6721, %v6938
      %v7029 = vadd.f32 %v6722, %v6941
      %v7030 = vadd.f32 %v6723, %v6946
      %v7031 = vadd.f32 %v6724, %v6949
      %v7032 = vadd.f32 %v6725, %v6954
      %v7033 = vadd.f32 %v6726, %v6957
      %v7034 = vadd.f32 %v6727, %v6962
      %v7035 = vadd.f32 %v6728, %v6965
      %v7036 = vadd.f32 %v6729, %v6970
      %v7037 = vadd.f32 %v6730, %v6973
      %v7038 = vadd.f32 %v6731, %v6978
      %v7039 = vadd.f32 %v6732, %v6981
      %v7040 = vadd.f32 %v6733, %v6986
      %v7041 = vadd.f32 %v6734, %v6989
      %v7042 = vadd.f32 %v6735, %v6994
      %v7043 = vadd.f32 %v6736, %v6997
      %v7044 = vadd.f32 %v6737, %v7002
      %v7045 = vadd.f32 %v6738, %v7005
      %v7046 = vadd.f32 %v6739, %v7010
      %v7047 = vadd.f32 %v6740, %v7013
      %v7048 = vld [vmem:[%s6741 + $0x1] sm:$0xff]
      %v7049 = vld [vmem:[%s6741 + $0x9] sm:$0xff]
      %v7050 = vld [vmem:[%s6741 + $0x19] sm:$0xff]
      %v7051 = vld [vmem:[%s6741 + $0x21] sm:$0xff]
      %v7052 = vld [vmem:[%s6741 + $0x31] sm:$0xff]
      %v7053 = vld [vmem:[%s6741 + $0x39] sm:$0xff]
      %v7054 = vld [vmem:[%s6741 + $0x49] sm:$0xff]
      %v7055 = vld [vmem:[%s6741 + $0x51] sm:$0xff]
      %v7056 = vld [vmem:[%s6741 + $0x61] sm:$0xff]
      %v7057 = vld [vmem:[%s6741 + $0x69] sm:$0xff]
      %v7058 = vld [vmem:[%s6741 + $0x79] sm:$0xff]
      %v7059 = vld [vmem:[%s6741 + $0x81] sm:$0xff]
      %v7060 = vld [vmem:[%s6741 + $0x91] sm:$0xff]
      %v7061 = vld [vmem:[%s6741 + $0x99] sm:$0xff]
      %v7062 = vld [vmem:[%s6741 + $0xa9] sm:$0xff]
      %v7063 = vld [vmem:[%s6741 + $0xb1] sm:$0xff]
      %v7064 = vld [vmem:[%s6741 + $0xc1] sm:$0xff]
      %v7065 = vld [vmem:[%s6741 + $0xc9] sm:$0xff]
      %v7066 = vld [vmem:[%s6741 + $0xd9] sm:$0xff]
      %v7067 = vld [vmem:[%s6741 + $0xe1] sm:$0xff]
      %v7068 = vld [vmem:[%s6741 + $0xf1] sm:$0xff]
      %v7069 = vld [vmem:[%s6741 + $0xf9] sm:$0xff]
      %v7070 = vld [vmem:[%s6741 + $0x109] sm:$0xff]
      %v7071 = vld [vmem:[%s6741 + $0x111] sm:$0xff]
      %v7072 = vld [vmem:[%s6741 + $0x121] sm:$0xff]
      %v7073 = vld [vmem:[%s6741 + $0x129] sm:$0xff]
      %v7074 = vld [vmem:[%s6741 + $0x139] sm:$0xff]
      %v7075 = vld [vmem:[%s6741 + $0x141] sm:$0xff]
      %v7076 = vld [vmem:[%s6741 + $0x151] sm:$0xff]
      %v7077 = vld [vmem:[%s6741 + $0x159] sm:$0xff]
      %v7078 = vld [vmem:[%s6741 + $0x169] sm:$0xff]
      %v7079 = vld [vmem:[%s6741 + $0x171] sm:$0xff]
      %v7080 = vpack.c.bf16 %v7049, %v7048
      %v7081 = vpack.c.bf16 %v7051, %v7050
      %v7082 = vpack.c.bf16 %v7053, %v7052
      %v7083 = vpack.c.bf16 %v7055, %v7054
      %v7084 = vpack.c.bf16 %v7057, %v7056
      %v7085 = vpack.c.bf16 %v7059, %v7058
      %v7086 = vpack.c.bf16 %v7061, %v7060
      %v7087 = vpack.c.bf16 %v7063, %v7062
      %v7088 = vpack.c.bf16 %v7065, %v7064
      %v7089 = vpack.c.bf16 %v7067, %v7066
      %v7090 = vpack.c.bf16 %v7069, %v7068
      %v7091 = vpack.c.bf16 %v7071, %v7070
      %v7092 = vpack.c.bf16 %v7073, %v7072
      %v7093 = vpack.c.bf16 %v7075, %v7074
      %v7094 = vpack.c.bf16 %v7077, %v7076
      %v7095 = vpack.c.bf16 %v7079, %v7078
      %s7096 = scalar_lea.vmem %s3, 448
      %v7097 = vld [vmem:[%s7096] sm:$0xf]
      %v7098 = vld [vmem:[%s7096 + $0x4] sm:$0xf]
      %v7099 = vld [vmem:[%s7096 + $0x8] sm:$0xf]
      %v7100 = vld [vmem:[%s7096 + $0xc] sm:$0xf]
      %v7101 = vld [vmem:[%s7096 + $0x10] sm:$0xf]
      %v7102 = vld [vmem:[%s7096 + $0x14] sm:$0xf]
      %v7103 = vld [vmem:[%s7096 + $0x18] sm:$0xf]
      %v7104 = vld [vmem:[%s7096 + $0x1c] sm:$0xf]
      %v7105 = vld [vmem:[%s7096 + $0x20] sm:$0xf]
      %v7106 = vld [vmem:[%s7096 + $0x24] sm:$0xf]
      %v7107 = vld [vmem:[%s7096 + $0x28] sm:$0xf]
      %v7108 = vld [vmem:[%s7096 + $0x2c] sm:$0xf]
      %v7109 = vld [vmem:[%s7096 + $0x30] sm:$0xf]
      %v7110 = vld [vmem:[%s7096 + $0x34] sm:$0xf]
      %v7111 = vld [vmem:[%s7096 + $0x38] sm:$0xf]
      %v7112 = vld [vmem:[%s7096 + $0x3c] sm:$0xf]
      %v7129 = vunpack.c.l.b16 %v7097
      %v7130 = vunpack.c.l.b16 %v7098
      %v7131 = vunpack.c.l.b16 %v7099
      %v7132 = vunpack.c.l.b16 %v7100
      %v7133 = vunpack.c.l.b16 %v7101
      %v7134 = vunpack.c.l.b16 %v7102
      %v7135 = vunpack.c.l.b16 %v7103
      %v7136 = vunpack.c.l.b16 %v7104
      %v7137 = vunpack.c.l.b16 %v7105
      %v7138 = vunpack.c.l.b16 %v7106
      %v7139 = vunpack.c.l.b16 %v7107
      %v7140 = vunpack.c.l.b16 %v7108
      %v7141 = vunpack.c.l.b16 %v7109
      %v7142 = vunpack.c.l.b16 %v7110
      %v7143 = vunpack.c.l.b16 %v7111
      %v7144 = vunpack.c.l.b16 %v7112
      %v7145 = vpack.c.b16 %v7130, %v7129
      %v7146 = vpack.c.b16 %v7132, %v7131
      %v7147 = vpack.c.b16 %v7134, %v7133
      %v7148 = vpack.c.b16 %v7136, %v7135
      %v7149 = vpack.c.b16 %v7138, %v7137
      %v7150 = vpack.c.b16 %v7140, %v7139
      %v7151 = vpack.c.b16 %v7142, %v7141
      %v7152 = vpack.c.b16 %v7144, %v7143
      %7161 = vmatprep.subr.bf16.mxu0 0
      %7162 = vmatpush1.bf16.msra.mxu0 %v7145
      %7163 = vmatprep.subr.bf16.mxu0 0
      %7164 = vmatpush1.bf16.msra.mxu0 %v7146
      %7165 = vmatprep.subr.bf16.mxu0 0
      %7166 = vmatpush1.bf16.msra.mxu0 %v7147
      %7167 = vmatprep.subr.bf16.mxu0 0
      %7168 = vmatpush1.bf16.msra.mxu0 %v7148
      %7169 = vmatprep.subr.bf16.mxu0 0
      %7170 = vmatpush1.bf16.msra.mxu0 %v7149
      %7171 = vmatprep.subr.bf16.mxu0 0
      %7172 = vmatpush1.bf16.msra.mxu0 %v7150
      %7173 = vmatprep.subr.bf16.mxu0 0
      %7174 = vmatpush1.bf16.msra.mxu0 %v7151
      %7175 = vmatprep.subr.bf16.mxu0 0
      %7176 = vmatpush1.bf16.msra.mxu0 %v7152
      %7177 = vmatprep.subr.bf16.mxu0 0
      %7178 = vmatpush1.bf16.msra.mxu0 0
      %7179 = vmatprep.subr.bf16.mxu0 0
      %7180 = vmatpush1.bf16.msra.mxu0 0
      %7181 = vmatprep.subr.bf16.mxu0 0
      %7182 = vmatpush1.bf16.msra.mxu0 0
      %7183 = vmatprep.subr.bf16.mxu0 0
      %7184 = vmatpush1.bf16.msra.mxu0 0
      %7185 = vmatprep.subr.bf16.mxu0 0
      %7186 = vmatpush1.bf16.msra.mxu0 0
      %7187 = vmatprep.subr.bf16.mxu0 0
      %7188 = vmatpush1.bf16.msra.mxu0 0
      %7189 = vmatprep.subr.bf16.mxu0 0
      %7190 = vmatpush1.bf16.msra.mxu0 0
      %7191 = vmatprep.subr.bf16.mxu0 0
      %7192 = vmatpush1.bf16.msra.mxu0 0
      %7193 = vmatprep.mubr.bf16.mxu0 0
      %7194 = vmatmul.mubr.bf16.gmra.mrb[0].mxu0 %v7080
      %v7195 = vpop.f32.mrb[0].mxu0
      %v7196 = vadd.f32 0.0, %v7195
      %v7197 = vpop.f32.mrb[0].mxu0
      %v7198 = vpop.f32.mrb[0].mxu0
      %v7199 = vadd.f32 0.0, %v7198
      %v7200 = vpop.f32.mrb[0].mxu0
      %7201 = vmatprep.mubr.bf16.mxu0 0
      %7202 = vmatmul.mubr.bf16.gmra.mrb[0].mxu0 %v7081
      %v7203 = vpop.f32.mrb[0].mxu0
      %v7204 = vadd.f32 0.0, %v7203
      %v7205 = vpop.f32.mrb[0].mxu0
      %v7206 = vpop.f32.mrb[0].mxu0
      %v7207 = vadd.f32 0.0, %v7206
      %v7208 = vpop.f32.mrb[0].mxu0
      %7209 = vmatprep.mubr.bf16.mxu0 0
      %7210 = vmatmul.mubr.bf16.gmra.mrb[0].mxu0 %v7082
      %v7211 = vpop.f32.mrb[0].mxu0
      %v7212 = vadd.f32 0.0, %v7211
      %v7213 = vpop.f32.mrb[0].mxu0
      %v7214 = vpop.f32.mrb[0].mxu0
      %v7215 = vadd.f32 0.0, %v7214
      %v7216 = vpop.f32.mrb[0].mxu0
      %7217 = vmatprep.mubr.bf16.mxu0 0
      %7218 = vmatmul.mubr.bf16.gmra.mrb[0].mxu0 %v7083
      %v7219 = vpop.f32.mrb[0].mxu0
      %v7220 = vadd.f32 0.0, %v7219
      %v7221 = vpop.f32.mrb[0].mxu0
      %v7222 = vpop.f32.mrb[0].mxu0
      %v7223 = vadd.f32 0.0, %v7222
      %v7224 = vpop.f32.mrb[0].mxu0
      %7225 = vmatprep.mubr.bf16.mxu0 0
      %7226 = vmatmul.mubr.bf16.gmra.mrb[0].mxu0 %v7084
      %v7227 = vpop.f32.mrb[0].mxu0
      %v7228 = vadd.f32 0.0, %v7227
      %v7229 = vpop.f32.mrb[0].mxu0
      %v7230 = vpop.f32.mrb[0].mxu0
      %v7231 = vadd.f32 0.0, %v7230
      %v7232 = vpop.f32.mrb[0].mxu0
      %7233 = vmatprep.mubr.bf16.mxu0 0
      %7234 = vmatmul.mubr.bf16.gmra.mrb[0].mxu0 %v7085
      %v7235 = vpop.f32.mrb[0].mxu0
      %v7236 = vadd.f32 0.0, %v7235
      %v7237 = vpop.f32.mrb[0].mxu0
      %v7238 = vpop.f32.mrb[0].mxu0
      %v7239 = vadd.f32 0.0, %v7238
      %v7240 = vpop.f32.mrb[0].mxu0
      %7241 = vmatprep.mubr.bf16.mxu0 0
      %7242 = vmatmul.mubr.bf16.gmra.mrb[0].mxu0 %v7086
      %v7243 = vpop.f32.mrb[0].mxu0
      %v7244 = vadd.f32 0.0, %v7243
      %v7245 = vpop.f32.mrb[0].mxu0
      %v7246 = vpop.f32.mrb[0].mxu0
      %v7247 = vadd.f32 0.0, %v7246
      %v7248 = vpop.f32.mrb[0].mxu0
      %7249 = vmatprep.mubr.bf16.mxu0 0
      %7250 = vmatmul.mubr.bf16.gmra.mrb[0].mxu0 %v7087
      %v7251 = vpop.f32.mrb[0].mxu0
      %v7252 = vadd.f32 0.0, %v7251
      %v7253 = vpop.f32.mrb[0].mxu0
      %v7254 = vpop.f32.mrb[0].mxu0
      %v7255 = vadd.f32 0.0, %v7254
      %v7256 = vpop.f32.mrb[0].mxu0
      %7257 = vmatprep.mubr.bf16.mxu0 0
      %7258 = vmatmul.mubr.bf16.gmra.mrb[0].mxu0 %v7088
      %v7259 = vpop.f32.mrb[0].mxu0
      %v7260 = vadd.f32 0.0, %v7259
      %v7261 = vpop.f32.mrb[0].mxu0
      %v7262 = vpop.f32.mrb[0].mxu0
      %v7263 = vadd.f32 0.0, %v7262
      %v7264 = vpop.f32.mrb[0].mxu0
      %7265 = vmatprep.mubr.bf16.mxu0 0
      %7266 = vmatmul.mubr.bf16.gmra.mrb[0].mxu0 %v7089
      %v7267 = vpop.f32.mrb[0].mxu0
      %v7268 = vadd.f32 0.0, %v7267
      %v7269 = vpop.f32.mrb[0].mxu0
      %v7270 = vpop.f32.mrb[0].mxu0
      %v7271 = vadd.f32 0.0, %v7270
      %v7272 = vpop.f32.mrb[0].mxu0
      %7273 = vmatprep.mubr.bf16.mxu0 0
      %7274 = vmatmul.mubr.bf16.gmra.mrb[0].mxu0 %v7090
      %v7275 = vpop.f32.mrb[0].mxu0
      %v7276 = vadd.f32 0.0, %v7275
      %v7277 = vpop.f32.mrb[0].mxu0
      %v7278 = vpop.f32.mrb[0].mxu0
      %v7279 = vadd.f32 0.0, %v7278
      %v7280 = vpop.f32.mrb[0].mxu0
      %7281 = vmatprep.mubr.bf16.mxu0 0
      %7282 = vmatmul.mubr.bf16.gmra.mrb[0].mxu0 %v7091
      %v7283 = vpop.f32.mrb[0].mxu0
      %v7284 = vadd.f32 0.0, %v7283
      %v7285 = vpop.f32.mrb[0].mxu0
      %v7286 = vpop.f32.mrb[0].mxu0
      %v7287 = vadd.f32 0.0, %v7286
      %v7288 = vpop.f32.mrb[0].mxu0
      %7289 = vmatprep.mubr.bf16.mxu0 0
      %7290 = vmatmul.mubr.bf16.gmra.mrb[0].mxu0 %v7092
      %v7291 = vpop.f32.mrb[0].mxu0
      %v7292 = vadd.f32 0.0, %v7291
      %v7293 = vpop.f32.mrb[0].mxu0
      %v7294 = vpop.f32.mrb[0].mxu0
      %v7295 = vadd.f32 0.0, %v7294
      %v7296 = vpop.f32.mrb[0].mxu0
      %7297 = vmatprep.mubr.bf16.mxu0 0
      %7298 = vmatmul.mubr.bf16.gmra.mrb[0].mxu0 %v7093
      %v7299 = vpop.f32.mrb[0].mxu0
      %v7300 = vadd.f32 0.0, %v7299
      %v7301 = vpop.f32.mrb[0].mxu0
      %v7302 = vpop.f32.mrb[0].mxu0
      %v7303 = vadd.f32 0.0, %v7302
      %v7304 = vpop.f32.mrb[0].mxu0
      %7305 = vmatprep.mubr.bf16.mxu0 0
      %7306 = vmatmul.mubr.bf16.gmra.mrb[0].mxu0 %v7094
      %v7307 = vpop.f32.mrb[0].mxu0
      %v7308 = vadd.f32 0.0, %v7307
      %v7309 = vpop.f32.mrb[0].mxu0
      %v7310 = vpop.f32.mrb[0].mxu0
      %v7311 = vadd.f32 0.0, %v7310
      %v7312 = vpop.f32.mrb[0].mxu0
      %7313 = vmatprep.mubr.bf16.mxu0 0
      %7314 = vmatmul.mubr.bf16.gmra.mrb[0].mxu0 %v7095
      %v7315 = vpop.f32.mrb[0].mxu0
      %v7316 = vadd.f32 0.0, %v7315
      %v7317 = vpop.f32.mrb[0].mxu0
      %v7318 = vpop.f32.mrb[0].mxu0
      %v7319 = vadd.f32 0.0, %v7318
      %v7320 = vpop.f32.mrb[0].mxu0
      %7321 = vdwg.mxu0
      %v7322 = vadd.f32 %v7016, %v7196
      %v7323 = vadd.f32 %v7017, %v7199
      %v7324 = vadd.f32 %v7018, %v7204
      %v7325 = vadd.f32 %v7019, %v7207
      %v7326 = vadd.f32 %v7020, %v7212
      %v7327 = vadd.f32 %v7021, %v7215
      %v7328 = vadd.f32 %v7022, %v7220
      %v7329 = vadd.f32 %v7023, %v7223
      %v7330 = vadd.f32 %v7024, %v7228
      %v7331 = vadd.f32 %v7025, %v7231
      %v7332 = vadd.f32 %v7026, %v7236
      %v7333 = vadd.f32 %v7027, %v7239
      %v7334 = vadd.f32 %v7028, %v7244
      %v7335 = vadd.f32 %v7029, %v7247
      %v7336 = vadd.f32 %v7030, %v7252
      %v7337 = vadd.f32 %v7031, %v7255
      %v7338 = vadd.f32 %v7032, %v7260
      %v7339 = vadd.f32 %v7033, %v7263
      %v7340 = vadd.f32 %v7034, %v7268
      %v7341 = vadd.f32 %v7035, %v7271
      %v7342 = vadd.f32 %v7036, %v7276
      %v7343 = vadd.f32 %v7037, %v7279
      %v7344 = vadd.f32 %v7038, %v7284
      %v7345 = vadd.f32 %v7039, %v7287
      %v7346 = vadd.f32 %v7040, %v7292
      %v7347 = vadd.f32 %v7041, %v7295
      %v7348 = vadd.f32 %v7042, %v7300
      %v7349 = vadd.f32 %v7043, %v7303
      %v7350 = vadd.f32 %v7044, %v7308
      %v7351 = vadd.f32 %v7045, %v7311
      %v7352 = vadd.f32 %v7046, %v7316
      %v7353 = vadd.f32 %v7047, %v7319
      %v7354 = vld [vmem:[%s6741 + $0x2] sm:$0xff]
      %v7355 = vld [vmem:[%s6741 + $0xa] sm:$0xff]
      %v7356 = vld [vmem:[%s6741 + $0x1a] sm:$0xff]
      %v7357 = vld [vmem:[%s6741 + $0x22] sm:$0xff]
      %v7358 = vld [vmem:[%s6741 + $0x32] sm:$0xff]
      %v7359 = vld [vmem:[%s6741 + $0x3a] sm:$0xff]
      %v7360 = vld [vmem:[%s6741 + $0x4a] sm:$0xff]
      %v7361 = vld [vmem:[%s6741 + $0x52] sm:$0xff]
      %v7362 = vld [vmem:[%s6741 + $0x62] sm:$0xff]
      %v7363 = vld [vmem:[%s6741 + $0x6a] sm:$0xff]
      %v7364 = vld [vmem:[%s6741 + $0x7a] sm:$0xff]
      %v7365 = vld [vmem:[%s6741 + $0x82] sm:$0xff]
      %v7366 = vld [vmem:[%s6741 + $0x92] sm:$0xff]
      %v7367 = vld [vmem:[%s6741 + $0x9a] sm:$0xff]
      %v7368 = vld [vmem:[%s6741 + $0xaa] sm:$0xff]
      %v7369 = vld [vmem:[%s6741 + $0xb2] sm:$0xff]
      %v7370 = vld [vmem:[%s6741 + $0xc2] sm:$0xff]
      %v7371 = vld [vmem:[%s6741 + $0xca] sm:$0xff]
      %v7372 = vld [vmem:[%s6741 + $0xda] sm:$0xff]
      %v7373 = vld [vmem:[%s6741 + $0xe2] sm:$0xff]
      %v7374 = vld [vmem:[%s6741 + $0xf2] sm:$0xff]
      %v7375 = vld [vmem:[%s6741 + $0xfa] sm:$0xff]
      %v7376 = vld [vmem:[%s6741 + $0x10a] sm:$0xff]
      %v7377 = vld [vmem:[%s6741 + $0x112] sm:$0xff]
      %v7378 = vld [vmem:[%s6741 + $0x122] sm:$0xff]
      %v7379 = vld [vmem:[%s6741 + $0x12a] sm:$0xff]
      %v7380 = vld [vmem:[%s6741 + $0x13a] sm:$0xff]
      %v7381 = vld [vmem:[%s6741 + $0x142] sm:$0xff]
      %v7382 = vld [vmem:[%s6741 + $0x152] sm:$0xff]
      %v7383 = vld [vmem:[%s6741 + $0x15a] sm:$0xff]
      %v7384 = vld [vmem:[%s6741 + $0x16a] sm:$0xff]
      %v7385 = vld [vmem:[%s6741 + $0x172] sm:$0xff]
      %v7386 = vpack.c.bf16 %v7355, %v7354
      %v7387 = vpack.c.bf16 %v7357, %v7356
      %v7388 = vpack.c.bf16 %v7359, %v7358
      %v7389 = vpack.c.bf16 %v7361, %v7360
      %v7390 = vpack.c.bf16 %v7363, %v7362
      %v7391 = vpack.c.bf16 %v7365, %v7364
      %v7392 = vpack.c.bf16 %v7367, %v7366
      %v7393 = vpack.c.bf16 %v7369, %v7368
      %v7394 = vpack.c.bf16 %v7371, %v7370
      %v7395 = vpack.c.bf16 %v7373, %v7372
      %v7396 = vpack.c.bf16 %v7375, %v7374
      %v7397 = vpack.c.bf16 %v7377, %v7376
      %v7398 = vpack.c.bf16 %v7379, %v7378
      %v7399 = vpack.c.bf16 %v7381, %v7380
      %v7400 = vpack.c.bf16 %v7383, %v7382
      %v7401 = vpack.c.bf16 %v7385, %v7384
      %s7402 = scalar_lea.vmem %s3, 512
      %v7403 = vld [vmem:[%s7402] sm:$0xf]
      %v7404 = vld [vmem:[%s7402 + $0x4] sm:$0xf]
      %v7405 = vld [vmem:[%s7402 + $0x8] sm:$0xf]
      %v7406 = vld [vmem:[%s7402 + $0xc] sm:$0xf]
      %v7407 = vld [vmem:[%s7402 + $0x10] sm:$0xf]
      %v7408 = vld [vmem:[%s7402 + $0x14] sm:$0xf]
      %v7409 = vld [vmem:[%s7402 + $0x18] sm:$0xf]
      %v7410 = vld [vmem:[%s7402 + $0x1c] sm:$0xf]
      %v7411 = vld [vmem:[%s7402 + $0x20] sm:$0xf]
      %v7412 = vld [vmem:[%s7402 + $0x24] sm:$0xf]
      %v7413 = vld [vmem:[%s7402 + $0x28] sm:$0xf]
      %v7414 = vld [vmem:[%s7402 + $0x2c] sm:$0xf]
      %v7415 = vld [vmem:[%s7402 + $0x30] sm:$0xf]
      %v7416 = vld [vmem:[%s7402 + $0x34] sm:$0xf]
      %v7417 = vld [vmem:[%s7402 + $0x38] sm:$0xf]
      %v7418 = vld [vmem:[%s7402 + $0x3c] sm:$0xf]
      %v7435 = vunpack.c.l.b16 %v7403
      %v7436 = vunpack.c.l.b16 %v7404
      %v7437 = vunpack.c.l.b16 %v7405
      %v7438 = vunpack.c.l.b16 %v7406
      %v7439 = vunpack.c.l.b16 %v7407
      %v7440 = vunpack.c.l.b16 %v7408
      %v7441 = vunpack.c.l.b16 %v7409
      %v7442 = vunpack.c.l.b16 %v7410
      %v7443 = vunpack.c.l.b16 %v7411
      %v7444 = vunpack.c.l.b16 %v7412
      %v7445 = vunpack.c.l.b16 %v7413
      %v7446 = vunpack.c.l.b16 %v7414
      %v7447 = vunpack.c.l.b16 %v7415
      %v7448 = vunpack.c.l.b16 %v7416
      %v7449 = vunpack.c.l.b16 %v7417
      %v7450 = vunpack.c.l.b16 %v7418
      %v7451 = vpack.c.b16 %v7436, %v7435
      %v7452 = vpack.c.b16 %v7438, %v7437
      %v7453 = vpack.c.b16 %v7440, %v7439
      %v7454 = vpack.c.b16 %v7442, %v7441
      %v7455 = vpack.c.b16 %v7444, %v7443
      %v7456 = vpack.c.b16 %v7446, %v7445
      %v7457 = vpack.c.b16 %v7448, %v7447
      %v7458 = vpack.c.b16 %v7450, %v7449
      %7467 = vmatprep.subr.bf16.mxu0 0
      %7468 = vmatpush1.bf16.msra.mxu0 %v7451
      %7469 = vmatprep.subr.bf16.mxu0 0
      %7470 = vmatpush1.bf16.msra.mxu0 %v7452
      %7471 = vmatprep.subr.bf16.mxu0 0
      %7472 = vmatpush1.bf16.msra.mxu0 %v7453
      %7473 = vmatprep.subr.bf16.mxu0 0
      %7474 = vmatpush1.bf16.msra.mxu0 %v7454
      %7475 = vmatprep.subr.bf16.mxu0 0
      %7476 = vmatpush1.bf16.msra.mxu0 %v7455
      %7477 = vmatprep.subr.bf16.mxu0 0
      %7478 = vmatpush1.bf16.msra.mxu0 %v7456
      %7479 = vmatprep.subr.bf16.mxu0 0
      %7480 = vmatpush1.bf16.msra.mxu0 %v7457
      %7481 = vmatprep.subr.bf16.mxu0 0
      %7482 = vmatpush1.bf16.msra.mxu0 %v7458
      %7483 = vmatprep.subr.bf16.mxu0 0
      %7484 = vmatpush1.bf16.msra.mxu0 0
      %7485 = vmatprep.subr.bf16.mxu0 0
      %7486 = vmatpush1.bf16.msra.mxu0 0
      %7487 = vmatprep.subr.bf16.mxu0 0
      %7488 = vmatpush1.bf16.msra.mxu0 0
      %7489 = vmatprep.subr.bf16.mxu0 0
      %7490 = vmatpush1.bf16.msra.mxu0 0
      %7491 = vmatprep.subr.bf16.mxu0 0
      %7492 = vmatpush1.bf16.msra.mxu0 0
      %7493 = vmatprep.subr.bf16.mxu0 0
      %7494 = vmatpush1.bf16.msra.mxu0 0
      %7495 = vmatprep.subr.bf16.mxu0 0
      %7496 = vmatpush1.bf16.msra.mxu0 0
      %7497 = vmatprep.subr.bf16.mxu0 0
      %7498 = vmatpush1.bf16.msra.mxu0 0
      %7499 = vmatprep.mubr.bf16.mxu0 0
      %7500 = vmatmul.mubr.bf16.gmra.mrb[0].mxu0 %v7386
      %v7501 = vpop.f32.mrb[0].mxu0
      %v7502 = vadd.f32 0.0, %v7501
      %v7503 = vpop.f32.mrb[0].mxu0
      %v7504 = vpop.f32.mrb[0].mxu0
      %v7505 = vadd.f32 0.0, %v7504
      %v7506 = vpop.f32.mrb[0].mxu0
      %7507 = vmatprep.mubr.bf16.mxu0 0
      %7508 = vmatmul.mubr.bf16.gmra.mrb[0].mxu0 %v7387
      %v7509 = vpop.f32.mrb[0].mxu0
      %v7510 = vadd.f32 0.0, %v7509
      %v7511 = vpop.f32.mrb[0].mxu0
      %v7512 = vpop.f32.mrb[0].mxu0
      %v7513 = vadd.f32 0.0, %v7512
      %v7514 = vpop.f32.mrb[0].mxu0
      %7515 = vmatprep.mubr.bf16.mxu0 0
      %7516 = vmatmul.mubr.bf16.gmra.mrb[0].mxu0 %v7388
      %v7517 = vpop.f32.mrb[0].mxu0
      %v7518 = vadd.f32 0.0, %v7517
      %v7519 = vpop.f32.mrb[0].mxu0
      %v7520 = vpop.f32.mrb[0].mxu0
      %v7521 = vadd.f32 0.0, %v7520
      %v7522 = vpop.f32.mrb[0].mxu0
      %7523 = vmatprep.mubr.bf16.mxu0 0
      %7524 = vmatmul.mubr.bf16.gmra.mrb[0].mxu0 %v7389
      %v7525 = vpop.f32.mrb[0].mxu0
      %v7526 = vadd.f32 0.0, %v7525
      %v7527 = vpop.f32.mrb[0].mxu0
      %v7528 = vpop.f32.mrb[0].mxu0
      %v7529 = vadd.f32 0.0, %v7528
      %v7530 = vpop.f32.mrb[0].mxu0
      %7531 = vmatprep.mubr.bf16.mxu0 0
      %7532 = vmatmul.mubr.bf16.gmra.mrb[0].mxu0 %v7390
      %v7533 = vpop.f32.mrb[0].mxu0
      %v7534 = vadd.f32 0.0, %v7533
      %v7535 = vpop.f32.mrb[0].mxu0
      %v7536 = vpop.f32.mrb[0].mxu0
      %v7537 = vadd.f32 0.0, %v7536
      %v7538 = vpop.f32.mrb[0].mxu0
      %7539 = vmatprep.mubr.bf16.mxu0 0
      %7540 = vmatmul.mubr.bf16.gmra.mrb[0].mxu0 %v7391
      %v7541 = vpop.f32.mrb[0].mxu0
      %v7542 = vadd.f32 0.0, %v7541
      %v7543 = vpop.f32.mrb[0].mxu0
      %v7544 = vpop.f32.mrb[0].mxu0
      %v7545 = vadd.f32 0.0, %v7544
      %v7546 = vpop.f32.mrb[0].mxu0
      %7547 = vmatprep.mubr.bf16.mxu0 0
      %7548 = vmatmul.mubr.bf16.gmra.mrb[0].mxu0 %v7392
      %v7549 = vpop.f32.mrb[0].mxu0
      %v7550 = vadd.f32 0.0, %v7549
      %v7551 = vpop.f32.mrb[0].mxu0
      %v7552 = vpop.f32.mrb[0].mxu0
      %v7553 = vadd.f32 0.0, %v7552
      %v7554 = vpop.f32.mrb[0].mxu0
      %7555 = vmatprep.mubr.bf16.mxu0 0
      %7556 = vmatmul.mubr.bf16.gmra.mrb[0].mxu0 %v7393
      %v7557 = vpop.f32.mrb[0].mxu0
      %v7558 = vadd.f32 0.0, %v7557
      %v7559 = vpop.f32.mrb[0].mxu0
      %v7560 = vpop.f32.mrb[0].mxu0
      %v7561 = vadd.f32 0.0, %v7560
      %v7562 = vpop.f32.mrb[0].mxu0
      %7563 = vmatprep.mubr.bf16.mxu0 0
      %7564 = vmatmul.mubr.bf16.gmra.mrb[0].mxu0 %v7394
      %v7565 = vpop.f32.mrb[0].mxu0
      %v7566 = vadd.f32 0.0, %v7565
      %v7567 = vpop.f32.mrb[0].mxu0
      %v7568 = vpop.f32.mrb[0].mxu0
      %v7569 = vadd.f32 0.0, %v7568
      %v7570 = vpop.f32.mrb[0].mxu0
      %7571 = vmatprep.mubr.bf16.mxu0 0
      %7572 = vmatmul.mubr.bf16.gmra.mrb[0].mxu0 %v7395
      %v7573 = vpop.f32.mrb[0].mxu0
      %v7574 = vadd.f32 0.0, %v7573
      %v7575 = vpop.f32.mrb[0].mxu0
      %v7576 = vpop.f32.mrb[0].mxu0
      %v7577 = vadd.f32 0.0, %v7576
      %v7578 = vpop.f32.mrb[0].mxu0
      %7579 = vmatprep.mubr.bf16.mxu0 0
      %7580 = vmatmul.mubr.bf16.gmra.mrb[0].mxu0 %v7396
      %v7581 = vpop.f32.mrb[0].mxu0
      %v7582 = vadd.f32 0.0, %v7581
      %v7583 = vpop.f32.mrb[0].mxu0
      %v7584 = vpop.f32.mrb[0].mxu0
      %v7585 = vadd.f32 0.0, %v7584
      %v7586 = vpop.f32.mrb[0].mxu0
      %7587 = vmatprep.mubr.bf16.mxu0 0
      %7588 = vmatmul.mubr.bf16.gmra.mrb[0].mxu0 %v7397
      %v7589 = vpop.f32.mrb[0].mxu0
      %v7590 = vadd.f32 0.0, %v7589
      %v7591 = vpop.f32.mrb[0].mxu0
      %v7592 = vpop.f32.mrb[0].mxu0
      %v7593 = vadd.f32 0.0, %v7592
      %v7594 = vpop.f32.mrb[0].mxu0
      %7595 = vmatprep.mubr.bf16.mxu0 0
      %7596 = vmatmul.mubr.bf16.gmra.mrb[0].mxu0 %v7398
      %v7597 = vpop.f32.mrb[0].mxu0
      %v7598 = vadd.f32 0.0, %v7597
      %v7599 = vpop.f32.mrb[0].mxu0
      %v7600 = vpop.f32.mrb[0].mxu0
      %v7601 = vadd.f32 0.0, %v7600
      %v7602 = vpop.f32.mrb[0].mxu0
      %7603 = vmatprep.mubr.bf16.mxu0 0
      %7604 = vmatmul.mubr.bf16.gmra.mrb[0].mxu0 %v7399
      %v7605 = vpop.f32.mrb[0].mxu0
      %v7606 = vadd.f32 0.0, %v7605
      %v7607 = vpop.f32.mrb[0].mxu0
      %v7608 = vpop.f32.mrb[0].mxu0
      %v7609 = vadd.f32 0.0, %v7608
      %v7610 = vpop.f32.mrb[0].mxu0
      %7611 = vmatprep.mubr.bf16.mxu0 0
      %7612 = vmatmul.mubr.bf16.gmra.mrb[0].mxu0 %v7400
      %v7613 = vpop.f32.mrb[0].mxu0
      %v7614 = vadd.f32 0.0, %v7613
      %v7615 = vpop.f32.mrb[0].mxu0
      %v7616 = vpop.f32.mrb[0].mxu0
      %v7617 = vadd.f32 0.0, %v7616
      %v7618 = vpop.f32.mrb[0].mxu0
      %7619 = vmatprep.mubr.bf16.mxu0 0
      %7620 = vmatmul.mubr.bf16.gmra.mrb[0].mxu0 %v7401
      %v7621 = vpop.f32.mrb[0].mxu0
      %v7622 = vadd.f32 0.0, %v7621
      %v7623 = vpop.f32.mrb[0].mxu0
      %v7624 = vpop.f32.mrb[0].mxu0
      %v7625 = vadd.f32 0.0, %v7624
      %v7626 = vpop.f32.mrb[0].mxu0
      %7627 = vdwg.mxu0
      %v7628 = vadd.f32 %v7322, %v7502
      %v7629 = vadd.f32 %v7323, %v7505
      %v7630 = vadd.f32 %v7324, %v7510
      %v7631 = vadd.f32 %v7325, %v7513
      %v7632 = vadd.f32 %v7326, %v7518
      %v7633 = vadd.f32 %v7327, %v7521
      %v7634 = vadd.f32 %v7328, %v7526
      %v7635 = vadd.f32 %v7329, %v7529
      %v7636 = vadd.f32 %v7330, %v7534
      %v7637 = vadd.f32 %v7331, %v7537
      %v7638 = vadd.f32 %v7332, %v7542
      %v7639 = vadd.f32 %v7333, %v7545
      %v7640 = vadd.f32 %v7334, %v7550
      %v7641 = vadd.f32 %v7335, %v7553
      %v7642 = vadd.f32 %v7336, %v7558
      %v7643 = vadd.f32 %v7337, %v7561
      %v7644 = vadd.f32 %v7338, %v7566
      %v7645 = vadd.f32 %v7339, %v7569
      %v7646 = vadd.f32 %v7340, %v7574
      %v7647 = vadd.f32 %v7341, %v7577
      %v7648 = vadd.f32 %v7342, %v7582
      %v7649 = vadd.f32 %v7343, %v7585
      %v7650 = vadd.f32 %v7344, %v7590
      %v7651 = vadd.f32 %v7345, %v7593
      %v7652 = vadd.f32 %v7346, %v7598
      %v7653 = vadd.f32 %v7347, %v7601
      %v7654 = vadd.f32 %v7348, %v7606
      %v7655 = vadd.f32 %v7349, %v7609
      %v7656 = vadd.f32 %v7350, %v7614
      %v7657 = vadd.f32 %v7351, %v7617
      %v7658 = vadd.f32 %v7352, %v7622
      %v7659 = vadd.f32 %v7353, %v7625
      %v7660 = vld [vmem:[%s5] sm:$0x3]
      %v7662 = vsel %vm788, %v7660, 0
      %7664 = vmatprep.subr.bf16.mxu0 0
      %7665 = vmatpush1.bf16.msra.mxu0 %v7662
      %7666 = vmatprep.subr.bf16.mxu0 0
      %7667 = vmatpush1.bf16.msra.mxu0 0
      %7668 = vmatprep.subr.bf16.mxu0 0
      %7669 = vmatpush1.bf16.msra.mxu0 0
      %7670 = vmatprep.subr.bf16.mxu0 0
      %7671 = vmatpush1.bf16.msra.mxu0 0
      %7672 = vmatprep.subr.bf16.mxu0 0
      %7673 = vmatpush1.bf16.msra.mxu0 0
      %7674 = vmatprep.subr.bf16.mxu0 0
      %7675 = vmatpush1.bf16.msra.mxu0 0
      %7676 = vmatprep.subr.bf16.mxu0 0
      %7677 = vmatpush1.bf16.msra.mxu0 0
      %7678 = vmatprep.subr.bf16.mxu0 0
      %7679 = vmatpush1.bf16.msra.mxu0 0
      %7680 = vmatprep.subr.bf16.mxu0 0
      %7681 = vmatpush1.bf16.msra.mxu0 0
      %7682 = vmatprep.subr.bf16.mxu0 0
      %7683 = vmatpush1.bf16.msra.mxu0 0
      %7684 = vmatprep.subr.bf16.mxu0 0
      %7685 = vmatpush1.bf16.msra.mxu0 0
      %7686 = vmatprep.subr.bf16.mxu0 0
      %7687 = vmatpush1.bf16.msra.mxu0 0
      %7688 = vmatprep.subr.bf16.mxu0 0
      %7689 = vmatpush1.bf16.msra.mxu0 0
      %7690 = vmatprep.subr.bf16.mxu0 0
      %7691 = vmatpush1.bf16.msra.mxu0 0
      %7692 = vmatprep.subr.bf16.mxu0 0
      %7693 = vmatpush1.bf16.msra.mxu0 0
      %7694 = vmatprep.subr.bf16.mxu0 0
      %7695 = vmatpush1.bf16.msra.mxu0 0
      %7696 = vmatprep.mubr.bf16.mxu0 0
      %7697 = vmatmul.mubr.bf16.gmra.mrb[0].mxu0 %v2544
      %v7698 = vpop.f32.mrb[0].mxu0
      %v7699 = vadd.f32 0.0, %v7698
      %v7700 = vpop.f32.mrb[0].mxu0
      %v7701 = vpop.f32.mrb[0].mxu0
      %v7702 = vadd.f32 0.0, %v7701
      %v7703 = vpop.f32.mrb[0].mxu0
      %7704 = vmatprep.mubr.bf16.mxu0 0
      %7705 = vmatmul.mubr.bf16.gmra.mrb[0].mxu0 %v2547
      %v7706 = vpop.f32.mrb[0].mxu0
      %v7707 = vadd.f32 0.0, %v7706
      %v7708 = vpop.f32.mrb[0].mxu0
      %v7709 = vpop.f32.mrb[0].mxu0
      %v7710 = vadd.f32 0.0, %v7709
      %v7711 = vpop.f32.mrb[0].mxu0
      %7712 = vmatprep.mubr.bf16.mxu0 0
      %7713 = vmatmul.mubr.bf16.gmra.mrb[0].mxu0 %v2550
      %v7714 = vpop.f32.mrb[0].mxu0
      %v7715 = vadd.f32 0.0, %v7714
      %v7716 = vpop.f32.mrb[0].mxu0
      %v7717 = vpop.f32.mrb[0].mxu0
      %v7718 = vadd.f32 0.0, %v7717
      %v7719 = vpop.f32.mrb[0].mxu0
      %7720 = vmatprep.mubr.bf16.mxu0 0
      %7721 = vmatmul.mubr.bf16.gmra.mrb[0].mxu0 %v2553
      %v7722 = vpop.f32.mrb[0].mxu0
      %v7723 = vadd.f32 0.0, %v7722
      %v7724 = vpop.f32.mrb[0].mxu0
      %v7725 = vpop.f32.mrb[0].mxu0
      %v7726 = vadd.f32 0.0, %v7725
      %v7727 = vpop.f32.mrb[0].mxu0
      %7728 = vmatprep.mubr.bf16.mxu0 0
      %7729 = vmatmul.mubr.bf16.gmra.mrb[0].mxu0 %v2556
      %v7730 = vpop.f32.mrb[0].mxu0
      %v7731 = vadd.f32 0.0, %v7730
      %v7732 = vpop.f32.mrb[0].mxu0
      %v7733 = vpop.f32.mrb[0].mxu0
      %v7734 = vadd.f32 0.0, %v7733
      %v7735 = vpop.f32.mrb[0].mxu0
      %7736 = vmatprep.mubr.bf16.mxu0 0
      %7737 = vmatmul.mubr.bf16.gmra.mrb[0].mxu0 %v2559
      %v7738 = vpop.f32.mrb[0].mxu0
      %v7739 = vadd.f32 0.0, %v7738
      %v7740 = vpop.f32.mrb[0].mxu0
      %v7741 = vpop.f32.mrb[0].mxu0
      %v7742 = vadd.f32 0.0, %v7741
      %v7743 = vpop.f32.mrb[0].mxu0
      %7744 = vmatprep.mubr.bf16.mxu0 0
      %7745 = vmatmul.mubr.bf16.gmra.mrb[0].mxu0 %v2562
      %v7746 = vpop.f32.mrb[0].mxu0
      %v7747 = vadd.f32 0.0, %v7746
      %v7748 = vpop.f32.mrb[0].mxu0
      %v7749 = vpop.f32.mrb[0].mxu0
      %v7750 = vadd.f32 0.0, %v7749
      %v7751 = vpop.f32.mrb[0].mxu0
      %7752 = vmatprep.mubr.bf16.mxu0 0
      %7753 = vmatmul.mubr.bf16.gmra.mrb[0].mxu0 %v2565
      %v7754 = vpop.f32.mrb[0].mxu0
      %v7755 = vadd.f32 0.0, %v7754
      %v7756 = vpop.f32.mrb[0].mxu0
      %v7757 = vpop.f32.mrb[0].mxu0
      %v7758 = vadd.f32 0.0, %v7757
      %v7759 = vpop.f32.mrb[0].mxu0
      %7760 = vmatprep.mubr.bf16.mxu0 0
      %7761 = vmatmul.mubr.bf16.gmra.mrb[0].mxu0 %v2568
      %v7762 = vpop.f32.mrb[0].mxu0
      %v7763 = vadd.f32 0.0, %v7762
      %v7764 = vpop.f32.mrb[0].mxu0
      %v7765 = vpop.f32.mrb[0].mxu0
      %v7766 = vadd.f32 0.0, %v7765
      %v7767 = vpop.f32.mrb[0].mxu0
      %7768 = vmatprep.mubr.bf16.mxu0 0
      %7769 = vmatmul.mubr.bf16.gmra.mrb[0].mxu0 %v2571
      %v7770 = vpop.f32.mrb[0].mxu0
      %v7771 = vadd.f32 0.0, %v7770
      %v7772 = vpop.f32.mrb[0].mxu0
      %v7773 = vpop.f32.mrb[0].mxu0
      %v7774 = vadd.f32 0.0, %v7773
      %v7775 = vpop.f32.mrb[0].mxu0
      %7776 = vmatprep.mubr.bf16.mxu0 0
      %7777 = vmatmul.mubr.bf16.gmra.mrb[0].mxu0 %v2574
      %v7778 = vpop.f32.mrb[0].mxu0
      %v7779 = vadd.f32 0.0, %v7778
      %v7780 = vpop.f32.mrb[0].mxu0
      %v7781 = vpop.f32.mrb[0].mxu0
      %v7782 = vadd.f32 0.0, %v7781
      %v7783 = vpop.f32.mrb[0].mxu0
      %7784 = vmatprep.mubr.bf16.mxu0 0
      %7785 = vmatmul.mubr.bf16.gmra.mrb[0].mxu0 %v2577
      %v7786 = vpop.f32.mrb[0].mxu0
      %v7787 = vadd.f32 0.0, %v7786
      %v7788 = vpop.f32.mrb[0].mxu0
      %v7789 = vpop.f32.mrb[0].mxu0
      %v7790 = vadd.f32 0.0, %v7789
      %v7791 = vpop.f32.mrb[0].mxu0
      %7792 = vmatprep.mubr.bf16.mxu0 0
      %7793 = vmatmul.mubr.bf16.gmra.mrb[0].mxu0 %v2580
      %v7794 = vpop.f32.mrb[0].mxu0
      %v7795 = vadd.f32 0.0, %v7794
      %v7796 = vpop.f32.mrb[0].mxu0
      %v7797 = vpop.f32.mrb[0].mxu0
      %v7798 = vadd.f32 0.0, %v7797
      %v7799 = vpop.f32.mrb[0].mxu0
      %7800 = vmatprep.mubr.bf16.mxu0 0
      %7801 = vmatmul.mubr.bf16.gmra.mrb[0].mxu0 %v2583
      %v7802 = vpop.f32.mrb[0].mxu0
      %v7803 = vadd.f32 0.0, %v7802
      %v7804 = vpop.f32.mrb[0].mxu0
      %v7805 = vpop.f32.mrb[0].mxu0
      %v7806 = vadd.f32 0.0, %v7805
      %v7807 = vpop.f32.mrb[0].mxu0
      %7808 = vmatprep.mubr.bf16.mxu0 0
      %7809 = vmatmul.mubr.bf16.gmra.mrb[0].mxu0 %v2586
      %v7810 = vpop.f32.mrb[0].mxu0
      %v7811 = vadd.f32 0.0, %v7810
      %v7812 = vpop.f32.mrb[0].mxu0
      %v7813 = vpop.f32.mrb[0].mxu0
      %v7814 = vadd.f32 0.0, %v7813
      %v7815 = vpop.f32.mrb[0].mxu0
      %7816 = vmatprep.mubr.bf16.mxu0 0
      %7817 = vmatmul.mubr.bf16.gmra.mrb[0].mxu0 %v2589
      %v7818 = vpop.f32.mrb[0].mxu0
      %v7819 = vadd.f32 0.0, %v7818
      %v7820 = vpop.f32.mrb[0].mxu0
      %v7821 = vpop.f32.mrb[0].mxu0
      %v7822 = vadd.f32 0.0, %v7821
      %v7823 = vpop.f32.mrb[0].mxu0
      %7824 = vdwg.mxu0
      %v7825 = vadd.f32 %v7628, %v7699
      %v7826 = vadd.f32 %v7629, %v7702
      %v7827 = vadd.f32 %v7630, %v7707
      %v7828 = vadd.f32 %v7631, %v7710
      %v7829 = vadd.f32 %v7632, %v7715
      %v7830 = vadd.f32 %v7633, %v7718
      %v7831 = vadd.f32 %v7634, %v7723
      %v7832 = vadd.f32 %v7635, %v7726
      %v7833 = vadd.f32 %v7636, %v7731
      %v7834 = vadd.f32 %v7637, %v7734
      %v7835 = vadd.f32 %v7638, %v7739
      %v7836 = vadd.f32 %v7639, %v7742
      %v7837 = vadd.f32 %v7640, %v7747
      %v7838 = vadd.f32 %v7641, %v7750
      %v7839 = vadd.f32 %v7642, %v7755
      %v7840 = vadd.f32 %v7643, %v7758
      %v7841 = vadd.f32 %v7644, %v7763
      %v7842 = vadd.f32 %v7645, %v7766
      %v7843 = vadd.f32 %v7646, %v7771
      %v7844 = vadd.f32 %v7647, %v7774
      %v7845 = vadd.f32 %v7648, %v7779
      %v7846 = vadd.f32 %v7649, %v7782
      %v7847 = vadd.f32 %v7650, %v7787
      %v7848 = vadd.f32 %v7651, %v7790
      %v7849 = vadd.f32 %v7652, %v7795
      %v7850 = vadd.f32 %v7653, %v7798
      %v7851 = vadd.f32 %v7654, %v7803
      %v7852 = vadd.f32 %v7655, %v7806
      %v7853 = vadd.f32 %v7656, %v7811
      %v7854 = vadd.f32 %v7657, %v7814
      %v7855 = vadd.f32 %v7658, %v7819
      %v7856 = vadd.f32 %v7659, %v7822
      %v7857 = vld [vmem:[%s4] sm:$0x1]
      %v7859 = vlaneseq
      %v7860 = vshrl.u32 %v7859, 7
      %v7861 = vsub.s32 0, %v7860
      %v7862 = vrot.slane %v7857, %v7861
      %v7864 = vadd.f32 %v7825, %v7862
      %v7865 = vadd.f32 %v7826, %v7862
      %v7866 = vadd.f32 %v7827, %v7862
      %v7867 = vadd.f32 %v7828, %v7862
      %v7868 = vadd.f32 %v7829, %v7862
      %v7869 = vadd.f32 %v7830, %v7862
      %v7870 = vadd.f32 %v7831, %v7862
      %v7871 = vadd.f32 %v7832, %v7862
      %v7872 = vadd.f32 %v7833, %v7862
      %v7873 = vadd.f32 %v7834, %v7862
      %v7874 = vadd.f32 %v7835, %v7862
      %v7875 = vadd.f32 %v7836, %v7862
      %v7876 = vadd.f32 %v7837, %v7862
      %v7877 = vadd.f32 %v7838, %v7862
      %v7878 = vadd.f32 %v7839, %v7862
      %v7879 = vadd.f32 %v7840, %v7862
      %v7880 = vadd.f32 %v7841, %v7862
      %v7881 = vadd.f32 %v7842, %v7862
      %v7882 = vadd.f32 %v7843, %v7862
      %v7883 = vadd.f32 %v7844, %v7862
      %v7884 = vadd.f32 %v7845, %v7862
      %v7885 = vadd.f32 %v7846, %v7862
      %v7886 = vadd.f32 %v7847, %v7862
      %v7887 = vadd.f32 %v7848, %v7862
      %v7888 = vadd.f32 %v7849, %v7862
      %v7889 = vadd.f32 %v7850, %v7862
      %v7890 = vadd.f32 %v7851, %v7862
      %v7891 = vadd.f32 %v7852, %v7862
      %v7892 = vadd.f32 %v7853, %v7862
      %v7893 = vadd.f32 %v7854, %v7862
      %v7894 = vadd.f32 %v7855, %v7862
      %v7895 = vadd.f32 %v7856, %v7862
      %v7896 = vmax.f32 %v7864, 0.0
      %v7897 = vmax.f32 %v7865, 0.0
      %v7898 = vmax.f32 %v7866, 0.0
      %v7899 = vmax.f32 %v7867, 0.0
      %v7900 = vmax.f32 %v7868, 0.0
      %v7901 = vmax.f32 %v7869, 0.0
      %v7902 = vmax.f32 %v7870, 0.0
      %v7903 = vmax.f32 %v7871, 0.0
      %v7904 = vmax.f32 %v7872, 0.0
      %v7905 = vmax.f32 %v7873, 0.0
      %v7906 = vmax.f32 %v7874, 0.0
      %v7907 = vmax.f32 %v7875, 0.0
      %v7908 = vmax.f32 %v7876, 0.0
      %v7909 = vmax.f32 %v7877, 0.0
      %v7910 = vmax.f32 %v7878, 0.0
      %v7911 = vmax.f32 %v7879, 0.0
      %v7912 = vmax.f32 %v7880, 0.0
      %v7913 = vmax.f32 %v7881, 0.0
      %v7914 = vmax.f32 %v7882, 0.0
      %v7915 = vmax.f32 %v7883, 0.0
      %v7916 = vmax.f32 %v7884, 0.0
      %v7917 = vmax.f32 %v7885, 0.0
      %v7918 = vmax.f32 %v7886, 0.0
      %v7919 = vmax.f32 %v7887, 0.0
      %v7920 = vmax.f32 %v7888, 0.0
      %v7921 = vmax.f32 %v7889, 0.0
      %v7922 = vmax.f32 %v7890, 0.0
      %v7923 = vmax.f32 %v7891, 0.0
      %v7924 = vmax.f32 %v7892, 0.0
      %v7925 = vmax.f32 %v7893, 0.0
      %v7926 = vmax.f32 %v7894, 0.0
      %v7927 = vmax.f32 %v7895, 0.0
      %7928 = vst [vmem:[%s251] sm:$0xff] %v7896
      %7929 = vst [vmem:[%s251 + $0x8] sm:$0xff] %v7897
      %7930 = vst [vmem:[%s251 + $0x10] sm:$0xff] %v7898
      %7931 = vst [vmem:[%s251 + $0x18] sm:$0xff] %v7899
      %7932 = vst [vmem:[%s251 + $0x20] sm:$0xff] %v7900
      %7933 = vst [vmem:[%s251 + $0x28] sm:$0xff] %v7901
      %7934 = vst [vmem:[%s251 + $0x30] sm:$0xff] %v7902
      %7935 = vst [vmem:[%s251 + $0x38] sm:$0xff] %v7903
      %7936 = vst [vmem:[%s251 + $0x40] sm:$0xff] %v7904
      %7937 = vst [vmem:[%s251 + $0x48] sm:$0xff] %v7905
      %7938 = vst [vmem:[%s251 + $0x50] sm:$0xff] %v7906
      %7939 = vst [vmem:[%s251 + $0x58] sm:$0xff] %v7907
      %7940 = vst [vmem:[%s251 + $0x60] sm:$0xff] %v7908
      %7941 = vst [vmem:[%s251 + $0x68] sm:$0xff] %v7909
      %7942 = vst [vmem:[%s251 + $0x70] sm:$0xff] %v7910
      %7943 = vst [vmem:[%s251 + $0x78] sm:$0xff] %v7911
      %7944 = vst [vmem:[%s251 + $0x80] sm:$0xff] %v7912
      %7945 = vst [vmem:[%s251 + $0x88] sm:$0xff] %v7913
      %7946 = vst [vmem:[%s251 + $0x90] sm:$0xff] %v7914
      %7947 = vst [vmem:[%s251 + $0x98] sm:$0xff] %v7915
      %7948 = vst [vmem:[%s251 + $0xa0] sm:$0xff] %v7916
      %7949 = vst [vmem:[%s251 + $0xa8] sm:$0xff] %v7917
      %7950 = vst [vmem:[%s251 + $0xb0] sm:$0xff] %v7918
      %7951 = vst [vmem:[%s251 + $0xb8] sm:$0xff] %v7919
      %7952 = vst [vmem:[%s251 + $0xc0] sm:$0xff] %v7920
      %7953 = vst [vmem:[%s251 + $0xc8] sm:$0xff] %v7921
      %7954 = vst [vmem:[%s251 + $0xd0] sm:$0xff] %v7922
      %7955 = vst [vmem:[%s251 + $0xd8] sm:$0xff] %v7923
      %7956 = vst [vmem:[%s251 + $0xe0] sm:$0xff] %v7924
      %7957 = vst [vmem:[%s251 + $0xe8] sm:$0xff] %v7925
      %7958 = vst [vmem:[%s251 + $0xf0] sm:$0xff] %v7926
      %7959 = vst [vmem:[%s251 + $0xf8] sm:$0xff] %v7927
      %p7960 = scmp.lt.s32.totalorder %s17, 1
      %s7961 = scalar_select %p7960, %s17, 1
      %s7962 = smul.addr %s7961, 32
      %s7963 = smul.addr %s7962, 8
      %s7964 = scalar_lea.vmem %s6, %s7963
      // Predicated region
      $region45: #{basic_res_block_forward.1} parent=43 // pred_check
        %p7965 = pneg %p166
      $region46: #{basic_res_block_forward.1} parent=43 // pred_check_branch
        %7967 = sbr.rel (%p7965) target = $region48
      $region47: #{basic_res_block_forward.1} parent=43 // pred_region
        _
      $region48: #{basic_res_block_forward.1} parent=43 // pred_fallthru
        _
    $region44: #{basic_res_block_forward.1} parent=5 // pred_fallthru
      _
    %p7968 = scmp.le.s32.totalorder 2, %s12
    // Predicated region
    $region49: #{basic_res_block_forward.1} parent=5 // pred_check
      %p7969 = pneg %p7968
    $region50: #{basic_res_block_forward.1} parent=5 // pred_check_branch
      %7971 = sbr.rel (%p7969) target = $region52
    $region51: #{basic_res_block_forward.1} parent=5 // pred_region
      %s7972 = ssub.s32 %s12, 2
      // Predicated region
      $region53: #{basic_res_block_forward.1} parent=51 // pred_check
        %p7973 = pneg %p172
      $region54: #{basic_res_block_forward.1} parent=51 // pred_check_branch
        %7975 = sbr.rel (%p7973) target = $region56
      $region55: #{basic_res_block_forward.1} parent=51 // pred_region
        %p7976 = scmp.lt.s32.totalorder %s18, 1
        %s7977 = scalar_select %p7976, %s18, 1
        %s7978 = smul.addr %s7977, 32
        %s7979 = smul.addr %s7978, 8
        %s7980 = scalar_lea.vmem %s6, %s7979
      $region56: #{basic_res_block_forward.1} parent=51 // pred_fallthru
        _
    $region52: #{basic_res_block_forward.1} parent=5 // pred_fallthru
      _
  $region6: #{basic_res_block_forward.1} parent=0 // loop_footer
    %s16 = sadd.s32 1, %s12
  $region7: #{basic_res_block_forward.1} parent=0 // loop_footer_branch
    %11 = sbr.rel target = $region3
  $region8: #{basic_res_block_forward.1} parent=0 // loop_exit
    _

</llo_original>
